<compile_context>
chip_gen: v7x
topology: tpu7x:2x2x1
jax: 0.10.0
libtpu: 0.0.40
codegen_flags: <defaults>
</compile_context>

<pallas_src>
import jax
import jax.numpy as jnp
from jax.experimental import pallas as pl
from jax.experimental.pallas import tpu as pltpu


LRELU_SLOPE = 0.1
VMEM_LIMIT_BYTES = 32 * 1024 * 1024   # explicit scoped-VMEM budget (safe on v5e/v6e/v7x)
DEFAULT_TM = 256                      # row tile: multiple of 8/128, MXU friendly


def _round_up(x, m):
    return (x + m - 1) // m * m


def _lrelu(x):
    return jnp.where(x >= 0, x, LRELU_SLOPE * x)


# -----------------------------------------------------------------------------
# Pallas kernels
# -----------------------------------------------------------------------------
def _matmul_bias_lrelu_kernel(p_ref, w_ref, b_ref, o_ref):
    """One M-tile of  o = leaky_relu(p @ w + b).  bf16 MXU inputs, f32 accumulate."""
    acc = jnp.dot(p_ref[...], w_ref[...], preferred_element_type=jnp.float32)
    acc = acc + b_ref[...]                       # (1, N) broadcast over rows
    o_ref[...] = _lrelu(acc)


def _dual_1x1_lrelu_kernel(x_ref, w1_ref, b1_ref, w2_ref, b2_ref, o_ref):
    """Fused conv3b + conv3c (two 1x1 convs): two back-to-back MXU dots with the
    intermediate kept in registers/VMEM, bias + LeakyReLU after each."""
    h = jnp.dot(x_ref[...], w1_ref[...], preferred_element_type=jnp.float32)
    h = _lrelu(h + b1_ref[...])
    h = jnp.dot(h.astype(jnp.bfloat16), w2_ref[...],
                preferred_element_type=jnp.float32)
    o_ref[...] = _lrelu(h + b2_ref[...])


def _max4_kernel(a_ref, b_ref, c_ref, d_ref, o_ref):
    """Elementwise max of the 4 taps of a 2x2/stride-2 max-pool window (VPU)."""
    o_ref[...] = jnp.maximum(jnp.maximum(a_ref[...], b_ref[...]),
                             jnp.maximum(c_ref[...], d_ref[...]))


def _gap_dense_softmax_kernel(x_ref, w_ref, b_ref, o_ref):
    """Fused global-avg-pool + dense + softmax tail."""
    feat = jnp.mean(x_ref[...], axis=1)                       # (N, C)
    logits = jnp.dot(feat, w_ref[...],
                     preferred_element_type=jnp.float32) + b_ref[...]
    m = jnp.max(logits, axis=1, keepdims=True)
    e = jnp.exp(logits - m)
    o_ref[...] = e / jnp.sum(e, axis=1, keepdims=True)


# -----------------------------------------------------------------------------
# Pallas wrappers
# -----------------------------------------------------------------------------
def matmul_bias_lrelu(p, w, b, tm=DEFAULT_TM):
    """leaky_relu(p @ w + b).  p:(M,K), w:(K,N), b:(N,).  Tiled over M with a
    VMEM-resident bf16 weight; M axis is 'parallel' for megacore."""
    M, K = p.shape
    N = w.shape[-1]

    p = p.astype(jnp.bfloat16)
    w = w.astype(jnp.bfloat16)
    b = b.reshape(1, N).astype(jnp.float32)

    # Lane-pad the contraction dim (only matters for conv1a where K = 27).
    Kp = _round_up(K, 128)
    if Kp != K:
        p = jnp.pad(p, ((0, 0), (0, Kp - K)))
        w = jnp.pad(w, ((0, Kp - K), (0, 0)))

    # Row tile: multiple of 8, padded so the grid has no partial blocks.
    tm_eff = min(tm, _round_up(M, 8))
    Mp = _round_up(M, tm_eff)
    if Mp != M:
        p = jnp.pad(p, ((0, Mp - M), (0, 0)))

    out = pl.pallas_call(
        _matmul_bias_lrelu_kernel,
        out_shape=jax.ShapeDtypeStruct((Mp, N), jnp.float32),
        grid=(Mp // tm_eff,),
        in_specs=[
            pl.BlockSpec((tm_eff, Kp), lambda i: (i, 0)),   # patch tile
            pl.BlockSpec((Kp, N), lambda i: (0, 0)),        # resident weight
            pl.BlockSpec((1, N), lambda i: (0, 0)),         # bias
        ],
        out_specs=pl.BlockSpec((tm_eff, N), lambda i: (i, 0)),
        compiler_params=pltpu.CompilerParams(
            dimension_semantics=("parallel",),
            vmem_limit_bytes=VMEM_LIMIT_BYTES),
    )(p, w, b)
    return out[:M] if Mp != M else out


def dual_conv1x1_lrelu(x, w1, b1, w2, b2, tm=DEFAULT_TM):
    """Fused (1x1 conv + LReLU) x 2.  x:(N,H,W,C1), w1:(C1,C2), w2:(C2,C3)."""
    N, H, W, C1 = x.shape
    C2 = w1.shape[-1]
    C3 = w2.shape[-1]
    M = N * H * W
    xm = x.reshape(M, C1).astype(jnp.bfloat16)

    tm_eff = min(tm, _round_up(M, 8))
    Mp = _round_up(M, tm_eff)
    if Mp != M:
        xm = jnp.pad(xm, ((0, Mp - M), (0, 0)))

    out = pl.pallas_call(
        _dual_1x1_lrelu_kernel,
        out_shape=jax.ShapeDtypeStruct((Mp, C3), jnp.float32),
        grid=(Mp // tm_eff,),
        in_specs=[
            pl.BlockSpec((tm_eff, C1), lambda i: (i, 0)),
            pl.BlockSpec((C1, C2), lambda i: (0, 0)),       # resident weights
            pl.BlockSpec((1, C2), lambda i: (0, 0)),
            pl.BlockSpec((C2, C3), lambda i: (0, 0)),
            pl.BlockSpec((1, C3), lambda i: (0, 0)),
        ],
        out_specs=pl.BlockSpec((tm_eff, C3), lambda i: (i, 0)),
        compiler_params=pltpu.CompilerParams(
            dimension_semantics=("parallel",),
            vmem_limit_bytes=VMEM_LIMIT_BYTES),
    )(xm,
      w1.astype(jnp.bfloat16), b1.reshape(1, C2).astype(jnp.float32),
      w2.astype(jnp.bfloat16), b2.reshape(1, C3).astype(jnp.float32))
    out = out[:M] if Mp != M else out
    return out.reshape(N, H, W, C3)


def maxpool2x2(x, tm=512):
    """x: (N, H, W, C) -> (N, H//2, W//2, C), 2x2 window, stride 2 (f32 exact)."""
    N, H, W, C = x.shape
    Ho, Wo = H // 2, W // 2
    M = N * Ho * Wo
    taps = [x[:, 0::2, 0::2, :], x[:, 0::2, 1::2, :],
            x[:, 1::2, 0::2, :], x[:, 1::2, 1::2, :]]
    taps = [t.reshape(M, C) for t in taps]

    tm_eff = min(tm, _round_up(M, 8))
    Mp = _round_up(M, tm_eff)
    if Mp != M:
        taps = [jnp.pad(t, ((0, Mp - M), (0, 0))) for t in taps]

    out = pl.pallas_call(
        _max4_kernel,
        out_shape=jax.ShapeDtypeStruct((Mp, C), jnp.float32),
        grid=(Mp // tm_eff,),
        in_specs=[pl.BlockSpec((tm_eff, C), lambda i: (i, 0))] * 4,
        out_specs=pl.BlockSpec((tm_eff, C), lambda i: (i, 0)),
        compiler_params=pltpu.CompilerParams(
            dimension_semantics=("parallel",),
            vmem_limit_bytes=VMEM_LIMIT_BYTES),
    )(*taps)
    out = out[:M] if Mp != M else out
    return out.reshape(N, Ho, Wo, C)


def gap_dense_softmax(x, w, b):
    """Fused AdaptiveAvgPool2d((1,1)) + flatten + Linear + Softmax.
    x: (N, H*W, C) f32 -> (N, num_classes)."""
    N, HW, C = x.shape
    K = w.shape[-1]
    return pl.pallas_call(
        _gap_dense_softmax_kernel,
        out_shape=jax.ShapeDtypeStruct((N, K), jnp.float32),
        grid=(1,),
        in_specs=[pl.BlockSpec((N, HW, C), lambda i: (0, 0, 0)),
                  pl.BlockSpec((C, K), lambda i: (0, 0)),
                  pl.BlockSpec((1, K), lambda i: (0, 0))],
        out_specs=pl.BlockSpec((N, K), lambda i: (0, 0)),
        compiler_params=pltpu.CompilerParams(vmem_limit_bytes=VMEM_LIMIT_BYTES),
    )(x, w.astype(jnp.float32), b.reshape(1, K).astype(jnp.float32))


# -----------------------------------------------------------------------------
# im2col glue (plain JAX — just data rearrangement, compute is in the kernels)
# -----------------------------------------------------------------------------
def _im2col3(x, padding):
    """x: (N, H, W, C) -> patches (N*Ho*Wo, 9*C) in (kh, kw, cin) order."""
    N, H, W, C = x.shape
    if padding == "same":
        x = jnp.pad(x, ((0, 0), (1, 1), (1, 1), (0, 0)))
        Ho, Wo = H, W
    else:  # 'valid'
        Ho, Wo = H - 2, W - 2
    cols = [x[:, di:di + Ho, dj:dj + Wo, :] for di in range(3) for dj in range(3)]
    p = jnp.concatenate(cols, axis=-1)
    return p.reshape(N * Ho * Wo, 9 * C), Ho, Wo


def conv3x3_lrelu(x, w_hwio, b, padding):
    """3x3 conv (stride 1) + bias + LeakyReLU(0.1).  w_hwio: (3,3,Cin,Cout)."""
    N = x.shape[0]
    Cin, Cout = w_hwio.shape[2], w_hwio.shape[3]
    # Build patches directly in bf16 so only half the patch bytes hit HBM.
    patches, Ho, Wo = _im2col3(x.astype(jnp.bfloat16), padding)
    w_mat = w_hwio.reshape(9 * Cin, Cout)      # matches (kh, kw, cin) patch order
    out = matmul_bias_lrelu(patches, w_mat, b)
    return out.reshape(N, Ho, Wo, Cout)


# -----------------------------------------------------------------------------
# Parameter init (deterministic, kaiming-ish scale) and forward pass
# -----------------------------------------------------------------------------
def init_params(key, num_classes=10):
    specs = {  # name: (kh, kw, cin, cout)
        "conv1a": (3, 3, 3, 128), "conv1b": (3, 3, 128, 128), "conv1c": (3, 3, 128, 128),
        "conv2a": (3, 3, 128, 256), "conv2b": (3, 3, 256, 256), "conv2c": (3, 3, 256, 256),
        "conv3a": (3, 3, 256, 512), "conv3b": (1, 1, 512, 256), "conv3c": (1, 1, 256, 128),
    }
    params = {}
    keys = jax.random.split(key, len(specs) + 1)
    for k, (name, (kh, kw, cin, cout)) in zip(keys[:-1], specs.items()):
        kw_, kb_ = jax.random.split(k)
        fan_in = kh * kw * cin
        w = jax.random.normal(kw_, (kh, kw, cin, cout), jnp.float32) / jnp.sqrt(fan_in)
        b = jax.random.normal(kb_, (cout,), jnp.float32) * 0.01
        params[name] = (w, b)
    kd_w, kd_b = jax.random.split(keys[-1])
    params["dense"] = (
        jax.random.normal(kd_w, (128, num_classes), jnp.float32) / jnp.sqrt(128.0),
        jax.random.normal(kd_b, (num_classes,), jnp.float32) * 0.01,
    )
    return params


@jax.jit
def pi_model_forward(params, x_nchw):
    # PyTorch feeds NCHW; convert to NHWC for the TPU kernels.
    x = jnp.transpose(x_nchw, (0, 2, 3, 1)).astype(jnp.float32)

    x = conv3x3_lrelu(x, *params["conv1a"], padding="same")
    x = conv3x3_lrelu(x, *params["conv1b"], padding="same")
    x = conv3x3_lrelu(x, *params["conv1c"], padding="same")
    x = maxpool2x2(x)
    # TODO(synk): Dropout(p=0.5) treated as identity (deterministic / eval-mode).

    x = conv3x3_lrelu(x, *params["conv2a"], padding="same")
    x = conv3x3_lrelu(x, *params["conv2b"], padding="same")
    x = conv3x3_lrelu(x, *params["conv2c"], padding="same")
    x = maxpool2x2(x)
    # TODO(synk): Dropout(p=0.5) treated as identity (deterministic / eval-mode).

    x = conv3x3_lrelu(x, *params["conv3a"], padding="valid")

    # conv3b (512->256) + conv3c (256->128) fused into one Pallas call.
    w3b, b3b = params["conv3b"]
    w3c, b3c = params["conv3c"]
    x = dual_conv1x1_lrelu(x, w3b.reshape(512, 256), b3b,
                           w3c.reshape(256, 128), b3c)

    # AdaptiveAvgPool2d((1,1)) + flatten + Linear + Softmax fused into one call.
    N, Ho, Wo, C = x.shape
    wd, bd = params["dense"]
    return gap_dense_softmax(x.reshape(N, Ho * Wo, C), wd, bd)


if __name__ == "__main__":
    key = jax.random.PRNGKey(0)
    k_params, k_x = jax.random.split(key)
    params = init_params(k_params, num_classes=10)

    # Small, module-consistent input: batch=2, 3 channels, 16x16 spatial (NCHW).
    x = jax.random.normal(k_x, (2, 3, 16, 16), jnp.float32)

    out = pi_model_forward(params, x)
    jax.block_until_ready(out)

    assert out.shape == (2, 10)
    assert bool(jnp.allclose(jnp.sum(out, axis=1), 1.0, atol=1e-5))
    print("KERNEL_OK")
</pallas_src>

<mosaic_0001>
module attributes {stable_mosaic.version = 11 : i64} {
  func.func @_matmul_bias_lrelu_kernel(%arg0: i32, %arg1: memref<256x128xbf16, #tpu.memory_space<vmem>>, %arg2: memref<128x128xbf16, #tpu.memory_space<vmem>>, %arg3: memref<1x128xf32, #tpu.memory_space<vmem>>, %arg4: memref<256x128xf32, #tpu.memory_space<vmem>>) attributes {dimension_semantics = [#tpu.dimension_semantics<parallel>], iteration_bounds = array<i64: 2>, scalar_prefetch = 0 : i64, scratch_operands = 0 : i64, tpu.core_type = #tpu.core_type<tc>, window_params = [{transform_indices = @transform_0, window_bounds = array<i64: 256, 128>}, {pipeline_mode = #tpu.pipeline_mode<synchronous>, transform_indices = @transform_1, window_bounds = array<i64: 128, 128>}, {pipeline_mode = #tpu.pipeline_mode<synchronous>, transform_indices = @transform_2, window_bounds = array<i64: 1, 128>}, {transform_indices = @transform_3, window_bounds = array<i64: 256, 128>}]} {
    %c0 = arith.constant 0 : index
    %c0_0 = arith.constant 0 : index
    %0 = vector.load %arg1[%c0, %c0_0] : memref<256x128xbf16, #tpu.memory_space<vmem>>, vector<256x128xbf16>
    %c0_1 = arith.constant 0 : index
    %c0_2 = arith.constant 0 : index
    %1 = vector.load %arg2[%c0_1, %c0_2] : memref<128x128xbf16, #tpu.memory_space<vmem>>, vector<128x128xbf16>
    %cst = arith.constant dense<0.000000e+00> : vector<256x128xf32>
    %2 = tpu.matmul %0, %1, %cst {dimension_numbers = #tpu.dot_dimension_numbers<[1], [0], [0], [1], [0, 0, 1, 1], [], []>} : vector<256x128xbf16>, vector<128x128xbf16>, vector<256x128xf32> -> vector<256x128xf32>
    %c0_3 = arith.constant 0 : index
    %c0_4 = arith.constant 0 : index
    %3 = vector.load %arg3[%c0_3, %c0_4] : memref<1x128xf32, #tpu.memory_space<vmem>>, vector<1x128xf32>
    %4 = vector.broadcast %3 : vector<1x128xf32> to vector<256x128xf32>
    %5 = arith.addf %2, %4 : vector<256x128xf32>
    %cst_5 = arith.constant 0.000000e+00 : f32
    %6 = vector.broadcast %cst_5 : f32 to vector<256x128xf32>
    %7 = arith.cmpf oge, %5, %6 : vector<256x128xf32>
    %cst_6 = arith.constant 1.000000e-01 : f32
    %8 = vector.broadcast %cst_6 : f32 to vector<256x128xf32>
    %9 = arith.mulf %8, %5 : vector<256x128xf32>
    %10 = arith.select %7, %5, %9 : vector<256x128xi1>, vector<256x128xf32>
    %c0_7 = arith.constant 0 : index
    %c0_8 = arith.constant 0 : index
    %11 = vector.load %arg4[%c0_7, %c0_8] : memref<256x128xf32, #tpu.memory_space<vmem>>, vector<256x128xf32>
    tpu.vector_store %arg4[%c0_7, %c0_8], %10 {strides = array<i32>} : memref<256x128xf32, #tpu.memory_space<vmem>>, vector<256x128xf32>,
    return
  }
  func.func @transform_0(%arg0: i32) -> (i32, i32) {
    %c0_i32 = arith.constant 0 : i32
    %c0_i32_0 = arith.constant 0 : i32
    return %arg0, %c0_i32 : i32, i32
  }
  func.func @transform_1(%arg0: i32) -> (i32, i32) {
    %c0_i32 = arith.constant 0 : i32
    %c0_i32_0 = arith.constant 0 : i32
    %c0_i32_1 = arith.constant 0 : i32
    return %c0_i32, %c0_i32_0 : i32, i32
  }
  func.func @transform_2(%arg0: i32) -> (i32, i32) {
    %c0_i32 = arith.constant 0 : i32
    %c0_i32_0 = arith.constant 0 : i32
    %c0_i32_1 = arith.constant 0 : i32
    return %c0_i32, %c0_i32_0 : i32, i32
  }
  func.func @transform_3(%arg0: i32) -> (i32, i32) {
    %c0_i32 = arith.constant 0 : i32
    %c0_i32_0 = arith.constant 0 : i32
    return %arg0, %c0_i32 : i32, i32
  }
}

module attributes {stable_mosaic.version = 11 : i64} {
  func.func @_matmul_bias_lrelu_kernel(%arg0: i32, %arg1: memref<256x1152xbf16, #tpu.memory_space<vmem>>, %arg2: memref<1152x128xbf16, #tpu.memory_space<vmem>>, %arg3: memref<1x128xf32, #tpu.memory_space<vmem>>, %arg4: memref<256x128xf32, #tpu.memory_space<vmem>>) attributes {dimension_semantics = [#tpu.dimension_semantics<parallel>], iteration_bounds = array<i64: 2>, scalar_prefetch = 0 : i64, scratch_operands = 0 : i64, tpu.core_type = #tpu.core_type<tc>, window_params = [{transform_indices = @transform_0, window_bounds = array<i64: 256, 1152>}, {pipeline_mode = #tpu.pipeline_mode<synchronous>, transform_indices = @transform_1, window_bounds = array<i64: 1152, 128>}, {pipeline_mode = #tpu.pipeline_mode<synchronous>, transform_indices = @transform_2, window_bounds = array<i64: 1, 128>}, {transform_indices = @transform_3, window_bounds = array<i64: 256, 128>}]} {
    %c0 = arith.constant 0 : index
    %c0_0 = arith.constant 0 : index
    %0 = vector.load %arg1[%c0, %c0_0] : memref<256x1152xbf16, #tpu.memory_space<vmem>>, vector<256x1152xbf16>
    %c0_1 = arith.constant 0 : index
    %c0_2 = arith.constant 0 : index
    %1 = vector.load %arg2[%c0_1, %c0_2] : memref<1152x128xbf16, #tpu.memory_space<vmem>>, vector<1152x128xbf16>
    %cst = arith.constant dense<0.000000e+00> : vector<256x128xf32>
    %2 = tpu.matmul %0, %1, %cst {dimension_numbers = #tpu.dot_dimension_numbers<[1], [0], [0], [1], [0, 0, 1, 1], [], []>} : vector<256x1152xbf16>, vector<1152x128xbf16>, vector<256x128xf32> -> vector<256x128xf32>
    %c0_3 = arith.constant 0 : index
    %c0_4 = arith.constant 0 : index
    %3 = vector.load %arg3[%c0_3, %c0_4] : memref<1x128xf32, #tpu.memory_space<vmem>>, vector<1x128xf32>
    %4 = vector.broadcast %3 : vector<1x128xf32> to vector<256x128xf32>
    %5 = arith.addf %2, %4 : vector<256x128xf32>
    %cst_5 = arith.constant 0.000000e+00 : f32
    %6 = vector.broadcast %cst_5 : f32 to vector<256x128xf32>
    %7 = arith.cmpf oge, %5, %6 : vector<256x128xf32>
    %cst_6 = arith.constant 1.000000e-01 : f32
    %8 = vector.broadcast %cst_6 : f32 to vector<256x128xf32>
    %9 = arith.mulf %8, %5 : vector<256x128xf32>
    %10 = arith.select %7, %5, %9 : vector<256x128xi1>, vector<256x128xf32>
    %c0_7 = arith.constant 0 : index
    %c0_8 = arith.constant 0 : index
    %11 = vector.load %arg4[%c0_7, %c0_8] : memref<256x128xf32, #tpu.memory_space<vmem>>, vector<256x128xf32>
    tpu.vector_store %arg4[%c0_7, %c0_8], %10 {strides = array<i32>} : memref<256x128xf32, #tpu.memory_space<vmem>>, vector<256x128xf32>,
    return
  }
  func.func @transform_0(%arg0: i32) -> (i32, i32) {
    %c0_i32 = arith.constant 0 : i32
    %c0_i32_0 = arith.constant 0 : i32
    return %arg0, %c0_i32 : i32, i32
  }
  func.func @transform_1(%arg0: i32) -> (i32, i32) {
    %c0_i32 = arith.constant 0 : i32
    %c0_i32_0 = arith.constant 0 : i32
    %c0_i32_1 = arith.constant 0 : i32
    return %c0_i32, %c0_i32_0 : i32, i32
  }
  func.func @transform_2(%arg0: i32) -> (i32, i32) {
    %c0_i32 = arith.constant 0 : i32
    %c0_i32_0 = arith.constant 0 : i32
    %c0_i32_1 = arith.constant 0 : i32
    return %c0_i32, %c0_i32_0 : i32, i32
  }
  func.func @transform_3(%arg0: i32) -> (i32, i32) {
    %c0_i32 = arith.constant 0 : i32
    %c0_i32_0 = arith.constant 0 : i32
    return %arg0, %c0_i32 : i32, i32
  }
}

module attributes {stable_mosaic.version = 11 : i64} {
  func.func @_max4_kernel(%arg0: i32, %arg1: memref<128x128xf32, #tpu.memory_space<vmem>>, %arg2: memref<128x128xf32, #tpu.memory_space<vmem>>, %arg3: memref<128x128xf32, #tpu.memory_space<vmem>>, %arg4: memref<128x128xf32, #tpu.memory_space<vmem>>, %arg5: memref<128x128xf32, #tpu.memory_space<vmem>>) attributes {dimension_semantics = [#tpu.dimension_semantics<parallel>], iteration_bounds = array<i64: 1>, scalar_prefetch = 0 : i64, scratch_operands = 0 : i64, tpu.core_type = #tpu.core_type<tc>, window_params = [{transform_indices = @transform_0, window_bounds = array<i64: 128, 128>}, {transform_indices = @transform_1, window_bounds = array<i64: 128, 128>}, {transform_indices = @transform_2, window_bounds = array<i64: 128, 128>}, {transform_indices = @transform_3, window_bounds = array<i64: 128, 128>}, {transform_indices = @transform_4, window_bounds = array<i64: 128, 128>}]} {
    %c0 = arith.constant 0 : index
    %c0_0 = arith.constant 0 : index
    %0 = vector.load %arg1[%c0, %c0_0] : memref<128x128xf32, #tpu.memory_space<vmem>>, vector<128x128xf32>
    %c0_1 = arith.constant 0 : index
    %c0_2 = arith.constant 0 : index
    %1 = vector.load %arg2[%c0_1, %c0_2] : memref<128x128xf32, #tpu.memory_space<vmem>>, vector<128x128xf32>
    %2 = arith.maximumf %0, %1 : vector<128x128xf32>
    %c0_3 = arith.constant 0 : index
    %c0_4 = arith.constant 0 : index
    %3 = vector.load %arg3[%c0_3, %c0_4] : memref<128x128xf32, #tpu.memory_space<vmem>>, vector<128x128xf32>
    %c0_5 = arith.constant 0 : index
    %c0_6 = arith.constant 0 : index
    %4 = vector.load %arg4[%c0_5, %c0_6] : memref<128x128xf32, #tpu.memory_space<vmem>>, vector<128x128xf32>
    %5 = arith.maximumf %3, %4 : vector<128x128xf32>
    %6 = arith.maximumf %2, %5 : vector<128x128xf32>
    %c0_7 = arith.constant 0 : index
    %c0_8 = arith.constant 0 : index
    %7 = vector.load %arg5[%c0_7, %c0_8] : memref<128x128xf32, #tpu.memory_space<vmem>>, vector<128x128xf32>
    tpu.vector_store %arg5[%c0_7, %c0_8], %6 {strides = array<i32>} : memref<128x128xf32, #tpu.memory_space<vmem>>, vector<128x128xf32>,
    return
  }
  func.func @transform_0(%arg0: i32) -> (i32, i32) {
    %c0_i32 = arith.constant 0 : i32
    %c0_i32_0 = arith.constant 0 : i32
    return %arg0, %c0_i32 : i32, i32
  }
  func.func @transform_1(%arg0: i32) -> (i32, i32) {
    %c0_i32 = arith.constant 0 : i32
    %c0_i32_0 = arith.constant 0 : i32
    return %arg0, %c0_i32 : i32, i32
  }
  func.func @transform_2(%arg0: i32) -> (i32, i32) {
    %c0_i32 = arith.constant 0 : i32
    %c0_i32_0 = arith.constant 0 : i32
    return %arg0, %c0_i32 : i32, i32
  }
  func.func @transform_3(%arg0: i32) -> (i32, i32) {
    %c0_i32 = arith.constant 0 : i32
    %c0_i32_0 = arith.constant 0 : i32
    return %arg0, %c0_i32 : i32, i32
  }
  func.func @transform_4(%arg0: i32) -> (i32, i32) {
    %c0_i32 = arith.constant 0 : i32
    %c0_i32_0 = arith.constant 0 : i32
    return %arg0, %c0_i32 : i32, i32
  }
}

module attributes {stable_mosaic.version = 11 : i64} {
  func.func @_matmul_bias_lrelu_kernel(%arg0: i32, %arg1: memref<128x1152xbf16, #tpu.memory_space<vmem>>, %arg2: memref<1152x256xbf16, #tpu.memory_space<vmem>>, %arg3: memref<1x256xf32, #tpu.memory_space<vmem>>, %arg4: memref<128x256xf32, #tpu.memory_space<vmem>>) attributes {dimension_semantics = [#tpu.dimension_semantics<parallel>], iteration_bounds = array<i64: 1>, scalar_prefetch = 0 : i64, scratch_operands = 0 : i64, tpu.core_type = #tpu.core_type<tc>, window_params = [{transform_indices = @transform_0, window_bounds = array<i64: 128, 1152>}, {pipeline_mode = #tpu.pipeline_mode<synchronous>, transform_indices = @transform_1, window_bounds = array<i64: 1152, 256>}, {pipeline_mode = #tpu.pipeline_mode<synchronous>, transform_indices = @transform_2, window_bounds = array<i64: 1, 256>}, {transform_indices = @transform_3, window_bounds = array<i64: 128, 256>}]} {
    %c0 = arith.constant 0 : index
    %c0_0 = arith.constant 0 : index
    %0 = vector.load %arg1[%c0, %c0_0] : memref<128x1152xbf16, #tpu.memory_space<vmem>>, vector<128x1152xbf16>
    %c0_1 = arith.constant 0 : index
    %c0_2 = arith.constant 0 : index
    %1 = vector.load %arg2[%c0_1, %c0_2] : memref<1152x256xbf16, #tpu.memory_space<vmem>>, vector<1152x256xbf16>
    %cst = arith.constant dense<0.000000e+00> : vector<128x256xf32>
    %2 = tpu.matmul %0, %1, %cst {dimension_numbers = #tpu.dot_dimension_numbers<[1], [0], [0], [1], [0, 0, 1, 1], [], []>} : vector<128x1152xbf16>, vector<1152x256xbf16>, vector<128x256xf32> -> vector<128x256xf32>
    %c0_3 = arith.constant 0 : index
    %c0_4 = arith.constant 0 : index
    %3 = vector.load %arg3[%c0_3, %c0_4] : memref<1x256xf32, #tpu.memory_space<vmem>>, vector<1x256xf32>
    %4 = vector.broadcast %3 : vector<1x256xf32> to vector<128x256xf32>
    %5 = arith.addf %2, %4 : vector<128x256xf32>
    %cst_5 = arith.constant 0.000000e+00 : f32
    %6 = vector.broadcast %cst_5 : f32 to vector<128x256xf32>
    %7 = arith.cmpf oge, %5, %6 : vector<128x256xf32>
    %cst_6 = arith.constant 1.000000e-01 : f32
    %8 = vector.broadcast %cst_6 : f32 to vector<128x256xf32>
    %9 = arith.mulf %8, %5 : vector<128x256xf32>
    %10 = arith.select %7, %5, %9 : vector<128x256xi1>, vector<128x256xf32>
    %c0_7 = arith.constant 0 : index
    %c0_8 = arith.constant 0 : index
    %11 = vector.load %arg4[%c0_7, %c0_8] : memref<128x256xf32, #tpu.memory_space<vmem>>, vector<128x256xf32>
    tpu.vector_store %arg4[%c0_7, %c0_8], %10 {strides = array<i32>} : memref<128x256xf32, #tpu.memory_space<vmem>>, vector<128x256xf32>,
    return
  }
  func.func @transform_0(%arg0: i32) -> (i32, i32) {
    %c0_i32 = arith.constant 0 : i32
    %c0_i32_0 = arith.constant 0 : i32
    return %arg0, %c0_i32 : i32, i32
  }
  func.func @transform_1(%arg0: i32) -> (i32, i32) {
    %c0_i32 = arith.constant 0 : i32
    %c0_i32_0 = arith.constant 0 : i32
    %c0_i32_1 = arith.constant 0 : i32
    return %c0_i32, %c0_i32_0 : i32, i32
  }
  func.func @transform_2(%arg0: i32) -> (i32, i32) {
    %c0_i32 = arith.constant 0 : i32
    %c0_i32_0 = arith.constant 0 : i32
    %c0_i32_1 = arith.constant 0 : i32
    return %c0_i32, %c0_i32_0 : i32, i32
  }
  func.func @transform_3(%arg0: i32) -> (i32, i32) {
    %c0_i32 = arith.constant 0 : i32
    %c0_i32_0 = arith.constant 0 : i32
    return %arg0, %c0_i32 : i32, i32
  }
}

module attributes {stable_mosaic.version = 11 : i64} {
  func.func @_matmul_bias_lrelu_kernel(%arg0: i32, %arg1: memref<128x2304xbf16, #tpu.memory_space<vmem>>, %arg2: memref<2304x256xbf16, #tpu.memory_space<vmem>>, %arg3: memref<1x256xf32, #tpu.memory_space<vmem>>, %arg4: memref<128x256xf32, #tpu.memory_space<vmem>>) attributes {dimension_semantics = [#tpu.dimension_semantics<parallel>], iteration_bounds = array<i64: 1>, scalar_prefetch = 0 : i64, scratch_operands = 0 : i64, tpu.core_type = #tpu.core_type<tc>, window_params = [{transform_indices = @transform_0, window_bounds = array<i64: 128, 2304>}, {pipeline_mode = #tpu.pipeline_mode<synchronous>, transform_indices = @transform_1, window_bounds = array<i64: 2304, 256>}, {pipeline_mode = #tpu.pipeline_mode<synchronous>, transform_indices = @transform_2, window_bounds = array<i64: 1, 256>}, {transform_indices = @transform_3, window_bounds = array<i64: 128, 256>}]} {
    %c0 = arith.constant 0 : index
    %c0_0 = arith.constant 0 : index
    %0 = vector.load %arg1[%c0, %c0_0] : memref<128x2304xbf16, #tpu.memory_space<vmem>>, vector<128x2304xbf16>
    %c0_1 = arith.constant 0 : index
    %c0_2 = arith.constant 0 : index
    %1 = vector.load %arg2[%c0_1, %c0_2] : memref<2304x256xbf16, #tpu.memory_space<vmem>>, vector<2304x256xbf16>
    %cst = arith.constant dense<0.000000e+00> : vector<128x256xf32>
    %2 = tpu.matmul %0, %1, %cst {dimension_numbers = #tpu.dot_dimension_numbers<[1], [0], [0], [1], [0, 0, 1, 1], [], []>} : vector<128x2304xbf16>, vector<2304x256xbf16>, vector<128x256xf32> -> vector<128x256xf32>
    %c0_3 = arith.constant 0 : index
    %c0_4 = arith.constant 0 : index
    %3 = vector.load %arg3[%c0_3, %c0_4] : memref<1x256xf32, #tpu.memory_space<vmem>>, vector<1x256xf32>
    %4 = vector.broadcast %3 : vector<1x256xf32> to vector<128x256xf32>
    %5 = arith.addf %2, %4 : vector<128x256xf32>
    %cst_5 = arith.constant 0.000000e+00 : f32
    %6 = vector.broadcast %cst_5 : f32 to vector<128x256xf32>
    %7 = arith.cmpf oge, %5, %6 : vector<128x256xf32>
    %cst_6 = arith.constant 1.000000e-01 : f32
    %8 = vector.broadcast %cst_6 : f32 to vector<128x256xf32>
    %9 = arith.mulf %8, %5 : vector<128x256xf32>
    %10 = arith.select %7, %5, %9 : vector<128x256xi1>, vector<128x256xf32>
    %c0_7 = arith.constant 0 : index
    %c0_8 = arith.constant 0 : index
    %11 = vector.load %arg4[%c0_7, %c0_8] : memref<128x256xf32, #tpu.memory_space<vmem>>, vector<128x256xf32>
    tpu.vector_store %arg4[%c0_7, %c0_8], %10 {strides = array<i32>} : memref<128x256xf32, #tpu.memory_space<vmem>>, vector<128x256xf32>,
    return
  }
  func.func @transform_0(%arg0: i32) -> (i32, i32) {
    %c0_i32 = arith.constant 0 : i32
    %c0_i32_0 = arith.constant 0 : i32
    return %arg0, %c0_i32 : i32, i32
  }
  func.func @transform_1(%arg0: i32) -> (i32, i32) {
    %c0_i32 = arith.constant 0 : i32
    %c0_i32_0 = arith.constant 0 : i32
    %c0_i32_1 = arith.constant 0 : i32
    return %c0_i32, %c0_i32_0 : i32, i32
  }
  func.func @transform_2(%arg0: i32) -> (i32, i32) {
    %c0_i32 = arith.constant 0 : i32
    %c0_i32_0 = arith.constant 0 : i32
    %c0_i32_1 = arith.constant 0 : i32
    return %c0_i32, %c0_i32_0 : i32, i32
  }
  func.func @transform_3(%arg0: i32) -> (i32, i32) {
    %c0_i32 = arith.constant 0 : i32
    %c0_i32_0 = arith.constant 0 : i32
    return %arg0, %c0_i32 : i32, i32
  }
}

module attributes {stable_mosaic.version = 11 : i64} {
  func.func @_max4_kernel(%arg0: i32, %arg1: memref<32x256xf32, #tpu.memory_space<vmem>>, %arg2: memref<32x256xf32, #tpu.memory_space<vmem>>, %arg3: memref<32x256xf32, #tpu.memory_space<vmem>>, %arg4: memref<32x256xf32, #tpu.memory_space<vmem>>, %arg5: memref<32x256xf32, #tpu.memory_space<vmem>>) attributes {dimension_semantics = [#tpu.dimension_semantics<parallel>], iteration_bounds = array<i64: 1>, scalar_prefetch = 0 : i64, scratch_operands = 0 : i64, tpu.core_type = #tpu.core_type<tc>, window_params = [{transform_indices = @transform_0, window_bounds = array<i64: 32, 256>}, {transform_indices = @transform_1, window_bounds = array<i64: 32, 256>}, {transform_indices = @transform_2, window_bounds = array<i64: 32, 256>}, {transform_indices = @transform_3, window_bounds = array<i64: 32, 256>}, {transform_indices = @transform_4, window_bounds = array<i64: 32, 256>}]} {
    %c0 = arith.constant 0 : index
    %c0_0 = arith.constant 0 : index
    %0 = vector.load %arg1[%c0, %c0_0] : memref<32x256xf32, #tpu.memory_space<vmem>>, vector<32x256xf32>
    %c0_1 = arith.constant 0 : index
    %c0_2 = arith.constant 0 : index
    %1 = vector.load %arg2[%c0_1, %c0_2] : memref<32x256xf32, #tpu.memory_space<vmem>>, vector<32x256xf32>
    %2 = arith.maximumf %0, %1 : vector<32x256xf32>
    %c0_3 = arith.constant 0 : index
    %c0_4 = arith.constant 0 : index
    %3 = vector.load %arg3[%c0_3, %c0_4] : memref<32x256xf32, #tpu.memory_space<vmem>>, vector<32x256xf32>
    %c0_5 = arith.constant 0 : index
    %c0_6 = arith.constant 0 : index
    %4 = vector.load %arg4[%c0_5, %c0_6] : memref<32x256xf32, #tpu.memory_space<vmem>>, vector<32x256xf32>
    %5 = arith.maximumf %3, %4 : vector<32x256xf32>
    %6 = arith.maximumf %2, %5 : vector<32x256xf32>
    %c0_7 = arith.constant 0 : index
    %c0_8 = arith.constant 0 : index
    %7 = vector.load %arg5[%c0_7, %c0_8] : memref<32x256xf32, #tpu.memory_space<vmem>>, vector<32x256xf32>
    tpu.vector_store %arg5[%c0_7, %c0_8], %6 {strides = array<i32>} : memref<32x256xf32, #tpu.memory_space<vmem>>, vector<32x256xf32>,
    return
  }
  func.func @transform_0(%arg0: i32) -> (i32, i32) {
    %c0_i32 = arith.constant 0 : i32
    %c0_i32_0 = arith.constant 0 : i32
    return %arg0, %c0_i32 : i32, i32
  }
  func.func @transform_1(%arg0: i32) -> (i32, i32) {
    %c0_i32 = arith.constant 0 : i32
    %c0_i32_0 = arith.constant 0 : i32
    return %arg0, %c0_i32 : i32, i32
  }
  func.func @transform_2(%arg0: i32) -> (i32, i32) {
    %c0_i32 = arith.constant 0 : i32
    %c0_i32_0 = arith.constant 0 : i32
    return %arg0, %c0_i32 : i32, i32
  }
  func.func @transform_3(%arg0: i32) -> (i32, i32) {
    %c0_i32 = arith.constant 0 : i32
    %c0_i32_0 = arith.constant 0 : i32
    return %arg0, %c0_i32 : i32, i32
  }
  func.func @transform_4(%arg0: i32) -> (i32, i32) {
    %c0_i32 = arith.constant 0 : i32
    %c0_i32_0 = arith.constant 0 : i32
    return %arg0, %c0_i32 : i32, i32
  }
}

module attributes {stable_mosaic.version = 11 : i64} {
  func.func @_matmul_bias_lrelu_kernel(%arg0: i32, %arg1: memref<8x2304xbf16, #tpu.memory_space<vmem>>, %arg2: memref<2304x512xbf16, #tpu.memory_space<vmem>>, %arg3: memref<1x512xf32, #tpu.memory_space<vmem>>, %arg4: memref<8x512xf32, #tpu.memory_space<vmem>>) attributes {dimension_semantics = [#tpu.dimension_semantics<parallel>], iteration_bounds = array<i64: 1>, scalar_prefetch = 0 : i64, scratch_operands = 0 : i64, tpu.core_type = #tpu.core_type<tc>, window_params = [{transform_indices = @transform_0, window_bounds = array<i64: 8, 2304>}, {pipeline_mode = #tpu.pipeline_mode<synchronous>, transform_indices = @transform_1, window_bounds = array<i64: 2304, 512>}, {pipeline_mode = #tpu.pipeline_mode<synchronous>, transform_indices = @transform_2, window_bounds = array<i64: 1, 512>}, {transform_indices = @transform_3, window_bounds = array<i64: 8, 512>}]} {
    %c0 = arith.constant 0 : index
    %c0_0 = arith.constant 0 : index
    %0 = vector.load %arg1[%c0, %c0_0] : memref<8x2304xbf16, #tpu.memory_space<vmem>>, vector<8x2304xbf16>
    %c0_1 = arith.constant 0 : index
    %c0_2 = arith.constant 0 : index
    %1 = vector.load %arg2[%c0_1, %c0_2] : memref<2304x512xbf16, #tpu.memory_space<vmem>>, vector<2304x512xbf16>
    %cst = arith.constant dense<0.000000e+00> : vector<8x512xf32>
    %2 = tpu.matmul %0, %1, %cst {dimension_numbers = #tpu.dot_dimension_numbers<[1], [0], [0], [1], [0, 0, 1, 1], [], []>} : vector<8x2304xbf16>, vector<2304x512xbf16>, vector<8x512xf32> -> vector<8x512xf32>
    %c0_3 = arith.constant 0 : index
    %c0_4 = arith.constant 0 : index
    %3 = vector.load %arg3[%c0_3, %c0_4] : memref<1x512xf32, #tpu.memory_space<vmem>>, vector<1x512xf32>
    %4 = vector.broadcast %3 : vector<1x512xf32> to vector<8x512xf32>
    %5 = arith.addf %2, %4 : vector<8x512xf32>
    %cst_5 = arith.constant 0.000000e+00 : f32
    %6 = vector.broadcast %cst_5 : f32 to vector<8x512xf32>
    %7 = arith.cmpf oge, %5, %6 : vector<8x512xf32>
    %cst_6 = arith.constant 1.000000e-01 : f32
    %8 = vector.broadcast %cst_6 : f32 to vector<8x512xf32>
    %9 = arith.mulf %8, %5 : vector<8x512xf32>
    %10 = arith.select %7, %5, %9 : vector<8x512xi1>, vector<8x512xf32>
    %c0_7 = arith.constant 0 : index
    %c0_8 = arith.constant 0 : index
    %11 = vector.load %arg4[%c0_7, %c0_8] : memref<8x512xf32, #tpu.memory_space<vmem>>, vector<8x512xf32>
    tpu.vector_store %arg4[%c0_7, %c0_8], %10 {strides = array<i32>} : memref<8x512xf32, #tpu.memory_space<vmem>>, vector<8x512xf32>,
    return
  }
  func.func @transform_0(%arg0: i32) -> (i32, i32) {
    %c0_i32 = arith.constant 0 : i32
    %c0_i32_0 = arith.constant 0 : i32
    return %arg0, %c0_i32 : i32, i32
  }
  func.func @transform_1(%arg0: i32) -> (i32, i32) {
    %c0_i32 = arith.constant 0 : i32
    %c0_i32_0 = arith.constant 0 : i32
    %c0_i32_1 = arith.constant 0 : i32
    return %c0_i32, %c0_i32_0 : i32, i32
  }
  func.func @transform_2(%arg0: i32) -> (i32, i32) {
    %c0_i32 = arith.constant 0 : i32
    %c0_i32_0 = arith.constant 0 : i32
    %c0_i32_1 = arith.constant 0 : i32
    return %c0_i32, %c0_i32_0 : i32, i32
  }
  func.func @transform_3(%arg0: i32) -> (i32, i32) {
    %c0_i32 = arith.constant 0 : i32
    %c0_i32_0 = arith.constant 0 : i32
    return %arg0, %c0_i32 : i32, i32
  }
}

module attributes {stable_mosaic.version = 11 : i64} {
  func.func @_dual_1x1_lrelu_kernel(%arg0: i32, %arg1: memref<8x512xbf16, #tpu.memory_space<vmem>>, %arg2: memref<512x256xbf16, #tpu.memory_space<vmem>>, %arg3: memref<1x256xf32, #tpu.memory_space<vmem>>, %arg4: memref<256x128xbf16, #tpu.memory_space<vmem>>, %arg5: memref<1x128xf32, #tpu.memory_space<vmem>>, %arg6: memref<8x128xf32, #tpu.memory_space<vmem>>) attributes {dimension_semantics = [#tpu.dimension_semantics<parallel>], iteration_bounds = array<i64: 1>, scalar_prefetch = 0 : i64, scratch_operands = 0 : i64, tpu.core_type = #tpu.core_type<tc>, window_params = [{transform_indices = @transform_0, window_bounds = array<i64: 8, 512>}, {pipeline_mode = #tpu.pipeline_mode<synchronous>, transform_indices = @transform_1, window_bounds = array<i64: 512, 256>}, {pipeline_mode = #tpu.pipeline_mode<synchronous>, transform_indices = @transform_2, window_bounds = array<i64: 1, 256>}, {pipeline_mode = #tpu.pipeline_mode<synchronous>, transform_indices = @transform_3, window_bounds = array<i64: 256, 128>}, {pipeline_mode = #tpu.pipeline_mode<synchronous>, transform_indices = @transform_4, window_bounds = array<i64: 1, 128>}, {transform_indices = @transform_5, window_bounds = array<i64: 8, 128>}]} {
    %c0 = arith.constant 0 : index
    %c0_0 = arith.constant 0 : index
    %0 = vector.load %arg1[%c0, %c0_0] : memref<8x512xbf16, #tpu.memory_space<vmem>>, vector<8x512xbf16>
    %c0_1 = arith.constant 0 : index
    %c0_2 = arith.constant 0 : index
    %1 = vector.load %arg2[%c0_1, %c0_2] : memref<512x256xbf16, #tpu.memory_space<vmem>>, vector<512x256xbf16>
    %cst = arith.constant dense<0.000000e+00> : vector<8x256xf32>
    %2 = tpu.matmul %0, %1, %cst {dimension_numbers = #tpu.dot_dimension_numbers<[1], [0], [0], [1], [0, 0, 1, 1], [], []>} : vector<8x512xbf16>, vector<512x256xbf16>, vector<8x256xf32> -> vector<8x256xf32>
    %c0_3 = arith.constant 0 : index
    %c0_4 = arith.constant 0 : index
    %3 = vector.load %arg3[%c0_3, %c0_4] : memref<1x256xf32, #tpu.memory_space<vmem>>, vector<1x256xf32>
    %4 = vector.broadcast %3 : vector<1x256xf32> to vector<8x256xf32>
    %5 = arith.addf %2, %4 : vector<8x256xf32>
    %cst_5 = arith.constant 0.000000e+00 : f32
    %6 = vector.broadcast %cst_5 : f32 to vector<8x256xf32>
    %7 = arith.cmpf oge, %5, %6 : vector<8x256xf32>
    %cst_6 = arith.constant 1.000000e-01 : f32
    %8 = vector.broadcast %cst_6 : f32 to vector<8x256xf32>
    %9 = arith.mulf %8, %5 : vector<8x256xf32>
    %10 = arith.select %7, %5, %9 : vector<8x256xi1>, vector<8x256xf32>
    %11 = arith.truncf %10 : vector<8x256xf32> to vector<8x256xbf16>
    %c0_7 = arith.constant 0 : index
    %c0_8 = arith.constant 0 : index
    %12 = vector.load %arg4[%c0_7, %c0_8] : memref<256x128xbf16, #tpu.memory_space<vmem>>, vector<256x128xbf16>
    %cst_9 = arith.constant dense<0.000000e+00> : vector<8x128xf32>
    %13 = tpu.matmul %11, %12, %cst_9 {dimension_numbers = #tpu.dot_dimension_numbers<[1], [0], [0], [1], [0, 0, 1, 1], [], []>} : vector<8x256xbf16>, vector<256x128xbf16>, vector<8x128xf32> -> vector<8x128xf32>
    %c0_10 = arith.constant 0 : index
    %c0_11 = arith.constant 0 : index
    %14 = vector.load %arg5[%c0_10, %c0_11] : memref<1x128xf32, #tpu.memory_space<vmem>>, vector<1x128xf32>
    %15 = vector.broadcast %14 : vector<1x128xf32> to vector<8x128xf32>
    %16 = arith.addf %13, %15 : vector<8x128xf32>
    %cst_12 = arith.constant 0.000000e+00 : f32
    %17 = vector.broadcast %cst_12 : f32 to vector<8x128xf32>
    %18 = arith.cmpf oge, %16, %17 : vector<8x128xf32>
    %cst_13 = arith.constant 1.000000e-01 : f32
    %19 = vector.broadcast %cst_13 : f32 to vector<8x128xf32>
    %20 = arith.mulf %19, %16 : vector<8x128xf32>
    %21 = arith.select %18, %16, %20 : vector<8x128xi1>, vector<8x128xf32>
    %c0_14 = arith.constant 0 : index
    %c0_15 = arith.constant 0 : index
    %22 = vector.load %arg6[%c0_14, %c0_15] : memref<8x128xf32, #tpu.memory_space<vmem>>, vector<8x128xf32>
    tpu.vector_store %arg6[%c0_14, %c0_15], %21 {strides = array<i32>} : memref<8x128xf32, #tpu.memory_space<vmem>>, vector<8x128xf32>,
    return
  }
  func.func @transform_0(%arg0: i32) -> (i32, i32) {
    %c0_i32 = arith.constant 0 : i32
    %c0_i32_0 = arith.constant 0 : i32
    return %arg0, %c0_i32 : i32, i32
  }
  func.func @transform_1(%arg0: i32) -> (i32, i32) {
    %c0_i32 = arith.constant 0 : i32
    %c0_i32_0 = arith.constant 0 : i32
    %c0_i32_1 = arith.constant 0 : i32
    return %c0_i32, %c0_i32_0 : i32, i32
  }
  func.func @transform_2(%arg0: i32) -> (i32, i32) {
    %c0_i32 = arith.constant 0 : i32
    %c0_i32_0 = arith.constant 0 : i32
    %c0_i32_1 = arith.constant 0 : i32
    return %c0_i32, %c0_i32_0 : i32, i32
  }
  func.func @transform_3(%arg0: i32) -> (i32, i32) {
    %c0_i32 = arith.constant 0 : i32
    %c0_i32_0 = arith.constant 0 : i32
    %c0_i32_1 = arith.constant 0 : i32
    return %c0_i32, %c0_i32_0 : i32, i32
  }
  func.func @transform_4(%arg0: i32) -> (i32, i32) {
    %c0_i32 = arith.constant 0 : i32
    %c0_i32_0 = arith.constant 0 : i32
    %c0_i32_1 = arith.constant 0 : i32
    return %c0_i32, %c0_i32_0 : i32, i32
  }
  func.func @transform_5(%arg0: i32) -> (i32, i32) {
    %c0_i32 = arith.constant 0 : i32
    %c0_i32_0 = arith.constant 0 : i32
    return %arg0, %c0_i32 : i32, i32
  }
}

module attributes {stable_mosaic.version = 11 : i64} {
  func.func @_gap_dense_softmax_kernel(%arg0: i32, %arg1: memref<2x4x128xf32, #tpu.memory_space<vmem>>, %arg2: memref<128x10xf32, #tpu.memory_space<vmem>>, %arg3: memref<1x10xf32, #tpu.memory_space<vmem>>, %arg4: memref<2x10xf32, #tpu.memory_space<vmem>>) attributes {dimension_semantics = [#tpu.dimension_semantics<arbitrary>], iteration_bounds = array<i64: 1>, scalar_prefetch = 0 : i64, scratch_operands = 0 : i64, tpu.core_type = #tpu.core_type<tc>, window_params = [{pipeline_mode = #tpu.pipeline_mode<synchronous>, transform_indices = @transform_0, window_bounds = array<i64: 2, 4, 128>}, {pipeline_mode = #tpu.pipeline_mode<synchronous>, transform_indices = @transform_1, window_bounds = array<i64: 128, 10>}, {pipeline_mode = #tpu.pipeline_mode<synchronous>, transform_indices = @transform_2, window_bounds = array<i64: 1, 10>}, {pipeline_mode = #tpu.pipeline_mode<synchronous>, transform_indices = @transform_3, window_bounds = array<i64: 2, 10>}]} {
    %c0 = arith.constant 0 : index
    %c0_0 = arith.constant 0 : index
    %c0_1 = arith.constant 0 : index
    %0 = vector.load %arg1[%c0, %c0_0, %c0_1] : memref<2x4x128xf32, #tpu.memory_space<vmem>>, vector<2x4x128xf32>
    %cst = arith.constant dense<0.000000e+00> : vector<2x128xf32>
    %1 = vector.multi_reduction <add>, %0, %cst [1] : vector<2x4x128xf32> to vector<2x128xf32>
    %cst_2 = arith.constant 4.000000e+00 : f32
    %2 = vector.broadcast %cst_2 : f32 to vector<2x128xf32>
    %3 = arith.divf %1, %2 : vector<2x128xf32>
    %c0_3 = arith.constant 0 : index
    %c0_4 = arith.constant 0 : index
    %4 = vector.load %arg2[%c0_3, %c0_4] : memref<128x10xf32, #tpu.memory_space<vmem>>, vector<128x10xf32>
    %cst_5 = arith.constant dense<0.000000e+00> : vector<2x10xf32>
    %5 = tpu.matmul %3, %4, %cst_5 {dimension_numbers = #tpu.dot_dimension_numbers<[1], [0], [0], [1], [0, 0, 1, 1], [], []>} : vector<2x128xf32>, vector<128x10xf32>, vector<2x10xf32> -> vector<2x10xf32>
    %c0_6 = arith.constant 0 : index
    %c0_7 = arith.constant 0 : index
    %6 = vector.load %arg3[%c0_6, %c0_7] : memref<1x10xf32, #tpu.memory_space<vmem>>, vector<1x10xf32>
    %7 = vector.broadcast %6 : vector<1x10xf32> to vector<2x10xf32>
    %8 = arith.addf %5, %7 : vector<2x10xf32>
    %cst_8 = arith.constant dense<0xFF800000> : vector<2xf32>
    %9 = vector.multi_reduction <maximumf>, %8, %cst_8 [1] : vector<2x10xf32> to vector<2xf32>
    %10 = vector.shape_cast %9 : vector<2xf32> to vector<2x1xf32>
    %11 = vector.broadcast %10 : vector<2x1xf32> to vector<2x10xf32>
    %12 = arith.subf %8, %11 : vector<2x10xf32>
    %13 = math.exp %12 : vector<2x10xf32>
    %cst_9 = arith.constant dense<0.000000e+00> : vector<2xf32>
    %14 = vector.multi_reduction <add>, %13, %cst_9 [1] : vector<2x10xf32> to vector<2xf32>
    %15 = vector.shape_cast %14 : vector<2xf32> to vector<2x1xf32>
    %16 = vector.broadcast %15 : vector<2x1xf32> to vector<2x10xf32>
    %17 = arith.divf %13, %16 : vector<2x10xf32>
    %c0_10 = arith.constant 0 : index
    %c0_11 = arith.constant 0 : index
    %18 = vector.load %arg4[%c0_10, %c0_11] : memref<2x10xf32, #tpu.memory_space<vmem>>, vector<2x10xf32>
    tpu.vector_store %arg4[%c0_10, %c0_11], %17 {strides = array<i32>} : memref<2x10xf32, #tpu.memory_space<vmem>>, vector<2x10xf32>,
    return
  }
  func.func @transform_0(%arg0: i32) -> (i32, i32, i32) {
    %c0_i32 = arith.constant 0 : i32
    %c0_i32_0 = arith.constant 0 : i32
    %c0_i32_1 = arith.constant 0 : i32
    %c0_i32_2 = arith.constant 0 : i32
    return %c0_i32, %c0_i32_0, %c0_i32_1 : i32, i32, i32
  }
  func.func @transform_1(%arg0: i32) -> (i32, i32) {
    %c0_i32 = arith.constant 0 : i32
    %c0_i32_0 = arith.constant 0 : i32
    %c0_i32_1 = arith.constant 0 : i32
    return %c0_i32, %c0_i32_0 : i32, i32
  }
  func.func @transform_2(%arg0: i32) -> (i32, i32) {
    %c0_i32 = arith.constant 0 : i32
    %c0_i32_0 = arith.constant 0 : i32
    %c0_i32_1 = arith.constant 0 : i32
    return %c0_i32, %c0_i32_0 : i32, i32
  }
  func.func @transform_3(%arg0: i32) -> (i32, i32) {
    %c0_i32 = arith.constant 0 : i32
    %c0_i32_0 = arith.constant 0 : i32
    %c0_i32_1 = arith.constant 0 : i32
    return %c0_i32, %c0_i32_0 : i32, i32
  }
}

</mosaic_0001>

<llo_original>
// kernel: pi_model_forward.11
$region0: #{pi_model_forward.11}
  #allocation0 [shape = 'u32[]', space=smem, size = 0x4, offset = 0x4, fixed_abs, tag = 'smem constant byte address 0x4 - core index']
  #allocation1 [shape = 'u32[144,128]{1,0:T(1,128)}', space=vmem, size = 0x12000, scoped, tag = 'internal scratch']
  %s0 = inlined_call_operand.vmem [shape: bf16[512,128], index: 0, kind: input, shape index: {}]
  %s1 = inlined_call_operand.vmem [shape: bf16[128,128], index: 1, kind: input, shape index: {}]
  %s2 = inlined_call_operand.vmem [shape: f32[1,128], index: 2, kind: input, shape index: {}]
  %s3 = inlined_call_operand.vmem [shape: f32[512,128], index: 3, kind: output, shape index: {}]
  %s4 = sld [smem:[#allocation0]]
  $region45: #{pi_model_forward.11} parent=0
    _
  %s6 = ssub.s32 1, %s4
  %s7 = scalar_select 0, %s6, %s4
  loop: start=0, step=1, limit=4
  $region2: #{pi_model_forward.11} parent=0 // loop_pre_header
    _
  $region3: #{pi_model_forward.11} parent=0 // loop_header
    %s9 = sphi 0, %s13
    %p10 = scmp.ge.s32.totalorder %s9, 4
    %s19 = sphi 0, %s21
    %s22 = sphi 0, %s19
    %s23 = sphi 0, %s22
    %s39 = sphi 0, %s23
    %s43 = sphi 0, %s43
    %s45 = sphi 0, %s43
    %s46 = sphi 0, %s45
    %s60 = sphi 0, %s46
    %s64 = sphi 0, %s64
    %s66 = sphi 0, %s64
    %s67 = sphi 0, %s66
    %s81 = sphi 0, %s67
    %s87 = sphi 0, %s89
    %s90 = sphi 0, %s87
    %s91 = sphi 0, %s90
    %s107 = sphi 0, %s91
  $region4: #{pi_model_forward.11} parent=0 // loop_header_branch
    %12 = sbr.rel (%p10) target = $region8
  $region5: #{pi_model_forward.11} parent=0 // loop_body
    %s14 = ssub.s32 %s9, 1
    %s15 = ssub.s32 %s9, 2
    %s16 = sadd.s32 %s9, 1
    %s17 = ssub.s32 %s9, %s16
    %p18 = scmp.eq.s32.totalorder %s17, 0
    %s20 = sadd.s32 %s19, 1
    %s21 = scalar_select %p18, %s19, %s20
    %p24 = pneg %p18
    %p25 = scmp.eq.s32.totalorder %s9, 1
    %p26 = por %p24, %p25
    %p27 = scmp.ne.s32.totalorder %s19, %s22
    %p28 = scmp.eq.s32.totalorder %s9, 0
    %p29 = por %p27, %p28
    %p30 = scmp.ne.s32.totalorder %s19, %s22
    %p31 = scmp.eq.s32.totalorder %s14, 1
    %p32 = por %p30, %p31
    %p33 = scmp.ne.s32.totalorder %s22, %s23
    %p34 = scmp.eq.s32.totalorder %s14, 0
    %p35 = por %p33, %p34
    %p36 = scmp.ne.s32.totalorder %s22, %s23
    %p37 = scmp.eq.s32.totalorder %s15, 1
    %p38 = por %p36, %p37
    %p40 = scmp.ne.s32.totalorder %s23, %s39
    %p41 = scmp.eq.s32.totalorder %s15, 0
    %p42 = por %p40, %p41
    %s44 = sadd.s32 %s43, 1
    %p47 = scmp.eq.s32.totalorder %s9, 1
    %p48 = scmp.ne.s32.totalorder %s43, %s45
    %p49 = scmp.eq.s32.totalorder %s9, 0
    %p50 = por %p48, %p49
    %p51 = scmp.ne.s32.totalorder %s43, %s45
    %p52 = scmp.eq.s32.totalorder %s14, 1
    %p53 = por %p51, %p52
    %p54 = scmp.ne.s32.totalorder %s45, %s46
    %p55 = scmp.eq.s32.totalorder %s14, 0
    %p56 = por %p54, %p55
    %p57 = scmp.ne.s32.totalorder %s45, %s46
    %p58 = scmp.eq.s32.totalorder %s15, 1
    %p59 = por %p57, %p58
    %p61 = scmp.ne.s32.totalorder %s46, %s60
    %p62 = scmp.eq.s32.totalorder %s15, 0
    %p63 = por %p61, %p62
    %s65 = sadd.s32 %s64, 1
    %p68 = scmp.eq.s32.totalorder %s9, 1
    %p69 = scmp.ne.s32.totalorder %s64, %s66
    %p70 = scmp.eq.s32.totalorder %s9, 0
    %p71 = por %p69, %p70
    %p72 = scmp.ne.s32.totalorder %s64, %s66
    %p73 = scmp.eq.s32.totalorder %s14, 1
    %p74 = por %p72, %p73
    %p75 = scmp.ne.s32.totalorder %s66, %s67
    %p76 = scmp.eq.s32.totalorder %s14, 0
    %p77 = por %p75, %p76
    %p78 = scmp.ne.s32.totalorder %s66, %s67
    %p79 = scmp.eq.s32.totalorder %s15, 1
    %p80 = por %p78, %p79
    %p82 = scmp.ne.s32.totalorder %s67, %s81
    %p83 = scmp.eq.s32.totalorder %s15, 0
    %p84 = por %p82, %p83
    %s85 = ssub.s32 %s9, %s16
    %p86 = scmp.eq.s32.totalorder %s85, 0
    %s88 = sadd.s32 %s87, 1
    %s89 = scalar_select %p86, %s87, %s88
    %p92 = pneg %p86
    %p93 = scmp.eq.s32.totalorder %s9, 1
    %p94 = por %p92, %p93
    %p95 = scmp.ne.s32.totalorder %s87, %s90
    %p96 = scmp.eq.s32.totalorder %s9, 0
    %p97 = por %p95, %p96
    %p98 = scmp.ne.s32.totalorder %s87, %s90
    %p99 = scmp.eq.s32.totalorder %s14, 1
    %p100 = por %p98, %p99
    %p101 = scmp.ne.s32.totalorder %s90, %s91
    %p102 = scmp.eq.s32.totalorder %s14, 0
    %p103 = por %p101, %p102
    %p104 = scmp.ne.s32.totalorder %s90, %s91
    %p105 = scmp.eq.s32.totalorder %s15, 1
    %p106 = por %p104, %p105
    %p108 = scmp.ne.s32.totalorder %s91, %s107
    %p109 = scmp.eq.s32.totalorder %s15, 0
    %p110 = por %p108, %p109
    %p111 = scmp.le.s32.totalorder 1, %s9
    %p112 = scmp.lt.s32.totalorder %s9, 3
    %p113 = pnand %p111, %p112
    %p114 = pneg %p113
    // Predicated region
    $region9: #{pi_model_forward.11} parent=5 // pred_check
      _
    $region10: #{pi_model_forward.11} parent=5 // pred_check_branch
      %116 = sbr.rel (%p113) target = $region12
    $region11: #{pi_model_forward.11} parent=5 // pred_region
      %s117 = ssub.s32 %s9, 1
      // Predicated region
      $region13: #{pi_model_forward.11} parent=11 // pred_check
        %p118 = pneg %p56
      $region14: #{pi_model_forward.11} parent=11 // pred_check_branch
        %120 = sbr.rel (%p118) target = $region16
      $region15: #{pi_model_forward.11} parent=11 // pred_region
        _
      $region16: #{pi_model_forward.11} parent=11 // pred_fallthru
        _
      // Predicated region
      $region17: #{pi_model_forward.11} parent=11 // pred_check
        %p121 = pneg %p77
      $region18: #{pi_model_forward.11} parent=11 // pred_check_branch
        %123 = sbr.rel (%p121) target = $region20
      $region19: #{pi_model_forward.11} parent=11 // pred_region
        _
      $region20: #{pi_model_forward.11} parent=11 // pred_fallthru
        _
    $region12: #{pi_model_forward.11} parent=5 // pred_fallthru
      _
    %p124 = scmp.lt.s32.totalorder %s9, 2
    // Predicated region
    $region21: #{pi_model_forward.11} parent=5 // pred_check
      %p125 = pneg %p124
    $region22: #{pi_model_forward.11} parent=5 // pred_check_branch
      %127 = sbr.rel (%p125) target = $region24
    $region23: #{pi_model_forward.11} parent=5 // pred_region
      // Predicated region
      $region25: #{pi_model_forward.11} parent=23 // pred_check
        %p128 = pneg %p29
      $region26: #{pi_model_forward.11} parent=23 // pred_check_branch
        %130 = sbr.rel (%p128) target = $region28
      $region27: #{pi_model_forward.11} parent=23 // pred_region
        %s131 = smul.u32 32, %s9
        %p132 = scmp.lt.s32.totalorder %s131, 63
        %s133 = scalar_select %p132, %s131, 63
        %s134 = smul.addr %s133, 4
        %s135 = scalar_lea.vmem %s0, %s134
        %s136 = smul.u32 32, %s9
      $region28: #{pi_model_forward.11} parent=23 // pred_fallthru
        _
    $region24: #{pi_model_forward.11} parent=5 // pred_fallthru
      _
    %p137 = scmp.le.s32.totalorder 1, %s9
    %p138 = scmp.lt.s32.totalorder %s9, 3
    %p139 = pnand %p137, %p138
    %p140 = pneg %p139
    // Predicated region
    $region29: #{pi_model_forward.11} parent=5 // pred_check
      _
    $region30: #{pi_model_forward.11} parent=5 // pred_check_branch
      %142 = sbr.rel (%p139) target = $region32
    $region31: #{pi_model_forward.11} parent=5 // pred_region
      %s143 = ssub.s32 %s9, 1
      %s144 = smul.u32 32, %s14
      %p145 = scmp.lt.s32.totalorder %s144, 63
      %s146 = scalar_select %p145, %s144, 63
      %s147 = smul.addr %s146, 4
      %s148 = scalar_lea.vmem %s0, %s147
      %p149 = pneg %p35
      %p150 = pneg %p32
      %p151 = pneg %p56
      %p152 = pneg %p53
      %p153 = pneg %p77
      %p154 = pneg %p74
      %p155 = pneg %p103
      %p156 = pneg %p100
      %s157 = smul.u32 32, %s14
      %p158 = scmp.lt.s32.totalorder %s157, 63
      %s159 = scalar_select %p158, %s157, 63
      %s160 = smul.addr %s159, 8
      %s161 = scalar_lea.vmem %s3, %s160
      %s162 = smul.u32 32, %s14
      %p163 = scmp.lt.s32.totalorder %s162, 63
      %s164 = scalar_select %p163, %s162, 63
      %s165 = smul.addr %s164, 4
      %s166 = scalar_lea.vmem %s0, %s165
      %s167 = smul.u32 32, %s14
      %s168 = smul.u32 32, %s14
      %p169 = scmp.lt.s32.totalorder %s168, 63
      %s170 = scalar_select %p169, %s168, 63
      %s171 = smul.addr %s170, 8
      %s172 = scalar_lea.vmem %s3, %s171
      %s173 = smul.u32 32, %s14
      %v175 = vld [vmem:[%s166] sm:$0xf]
      %v176 = vld [vmem:[%s166 + $0x4] sm:$0xf]
      %v177 = vld [vmem:[%s166 + $0x8] sm:$0xf]
      %v178 = vld [vmem:[%s166 + $0xc] sm:$0xf]
      %v179 = vld [vmem:[%s166 + $0x10] sm:$0xf]
      %v180 = vld [vmem:[%s166 + $0x14] sm:$0xf]
      %v181 = vld [vmem:[%s166 + $0x18] sm:$0xf]
      %v182 = vld [vmem:[%s166 + $0x1c] sm:$0xf]
      %v183 = vld [vmem:[%s166 + $0x20] sm:$0xf]
      %v184 = vld [vmem:[%s166 + $0x24] sm:$0xf]
      %v185 = vld [vmem:[%s166 + $0x28] sm:$0xf]
      %v186 = vld [vmem:[%s166 + $0x2c] sm:$0xf]
      %v187 = vld [vmem:[%s166 + $0x30] sm:$0xf]
      %v188 = vld [vmem:[%s166 + $0x34] sm:$0xf]
      %v189 = vld [vmem:[%s166 + $0x38] sm:$0xf]
      %v190 = vld [vmem:[%s166 + $0x3c] sm:$0xf]
      %v191 = vld [vmem:[%s166 + $0x40] sm:$0xf]
      %v192 = vld [vmem:[%s166 + $0x44] sm:$0xf]
      %v193 = vld [vmem:[%s166 + $0x48] sm:$0xf]
      %v194 = vld [vmem:[%s166 + $0x4c] sm:$0xf]
      %v195 = vld [vmem:[%s166 + $0x50] sm:$0xf]
      %v196 = vld [vmem:[%s166 + $0x54] sm:$0xf]
      %v197 = vld [vmem:[%s166 + $0x58] sm:$0xf]
      %v198 = vld [vmem:[%s166 + $0x5c] sm:$0xf]
      %v199 = vld [vmem:[%s166 + $0x60] sm:$0xf]
      %v200 = vld [vmem:[%s166 + $0x64] sm:$0xf]
      %v201 = vld [vmem:[%s166 + $0x68] sm:$0xf]
      %v202 = vld [vmem:[%s166 + $0x6c] sm:$0xf]
      %v203 = vld [vmem:[%s166 + $0x70] sm:$0xf]
      %v204 = vld [vmem:[%s166 + $0x74] sm:$0xf]
      %v205 = vld [vmem:[%s166 + $0x78] sm:$0xf]
      %v206 = vld [vmem:[%s166 + $0x7c] sm:$0xf]
      %v207 = vld [vmem:[%s1] sm:$0xf]
      %v208 = vld [vmem:[%s1 + $0x4] sm:$0xf]
      %v209 = vld [vmem:[%s1 + $0x8] sm:$0xf]
      %v210 = vld [vmem:[%s1 + $0xc] sm:$0xf]
      %v211 = vld [vmem:[%s1 + $0x10] sm:$0xf]
      %v212 = vld [vmem:[%s1 + $0x14] sm:$0xf]
      %v213 = vld [vmem:[%s1 + $0x18] sm:$0xf]
      %v214 = vld [vmem:[%s1 + $0x1c] sm:$0xf]
      %v215 = vld [vmem:[%s1 + $0x20] sm:$0xf]
      %v216 = vld [vmem:[%s1 + $0x24] sm:$0xf]
      %v217 = vld [vmem:[%s1 + $0x28] sm:$0xf]
      %v218 = vld [vmem:[%s1 + $0x2c] sm:$0xf]
      %v219 = vld [vmem:[%s1 + $0x30] sm:$0xf]
      %v220 = vld [vmem:[%s1 + $0x34] sm:$0xf]
      %v221 = vld [vmem:[%s1 + $0x38] sm:$0xf]
      %v222 = vld [vmem:[%s1 + $0x3c] sm:$0xf]
      %v223 = vld [vmem:[%s2] sm:$0x1]
      %v225 = vlaneseq
      %v226 = vshrl.u32 %v225, 7
      %v227 = vsub.s32 0, %v226
      %v228 = vrot.slane %v223, %v227
      %v262 = vunpack.c.l.b16 %v175
      %v263 = vunpack.c.l.b16 %v176
      %v264 = vunpack.c.l.b16 %v177
      %v265 = vunpack.c.l.b16 %v178
      %v266 = vunpack.c.l.b16 %v179
      %v267 = vunpack.c.l.b16 %v180
      %v268 = vunpack.c.l.b16 %v181
      %v269 = vunpack.c.l.b16 %v182
      %v270 = vunpack.c.l.b16 %v183
      %v271 = vunpack.c.l.b16 %v184
      %v272 = vunpack.c.l.b16 %v185
      %v273 = vunpack.c.l.b16 %v186
      %v274 = vunpack.c.l.b16 %v187
      %v275 = vunpack.c.l.b16 %v188
      %v276 = vunpack.c.l.b16 %v189
      %v277 = vunpack.c.l.b16 %v190
      %v278 = vunpack.c.l.b16 %v191
      %v279 = vunpack.c.l.b16 %v192
      %v280 = vunpack.c.l.b16 %v193
      %v281 = vunpack.c.l.b16 %v194
      %v282 = vunpack.c.l.b16 %v195
      %v283 = vunpack.c.l.b16 %v196
      %v284 = vunpack.c.l.b16 %v197
      %v285 = vunpack.c.l.b16 %v198
      %v286 = vunpack.c.l.b16 %v199
      %v287 = vunpack.c.l.b16 %v200
      %v288 = vunpack.c.l.b16 %v201
      %v289 = vunpack.c.l.b16 %v202
      %v290 = vunpack.c.l.b16 %v203
      %v291 = vunpack.c.l.b16 %v204
      %v292 = vunpack.c.l.b16 %v205
      %v293 = vunpack.c.l.b16 %v206
      %v294 = vpack.c.b16 %v263, %v262
      %v295 = vpack.c.b16 %v265, %v264
      %v296 = vpack.c.b16 %v267, %v266
      %v297 = vpack.c.b16 %v269, %v268
      %v298 = vpack.c.b16 %v271, %v270
      %v299 = vpack.c.b16 %v273, %v272
      %v300 = vpack.c.b16 %v275, %v274
      %v301 = vpack.c.b16 %v277, %v276
      %v302 = vpack.c.b16 %v279, %v278
      %v303 = vpack.c.b16 %v281, %v280
      %v304 = vpack.c.b16 %v283, %v282
      %v305 = vpack.c.b16 %v285, %v284
      %v306 = vpack.c.b16 %v287, %v286
      %v307 = vpack.c.b16 %v289, %v288
      %v308 = vpack.c.b16 %v291, %v290
      %v309 = vpack.c.b16 %v293, %v292
      %v342 = vunpack.c.l.b16 %v207
      %v343 = vunpack.c.l.b16 %v208
      %v344 = vunpack.c.l.b16 %v209
      %v345 = vunpack.c.l.b16 %v210
      %v346 = vunpack.c.l.b16 %v211
      %v347 = vunpack.c.l.b16 %v212
      %v348 = vunpack.c.l.b16 %v213
      %v349 = vunpack.c.l.b16 %v214
      %v350 = vunpack.c.l.b16 %v215
      %v351 = vunpack.c.l.b16 %v216
      %v352 = vunpack.c.l.b16 %v217
      %v353 = vunpack.c.l.b16 %v218
      %v354 = vunpack.c.l.b16 %v219
      %v355 = vunpack.c.l.b16 %v220
      %v356 = vunpack.c.l.b16 %v221
      %v357 = vunpack.c.l.b16 %v222
      %v358 = vpack.c.b16 %v343, %v342
      %v359 = vpack.c.b16 %v345, %v344
      %v360 = vpack.c.b16 %v347, %v346
      %v361 = vpack.c.b16 %v349, %v348
      %v362 = vpack.c.b16 %v351, %v350
      %v363 = vpack.c.b16 %v353, %v352
      %v364 = vpack.c.b16 %v355, %v354
      %v365 = vpack.c.b16 %v357, %v356
      %374 = vmatprep.subr.bf16.mxu0 0
      %375 = vmatpush1.bf16.msra.mxu0 %v358
      %376 = vmatprep.subr.bf16.mxu0 0
      %377 = vmatpush1.bf16.msra.mxu0 %v359
      %378 = vmatprep.subr.bf16.mxu0 0
      %379 = vmatpush1.bf16.msra.mxu0 %v360
      %380 = vmatprep.subr.bf16.mxu0 0
      %381 = vmatpush1.bf16.msra.mxu0 %v361
      %382 = vmatprep.subr.bf16.mxu0 0
      %383 = vmatpush1.bf16.msra.mxu0 %v362
      %384 = vmatprep.subr.bf16.mxu0 0
      %385 = vmatpush1.bf16.msra.mxu0 %v363
      %386 = vmatprep.subr.bf16.mxu0 0
      %387 = vmatpush1.bf16.msra.mxu0 %v364
      %388 = vmatprep.subr.bf16.mxu0 0
      %389 = vmatpush1.bf16.msra.mxu0 %v365
      %390 = vmatprep.subr.bf16.mxu0 0
      %391 = vmatpush1.bf16.msra.mxu0 0
      %392 = vmatprep.subr.bf16.mxu0 0
      %393 = vmatpush1.bf16.msra.mxu0 0
      %394 = vmatprep.subr.bf16.mxu0 0
      %395 = vmatpush1.bf16.msra.mxu0 0
      %396 = vmatprep.subr.bf16.mxu0 0
      %397 = vmatpush1.bf16.msra.mxu0 0
      %398 = vmatprep.subr.bf16.mxu0 0
      %399 = vmatpush1.bf16.msra.mxu0 0
      %400 = vmatprep.subr.bf16.mxu0 0
      %401 = vmatpush1.bf16.msra.mxu0 0
      %402 = vmatprep.subr.bf16.mxu0 0
      %403 = vmatpush1.bf16.msra.mxu0 0
      %404 = vmatprep.subr.bf16.mxu0 0
      %405 = vmatpush1.bf16.msra.mxu0 0
      %406 = vmatprep.mubr.bf16.mxu0 0
      %407 = vmatmul.mubr.bf16.gmra.mrb[0].mxu0 %v294
      %v408 = vpop.f32.mrb[0].mxu0
      %v409 = vadd.f32 %v228, %v408
      %v410 = vpop.f32.mrb[0].mxu0
      %v411 = vpop.f32.mrb[0].mxu0
      %v412 = vadd.f32 %v228, %v411
      %v413 = vpop.f32.mrb[0].mxu0
      %414 = vmatprep.mubr.bf16.mxu0 0
      %415 = vmatmul.mubr.bf16.gmra.mrb[0].mxu0 %v295
      %v416 = vpop.f32.mrb[0].mxu0
      %v417 = vadd.f32 %v228, %v416
      %v418 = vpop.f32.mrb[0].mxu0
      %v419 = vpop.f32.mrb[0].mxu0
      %v420 = vadd.f32 %v228, %v419
      %v421 = vpop.f32.mrb[0].mxu0
      %422 = vmatprep.mubr.bf16.mxu0 0
      %423 = vmatmul.mubr.bf16.gmra.mrb[0].mxu0 %v296
      %v424 = vpop.f32.mrb[0].mxu0
      %v425 = vadd.f32 %v228, %v424
      %v426 = vpop.f32.mrb[0].mxu0
      %v427 = vpop.f32.mrb[0].mxu0
      %v428 = vadd.f32 %v228, %v427
      %v429 = vpop.f32.mrb[0].mxu0
      %430 = vmatprep.mubr.bf16.mxu0 0
      %431 = vmatmul.mubr.bf16.gmra.mrb[0].mxu0 %v297
      %v432 = vpop.f32.mrb[0].mxu0
      %v433 = vadd.f32 %v228, %v432
      %v434 = vpop.f32.mrb[0].mxu0
      %v435 = vpop.f32.mrb[0].mxu0
      %v436 = vadd.f32 %v228, %v435
      %v437 = vpop.f32.mrb[0].mxu0
      %438 = vmatprep.mubr.bf16.mxu0 0
      %439 = vmatmul.mubr.bf16.gmra.mrb[0].mxu0 %v298
      %v440 = vpop.f32.mrb[0].mxu0
      %v441 = vadd.f32 %v228, %v440
      %v442 = vpop.f32.mrb[0].mxu0
      %v443 = vpop.f32.mrb[0].mxu0
      %v444 = vadd.f32 %v228, %v443
      %v445 = vpop.f32.mrb[0].mxu0
      %446 = vmatprep.mubr.bf16.mxu0 0
      %447 = vmatmul.mubr.bf16.gmra.mrb[0].mxu0 %v299
      %v448 = vpop.f32.mrb[0].mxu0
      %v449 = vadd.f32 %v228, %v448
      %v450 = vpop.f32.mrb[0].mxu0
      %v451 = vpop.f32.mrb[0].mxu0
      %v452 = vadd.f32 %v228, %v451
      %v453 = vpop.f32.mrb[0].mxu0
      %454 = vmatprep.mubr.bf16.mxu0 0
      %455 = vmatmul.mubr.bf16.gmra.mrb[0].mxu0 %v300
      %v456 = vpop.f32.mrb[0].mxu0
      %v457 = vadd.f32 %v228, %v456
      %v458 = vpop.f32.mrb[0].mxu0
      %v459 = vpop.f32.mrb[0].mxu0
      %v460 = vadd.f32 %v228, %v459
      %v461 = vpop.f32.mrb[0].mxu0
      %462 = vmatprep.mubr.bf16.mxu0 0
      %463 = vmatmul.mubr.bf16.gmra.mrb[0].mxu0 %v301
      %v464 = vpop.f32.mrb[0].mxu0
      %v465 = vadd.f32 %v228, %v464
      %v466 = vpop.f32.mrb[0].mxu0
      %v467 = vpop.f32.mrb[0].mxu0
      %v468 = vadd.f32 %v228, %v467
      %v469 = vpop.f32.mrb[0].mxu0
      %470 = vmatprep.mubr.bf16.mxu0 0
      %471 = vmatmul.mubr.bf16.gmra.mrb[0].mxu0 %v302
      %v472 = vpop.f32.mrb[0].mxu0
      %v473 = vadd.f32 %v228, %v472
      %v474 = vpop.f32.mrb[0].mxu0
      %v475 = vpop.f32.mrb[0].mxu0
      %v476 = vadd.f32 %v228, %v475
      %v477 = vpop.f32.mrb[0].mxu0
      %478 = vmatprep.mubr.bf16.mxu0 0
      %479 = vmatmul.mubr.bf16.gmra.mrb[0].mxu0 %v303
      %v480 = vpop.f32.mrb[0].mxu0
      %v481 = vadd.f32 %v228, %v480
      %v482 = vpop.f32.mrb[0].mxu0
      %v483 = vpop.f32.mrb[0].mxu0
      %v484 = vadd.f32 %v228, %v483
      %v485 = vpop.f32.mrb[0].mxu0
      %486 = vmatprep.mubr.bf16.mxu0 0
      %487 = vmatmul.mubr.bf16.gmra.mrb[0].mxu0 %v304
      %v488 = vpop.f32.mrb[0].mxu0
      %v489 = vadd.f32 %v228, %v488
      %v490 = vpop.f32.mrb[0].mxu0
      %v491 = vpop.f32.mrb[0].mxu0
      %v492 = vadd.f32 %v228, %v491
      %v493 = vpop.f32.mrb[0].mxu0
      %494 = vmatprep.mubr.bf16.mxu0 0
      %495 = vmatmul.mubr.bf16.gmra.mrb[0].mxu0 %v305
      %v496 = vpop.f32.mrb[0].mxu0
      %v497 = vadd.f32 %v228, %v496
      %v498 = vpop.f32.mrb[0].mxu0
      %v499 = vpop.f32.mrb[0].mxu0
      %v500 = vadd.f32 %v228, %v499
      %v501 = vpop.f32.mrb[0].mxu0
      %502 = vmatprep.mubr.bf16.mxu0 0
      %503 = vmatmul.mubr.bf16.gmra.mrb[0].mxu0 %v306
      %v504 = vpop.f32.mrb[0].mxu0
      %v505 = vadd.f32 %v228, %v504
      %v506 = vpop.f32.mrb[0].mxu0
      %v507 = vpop.f32.mrb[0].mxu0
      %v508 = vadd.f32 %v228, %v507
      %v509 = vpop.f32.mrb[0].mxu0
      %510 = vmatprep.mubr.bf16.mxu0 0
      %511 = vmatmul.mubr.bf16.gmra.mrb[0].mxu0 %v307
      %v512 = vpop.f32.mrb[0].mxu0
      %v513 = vadd.f32 %v228, %v512
      %v514 = vpop.f32.mrb[0].mxu0
      %v515 = vpop.f32.mrb[0].mxu0
      %v516 = vadd.f32 %v228, %v515
      %v517 = vpop.f32.mrb[0].mxu0
      %518 = vmatprep.mubr.bf16.mxu0 0
      %519 = vmatmul.mubr.bf16.gmra.mrb[0].mxu0 %v308
      %v520 = vpop.f32.mrb[0].mxu0
      %v521 = vadd.f32 %v228, %v520
      %v522 = vpop.f32.mrb[0].mxu0
      %v523 = vpop.f32.mrb[0].mxu0
      %v524 = vadd.f32 %v228, %v523
      %v525 = vpop.f32.mrb[0].mxu0
      %526 = vmatprep.mubr.bf16.mxu0 0
      %527 = vmatmul.mubr.bf16.gmra.mrb[0].mxu0 %v309
      %v528 = vpop.f32.mrb[0].mxu0
      %v529 = vadd.f32 %v228, %v528
      %v530 = vpop.f32.mrb[0].mxu0
      %v531 = vpop.f32.mrb[0].mxu0
      %v532 = vadd.f32 %v228, %v531
      %v533 = vpop.f32.mrb[0].mxu0
      %534 = vdwg.mxu0
      %vm535 = vcmp.ge.f32.partialorder %v409, 0.0
      %vm536 = vcmp.ge.f32.partialorder %v412, 0.0
      %vm537 = vcmp.ge.f32.partialorder %v417, 0.0
      %vm538 = vcmp.ge.f32.partialorder %v420, 0.0
      %vm539 = vcmp.ge.f32.partialorder %v425, 0.0
      %vm540 = vcmp.ge.f32.partialorder %v428, 0.0
      %vm541 = vcmp.ge.f32.partialorder %v433, 0.0
      %vm542 = vcmp.ge.f32.partialorder %v436, 0.0
      %vm543 = vcmp.ge.f32.partialorder %v441, 0.0
      %vm544 = vcmp.ge.f32.partialorder %v444, 0.0
      %vm545 = vcmp.ge.f32.partialorder %v449, 0.0
      %vm546 = vcmp.ge.f32.partialorder %v452, 0.0
      %vm547 = vcmp.ge.f32.partialorder %v457, 0.0
      %vm548 = vcmp.ge.f32.partialorder %v460, 0.0
      %vm549 = vcmp.ge.f32.partialorder %v465, 0.0
      %vm550 = vcmp.ge.f32.partialorder %v468, 0.0
      %vm551 = vcmp.ge.f32.partialorder %v473, 0.0
      %vm552 = vcmp.ge.f32.partialorder %v476, 0.0
      %vm553 = vcmp.ge.f32.partialorder %v481, 0.0
      %vm554 = vcmp.ge.f32.partialorder %v484, 0.0
      %vm555 = vcmp.ge.f32.partialorder %v489, 0.0
      %vm556 = vcmp.ge.f32.partialorder %v492, 0.0
      %vm557 = vcmp.ge.f32.partialorder %v497, 0.0
      %vm558 = vcmp.ge.f32.partialorder %v500, 0.0
      %vm559 = vcmp.ge.f32.partialorder %v505, 0.0
      %vm560 = vcmp.ge.f32.partialorder %v508, 0.0
      %vm561 = vcmp.ge.f32.partialorder %v513, 0.0
      %vm562 = vcmp.ge.f32.partialorder %v516, 0.0
      %vm563 = vcmp.ge.f32.partialorder %v521, 0.0
      %vm564 = vcmp.ge.f32.partialorder %v524, 0.0
      %vm565 = vcmp.ge.f32.partialorder %v529, 0.0
      %vm566 = vcmp.ge.f32.partialorder %v532, 0.0
      %v567 = vmul.f32 %v409, 0.1
      %v568 = vmul.f32 %v412, 0.1
      %v569 = vmul.f32 %v417, 0.1
      %v570 = vmul.f32 %v420, 0.1
      %v571 = vmul.f32 %v425, 0.1
      %v572 = vmul.f32 %v428, 0.1
      %v573 = vmul.f32 %v433, 0.1
      %v574 = vmul.f32 %v436, 0.1
      %v575 = vmul.f32 %v441, 0.1
      %v576 = vmul.f32 %v444, 0.1
      %v577 = vmul.f32 %v449, 0.1
      %v578 = vmul.f32 %v452, 0.1
      %v579 = vmul.f32 %v457, 0.1
      %v580 = vmul.f32 %v460, 0.1
      %v581 = vmul.f32 %v465, 0.1
      %v582 = vmul.f32 %v468, 0.1
      %v583 = vmul.f32 %v473, 0.1
      %v584 = vmul.f32 %v476, 0.1
      %v585 = vmul.f32 %v481, 0.1
      %v586 = vmul.f32 %v484, 0.1
      %v587 = vmul.f32 %v489, 0.1
      %v588 = vmul.f32 %v492, 0.1
      %v589 = vmul.f32 %v497, 0.1
      %v590 = vmul.f32 %v500, 0.1
      %v591 = vmul.f32 %v505, 0.1
      %v592 = vmul.f32 %v508, 0.1
      %v593 = vmul.f32 %v513, 0.1
      %v594 = vmul.f32 %v516, 0.1
      %v595 = vmul.f32 %v521, 0.1
      %v596 = vmul.f32 %v524, 0.1
      %v597 = vmul.f32 %v529, 0.1
      %v598 = vmul.f32 %v532, 0.1
      %v599 = vsel %vm535, %v409, %v567
      %v600 = vsel %vm536, %v412, %v568
      %v601 = vsel %vm537, %v417, %v569
      %v602 = vsel %vm538, %v420, %v570
      %v603 = vsel %vm539, %v425, %v571
      %v604 = vsel %vm540, %v428, %v572
      %v605 = vsel %vm541, %v433, %v573
      %v606 = vsel %vm542, %v436, %v574
      %v607 = vsel %vm543, %v441, %v575
      %v608 = vsel %vm544, %v444, %v576
      %v609 = vsel %vm545, %v449, %v577
      %v610 = vsel %vm546, %v452, %v578
      %v611 = vsel %vm547, %v457, %v579
      %v612 = vsel %vm548, %v460, %v580
      %v613 = vsel %vm549, %v465, %v581
      %v614 = vsel %vm550, %v468, %v582
      %v615 = vsel %vm551, %v473, %v583
      %v616 = vsel %vm552, %v476, %v584
      %v617 = vsel %vm553, %v481, %v585
      %v618 = vsel %vm554, %v484, %v586
      %v619 = vsel %vm555, %v489, %v587
      %v620 = vsel %vm556, %v492, %v588
      %v621 = vsel %vm557, %v497, %v589
      %v622 = vsel %vm558, %v500, %v590
      %v623 = vsel %vm559, %v505, %v591
      %v624 = vsel %vm560, %v508, %v592
      %v625 = vsel %vm561, %v513, %v593
      %v626 = vsel %vm562, %v516, %v594
      %v627 = vsel %vm563, %v521, %v595
      %v628 = vsel %vm564, %v524, %v596
      %v629 = vsel %vm565, %v529, %v597
      %v630 = vsel %vm566, %v532, %v598
      %631 = vst [vmem:[%s172] sm:$0xff] %v599
      %632 = vst [vmem:[%s172 + $0x8] sm:$0xff] %v600
      %633 = vst [vmem:[%s172 + $0x10] sm:$0xff] %v601
      %634 = vst [vmem:[%s172 + $0x18] sm:$0xff] %v602
      %635 = vst [vmem:[%s172 + $0x20] sm:$0xff] %v603
      %636 = vst [vmem:[%s172 + $0x28] sm:$0xff] %v604
      %637 = vst [vmem:[%s172 + $0x30] sm:$0xff] %v605
      %638 = vst [vmem:[%s172 + $0x38] sm:$0xff] %v606
      %639 = vst [vmem:[%s172 + $0x40] sm:$0xff] %v607
      %640 = vst [vmem:[%s172 + $0x48] sm:$0xff] %v608
      %641 = vst [vmem:[%s172 + $0x50] sm:$0xff] %v609
      %642 = vst [vmem:[%s172 + $0x58] sm:$0xff] %v610
      %643 = vst [vmem:[%s172 + $0x60] sm:$0xff] %v611
      %644 = vst [vmem:[%s172 + $0x68] sm:$0xff] %v612
      %645 = vst [vmem:[%s172 + $0x70] sm:$0xff] %v613
      %646 = vst [vmem:[%s172 + $0x78] sm:$0xff] %v614
      %647 = vst [vmem:[%s172 + $0x80] sm:$0xff] %v615
      %648 = vst [vmem:[%s172 + $0x88] sm:$0xff] %v616
      %649 = vst [vmem:[%s172 + $0x90] sm:$0xff] %v617
      %650 = vst [vmem:[%s172 + $0x98] sm:$0xff] %v618
      %651 = vst [vmem:[%s172 + $0xa0] sm:$0xff] %v619
      %652 = vst [vmem:[%s172 + $0xa8] sm:$0xff] %v620
      %653 = vst [vmem:[%s172 + $0xb0] sm:$0xff] %v621
      %654 = vst [vmem:[%s172 + $0xb8] sm:$0xff] %v622
      %655 = vst [vmem:[%s172 + $0xc0] sm:$0xff] %v623
      %656 = vst [vmem:[%s172 + $0xc8] sm:$0xff] %v624
      %657 = vst [vmem:[%s172 + $0xd0] sm:$0xff] %v625
      %658 = vst [vmem:[%s172 + $0xd8] sm:$0xff] %v626
      %659 = vst [vmem:[%s172 + $0xe0] sm:$0xff] %v627
      %660 = vst [vmem:[%s172 + $0xe8] sm:$0xff] %v628
      %661 = vst [vmem:[%s172 + $0xf0] sm:$0xff] %v629
      %662 = vst [vmem:[%s172 + $0xf8] sm:$0xff] %v630
      %s663 = smul.u32 32, %s14
      %p664 = scmp.lt.s32.totalorder %s663, 63
      %s665 = scalar_select %p664, %s663, 63
      %s666 = smul.addr %s665, 8
      %s667 = scalar_lea.vmem %s3, %s666
      // Predicated region
      $region33: #{pi_model_forward.11} parent=31 // pred_check
        %p668 = pneg %p100
      $region34: #{pi_model_forward.11} parent=31 // pred_check_branch
        %670 = sbr.rel (%p668) target = $region36
      $region35: #{pi_model_forward.11} parent=31 // pred_region
        %s671 = smul.u32 32, %s14
      $region36: #{pi_model_forward.11} parent=31 // pred_fallthru
        _
    $region32: #{pi_model_forward.11} parent=5 // pred_fallthru
      _
    %p672 = scmp.le.s32.totalorder 2, %s9
    // Predicated region
    $region37: #{pi_model_forward.11} parent=5 // pred_check
      %p673 = pneg %p672
    $region38: #{pi_model_forward.11} parent=5 // pred_check_branch
      %675 = sbr.rel (%p673) target = $region40
    $region39: #{pi_model_forward.11} parent=5 // pred_region
      %s676 = ssub.s32 %s9, 2
      // Predicated region
      $region41: #{pi_model_forward.11} parent=39 // pred_check
        %p677 = pneg %p106
      $region42: #{pi_model_forward.11} parent=39 // pred_check_branch
        %679 = sbr.rel (%p677) target = $region44
      $region43: #{pi_model_forward.11} parent=39 // pred_region
        %s680 = smul.u32 32, %s15
        %p681 = scmp.lt.s32.totalorder %s680, 63
        %s682 = scalar_select %p681, %s680, 63
        %s683 = smul.addr %s682, 8
        %s684 = scalar_lea.vmem %s3, %s683
      $region44: #{pi_model_forward.11} parent=39 // pred_fallthru
        _
    $region40: #{pi_model_forward.11} parent=5 // pred_fallthru
      _
  $region6: #{pi_model_forward.11} parent=0 // loop_footer
    %s13 = sadd.s32 1, %s9
  $region7: #{pi_model_forward.11} parent=0 // loop_footer_branch
    %8 = sbr.rel target = $region3
  $region8: #{pi_model_forward.11} parent=0 // loop_exit
    _

// kernel: pi_model_forward.14
$region0: #{pi_model_forward.14}
  #allocation0 [shape = 'u32[]', space=smem, size = 0x4, offset = 0x4, fixed_abs, tag = 'smem constant byte address 0x4 - core index']
  #allocation1 [shape = 'u32[144,128]{1,0:T(1,128)}', space=vmem, size = 0x12000, scoped, tag = 'internal scratch']
  %s0 = inlined_call_operand.vmem [shape: f32[128,128], index: 0, kind: input, shape index: {}]
  %s1 = inlined_call_operand.vmem [shape: f32[128,128], index: 1, kind: input, shape index: {}]
  %s2 = inlined_call_operand.vmem [shape: f32[128,128], index: 2, kind: input, shape index: {}]
  %s3 = inlined_call_operand.vmem [shape: f32[128,128], index: 3, kind: input, shape index: {}]
  %s4 = inlined_call_operand.vmem [shape: f32[128,128], index: 4, kind: output, shape index: {}]
  %s5 = sld [smem:[#allocation0]]
  $region26: #{pi_model_forward.14} parent=0
    _
  %s7 = ssub.s32 1, %s5
  %s8 = scalar_select 0, %s7, %s5
  // Predicated region
  $region2: #{pi_model_forward.14} parent=0 // pred_check
    _
  $region3: #{pi_model_forward.14} parent=0 // pred_check_branch
    %10 = sbr.rel (0) target = $region5
  $region4: #{pi_model_forward.14} parent=0 // pred_region
    _
  $region5: #{pi_model_forward.14} parent=0 // pred_fallthru
    _
  // Predicated region
  $region6: #{pi_model_forward.14} parent=0 // pred_check
    _
  $region7: #{pi_model_forward.14} parent=0 // pred_check_branch
    %12 = sbr.rel (0) target = $region9
  $region8: #{pi_model_forward.14} parent=0 // pred_region
    _
  $region9: #{pi_model_forward.14} parent=0 // pred_fallthru
    _
  // Predicated region
  $region10: #{pi_model_forward.14} parent=0 // pred_check
    _
  $region11: #{pi_model_forward.14} parent=0 // pred_check_branch
    %14 = sbr.rel (0) target = $region13
  $region12: #{pi_model_forward.14} parent=0 // pred_region
    _
  $region13: #{pi_model_forward.14} parent=0 // pred_fallthru
    _
  // Predicated region
  $region14: #{pi_model_forward.14} parent=0 // pred_check
    _
  $region15: #{pi_model_forward.14} parent=0 // pred_check_branch
    %16 = sbr.rel (0) target = $region17
  $region16: #{pi_model_forward.14} parent=0 // pred_region
    _
  $region17: #{pi_model_forward.14} parent=0 // pred_fallthru
    _
  %v17 = vld [vmem:[%s0] sm:$0xff]
  %v18 = vld [vmem:[%s0 + $0x8] sm:$0xff]
  %v19 = vld [vmem:[%s0 + $0x10] sm:$0xff]
  %v20 = vld [vmem:[%s0 + $0x18] sm:$0xff]
  %v21 = vld [vmem:[%s0 + $0x20] sm:$0xff]
  %v22 = vld [vmem:[%s0 + $0x28] sm:$0xff]
  %v23 = vld [vmem:[%s0 + $0x30] sm:$0xff]
  %v24 = vld [vmem:[%s0 + $0x38] sm:$0xff]
  %v25 = vld [vmem:[%s0 + $0x40] sm:$0xff]
  %v26 = vld [vmem:[%s0 + $0x48] sm:$0xff]
  %v27 = vld [vmem:[%s0 + $0x50] sm:$0xff]
  %v28 = vld [vmem:[%s0 + $0x58] sm:$0xff]
  %v29 = vld [vmem:[%s0 + $0x60] sm:$0xff]
  %v30 = vld [vmem:[%s0 + $0x68] sm:$0xff]
  %v31 = vld [vmem:[%s0 + $0x70] sm:$0xff]
  %v32 = vld [vmem:[%s0 + $0x78] sm:$0xff]
  %v33 = vld [vmem:[%s1] sm:$0xff]
  %v34 = vld [vmem:[%s1 + $0x8] sm:$0xff]
  %v35 = vld [vmem:[%s1 + $0x10] sm:$0xff]
  %v36 = vld [vmem:[%s1 + $0x18] sm:$0xff]
  %v37 = vld [vmem:[%s1 + $0x20] sm:$0xff]
  %v38 = vld [vmem:[%s1 + $0x28] sm:$0xff]
  %v39 = vld [vmem:[%s1 + $0x30] sm:$0xff]
  %v40 = vld [vmem:[%s1 + $0x38] sm:$0xff]
  %v41 = vld [vmem:[%s1 + $0x40] sm:$0xff]
  %v42 = vld [vmem:[%s1 + $0x48] sm:$0xff]
  %v43 = vld [vmem:[%s1 + $0x50] sm:$0xff]
  %v44 = vld [vmem:[%s1 + $0x58] sm:$0xff]
  %v45 = vld [vmem:[%s1 + $0x60] sm:$0xff]
  %v46 = vld [vmem:[%s1 + $0x68] sm:$0xff]
  %v47 = vld [vmem:[%s1 + $0x70] sm:$0xff]
  %v48 = vld [vmem:[%s1 + $0x78] sm:$0xff]
  %v49 = vmax.f32 %v17, %v33
  %v50 = vmax.f32 %v18, %v34
  %v51 = vmax.f32 %v19, %v35
  %v52 = vmax.f32 %v20, %v36
  %v53 = vmax.f32 %v21, %v37
  %v54 = vmax.f32 %v22, %v38
  %v55 = vmax.f32 %v23, %v39
  %v56 = vmax.f32 %v24, %v40
  %v57 = vmax.f32 %v25, %v41
  %v58 = vmax.f32 %v26, %v42
  %v59 = vmax.f32 %v27, %v43
  %v60 = vmax.f32 %v28, %v44
  %v61 = vmax.f32 %v29, %v45
  %v62 = vmax.f32 %v30, %v46
  %v63 = vmax.f32 %v31, %v47
  %v64 = vmax.f32 %v32, %v48
  %v65 = vld [vmem:[%s2] sm:$0xff]
  %v66 = vld [vmem:[%s2 + $0x8] sm:$0xff]
  %v67 = vld [vmem:[%s2 + $0x10] sm:$0xff]
  %v68 = vld [vmem:[%s2 + $0x18] sm:$0xff]
  %v69 = vld [vmem:[%s2 + $0x20] sm:$0xff]
  %v70 = vld [vmem:[%s2 + $0x28] sm:$0xff]
  %v71 = vld [vmem:[%s2 + $0x30] sm:$0xff]
  %v72 = vld [vmem:[%s2 + $0x38] sm:$0xff]
  %v73 = vld [vmem:[%s2 + $0x40] sm:$0xff]
  %v74 = vld [vmem:[%s2 + $0x48] sm:$0xff]
  %v75 = vld [vmem:[%s2 + $0x50] sm:$0xff]
  %v76 = vld [vmem:[%s2 + $0x58] sm:$0xff]
  %v77 = vld [vmem:[%s2 + $0x60] sm:$0xff]
  %v78 = vld [vmem:[%s2 + $0x68] sm:$0xff]
  %v79 = vld [vmem:[%s2 + $0x70] sm:$0xff]
  %v80 = vld [vmem:[%s2 + $0x78] sm:$0xff]
  %v81 = vld [vmem:[%s3] sm:$0xff]
  %v82 = vld [vmem:[%s3 + $0x8] sm:$0xff]
  %v83 = vld [vmem:[%s3 + $0x10] sm:$0xff]
  %v84 = vld [vmem:[%s3 + $0x18] sm:$0xff]
  %v85 = vld [vmem:[%s3 + $0x20] sm:$0xff]
  %v86 = vld [vmem:[%s3 + $0x28] sm:$0xff]
  %v87 = vld [vmem:[%s3 + $0x30] sm:$0xff]
  %v88 = vld [vmem:[%s3 + $0x38] sm:$0xff]
  %v89 = vld [vmem:[%s3 + $0x40] sm:$0xff]
  %v90 = vld [vmem:[%s3 + $0x48] sm:$0xff]
  %v91 = vld [vmem:[%s3 + $0x50] sm:$0xff]
  %v92 = vld [vmem:[%s3 + $0x58] sm:$0xff]
  %v93 = vld [vmem:[%s3 + $0x60] sm:$0xff]
  %v94 = vld [vmem:[%s3 + $0x68] sm:$0xff]
  %v95 = vld [vmem:[%s3 + $0x70] sm:$0xff]
  %v96 = vld [vmem:[%s3 + $0x78] sm:$0xff]
  %v97 = vmax.f32 %v65, %v81
  %v98 = vmax.f32 %v66, %v82
  %v99 = vmax.f32 %v67, %v83
  %v100 = vmax.f32 %v68, %v84
  %v101 = vmax.f32 %v69, %v85
  %v102 = vmax.f32 %v70, %v86
  %v103 = vmax.f32 %v71, %v87
  %v104 = vmax.f32 %v72, %v88
  %v105 = vmax.f32 %v73, %v89
  %v106 = vmax.f32 %v74, %v90
  %v107 = vmax.f32 %v75, %v91
  %v108 = vmax.f32 %v76, %v92
  %v109 = vmax.f32 %v77, %v93
  %v110 = vmax.f32 %v78, %v94
  %v111 = vmax.f32 %v79, %v95
  %v112 = vmax.f32 %v80, %v96
  %v113 = vmax.f32 %v49, %v97
  %v114 = vmax.f32 %v50, %v98
  %v115 = vmax.f32 %v51, %v99
  %v116 = vmax.f32 %v52, %v100
  %v117 = vmax.f32 %v53, %v101
  %v118 = vmax.f32 %v54, %v102
  %v119 = vmax.f32 %v55, %v103
  %v120 = vmax.f32 %v56, %v104
  %v121 = vmax.f32 %v57, %v105
  %v122 = vmax.f32 %v58, %v106
  %v123 = vmax.f32 %v59, %v107
  %v124 = vmax.f32 %v60, %v108
  %v125 = vmax.f32 %v61, %v109
  %v126 = vmax.f32 %v62, %v110
  %v127 = vmax.f32 %v63, %v111
  %v128 = vmax.f32 %v64, %v112
  %129 = vst [vmem:[%s4] sm:$0xff] %v113
  %130 = vst [vmem:[%s4 + $0x8] sm:$0xff] %v114
  %131 = vst [vmem:[%s4 + $0x10] sm:$0xff] %v115
  %132 = vst [vmem:[%s4 + $0x18] sm:$0xff] %v116
  %133 = vst [vmem:[%s4 + $0x20] sm:$0xff] %v117
  %134 = vst [vmem:[%s4 + $0x28] sm:$0xff] %v118
  %135 = vst [vmem:[%s4 + $0x30] sm:$0xff] %v119
  %136 = vst [vmem:[%s4 + $0x38] sm:$0xff] %v120
  %137 = vst [vmem:[%s4 + $0x40] sm:$0xff] %v121
  %138 = vst [vmem:[%s4 + $0x48] sm:$0xff] %v122
  %139 = vst [vmem:[%s4 + $0x50] sm:$0xff] %v123
  %140 = vst [vmem:[%s4 + $0x58] sm:$0xff] %v124
  %141 = vst [vmem:[%s4 + $0x60] sm:$0xff] %v125
  %142 = vst [vmem:[%s4 + $0x68] sm:$0xff] %v126
  %143 = vst [vmem:[%s4 + $0x70] sm:$0xff] %v127
  %144 = vst [vmem:[%s4 + $0x78] sm:$0xff] %v128
  // Predicated region
  $region18: #{pi_model_forward.14} parent=0 // pred_check
    _
  $region19: #{pi_model_forward.14} parent=0 // pred_check_branch
    %146 = sbr.rel (0) target = $region21
  $region20: #{pi_model_forward.14} parent=0 // pred_region
    _
  $region21: #{pi_model_forward.14} parent=0 // pred_fallthru
    _
  // Predicated region
  $region22: #{pi_model_forward.14} parent=0 // pred_check
    _
  $region23: #{pi_model_forward.14} parent=0 // pred_check_branch
    %148 = sbr.rel (0) target = $region25
  $region24: #{pi_model_forward.14} parent=0 // pred_region
    _
  $region25: #{pi_model_forward.14} parent=0 // pred_fallthru
    _

// kernel: pi_model_forward.12
$region0: #{pi_model_forward.12}
  #allocation0 [shape = 'u32[]', space=smem, size = 0x4, offset = 0x4, fixed_abs, tag = 'smem constant byte address 0x4 - core index']
  #allocation1 [shape = 'u32[144,128]{1,0:T(1,128)}', space=vmem, size = 0x12000, scoped, tag = 'internal scratch']
  %s0 = inlined_call_operand.vmem [shape: bf16[512,1152], index: 0, kind: input, shape index: {}]
  %s1 = inlined_call_operand.vmem [shape: bf16[1152,128], index: 1, kind: input, shape index: {}]
  %s2 = inlined_call_operand.vmem [shape: f32[1,128], index: 2, kind: input, shape index: {}]
  %s3 = inlined_call_operand.vmem [shape: f32[512,128], index: 3, kind: output, shape index: {}]
  %s4 = sld [smem:[#allocation0]]
  $region45: #{pi_model_forward.12} parent=0
    _
  %s6 = ssub.s32 1, %s4
  %s7 = scalar_select 0, %s6, %s4
  loop: start=0, step=1, limit=4
  $region2: #{pi_model_forward.12} parent=0 // loop_pre_header
    _
  $region3: #{pi_model_forward.12} parent=0 // loop_header
    %s9 = sphi 0, %s13
    %p10 = scmp.ge.s32.totalorder %s9, 4
    %s19 = sphi 0, %s21
    %s22 = sphi 0, %s19
    %s23 = sphi 0, %s22
    %s39 = sphi 0, %s23
    %s43 = sphi 0, %s43
    %s45 = sphi 0, %s43
    %s46 = sphi 0, %s45
    %s60 = sphi 0, %s46
    %s64 = sphi 0, %s64
    %s66 = sphi 0, %s64
    %s67 = sphi 0, %s66
    %s81 = sphi 0, %s67
    %s87 = sphi 0, %s89
    %s90 = sphi 0, %s87
    %s91 = sphi 0, %s90
    %s107 = sphi 0, %s91
  $region4: #{pi_model_forward.12} parent=0 // loop_header_branch
    %12 = sbr.rel (%p10) target = $region8
  $region5: #{pi_model_forward.12} parent=0 // loop_body
    %s14 = ssub.s32 %s9, 1
    %s15 = ssub.s32 %s9, 2
    %s16 = sadd.s32 %s9, 1
    %s17 = ssub.s32 %s9, %s16
    %p18 = scmp.eq.s32.totalorder %s17, 0
    %s20 = sadd.s32 %s19, 1
    %s21 = scalar_select %p18, %s19, %s20
    %p24 = pneg %p18
    %p25 = scmp.eq.s32.totalorder %s9, 1
    %p26 = por %p24, %p25
    %p27 = scmp.ne.s32.totalorder %s19, %s22
    %p28 = scmp.eq.s32.totalorder %s9, 0
    %p29 = por %p27, %p28
    %p30 = scmp.ne.s32.totalorder %s19, %s22
    %p31 = scmp.eq.s32.totalorder %s14, 1
    %p32 = por %p30, %p31
    %p33 = scmp.ne.s32.totalorder %s22, %s23
    %p34 = scmp.eq.s32.totalorder %s14, 0
    %p35 = por %p33, %p34
    %p36 = scmp.ne.s32.totalorder %s22, %s23
    %p37 = scmp.eq.s32.totalorder %s15, 1
    %p38 = por %p36, %p37
    %p40 = scmp.ne.s32.totalorder %s23, %s39
    %p41 = scmp.eq.s32.totalorder %s15, 0
    %p42 = por %p40, %p41
    %s44 = sadd.s32 %s43, 1
    %p47 = scmp.eq.s32.totalorder %s9, 1
    %p48 = scmp.ne.s32.totalorder %s43, %s45
    %p49 = scmp.eq.s32.totalorder %s9, 0
    %p50 = por %p48, %p49
    %p51 = scmp.ne.s32.totalorder %s43, %s45
    %p52 = scmp.eq.s32.totalorder %s14, 1
    %p53 = por %p51, %p52
    %p54 = scmp.ne.s32.totalorder %s45, %s46
    %p55 = scmp.eq.s32.totalorder %s14, 0
    %p56 = por %p54, %p55
    %p57 = scmp.ne.s32.totalorder %s45, %s46
    %p58 = scmp.eq.s32.totalorder %s15, 1
    %p59 = por %p57, %p58
    %p61 = scmp.ne.s32.totalorder %s46, %s60
    %p62 = scmp.eq.s32.totalorder %s15, 0
    %p63 = por %p61, %p62
    %s65 = sadd.s32 %s64, 1
    %p68 = scmp.eq.s32.totalorder %s9, 1
    %p69 = scmp.ne.s32.totalorder %s64, %s66
    %p70 = scmp.eq.s32.totalorder %s9, 0
    %p71 = por %p69, %p70
    %p72 = scmp.ne.s32.totalorder %s64, %s66
    %p73 = scmp.eq.s32.totalorder %s14, 1
    %p74 = por %p72, %p73
    %p75 = scmp.ne.s32.totalorder %s66, %s67
    %p76 = scmp.eq.s32.totalorder %s14, 0
    %p77 = por %p75, %p76
    %p78 = scmp.ne.s32.totalorder %s66, %s67
    %p79 = scmp.eq.s32.totalorder %s15, 1
    %p80 = por %p78, %p79
    %p82 = scmp.ne.s32.totalorder %s67, %s81
    %p83 = scmp.eq.s32.totalorder %s15, 0
    %p84 = por %p82, %p83
    %s85 = ssub.s32 %s9, %s16
    %p86 = scmp.eq.s32.totalorder %s85, 0
    %s88 = sadd.s32 %s87, 1
    %s89 = scalar_select %p86, %s87, %s88
    %p92 = pneg %p86
    %p93 = scmp.eq.s32.totalorder %s9, 1
    %p94 = por %p92, %p93
    %p95 = scmp.ne.s32.totalorder %s87, %s90
    %p96 = scmp.eq.s32.totalorder %s9, 0
    %p97 = por %p95, %p96
    %p98 = scmp.ne.s32.totalorder %s87, %s90
    %p99 = scmp.eq.s32.totalorder %s14, 1
    %p100 = por %p98, %p99
    %p101 = scmp.ne.s32.totalorder %s90, %s91
    %p102 = scmp.eq.s32.totalorder %s14, 0
    %p103 = por %p101, %p102
    %p104 = scmp.ne.s32.totalorder %s90, %s91
    %p105 = scmp.eq.s32.totalorder %s15, 1
    %p106 = por %p104, %p105
    %p108 = scmp.ne.s32.totalorder %s91, %s107
    %p109 = scmp.eq.s32.totalorder %s15, 0
    %p110 = por %p108, %p109
    %p111 = scmp.le.s32.totalorder 1, %s9
    %p112 = scmp.lt.s32.totalorder %s9, 3
    %p113 = pnand %p111, %p112
    %p114 = pneg %p113
    // Predicated region
    $region9: #{pi_model_forward.12} parent=5 // pred_check
      _
    $region10: #{pi_model_forward.12} parent=5 // pred_check_branch
      %116 = sbr.rel (%p113) target = $region12
    $region11: #{pi_model_forward.12} parent=5 // pred_region
      %s117 = ssub.s32 %s9, 1
      // Predicated region
      $region13: #{pi_model_forward.12} parent=11 // pred_check
        %p118 = pneg %p56
      $region14: #{pi_model_forward.12} parent=11 // pred_check_branch
        %120 = sbr.rel (%p118) target = $region16
      $region15: #{pi_model_forward.12} parent=11 // pred_region
        _
      $region16: #{pi_model_forward.12} parent=11 // pred_fallthru
        _
      // Predicated region
      $region17: #{pi_model_forward.12} parent=11 // pred_check
        %p121 = pneg %p77
      $region18: #{pi_model_forward.12} parent=11 // pred_check_branch
        %123 = sbr.rel (%p121) target = $region20
      $region19: #{pi_model_forward.12} parent=11 // pred_region
        _
      $region20: #{pi_model_forward.12} parent=11 // pred_fallthru
        _
    $region12: #{pi_model_forward.12} parent=5 // pred_fallthru
      _
    %p124 = scmp.lt.s32.totalorder %s9, 2
    // Predicated region
    $region21: #{pi_model_forward.12} parent=5 // pred_check
      %p125 = pneg %p124
    $region22: #{pi_model_forward.12} parent=5 // pred_check_branch
      %127 = sbr.rel (%p125) target = $region24
    $region23: #{pi_model_forward.12} parent=5 // pred_region
      // Predicated region
      $region25: #{pi_model_forward.12} parent=23 // pred_check
        %p128 = pneg %p29
      $region26: #{pi_model_forward.12} parent=23 // pred_check_branch
        %130 = sbr.rel (%p128) target = $region28
      $region27: #{pi_model_forward.12} parent=23 // pred_region
        %s131 = smul.u32 32, %s9
        %p132 = scmp.lt.s32.totalorder %s131, 63
        %s133 = scalar_select %p132, %s131, 63
        %s134 = smul.addr %s133, 9
        %s135 = smul.addr %s134, 4
        %s136 = scalar_lea.vmem %s0, %s135
        %s137 = smul.u32 32, %s9
      $region28: #{pi_model_forward.12} parent=23 // pred_fallthru
        _
    $region24: #{pi_model_forward.12} parent=5 // pred_fallthru
      _
    %p138 = scmp.le.s32.totalorder 1, %s9
    %p139 = scmp.lt.s32.totalorder %s9, 3
    %p140 = pnand %p138, %p139
    %p141 = pneg %p140
    // Predicated region
    $region29: #{pi_model_forward.12} parent=5 // pred_check
      _
    $region30: #{pi_model_forward.12} parent=5 // pred_check_branch
      %143 = sbr.rel (%p140) target = $region32
    $region31: #{pi_model_forward.12} parent=5 // pred_region
      %s144 = ssub.s32 %s9, 1
      %s145 = smul.u32 32, %s14
      %p146 = scmp.lt.s32.totalorder %s145, 63
      %s147 = scalar_select %p146, %s145, 63
      %s148 = smul.addr %s147, 9
      %s149 = smul.addr %s148, 4
      %s150 = scalar_lea.vmem %s0, %s149
      %p151 = pneg %p35
      %p152 = pneg %p32
      %p153 = pneg %p56
      %p154 = pneg %p53
      %p155 = pneg %p77
      %p156 = pneg %p74
      %p157 = pneg %p103
      %p158 = pneg %p100
      %s159 = smul.u32 32, %s14
      %p160 = scmp.lt.s32.totalorder %s159, 63
      %s161 = scalar_select %p160, %s159, 63
      %s162 = smul.addr %s161, 8
      %s163 = scalar_lea.vmem %s3, %s162
      %s164 = smul.u32 32, %s14
      %p165 = scmp.lt.s32.totalorder %s164, 63
      %s166 = scalar_select %p165, %s164, 63
      %s167 = smul.addr %s166, 9
      %s168 = smul.addr %s167, 4
      %s169 = scalar_lea.vmem %s0, %s168
      %s170 = smul.u32 32, %s14
      %s171 = smul.u32 32, %s14
      %p172 = scmp.lt.s32.totalorder %s171, 63
      %s173 = scalar_select %p172, %s171, 63
      %s174 = smul.addr %s173, 8
      %s175 = scalar_lea.vmem %s3, %s174
      %s176 = smul.u32 32, %s14
      %v178 = vld [vmem:[%s169] sm:$0xff]
      %v179 = vld [vmem:[%s169 + $0x8] sm:$0xff]
      %v180 = vld [vmem:[%s169 + $0x10] sm:$0xff]
      %v181 = vld [vmem:[%s169 + $0x18] sm:$0xff]
      %v182 = vld [vmem:[%s169 + $0x20] sm:$0xf]
      %v183 = vld [vmem:[%s169 + $0x24] sm:$0xff]
      %v184 = vld [vmem:[%s169 + $0x2c] sm:$0xff]
      %v185 = vld [vmem:[%s169 + $0x34] sm:$0xff]
      %v186 = vld [vmem:[%s169 + $0x3c] sm:$0xff]
      %v187 = vld [vmem:[%s169 + $0x44] sm:$0xf]
      %v188 = vld [vmem:[%s169 + $0x48] sm:$0xff]
      %v189 = vld [vmem:[%s169 + $0x50] sm:$0xff]
      %v190 = vld [vmem:[%s169 + $0x58] sm:$0xff]
      %v191 = vld [vmem:[%s169 + $0x60] sm:$0xff]
      %v192 = vld [vmem:[%s169 + $0x68] sm:$0xf]
      %v193 = vld [vmem:[%s169 + $0x6c] sm:$0xff]
      %v194 = vld [vmem:[%s169 + $0x74] sm:$0xff]
      %v195 = vld [vmem:[%s169 + $0x7c] sm:$0xff]
      %v196 = vld [vmem:[%s169 + $0x84] sm:$0xff]
      %v197 = vld [vmem:[%s169 + $0x8c] sm:$0xf]
      %v198 = vld [vmem:[%s169 + $0x90] sm:$0xff]
      %v199 = vld [vmem:[%s169 + $0x98] sm:$0xff]
      %v200 = vld [vmem:[%s169 + $0xa0] sm:$0xff]
      %v201 = vld [vmem:[%s169 + $0xa8] sm:$0xff]
      %v202 = vld [vmem:[%s169 + $0xb0] sm:$0xf]
      %v203 = vld [vmem:[%s169 + $0xb4] sm:$0xff]
      %v204 = vld [vmem:[%s169 + $0xbc] sm:$0xff]
      %v205 = vld [vmem:[%s169 + $0xc4] sm:$0xff]
      %v206 = vld [vmem:[%s169 + $0xcc] sm:$0xff]
      %v207 = vld [vmem:[%s169 + $0xd4] sm:$0xf]
      %v208 = vld [vmem:[%s169 + $0xd8] sm:$0xff]
      %v209 = vld [vmem:[%s169 + $0xe0] sm:$0xff]
      %v210 = vld [vmem:[%s169 + $0xe8] sm:$0xff]
      %v211 = vld [vmem:[%s169 + $0xf0] sm:$0xff]
      %v212 = vld [vmem:[%s169 + $0xf8] sm:$0xf]
      %v213 = vld [vmem:[%s169 + $0xfc] sm:$0xff]
      %v214 = vld [vmem:[%s169 + $0x104] sm:$0xff]
      %v215 = vld [vmem:[%s169 + $0x10c] sm:$0xff]
      %v216 = vld [vmem:[%s169 + $0x114] sm:$0xff]
      %v217 = vld [vmem:[%s169 + $0x11c] sm:$0xf]
      %v218 = vld [vmem:[%s169 + $0x120] sm:$0xff]
      %v219 = vld [vmem:[%s169 + $0x128] sm:$0xff]
      %v220 = vld [vmem:[%s169 + $0x130] sm:$0xff]
      %v221 = vld [vmem:[%s169 + $0x138] sm:$0xff]
      %v222 = vld [vmem:[%s169 + $0x140] sm:$0xf]
      %v223 = vld [vmem:[%s169 + $0x144] sm:$0xff]
      %v224 = vld [vmem:[%s169 + $0x14c] sm:$0xff]
      %v225 = vld [vmem:[%s169 + $0x154] sm:$0xff]
      %v226 = vld [vmem:[%s169 + $0x15c] sm:$0xff]
      %v227 = vld [vmem:[%s169 + $0x164] sm:$0xf]
      %v228 = vld [vmem:[%s169 + $0x168] sm:$0xff]
      %v229 = vld [vmem:[%s169 + $0x170] sm:$0xff]
      %v230 = vld [vmem:[%s169 + $0x178] sm:$0xff]
      %v231 = vld [vmem:[%s169 + $0x180] sm:$0xff]
      %v232 = vld [vmem:[%s169 + $0x188] sm:$0xf]
      %v233 = vld [vmem:[%s169 + $0x18c] sm:$0xff]
      %v234 = vld [vmem:[%s169 + $0x194] sm:$0xff]
      %v235 = vld [vmem:[%s169 + $0x19c] sm:$0xff]
      %v236 = vld [vmem:[%s169 + $0x1a4] sm:$0xff]
      %v237 = vld [vmem:[%s169 + $0x1ac] sm:$0xf]
      %v238 = vld [vmem:[%s169 + $0x1b0] sm:$0xff]
      %v239 = vld [vmem:[%s169 + $0x1b8] sm:$0xff]
      %v240 = vld [vmem:[%s169 + $0x1c0] sm:$0xff]
      %v241 = vld [vmem:[%s169 + $0x1c8] sm:$0xff]
      %v242 = vld [vmem:[%s169 + $0x1d0] sm:$0xf]
      %v243 = vld [vmem:[%s169 + $0x1d4] sm:$0xff]
      %v244 = vld [vmem:[%s169 + $0x1dc] sm:$0xff]
      %v245 = vld [vmem:[%s169 + $0x1e4] sm:$0xff]
      %v246 = vld [vmem:[%s169 + $0x1ec] sm:$0xff]
      %v247 = vld [vmem:[%s169 + $0x1f4] sm:$0xf]
      %v248 = vld [vmem:[%s169 + $0x1f8] sm:$0xff]
      %v249 = vld [vmem:[%s169 + $0x200] sm:$0xff]
      %v250 = vld [vmem:[%s169 + $0x208] sm:$0xff]
      %v251 = vld [vmem:[%s169 + $0x210] sm:$0xff]
      %v252 = vld [vmem:[%s169 + $0x218] sm:$0xf]
      %v253 = vld [vmem:[%s169 + $0x21c] sm:$0xff]
      %v254 = vld [vmem:[%s169 + $0x224] sm:$0xff]
      %v255 = vld [vmem:[%s169 + $0x22c] sm:$0xff]
      %v256 = vld [vmem:[%s169 + $0x234] sm:$0xff]
      %v257 = vld [vmem:[%s169 + $0x23c] sm:$0xf]
      %v258 = vld [vmem:[%s169 + $0x240] sm:$0xff]
      %v259 = vld [vmem:[%s169 + $0x248] sm:$0xff]
      %v260 = vld [vmem:[%s169 + $0x250] sm:$0xff]
      %v261 = vld [vmem:[%s169 + $0x258] sm:$0xff]
      %v262 = vld [vmem:[%s169 + $0x260] sm:$0xf]
      %v263 = vld [vmem:[%s169 + $0x264] sm:$0xff]
      %v264 = vld [vmem:[%s169 + $0x26c] sm:$0xff]
      %v265 = vld [vmem:[%s169 + $0x274] sm:$0xff]
      %v266 = vld [vmem:[%s169 + $0x27c] sm:$0xff]
      %v267 = vld [vmem:[%s169 + $0x284] sm:$0xf]
      %v268 = vld [vmem:[%s169 + $0x288] sm:$0xff]
      %v269 = vld [vmem:[%s169 + $0x290] sm:$0xff]
      %v270 = vld [vmem:[%s169 + $0x298] sm:$0xff]
      %v271 = vld [vmem:[%s169 + $0x2a0] sm:$0xff]
      %v272 = vld [vmem:[%s169 + $0x2a8] sm:$0xf]
      %v273 = vld [vmem:[%s169 + $0x2ac] sm:$0xff]
      %v274 = vld [vmem:[%s169 + $0x2b4] sm:$0xff]
      %v275 = vld [vmem:[%s169 + $0x2bc] sm:$0xff]
      %v276 = vld [vmem:[%s169 + $0x2c4] sm:$0xff]
      %v277 = vld [vmem:[%s169 + $0x2cc] sm:$0xf]
      %v278 = vld [vmem:[%s169 + $0x2d0] sm:$0xff]
      %v279 = vld [vmem:[%s169 + $0x2d8] sm:$0xff]
      %v280 = vld [vmem:[%s169 + $0x2e0] sm:$0xff]
      %v281 = vld [vmem:[%s169 + $0x2e8] sm:$0xff]
      %v282 = vld [vmem:[%s169 + $0x2f0] sm:$0xf]
      %v283 = vld [vmem:[%s169 + $0x2f4] sm:$0xff]
      %v284 = vld [vmem:[%s169 + $0x2fc] sm:$0xff]
      %v285 = vld [vmem:[%s169 + $0x304] sm:$0xff]
      %v286 = vld [vmem:[%s169 + $0x30c] sm:$0xff]
      %v287 = vld [vmem:[%s169 + $0x314] sm:$0xf]
      %v288 = vld [vmem:[%s169 + $0x318] sm:$0xff]
      %v289 = vld [vmem:[%s169 + $0x320] sm:$0xff]
      %v290 = vld [vmem:[%s169 + $0x328] sm:$0xff]
      %v291 = vld [vmem:[%s169 + $0x330] sm:$0xff]
      %v292 = vld [vmem:[%s169 + $0x338] sm:$0xf]
      %v293 = vld [vmem:[%s169 + $0x33c] sm:$0xff]
      %v294 = vld [vmem:[%s169 + $0x344] sm:$0xff]
      %v295 = vld [vmem:[%s169 + $0x34c] sm:$0xff]
      %v296 = vld [vmem:[%s169 + $0x354] sm:$0xff]
      %v297 = vld [vmem:[%s169 + $0x35c] sm:$0xf]
      %v298 = vld [vmem:[%s169 + $0x360] sm:$0xff]
      %v299 = vld [vmem:[%s169 + $0x368] sm:$0xff]
      %v300 = vld [vmem:[%s169 + $0x370] sm:$0xff]
      %v301 = vld [vmem:[%s169 + $0x378] sm:$0xff]
      %v302 = vld [vmem:[%s169 + $0x380] sm:$0xf]
      %v303 = vld [vmem:[%s169 + $0x384] sm:$0xff]
      %v304 = vld [vmem:[%s169 + $0x38c] sm:$0xff]
      %v305 = vld [vmem:[%s169 + $0x394] sm:$0xff]
      %v306 = vld [vmem:[%s169 + $0x39c] sm:$0xff]
      %v307 = vld [vmem:[%s169 + $0x3a4] sm:$0xf]
      %v308 = vld [vmem:[%s169 + $0x3a8] sm:$0xff]
      %v309 = vld [vmem:[%s169 + $0x3b0] sm:$0xff]
      %v310 = vld [vmem:[%s169 + $0x3b8] sm:$0xff]
      %v311 = vld [vmem:[%s169 + $0x3c0] sm:$0xff]
      %v312 = vld [vmem:[%s169 + $0x3c8] sm:$0xf]
      %v313 = vld [vmem:[%s169 + $0x3cc] sm:$0xff]
      %v314 = vld [vmem:[%s169 + $0x3d4] sm:$0xff]
      %v315 = vld [vmem:[%s169 + $0x3dc] sm:$0xff]
      %v316 = vld [vmem:[%s169 + $0x3e4] sm:$0xff]
      %v317 = vld [vmem:[%s169 + $0x3ec] sm:$0xf]
      %v318 = vld [vmem:[%s169 + $0x3f0] sm:$0xff]
      %v319 = vld [vmem:[%s169 + $0x3f8] sm:$0xff]
      %v320 = vld [vmem:[%s169 + $0x400] sm:$0xff]
      %v321 = vld [vmem:[%s169 + $0x408] sm:$0xff]
      %v322 = vld [vmem:[%s169 + $0x410] sm:$0xf]
      %v323 = vld [vmem:[%s169 + $0x414] sm:$0xff]
      %v324 = vld [vmem:[%s169 + $0x41c] sm:$0xff]
      %v325 = vld [vmem:[%s169 + $0x424] sm:$0xff]
      %v326 = vld [vmem:[%s169 + $0x42c] sm:$0xff]
      %v327 = vld [vmem:[%s169 + $0x434] sm:$0xf]
      %v328 = vld [vmem:[%s169 + $0x438] sm:$0xff]
      %v329 = vld [vmem:[%s169 + $0x440] sm:$0xff]
      %v330 = vld [vmem:[%s169 + $0x448] sm:$0xff]
      %v331 = vld [vmem:[%s169 + $0x450] sm:$0xff]
      %v332 = vld [vmem:[%s169 + $0x458] sm:$0xf]
      %v333 = vld [vmem:[%s169 + $0x45c] sm:$0xff]
      %v334 = vld [vmem:[%s169 + $0x464] sm:$0xff]
      %v335 = vld [vmem:[%s169 + $0x46c] sm:$0xff]
      %v336 = vld [vmem:[%s169 + $0x474] sm:$0xff]
      %v337 = vld [vmem:[%s169 + $0x47c] sm:$0xf]
      %v338 = vld [vmem:[%s1] sm:$0xf]
      %v339 = vld [vmem:[%s1 + $0x4] sm:$0xf]
      %v340 = vld [vmem:[%s1 + $0x8] sm:$0xf]
      %v341 = vld [vmem:[%s1 + $0xc] sm:$0xf]
      %v342 = vld [vmem:[%s1 + $0x10] sm:$0xf]
      %v343 = vld [vmem:[%s1 + $0x14] sm:$0xf]
      %v344 = vld [vmem:[%s1 + $0x18] sm:$0xf]
      %v345 = vld [vmem:[%s1 + $0x1c] sm:$0xf]
      %v346 = vld [vmem:[%s1 + $0x20] sm:$0xf]
      %v347 = vld [vmem:[%s1 + $0x24] sm:$0xf]
      %v348 = vld [vmem:[%s1 + $0x28] sm:$0xf]
      %v349 = vld [vmem:[%s1 + $0x2c] sm:$0xf]
      %v350 = vld [vmem:[%s1 + $0x30] sm:$0xf]
      %v351 = vld [vmem:[%s1 + $0x34] sm:$0xf]
      %v352 = vld [vmem:[%s1 + $0x38] sm:$0xf]
      %v353 = vld [vmem:[%s1 + $0x3c] sm:$0xf]
      %v354 = vld [vmem:[%s1 + $0x40] sm:$0xf]
      %v355 = vld [vmem:[%s1 + $0x44] sm:$0xf]
      %v356 = vld [vmem:[%s1 + $0x48] sm:$0xf]
      %v357 = vld [vmem:[%s1 + $0x4c] sm:$0xf]
      %v358 = vld [vmem:[%s1 + $0x50] sm:$0xf]
      %v359 = vld [vmem:[%s1 + $0x54] sm:$0xf]
      %v360 = vld [vmem:[%s1 + $0x58] sm:$0xf]
      %v361 = vld [vmem:[%s1 + $0x5c] sm:$0xf]
      %v362 = vld [vmem:[%s1 + $0x60] sm:$0xf]
      %v363 = vld [vmem:[%s1 + $0x64] sm:$0xf]
      %v364 = vld [vmem:[%s1 + $0x68] sm:$0xf]
      %v365 = vld [vmem:[%s1 + $0x6c] sm:$0xf]
      %v366 = vld [vmem:[%s1 + $0x70] sm:$0xf]
      %v367 = vld [vmem:[%s1 + $0x74] sm:$0xf]
      %v368 = vld [vmem:[%s1 + $0x78] sm:$0xf]
      %v369 = vld [vmem:[%s1 + $0x7c] sm:$0xf]
      %v370 = vld [vmem:[%s1 + $0x80] sm:$0xf]
      %v371 = vld [vmem:[%s1 + $0x84] sm:$0xf]
      %v372 = vld [vmem:[%s1 + $0x88] sm:$0xf]
      %v373 = vld [vmem:[%s1 + $0x8c] sm:$0xf]
      %v374 = vld [vmem:[%s1 + $0x90] sm:$0xf]
      %v375 = vld [vmem:[%s1 + $0x94] sm:$0xf]
      %v376 = vld [vmem:[%s1 + $0x98] sm:$0xf]
      %v377 = vld [vmem:[%s1 + $0x9c] sm:$0xf]
      %v378 = vld [vmem:[%s1 + $0xa0] sm:$0xf]
      %v379 = vld [vmem:[%s1 + $0xa4] sm:$0xf]
      %v380 = vld [vmem:[%s1 + $0xa8] sm:$0xf]
      %v381 = vld [vmem:[%s1 + $0xac] sm:$0xf]
      %v382 = vld [vmem:[%s1 + $0xb0] sm:$0xf]
      %v383 = vld [vmem:[%s1 + $0xb4] sm:$0xf]
      %v384 = vld [vmem:[%s1 + $0xb8] sm:$0xf]
      %v385 = vld [vmem:[%s1 + $0xbc] sm:$0xf]
      %v386 = vld [vmem:[%s1 + $0xc0] sm:$0xf]
      %v387 = vld [vmem:[%s1 + $0xc4] sm:$0xf]
      %v388 = vld [vmem:[%s1 + $0xc8] sm:$0xf]
      %v389 = vld [vmem:[%s1 + $0xcc] sm:$0xf]
      %v390 = vld [vmem:[%s1 + $0xd0] sm:$0xf]
      %v391 = vld [vmem:[%s1 + $0xd4] sm:$0xf]
      %v392 = vld [vmem:[%s1 + $0xd8] sm:$0xf]
      %v393 = vld [vmem:[%s1 + $0xdc] sm:$0xf]
      %v394 = vld [vmem:[%s1 + $0xe0] sm:$0xf]
      %v395 = vld [vmem:[%s1 + $0xe4] sm:$0xf]
      %v396 = vld [vmem:[%s1 + $0xe8] sm:$0xf]
      %v397 = vld [vmem:[%s1 + $0xec] sm:$0xf]
      %v398 = vld [vmem:[%s1 + $0xf0] sm:$0xf]
      %v399 = vld [vmem:[%s1 + $0xf4] sm:$0xf]
      %v400 = vld [vmem:[%s1 + $0xf8] sm:$0xf]
      %v401 = vld [vmem:[%s1 + $0xfc] sm:$0xf]
      %v402 = vld [vmem:[%s1 + $0x100] sm:$0xf]
      %v403 = vld [vmem:[%s1 + $0x104] sm:$0xf]
      %v404 = vld [vmem:[%s1 + $0x108] sm:$0xf]
      %v405 = vld [vmem:[%s1 + $0x10c] sm:$0xf]
      %v406 = vld [vmem:[%s1 + $0x110] sm:$0xf]
      %v407 = vld [vmem:[%s1 + $0x114] sm:$0xf]
      %v408 = vld [vmem:[%s1 + $0x118] sm:$0xf]
      %v409 = vld [vmem:[%s1 + $0x11c] sm:$0xf]
      %v410 = vld [vmem:[%s1 + $0x120] sm:$0xf]
      %v411 = vld [vmem:[%s1 + $0x124] sm:$0xf]
      %v412 = vld [vmem:[%s1 + $0x128] sm:$0xf]
      %v413 = vld [vmem:[%s1 + $0x12c] sm:$0xf]
      %v414 = vld [vmem:[%s1 + $0x130] sm:$0xf]
      %v415 = vld [vmem:[%s1 + $0x134] sm:$0xf]
      %v416 = vld [vmem:[%s1 + $0x138] sm:$0xf]
      %v417 = vld [vmem:[%s1 + $0x13c] sm:$0xf]
      %v418 = vld [vmem:[%s1 + $0x140] sm:$0xf]
      %v419 = vld [vmem:[%s1 + $0x144] sm:$0xf]
      %v420 = vld [vmem:[%s1 + $0x148] sm:$0xf]
      %v421 = vld [vmem:[%s1 + $0x14c] sm:$0xf]
      %v422 = vld [vmem:[%s1 + $0x150] sm:$0xf]
      %v423 = vld [vmem:[%s1 + $0x154] sm:$0xf]
      %v424 = vld [vmem:[%s1 + $0x158] sm:$0xf]
      %v425 = vld [vmem:[%s1 + $0x15c] sm:$0xf]
      %v426 = vld [vmem:[%s1 + $0x160] sm:$0xf]
      %v427 = vld [vmem:[%s1 + $0x164] sm:$0xf]
      %v428 = vld [vmem:[%s1 + $0x168] sm:$0xf]
      %v429 = vld [vmem:[%s1 + $0x16c] sm:$0xf]
      %v430 = vld [vmem:[%s1 + $0x170] sm:$0xf]
      %v431 = vld [vmem:[%s1 + $0x174] sm:$0xf]
      %v432 = vld [vmem:[%s1 + $0x178] sm:$0xf]
      %v433 = vld [vmem:[%s1 + $0x17c] sm:$0xf]
      %v434 = vld [vmem:[%s1 + $0x180] sm:$0xf]
      %v435 = vld [vmem:[%s1 + $0x184] sm:$0xf]
      %v436 = vld [vmem:[%s1 + $0x188] sm:$0xf]
      %v437 = vld [vmem:[%s1 + $0x18c] sm:$0xf]
      %v438 = vld [vmem:[%s1 + $0x190] sm:$0xf]
      %v439 = vld [vmem:[%s1 + $0x194] sm:$0xf]
      %v440 = vld [vmem:[%s1 + $0x198] sm:$0xf]
      %v441 = vld [vmem:[%s1 + $0x19c] sm:$0xf]
      %v442 = vld [vmem:[%s1 + $0x1a0] sm:$0xf]
      %v443 = vld [vmem:[%s1 + $0x1a4] sm:$0xf]
      %v444 = vld [vmem:[%s1 + $0x1a8] sm:$0xf]
      %v445 = vld [vmem:[%s1 + $0x1ac] sm:$0xf]
      %v446 = vld [vmem:[%s1 + $0x1b0] sm:$0xf]
      %v447 = vld [vmem:[%s1 + $0x1b4] sm:$0xf]
      %v448 = vld [vmem:[%s1 + $0x1b8] sm:$0xf]
      %v449 = vld [vmem:[%s1 + $0x1bc] sm:$0xf]
      %v450 = vld [vmem:[%s1 + $0x1c0] sm:$0xf]
      %v451 = vld [vmem:[%s1 + $0x1c4] sm:$0xf]
      %v452 = vld [vmem:[%s1 + $0x1c8] sm:$0xf]
      %v453 = vld [vmem:[%s1 + $0x1cc] sm:$0xf]
      %v454 = vld [vmem:[%s1 + $0x1d0] sm:$0xf]
      %v455 = vld [vmem:[%s1 + $0x1d4] sm:$0xf]
      %v456 = vld [vmem:[%s1 + $0x1d8] sm:$0xf]
      %v457 = vld [vmem:[%s1 + $0x1dc] sm:$0xf]
      %v458 = vld [vmem:[%s1 + $0x1e0] sm:$0xf]
      %v459 = vld [vmem:[%s1 + $0x1e4] sm:$0xf]
      %v460 = vld [vmem:[%s1 + $0x1e8] sm:$0xf]
      %v461 = vld [vmem:[%s1 + $0x1ec] sm:$0xf]
      %v462 = vld [vmem:[%s1 + $0x1f0] sm:$0xf]
      %v463 = vld [vmem:[%s1 + $0x1f4] sm:$0xf]
      %v464 = vld [vmem:[%s1 + $0x1f8] sm:$0xf]
      %v465 = vld [vmem:[%s1 + $0x1fc] sm:$0xf]
      %v466 = vld [vmem:[%s1 + $0x200] sm:$0xf]
      %v467 = vld [vmem:[%s1 + $0x204] sm:$0xf]
      %v468 = vld [vmem:[%s1 + $0x208] sm:$0xf]
      %v469 = vld [vmem:[%s1 + $0x20c] sm:$0xf]
      %v470 = vld [vmem:[%s1 + $0x210] sm:$0xf]
      %v471 = vld [vmem:[%s1 + $0x214] sm:$0xf]
      %v472 = vld [vmem:[%s1 + $0x218] sm:$0xf]
      %v473 = vld [vmem:[%s1 + $0x21c] sm:$0xf]
      %v474 = vld [vmem:[%s1 + $0x220] sm:$0xf]
      %v475 = vld [vmem:[%s1 + $0x224] sm:$0xf]
      %v476 = vld [vmem:[%s1 + $0x228] sm:$0xf]
      %v477 = vld [vmem:[%s1 + $0x22c] sm:$0xf]
      %v478 = vld [vmem:[%s1 + $0x230] sm:$0xf]
      %v479 = vld [vmem:[%s1 + $0x234] sm:$0xf]
      %v480 = vld [vmem:[%s1 + $0x238] sm:$0xf]
      %v481 = vld [vmem:[%s1 + $0x23c] sm:$0xf]
      %v482 = vld [vmem:[%s2] sm:$0x1]
      %v484 = vlaneseq
      %v485 = vshrl.u32 %v484, 7
      %v486 = vsub.s32 0, %v485
      %v487 = vrot.slane %v482, %v486
      %v649 = vunpack.c.l.b16 %v178
      %v650 = vunpack.c.h.b16 %v178
      %v651 = vunpack.c.l.b16 %v179
      %v652 = vunpack.c.h.b16 %v179
      %v653 = vunpack.c.l.b16 %v180
      %v654 = vunpack.c.h.b16 %v180
      %v655 = vunpack.c.l.b16 %v181
      %v656 = vunpack.c.h.b16 %v181
      %v657 = vunpack.c.l.b16 %v182
      %v658 = vunpack.c.l.b16 %v183
      %v659 = vunpack.c.h.b16 %v183
      %v660 = vunpack.c.l.b16 %v184
      %v661 = vunpack.c.h.b16 %v184
      %v662 = vunpack.c.l.b16 %v185
      %v663 = vunpack.c.h.b16 %v185
      %v664 = vunpack.c.l.b16 %v186
      %v665 = vunpack.c.h.b16 %v186
      %v666 = vunpack.c.l.b16 %v187
      %v667 = vunpack.c.l.b16 %v188
      %v668 = vunpack.c.h.b16 %v188
      %v669 = vunpack.c.l.b16 %v189
      %v670 = vunpack.c.h.b16 %v189
      %v671 = vunpack.c.l.b16 %v190
      %v672 = vunpack.c.h.b16 %v190
      %v673 = vunpack.c.l.b16 %v191
      %v674 = vunpack.c.h.b16 %v191
      %v675 = vunpack.c.l.b16 %v192
      %v676 = vunpack.c.l.b16 %v193
      %v677 = vunpack.c.h.b16 %v193
      %v678 = vunpack.c.l.b16 %v194
      %v679 = vunpack.c.h.b16 %v194
      %v680 = vunpack.c.l.b16 %v195
      %v681 = vunpack.c.h.b16 %v195
      %v682 = vunpack.c.l.b16 %v196
      %v683 = vunpack.c.h.b16 %v196
      %v684 = vunpack.c.l.b16 %v197
      %v685 = vunpack.c.l.b16 %v198
      %v686 = vunpack.c.h.b16 %v198
      %v687 = vunpack.c.l.b16 %v199
      %v688 = vunpack.c.h.b16 %v199
      %v689 = vunpack.c.l.b16 %v200
      %v690 = vunpack.c.h.b16 %v200
      %v691 = vunpack.c.l.b16 %v201
      %v692 = vunpack.c.h.b16 %v201
      %v693 = vunpack.c.l.b16 %v202
      %v694 = vunpack.c.l.b16 %v203
      %v695 = vunpack.c.h.b16 %v203
      %v696 = vunpack.c.l.b16 %v204
      %v697 = vunpack.c.h.b16 %v204
      %v698 = vunpack.c.l.b16 %v205
      %v699 = vunpack.c.h.b16 %v205
      %v700 = vunpack.c.l.b16 %v206
      %v701 = vunpack.c.h.b16 %v206
      %v702 = vunpack.c.l.b16 %v207
      %v703 = vunpack.c.l.b16 %v208
      %v704 = vunpack.c.h.b16 %v208
      %v705 = vunpack.c.l.b16 %v209
      %v706 = vunpack.c.h.b16 %v209
      %v707 = vunpack.c.l.b16 %v210
      %v708 = vunpack.c.h.b16 %v210
      %v709 = vunpack.c.l.b16 %v211
      %v710 = vunpack.c.h.b16 %v211
      %v711 = vunpack.c.l.b16 %v212
      %v712 = vunpack.c.l.b16 %v213
      %v713 = vunpack.c.h.b16 %v213
      %v714 = vunpack.c.l.b16 %v214
      %v715 = vunpack.c.h.b16 %v214
      %v716 = vunpack.c.l.b16 %v215
      %v717 = vunpack.c.h.b16 %v215
      %v718 = vunpack.c.l.b16 %v216
      %v719 = vunpack.c.h.b16 %v216
      %v720 = vunpack.c.l.b16 %v217
      %v721 = vunpack.c.l.b16 %v218
      %v722 = vunpack.c.h.b16 %v218
      %v723 = vunpack.c.l.b16 %v219
      %v724 = vunpack.c.h.b16 %v219
      %v725 = vunpack.c.l.b16 %v220
      %v726 = vunpack.c.h.b16 %v220
      %v727 = vunpack.c.l.b16 %v221
      %v728 = vunpack.c.h.b16 %v221
      %v729 = vunpack.c.l.b16 %v222
      %v730 = vunpack.c.l.b16 %v223
      %v731 = vunpack.c.h.b16 %v223
      %v732 = vunpack.c.l.b16 %v224
      %v733 = vunpack.c.h.b16 %v224
      %v734 = vunpack.c.l.b16 %v225
      %v735 = vunpack.c.h.b16 %v225
      %v736 = vunpack.c.l.b16 %v226
      %v737 = vunpack.c.h.b16 %v226
      %v738 = vunpack.c.l.b16 %v227
      %v739 = vunpack.c.l.b16 %v228
      %v740 = vunpack.c.h.b16 %v228
      %v741 = vunpack.c.l.b16 %v229
      %v742 = vunpack.c.h.b16 %v229
      %v743 = vunpack.c.l.b16 %v230
      %v744 = vunpack.c.h.b16 %v230
      %v745 = vunpack.c.l.b16 %v231
      %v746 = vunpack.c.h.b16 %v231
      %v747 = vunpack.c.l.b16 %v232
      %v748 = vunpack.c.l.b16 %v233
      %v749 = vunpack.c.h.b16 %v233
      %v750 = vunpack.c.l.b16 %v234
      %v751 = vunpack.c.h.b16 %v234
      %v752 = vunpack.c.l.b16 %v235
      %v753 = vunpack.c.h.b16 %v235
      %v754 = vunpack.c.l.b16 %v236
      %v755 = vunpack.c.h.b16 %v236
      %v756 = vunpack.c.l.b16 %v237
      %v757 = vunpack.c.l.b16 %v238
      %v758 = vunpack.c.h.b16 %v238
      %v759 = vunpack.c.l.b16 %v239
      %v760 = vunpack.c.h.b16 %v239
      %v761 = vunpack.c.l.b16 %v240
      %v762 = vunpack.c.h.b16 %v240
      %v763 = vunpack.c.l.b16 %v241
      %v764 = vunpack.c.h.b16 %v241
      %v765 = vunpack.c.l.b16 %v242
      %v766 = vunpack.c.l.b16 %v243
      %v767 = vunpack.c.h.b16 %v243
      %v768 = vunpack.c.l.b16 %v244
      %v769 = vunpack.c.h.b16 %v244
      %v770 = vunpack.c.l.b16 %v245
      %v771 = vunpack.c.h.b16 %v245
      %v772 = vunpack.c.l.b16 %v246
      %v773 = vunpack.c.h.b16 %v246
      %v774 = vunpack.c.l.b16 %v247
      %v775 = vunpack.c.l.b16 %v248
      %v776 = vunpack.c.h.b16 %v248
      %v777 = vunpack.c.l.b16 %v249
      %v778 = vunpack.c.h.b16 %v249
      %v779 = vunpack.c.l.b16 %v250
      %v780 = vunpack.c.h.b16 %v250
      %v781 = vunpack.c.l.b16 %v251
      %v782 = vunpack.c.h.b16 %v251
      %v783 = vunpack.c.l.b16 %v252
      %v784 = vunpack.c.l.b16 %v253
      %v785 = vunpack.c.h.b16 %v253
      %v786 = vunpack.c.l.b16 %v254
      %v787 = vunpack.c.h.b16 %v254
      %v788 = vunpack.c.l.b16 %v255
      %v789 = vunpack.c.h.b16 %v255
      %v790 = vunpack.c.l.b16 %v256
      %v791 = vunpack.c.h.b16 %v256
      %v792 = vunpack.c.l.b16 %v257
      %v793 = vunpack.c.l.b16 %v258
      %v794 = vunpack.c.h.b16 %v258
      %v795 = vunpack.c.l.b16 %v259
      %v796 = vunpack.c.h.b16 %v259
      %v797 = vunpack.c.l.b16 %v260
      %v798 = vunpack.c.h.b16 %v260
      %v799 = vunpack.c.l.b16 %v261
      %v800 = vunpack.c.h.b16 %v261
      %v801 = vunpack.c.l.b16 %v262
      %v802 = vunpack.c.l.b16 %v263
      %v803 = vunpack.c.h.b16 %v263
      %v804 = vunpack.c.l.b16 %v264
      %v805 = vunpack.c.h.b16 %v264
      %v806 = vunpack.c.l.b16 %v265
      %v807 = vunpack.c.h.b16 %v265
      %v808 = vunpack.c.l.b16 %v266
      %v809 = vunpack.c.h.b16 %v266
      %v810 = vunpack.c.l.b16 %v267
      %v811 = vunpack.c.l.b16 %v268
      %v812 = vunpack.c.h.b16 %v268
      %v813 = vunpack.c.l.b16 %v269
      %v814 = vunpack.c.h.b16 %v269
      %v815 = vunpack.c.l.b16 %v270
      %v816 = vunpack.c.h.b16 %v270
      %v817 = vunpack.c.l.b16 %v271
      %v818 = vunpack.c.h.b16 %v271
      %v819 = vunpack.c.l.b16 %v272
      %v820 = vunpack.c.l.b16 %v273
      %v821 = vunpack.c.h.b16 %v273
      %v822 = vunpack.c.l.b16 %v274
      %v823 = vunpack.c.h.b16 %v274
      %v824 = vunpack.c.l.b16 %v275
      %v825 = vunpack.c.h.b16 %v275
      %v826 = vunpack.c.l.b16 %v276
      %v827 = vunpack.c.h.b16 %v276
      %v828 = vunpack.c.l.b16 %v277
      %v829 = vunpack.c.l.b16 %v278
      %v830 = vunpack.c.h.b16 %v278
      %v831 = vunpack.c.l.b16 %v279
      %v832 = vunpack.c.h.b16 %v279
      %v833 = vunpack.c.l.b16 %v280
      %v834 = vunpack.c.h.b16 %v280
      %v835 = vunpack.c.l.b16 %v281
      %v836 = vunpack.c.h.b16 %v281
      %v837 = vunpack.c.l.b16 %v282
      %v838 = vunpack.c.l.b16 %v283
      %v839 = vunpack.c.h.b16 %v283
      %v840 = vunpack.c.l.b16 %v284
      %v841 = vunpack.c.h.b16 %v284
      %v842 = vunpack.c.l.b16 %v285
      %v843 = vunpack.c.h.b16 %v285
      %v844 = vunpack.c.l.b16 %v286
      %v845 = vunpack.c.h.b16 %v286
      %v846 = vunpack.c.l.b16 %v287
      %v847 = vunpack.c.l.b16 %v288
      %v848 = vunpack.c.h.b16 %v288
      %v849 = vunpack.c.l.b16 %v289
      %v850 = vunpack.c.h.b16 %v289
      %v851 = vunpack.c.l.b16 %v290
      %v852 = vunpack.c.h.b16 %v290
      %v853 = vunpack.c.l.b16 %v291
      %v854 = vunpack.c.h.b16 %v291
      %v855 = vunpack.c.l.b16 %v292
      %v856 = vunpack.c.l.b16 %v293
      %v857 = vunpack.c.h.b16 %v293
      %v858 = vunpack.c.l.b16 %v294
      %v859 = vunpack.c.h.b16 %v294
      %v860 = vunpack.c.l.b16 %v295
      %v861 = vunpack.c.h.b16 %v295
      %v862 = vunpack.c.l.b16 %v296
      %v863 = vunpack.c.h.b16 %v296
      %v864 = vunpack.c.l.b16 %v297
      %v865 = vunpack.c.l.b16 %v298
      %v866 = vunpack.c.h.b16 %v298
      %v867 = vunpack.c.l.b16 %v299
      %v868 = vunpack.c.h.b16 %v299
      %v869 = vunpack.c.l.b16 %v300
      %v870 = vunpack.c.h.b16 %v300
      %v871 = vunpack.c.l.b16 %v301
      %v872 = vunpack.c.h.b16 %v301
      %v873 = vunpack.c.l.b16 %v302
      %v874 = vunpack.c.l.b16 %v303
      %v875 = vunpack.c.h.b16 %v303
      %v876 = vunpack.c.l.b16 %v304
      %v877 = vunpack.c.h.b16 %v304
      %v878 = vunpack.c.l.b16 %v305
      %v879 = vunpack.c.h.b16 %v305
      %v880 = vunpack.c.l.b16 %v306
      %v881 = vunpack.c.h.b16 %v306
      %v882 = vunpack.c.l.b16 %v307
      %v883 = vunpack.c.l.b16 %v308
      %v884 = vunpack.c.h.b16 %v308
      %v885 = vunpack.c.l.b16 %v309
      %v886 = vunpack.c.h.b16 %v309
      %v887 = vunpack.c.l.b16 %v310
      %v888 = vunpack.c.h.b16 %v310
      %v889 = vunpack.c.l.b16 %v311
      %v890 = vunpack.c.h.b16 %v311
      %v891 = vunpack.c.l.b16 %v312
      %v892 = vunpack.c.l.b16 %v313
      %v893 = vunpack.c.h.b16 %v313
      %v894 = vunpack.c.l.b16 %v314
      %v895 = vunpack.c.h.b16 %v314
      %v896 = vunpack.c.l.b16 %v315
      %v897 = vunpack.c.h.b16 %v315
      %v898 = vunpack.c.l.b16 %v316
      %v899 = vunpack.c.h.b16 %v316
      %v900 = vunpack.c.l.b16 %v317
      %v901 = vunpack.c.l.b16 %v318
      %v902 = vunpack.c.h.b16 %v318
      %v903 = vunpack.c.l.b16 %v319
      %v904 = vunpack.c.h.b16 %v319
      %v905 = vunpack.c.l.b16 %v320
      %v906 = vunpack.c.h.b16 %v320
      %v907 = vunpack.c.l.b16 %v321
      %v908 = vunpack.c.h.b16 %v321
      %v909 = vunpack.c.l.b16 %v322
      %v910 = vunpack.c.l.b16 %v323
      %v911 = vunpack.c.h.b16 %v323
      %v912 = vunpack.c.l.b16 %v324
      %v913 = vunpack.c.h.b16 %v324
      %v914 = vunpack.c.l.b16 %v325
      %v915 = vunpack.c.h.b16 %v325
      %v916 = vunpack.c.l.b16 %v326
      %v917 = vunpack.c.h.b16 %v326
      %v918 = vunpack.c.l.b16 %v327
      %v919 = vunpack.c.l.b16 %v328
      %v920 = vunpack.c.h.b16 %v328
      %v921 = vunpack.c.l.b16 %v329
      %v922 = vunpack.c.h.b16 %v329
      %v923 = vunpack.c.l.b16 %v330
      %v924 = vunpack.c.h.b16 %v330
      %v925 = vunpack.c.l.b16 %v331
      %v926 = vunpack.c.h.b16 %v331
      %v927 = vunpack.c.l.b16 %v332
      %v928 = vunpack.c.l.b16 %v333
      %v929 = vunpack.c.h.b16 %v333
      %v930 = vunpack.c.l.b16 %v334
      %v931 = vunpack.c.h.b16 %v334
      %v932 = vunpack.c.l.b16 %v335
      %v933 = vunpack.c.h.b16 %v335
      %v934 = vunpack.c.l.b16 %v336
      %v935 = vunpack.c.h.b16 %v336
      %v936 = vunpack.c.l.b16 %v337
      %v937 = vpack.c.b16 %v658, %v649
      %v938 = vpack.c.b16 %v659, %v650
      %v939 = vpack.c.b16 %v660, %v651
      %v940 = vpack.c.b16 %v661, %v652
      %v941 = vpack.c.b16 %v662, %v653
      %v942 = vpack.c.b16 %v663, %v654
      %v943 = vpack.c.b16 %v664, %v655
      %v944 = vpack.c.b16 %v665, %v656
      %v945 = vpack.c.b16 %v666, %v657
      %v946 = vpack.c.b16 %v676, %v667
      %v947 = vpack.c.b16 %v677, %v668
      %v948 = vpack.c.b16 %v678, %v669
      %v949 = vpack.c.b16 %v679, %v670
      %v950 = vpack.c.b16 %v680, %v671
      %v951 = vpack.c.b16 %v681, %v672
      %v952 = vpack.c.b16 %v682, %v673
      %v953 = vpack.c.b16 %v683, %v674
      %v954 = vpack.c.b16 %v684, %v675
      %v955 = vpack.c.b16 %v694, %v685
      %v956 = vpack.c.b16 %v695, %v686
      %v957 = vpack.c.b16 %v696, %v687
      %v958 = vpack.c.b16 %v697, %v688
      %v959 = vpack.c.b16 %v698, %v689
      %v960 = vpack.c.b16 %v699, %v690
      %v961 = vpack.c.b16 %v700, %v691
      %v962 = vpack.c.b16 %v701, %v692
      %v963 = vpack.c.b16 %v702, %v693
      %v964 = vpack.c.b16 %v712, %v703
      %v965 = vpack.c.b16 %v713, %v704
      %v966 = vpack.c.b16 %v714, %v705
      %v967 = vpack.c.b16 %v715, %v706
      %v968 = vpack.c.b16 %v716, %v707
      %v969 = vpack.c.b16 %v717, %v708
      %v970 = vpack.c.b16 %v718, %v709
      %v971 = vpack.c.b16 %v719, %v710
      %v972 = vpack.c.b16 %v720, %v711
      %v973 = vpack.c.b16 %v730, %v721
      %v974 = vpack.c.b16 %v731, %v722
      %v975 = vpack.c.b16 %v732, %v723
      %v976 = vpack.c.b16 %v733, %v724
      %v977 = vpack.c.b16 %v734, %v725
      %v978 = vpack.c.b16 %v735, %v726
      %v979 = vpack.c.b16 %v736, %v727
      %v980 = vpack.c.b16 %v737, %v728
      %v981 = vpack.c.b16 %v738, %v729
      %v982 = vpack.c.b16 %v748, %v739
      %v983 = vpack.c.b16 %v749, %v740
      %v984 = vpack.c.b16 %v750, %v741
      %v985 = vpack.c.b16 %v751, %v742
      %v986 = vpack.c.b16 %v752, %v743
      %v987 = vpack.c.b16 %v753, %v744
      %v988 = vpack.c.b16 %v754, %v745
      %v989 = vpack.c.b16 %v755, %v746
      %v990 = vpack.c.b16 %v756, %v747
      %v991 = vpack.c.b16 %v766, %v757
      %v992 = vpack.c.b16 %v767, %v758
      %v993 = vpack.c.b16 %v768, %v759
      %v994 = vpack.c.b16 %v769, %v760
      %v995 = vpack.c.b16 %v770, %v761
      %v996 = vpack.c.b16 %v771, %v762
      %v997 = vpack.c.b16 %v772, %v763
      %v998 = vpack.c.b16 %v773, %v764
      %v999 = vpack.c.b16 %v774, %v765
      %v1000 = vpack.c.b16 %v784, %v775
      %v1001 = vpack.c.b16 %v785, %v776
      %v1002 = vpack.c.b16 %v786, %v777
      %v1003 = vpack.c.b16 %v787, %v778
      %v1004 = vpack.c.b16 %v788, %v779
      %v1005 = vpack.c.b16 %v789, %v780
      %v1006 = vpack.c.b16 %v790, %v781
      %v1007 = vpack.c.b16 %v791, %v782
      %v1008 = vpack.c.b16 %v792, %v783
      %v1009 = vpack.c.b16 %v802, %v793
      %v1010 = vpack.c.b16 %v803, %v794
      %v1011 = vpack.c.b16 %v804, %v795
      %v1012 = vpack.c.b16 %v805, %v796
      %v1013 = vpack.c.b16 %v806, %v797
      %v1014 = vpack.c.b16 %v807, %v798
      %v1015 = vpack.c.b16 %v808, %v799
      %v1016 = vpack.c.b16 %v809, %v800
      %v1017 = vpack.c.b16 %v810, %v801
      %v1018 = vpack.c.b16 %v820, %v811
      %v1019 = vpack.c.b16 %v821, %v812
      %v1020 = vpack.c.b16 %v822, %v813
      %v1021 = vpack.c.b16 %v823, %v814
      %v1022 = vpack.c.b16 %v824, %v815
      %v1023 = vpack.c.b16 %v825, %v816
      %v1024 = vpack.c.b16 %v826, %v817
      %v1025 = vpack.c.b16 %v827, %v818
      %v1026 = vpack.c.b16 %v828, %v819
      %v1027 = vpack.c.b16 %v838, %v829
      %v1028 = vpack.c.b16 %v839, %v830
      %v1029 = vpack.c.b16 %v840, %v831
      %v1030 = vpack.c.b16 %v841, %v832
      %v1031 = vpack.c.b16 %v842, %v833
      %v1032 = vpack.c.b16 %v843, %v834
      %v1033 = vpack.c.b16 %v844, %v835
      %v1034 = vpack.c.b16 %v845, %v836
      %v1035 = vpack.c.b16 %v846, %v837
      %v1036 = vpack.c.b16 %v856, %v847
      %v1037 = vpack.c.b16 %v857, %v848
      %v1038 = vpack.c.b16 %v858, %v849
      %v1039 = vpack.c.b16 %v859, %v850
      %v1040 = vpack.c.b16 %v860, %v851
      %v1041 = vpack.c.b16 %v861, %v852
      %v1042 = vpack.c.b16 %v862, %v853
      %v1043 = vpack.c.b16 %v863, %v854
      %v1044 = vpack.c.b16 %v864, %v855
      %v1045 = vpack.c.b16 %v874, %v865
      %v1046 = vpack.c.b16 %v875, %v866
      %v1047 = vpack.c.b16 %v876, %v867
      %v1048 = vpack.c.b16 %v877, %v868
      %v1049 = vpack.c.b16 %v878, %v869
      %v1050 = vpack.c.b16 %v879, %v870
      %v1051 = vpack.c.b16 %v880, %v871
      %v1052 = vpack.c.b16 %v881, %v872
      %v1053 = vpack.c.b16 %v882, %v873
      %v1054 = vpack.c.b16 %v892, %v883
      %v1055 = vpack.c.b16 %v893, %v884
      %v1056 = vpack.c.b16 %v894, %v885
      %v1057 = vpack.c.b16 %v895, %v886
      %v1058 = vpack.c.b16 %v896, %v887
      %v1059 = vpack.c.b16 %v897, %v888
      %v1060 = vpack.c.b16 %v898, %v889
      %v1061 = vpack.c.b16 %v899, %v890
      %v1062 = vpack.c.b16 %v900, %v891
      %v1063 = vpack.c.b16 %v910, %v901
      %v1064 = vpack.c.b16 %v911, %v902
      %v1065 = vpack.c.b16 %v912, %v903
      %v1066 = vpack.c.b16 %v913, %v904
      %v1067 = vpack.c.b16 %v914, %v905
      %v1068 = vpack.c.b16 %v915, %v906
      %v1069 = vpack.c.b16 %v916, %v907
      %v1070 = vpack.c.b16 %v917, %v908
      %v1071 = vpack.c.b16 %v918, %v909
      %v1072 = vpack.c.b16 %v928, %v919
      %v1073 = vpack.c.b16 %v929, %v920
      %v1074 = vpack.c.b16 %v930, %v921
      %v1075 = vpack.c.b16 %v931, %v922
      %v1076 = vpack.c.b16 %v932, %v923
      %v1077 = vpack.c.b16 %v933, %v924
      %v1078 = vpack.c.b16 %v934, %v925
      %v1079 = vpack.c.b16 %v935, %v926
      %v1080 = vpack.c.b16 %v936, %v927
      %v1369 = vunpack.c.l.b16 %v338
      %v1370 = vunpack.c.l.b16 %v339
      %v1371 = vunpack.c.l.b16 %v340
      %v1372 = vunpack.c.l.b16 %v341
      %v1373 = vunpack.c.l.b16 %v342
      %v1374 = vunpack.c.l.b16 %v343
      %v1375 = vunpack.c.l.b16 %v344
      %v1376 = vunpack.c.l.b16 %v345
      %v1377 = vunpack.c.l.b16 %v346
      %v1378 = vunpack.c.l.b16 %v347
      %v1379 = vunpack.c.l.b16 %v348
      %v1380 = vunpack.c.l.b16 %v349
      %v1381 = vunpack.c.l.b16 %v350
      %v1382 = vunpack.c.l.b16 %v351
      %v1383 = vunpack.c.l.b16 %v352
      %v1384 = vunpack.c.l.b16 %v353
      %v1385 = vunpack.c.l.b16 %v354
      %v1386 = vunpack.c.l.b16 %v355
      %v1387 = vunpack.c.l.b16 %v356
      %v1388 = vunpack.c.l.b16 %v357
      %v1389 = vunpack.c.l.b16 %v358
      %v1390 = vunpack.c.l.b16 %v359
      %v1391 = vunpack.c.l.b16 %v360
      %v1392 = vunpack.c.l.b16 %v361
      %v1393 = vunpack.c.l.b16 %v362
      %v1394 = vunpack.c.l.b16 %v363
      %v1395 = vunpack.c.l.b16 %v364
      %v1396 = vunpack.c.l.b16 %v365
      %v1397 = vunpack.c.l.b16 %v366
      %v1398 = vunpack.c.l.b16 %v367
      %v1399 = vunpack.c.l.b16 %v368
      %v1400 = vunpack.c.l.b16 %v369
      %v1401 = vunpack.c.l.b16 %v370
      %v1402 = vunpack.c.l.b16 %v371
      %v1403 = vunpack.c.l.b16 %v372
      %v1404 = vunpack.c.l.b16 %v373
      %v1405 = vunpack.c.l.b16 %v374
      %v1406 = vunpack.c.l.b16 %v375
      %v1407 = vunpack.c.l.b16 %v376
      %v1408 = vunpack.c.l.b16 %v377
      %v1409 = vunpack.c.l.b16 %v378
      %v1410 = vunpack.c.l.b16 %v379
      %v1411 = vunpack.c.l.b16 %v380
      %v1412 = vunpack.c.l.b16 %v381
      %v1413 = vunpack.c.l.b16 %v382
      %v1414 = vunpack.c.l.b16 %v383
      %v1415 = vunpack.c.l.b16 %v384
      %v1416 = vunpack.c.l.b16 %v385
      %v1417 = vunpack.c.l.b16 %v386
      %v1418 = vunpack.c.l.b16 %v387
      %v1419 = vunpack.c.l.b16 %v388
      %v1420 = vunpack.c.l.b16 %v389
      %v1421 = vunpack.c.l.b16 %v390
      %v1422 = vunpack.c.l.b16 %v391
      %v1423 = vunpack.c.l.b16 %v392
      %v1424 = vunpack.c.l.b16 %v393
      %v1425 = vunpack.c.l.b16 %v394
      %v1426 = vunpack.c.l.b16 %v395
      %v1427 = vunpack.c.l.b16 %v396
      %v1428 = vunpack.c.l.b16 %v397
      %v1429 = vunpack.c.l.b16 %v398
      %v1430 = vunpack.c.l.b16 %v399
      %v1431 = vunpack.c.l.b16 %v400
      %v1432 = vunpack.c.l.b16 %v401
      %v1433 = vunpack.c.l.b16 %v402
      %v1434 = vunpack.c.l.b16 %v403
      %v1435 = vunpack.c.l.b16 %v404
      %v1436 = vunpack.c.l.b16 %v405
      %v1437 = vunpack.c.l.b16 %v406
      %v1438 = vunpack.c.l.b16 %v407
      %v1439 = vunpack.c.l.b16 %v408
      %v1440 = vunpack.c.l.b16 %v409
      %v1441 = vunpack.c.l.b16 %v410
      %v1442 = vunpack.c.l.b16 %v411
      %v1443 = vunpack.c.l.b16 %v412
      %v1444 = vunpack.c.l.b16 %v413
      %v1445 = vunpack.c.l.b16 %v414
      %v1446 = vunpack.c.l.b16 %v415
      %v1447 = vunpack.c.l.b16 %v416
      %v1448 = vunpack.c.l.b16 %v417
      %v1449 = vunpack.c.l.b16 %v418
      %v1450 = vunpack.c.l.b16 %v419
      %v1451 = vunpack.c.l.b16 %v420
      %v1452 = vunpack.c.l.b16 %v421
      %v1453 = vunpack.c.l.b16 %v422
      %v1454 = vunpack.c.l.b16 %v423
      %v1455 = vunpack.c.l.b16 %v424
      %v1456 = vunpack.c.l.b16 %v425
      %v1457 = vunpack.c.l.b16 %v426
      %v1458 = vunpack.c.l.b16 %v427
      %v1459 = vunpack.c.l.b16 %v428
      %v1460 = vunpack.c.l.b16 %v429
      %v1461 = vunpack.c.l.b16 %v430
      %v1462 = vunpack.c.l.b16 %v431
      %v1463 = vunpack.c.l.b16 %v432
      %v1464 = vunpack.c.l.b16 %v433
      %v1465 = vunpack.c.l.b16 %v434
      %v1466 = vunpack.c.l.b16 %v435
      %v1467 = vunpack.c.l.b16 %v436
      %v1468 = vunpack.c.l.b16 %v437
      %v1469 = vunpack.c.l.b16 %v438
      %v1470 = vunpack.c.l.b16 %v439
      %v1471 = vunpack.c.l.b16 %v440
      %v1472 = vunpack.c.l.b16 %v441
      %v1473 = vunpack.c.l.b16 %v442
      %v1474 = vunpack.c.l.b16 %v443
      %v1475 = vunpack.c.l.b16 %v444
      %v1476 = vunpack.c.l.b16 %v445
      %v1477 = vunpack.c.l.b16 %v446
      %v1478 = vunpack.c.l.b16 %v447
      %v1479 = vunpack.c.l.b16 %v448
      %v1480 = vunpack.c.l.b16 %v449
      %v1481 = vunpack.c.l.b16 %v450
      %v1482 = vunpack.c.l.b16 %v451
      %v1483 = vunpack.c.l.b16 %v452
      %v1484 = vunpack.c.l.b16 %v453
      %v1485 = vunpack.c.l.b16 %v454
      %v1486 = vunpack.c.l.b16 %v455
      %v1487 = vunpack.c.l.b16 %v456
      %v1488 = vunpack.c.l.b16 %v457
      %v1489 = vunpack.c.l.b16 %v458
      %v1490 = vunpack.c.l.b16 %v459
      %v1491 = vunpack.c.l.b16 %v460
      %v1492 = vunpack.c.l.b16 %v461
      %v1493 = vunpack.c.l.b16 %v462
      %v1494 = vunpack.c.l.b16 %v463
      %v1495 = vunpack.c.l.b16 %v464
      %v1496 = vunpack.c.l.b16 %v465
      %v1497 = vunpack.c.l.b16 %v466
      %v1498 = vunpack.c.l.b16 %v467
      %v1499 = vunpack.c.l.b16 %v468
      %v1500 = vunpack.c.l.b16 %v469
      %v1501 = vunpack.c.l.b16 %v470
      %v1502 = vunpack.c.l.b16 %v471
      %v1503 = vunpack.c.l.b16 %v472
      %v1504 = vunpack.c.l.b16 %v473
      %v1505 = vunpack.c.l.b16 %v474
      %v1506 = vunpack.c.l.b16 %v475
      %v1507 = vunpack.c.l.b16 %v476
      %v1508 = vunpack.c.l.b16 %v477
      %v1509 = vunpack.c.l.b16 %v478
      %v1510 = vunpack.c.l.b16 %v479
      %v1511 = vunpack.c.l.b16 %v480
      %v1512 = vunpack.c.l.b16 %v481
      %v1513 = vpack.c.b16 %v1370, %v1369
      %v1514 = vpack.c.b16 %v1372, %v1371
      %v1515 = vpack.c.b16 %v1374, %v1373
      %v1516 = vpack.c.b16 %v1376, %v1375
      %v1517 = vpack.c.b16 %v1378, %v1377
      %v1518 = vpack.c.b16 %v1380, %v1379
      %v1519 = vpack.c.b16 %v1382, %v1381
      %v1520 = vpack.c.b16 %v1384, %v1383
      %v1521 = vpack.c.b16 %v1386, %v1385
      %v1522 = vpack.c.b16 %v1388, %v1387
      %v1523 = vpack.c.b16 %v1390, %v1389
      %v1524 = vpack.c.b16 %v1392, %v1391
      %v1525 = vpack.c.b16 %v1394, %v1393
      %v1526 = vpack.c.b16 %v1396, %v1395
      %v1527 = vpack.c.b16 %v1398, %v1397
      %v1528 = vpack.c.b16 %v1400, %v1399
      %v1529 = vpack.c.b16 %v1402, %v1401
      %v1530 = vpack.c.b16 %v1404, %v1403
      %v1531 = vpack.c.b16 %v1406, %v1405
      %v1532 = vpack.c.b16 %v1408, %v1407
      %v1533 = vpack.c.b16 %v1410, %v1409
      %v1534 = vpack.c.b16 %v1412, %v1411
      %v1535 = vpack.c.b16 %v1414, %v1413
      %v1536 = vpack.c.b16 %v1416, %v1415
      %v1537 = vpack.c.b16 %v1418, %v1417
      %v1538 = vpack.c.b16 %v1420, %v1419
      %v1539 = vpack.c.b16 %v1422, %v1421
      %v1540 = vpack.c.b16 %v1424, %v1423
      %v1541 = vpack.c.b16 %v1426, %v1425
      %v1542 = vpack.c.b16 %v1428, %v1427
      %v1543 = vpack.c.b16 %v1430, %v1429
      %v1544 = vpack.c.b16 %v1432, %v1431
      %v1545 = vpack.c.b16 %v1434, %v1433
      %v1546 = vpack.c.b16 %v1436, %v1435
      %v1547 = vpack.c.b16 %v1438, %v1437
      %v1548 = vpack.c.b16 %v1440, %v1439
      %v1549 = vpack.c.b16 %v1442, %v1441
      %v1550 = vpack.c.b16 %v1444, %v1443
      %v1551 = vpack.c.b16 %v1446, %v1445
      %v1552 = vpack.c.b16 %v1448, %v1447
      %v1553 = vpack.c.b16 %v1450, %v1449
      %v1554 = vpack.c.b16 %v1452, %v1451
      %v1555 = vpack.c.b16 %v1454, %v1453
      %v1556 = vpack.c.b16 %v1456, %v1455
      %v1557 = vpack.c.b16 %v1458, %v1457
      %v1558 = vpack.c.b16 %v1460, %v1459
      %v1559 = vpack.c.b16 %v1462, %v1461
      %v1560 = vpack.c.b16 %v1464, %v1463
      %v1561 = vpack.c.b16 %v1466, %v1465
      %v1562 = vpack.c.b16 %v1468, %v1467
      %v1563 = vpack.c.b16 %v1470, %v1469
      %v1564 = vpack.c.b16 %v1472, %v1471
      %v1565 = vpack.c.b16 %v1474, %v1473
      %v1566 = vpack.c.b16 %v1476, %v1475
      %v1567 = vpack.c.b16 %v1478, %v1477
      %v1568 = vpack.c.b16 %v1480, %v1479
      %v1569 = vpack.c.b16 %v1482, %v1481
      %v1570 = vpack.c.b16 %v1484, %v1483
      %v1571 = vpack.c.b16 %v1486, %v1485
      %v1572 = vpack.c.b16 %v1488, %v1487
      %v1573 = vpack.c.b16 %v1490, %v1489
      %v1574 = vpack.c.b16 %v1492, %v1491
      %v1575 = vpack.c.b16 %v1494, %v1493
      %v1576 = vpack.c.b16 %v1496, %v1495
      %v1577 = vpack.c.b16 %v1498, %v1497
      %v1578 = vpack.c.b16 %v1500, %v1499
      %v1579 = vpack.c.b16 %v1502, %v1501
      %v1580 = vpack.c.b16 %v1504, %v1503
      %v1581 = vpack.c.b16 %v1506, %v1505
      %v1582 = vpack.c.b16 %v1508, %v1507
      %v1583 = vpack.c.b16 %v1510, %v1509
      %v1584 = vpack.c.b16 %v1512, %v1511
      %1657 = vmatprep.subr.bf16.mxu0 0
      %1658 = vmatpush1.bf16.msra.mxu0 %v1513
      %1659 = vmatprep.subr.bf16.mxu0 0
      %1660 = vmatpush1.bf16.msra.mxu0 %v1514
      %1661 = vmatprep.subr.bf16.mxu0 0
      %1662 = vmatpush1.bf16.msra.mxu0 %v1515
      %1663 = vmatprep.subr.bf16.mxu0 0
      %1664 = vmatpush1.bf16.msra.mxu0 %v1516
      %1665 = vmatprep.subr.bf16.mxu0 0
      %1666 = vmatpush1.bf16.msra.mxu0 %v1517
      %1667 = vmatprep.subr.bf16.mxu0 0
      %1668 = vmatpush1.bf16.msra.mxu0 %v1518
      %1669 = vmatprep.subr.bf16.mxu0 0
      %1670 = vmatpush1.bf16.msra.mxu0 %v1519
      %1671 = vmatprep.subr.bf16.mxu0 0
      %1672 = vmatpush1.bf16.msra.mxu0 %v1520
      %1673 = vmatprep.subr.bf16.mxu0 0
      %1674 = vmatpush1.bf16.msra.mxu0 %v1521
      %1675 = vmatprep.subr.bf16.mxu0 0
      %1676 = vmatpush1.bf16.msra.mxu0 %v1522
      %1677 = vmatprep.subr.bf16.mxu0 0
      %1678 = vmatpush1.bf16.msra.mxu0 %v1523
      %1679 = vmatprep.subr.bf16.mxu0 0
      %1680 = vmatpush1.bf16.msra.mxu0 %v1524
      %1681 = vmatprep.subr.bf16.mxu0 0
      %1682 = vmatpush1.bf16.msra.mxu0 %v1525
      %1683 = vmatprep.subr.bf16.mxu0 0
      %1684 = vmatpush1.bf16.msra.mxu0 %v1526
      %1685 = vmatprep.subr.bf16.mxu0 0
      %1686 = vmatpush1.bf16.msra.mxu0 %v1527
      %1687 = vmatprep.subr.bf16.mxu0 0
      %1688 = vmatpush1.bf16.msra.mxu0 %v1528
      %1689 = vmatprep.mubr.bf16.mxu0 %v938
      %1690 = vmatmul.mubr.bf16.gmra.mrb[0].mxu0 %v937
      %v1691 = vpop.f32.mrb[0].mxu0
      %v1692 = vadd.f32 %v487, %v1691
      %v1693 = vpop.f32.mrb[0].mxu0
      %v1694 = vpop.f32.mrb[0].mxu0
      %v1695 = vadd.f32 %v487, %v1694
      %v1696 = vpop.f32.mrb[0].mxu0
      %1697 = vmatprep.mubr.bf16.mxu0 %v947
      %1698 = vmatmul.mubr.bf16.gmra.mrb[0].mxu0 %v946
      %v1699 = vpop.f32.mrb[0].mxu0
      %v1700 = vadd.f32 %v487, %v1699
      %v1701 = vpop.f32.mrb[0].mxu0
      %v1702 = vpop.f32.mrb[0].mxu0
      %v1703 = vadd.f32 %v487, %v1702
      %v1704 = vpop.f32.mrb[0].mxu0
      %1705 = vmatprep.mubr.bf16.mxu0 %v956
      %1706 = vmatmul.mubr.bf16.gmra.mrb[0].mxu0 %v955
      %v1707 = vpop.f32.mrb[0].mxu0
      %v1708 = vadd.f32 %v487, %v1707
      %v1709 = vpop.f32.mrb[0].mxu0
      %v1710 = vpop.f32.mrb[0].mxu0
      %v1711 = vadd.f32 %v487, %v1710
      %v1712 = vpop.f32.mrb[0].mxu0
      %1713 = vmatprep.mubr.bf16.mxu0 %v965
      %1714 = vmatmul.mubr.bf16.gmra.mrb[0].mxu0 %v964
      %v1715 = vpop.f32.mrb[0].mxu0
      %v1716 = vadd.f32 %v487, %v1715
      %v1717 = vpop.f32.mrb[0].mxu0
      %v1718 = vpop.f32.mrb[0].mxu0
      %v1719 = vadd.f32 %v487, %v1718
      %v1720 = vpop.f32.mrb[0].mxu0
      %1721 = vmatprep.mubr.bf16.mxu0 %v974
      %1722 = vmatmul.mubr.bf16.gmra.mrb[0].mxu0 %v973
      %v1723 = vpop.f32.mrb[0].mxu0
      %v1724 = vadd.f32 %v487, %v1723
      %v1725 = vpop.f32.mrb[0].mxu0
      %v1726 = vpop.f32.mrb[0].mxu0
      %v1727 = vadd.f32 %v487, %v1726
      %v1728 = vpop.f32.mrb[0].mxu0
      %1729 = vmatprep.mubr.bf16.mxu0 %v983
      %1730 = vmatmul.mubr.bf16.gmra.mrb[0].mxu0 %v982
      %v1731 = vpop.f32.mrb[0].mxu0
      %v1732 = vadd.f32 %v487, %v1731
      %v1733 = vpop.f32.mrb[0].mxu0
      %v1734 = vpop.f32.mrb[0].mxu0
      %v1735 = vadd.f32 %v487, %v1734
      %v1736 = vpop.f32.mrb[0].mxu0
      %1737 = vmatprep.mubr.bf16.mxu0 %v992
      %1738 = vmatmul.mubr.bf16.gmra.mrb[0].mxu0 %v991
      %v1739 = vpop.f32.mrb[0].mxu0
      %v1740 = vadd.f32 %v487, %v1739
      %v1741 = vpop.f32.mrb[0].mxu0
      %v1742 = vpop.f32.mrb[0].mxu0
      %v1743 = vadd.f32 %v487, %v1742
      %v1744 = vpop.f32.mrb[0].mxu0
      %1745 = vmatprep.mubr.bf16.mxu0 %v1001
      %1746 = vmatmul.mubr.bf16.gmra.mrb[0].mxu0 %v1000
      %v1747 = vpop.f32.mrb[0].mxu0
      %v1748 = vadd.f32 %v487, %v1747
      %v1749 = vpop.f32.mrb[0].mxu0
      %v1750 = vpop.f32.mrb[0].mxu0
      %v1751 = vadd.f32 %v487, %v1750
      %v1752 = vpop.f32.mrb[0].mxu0
      %1753 = vmatprep.mubr.bf16.mxu0 %v1010
      %1754 = vmatmul.mubr.bf16.gmra.mrb[0].mxu0 %v1009
      %v1755 = vpop.f32.mrb[0].mxu0
      %v1756 = vadd.f32 %v487, %v1755
      %v1757 = vpop.f32.mrb[0].mxu0
      %v1758 = vpop.f32.mrb[0].mxu0
      %v1759 = vadd.f32 %v487, %v1758
      %v1760 = vpop.f32.mrb[0].mxu0
      %1761 = vmatprep.mubr.bf16.mxu0 %v1019
      %1762 = vmatmul.mubr.bf16.gmra.mrb[0].mxu0 %v1018
      %v1763 = vpop.f32.mrb[0].mxu0
      %v1764 = vadd.f32 %v487, %v1763
      %v1765 = vpop.f32.mrb[0].mxu0
      %v1766 = vpop.f32.mrb[0].mxu0
      %v1767 = vadd.f32 %v487, %v1766
      %v1768 = vpop.f32.mrb[0].mxu0
      %1769 = vmatprep.mubr.bf16.mxu0 %v1028
      %1770 = vmatmul.mubr.bf16.gmra.mrb[0].mxu0 %v1027
      %v1771 = vpop.f32.mrb[0].mxu0
      %v1772 = vadd.f32 %v487, %v1771
      %v1773 = vpop.f32.mrb[0].mxu0
      %v1774 = vpop.f32.mrb[0].mxu0
      %v1775 = vadd.f32 %v487, %v1774
      %v1776 = vpop.f32.mrb[0].mxu0
      %1777 = vmatprep.mubr.bf16.mxu0 %v1037
      %1778 = vmatmul.mubr.bf16.gmra.mrb[0].mxu0 %v1036
      %v1779 = vpop.f32.mrb[0].mxu0
      %v1780 = vadd.f32 %v487, %v1779
      %v1781 = vpop.f32.mrb[0].mxu0
      %v1782 = vpop.f32.mrb[0].mxu0
      %v1783 = vadd.f32 %v487, %v1782
      %v1784 = vpop.f32.mrb[0].mxu0
      %1785 = vmatprep.mubr.bf16.mxu0 %v1046
      %1786 = vmatmul.mubr.bf16.gmra.mrb[0].mxu0 %v1045
      %v1787 = vpop.f32.mrb[0].mxu0
      %v1788 = vadd.f32 %v487, %v1787
      %v1789 = vpop.f32.mrb[0].mxu0
      %v1790 = vpop.f32.mrb[0].mxu0
      %v1791 = vadd.f32 %v487, %v1790
      %v1792 = vpop.f32.mrb[0].mxu0
      %1793 = vmatprep.mubr.bf16.mxu0 %v1055
      %1794 = vmatmul.mubr.bf16.gmra.mrb[0].mxu0 %v1054
      %v1795 = vpop.f32.mrb[0].mxu0
      %v1796 = vadd.f32 %v487, %v1795
      %v1797 = vpop.f32.mrb[0].mxu0
      %v1798 = vpop.f32.mrb[0].mxu0
      %v1799 = vadd.f32 %v487, %v1798
      %v1800 = vpop.f32.mrb[0].mxu0
      %1801 = vmatprep.mubr.bf16.mxu0 %v1064
      %1802 = vmatmul.mubr.bf16.gmra.mrb[0].mxu0 %v1063
      %v1803 = vpop.f32.mrb[0].mxu0
      %v1804 = vadd.f32 %v487, %v1803
      %v1805 = vpop.f32.mrb[0].mxu0
      %v1806 = vpop.f32.mrb[0].mxu0
      %v1807 = vadd.f32 %v487, %v1806
      %v1808 = vpop.f32.mrb[0].mxu0
      %1809 = vmatprep.mubr.bf16.mxu0 %v1073
      %1810 = vmatmul.mubr.bf16.gmra.mrb[0].mxu0 %v1072
      %v1811 = vpop.f32.mrb[0].mxu0
      %v1812 = vadd.f32 %v487, %v1811
      %v1813 = vpop.f32.mrb[0].mxu0
      %v1814 = vpop.f32.mrb[0].mxu0
      %v1815 = vadd.f32 %v487, %v1814
      %v1816 = vpop.f32.mrb[0].mxu0
      %1817 = vdwg.mxu0
      %1818 = vmatprep.subr.bf16.mxu0 0
      %1819 = vmatpush1.bf16.msra.mxu0 %v1529
      %1820 = vmatprep.subr.bf16.mxu0 0
      %1821 = vmatpush1.bf16.msra.mxu0 %v1530
      %1822 = vmatprep.subr.bf16.mxu0 0
      %1823 = vmatpush1.bf16.msra.mxu0 %v1531
      %1824 = vmatprep.subr.bf16.mxu0 0
      %1825 = vmatpush1.bf16.msra.mxu0 %v1532
      %1826 = vmatprep.subr.bf16.mxu0 0
      %1827 = vmatpush1.bf16.msra.mxu0 %v1533
      %1828 = vmatprep.subr.bf16.mxu0 0
      %1829 = vmatpush1.bf16.msra.mxu0 %v1534
      %1830 = vmatprep.subr.bf16.mxu0 0
      %1831 = vmatpush1.bf16.msra.mxu0 %v1535
      %1832 = vmatprep.subr.bf16.mxu0 0
      %1833 = vmatpush1.bf16.msra.mxu0 %v1536
      %1834 = vmatprep.subr.bf16.mxu0 0
      %1835 = vmatpush1.bf16.msra.mxu0 %v1537
      %1836 = vmatprep.subr.bf16.mxu0 0
      %1837 = vmatpush1.bf16.msra.mxu0 %v1538
      %1838 = vmatprep.subr.bf16.mxu0 0
      %1839 = vmatpush1.bf16.msra.mxu0 %v1539
      %1840 = vmatprep.subr.bf16.mxu0 0
      %1841 = vmatpush1.bf16.msra.mxu0 %v1540
      %1842 = vmatprep.subr.bf16.mxu0 0
      %1843 = vmatpush1.bf16.msra.mxu0 %v1541
      %1844 = vmatprep.subr.bf16.mxu0 0
      %1845 = vmatpush1.bf16.msra.mxu0 %v1542
      %1846 = vmatprep.subr.bf16.mxu0 0
      %1847 = vmatpush1.bf16.msra.mxu0 %v1543
      %1848 = vmatprep.subr.bf16.mxu0 0
      %1849 = vmatpush1.bf16.msra.mxu0 %v1544
      %1850 = vmatprep.mubr.bf16.mxu0 %v940
      %1851 = vmatmul.mubr.bf16.gmra.mrb[0].mxu0 %v939
      %v1852 = vpop.f32.mrb[0].mxu0
      %v1853 = vadd.f32 %v1692, %v1852
      %v1854 = vpop.f32.mrb[0].mxu0
      %v1855 = vpop.f32.mrb[0].mxu0
      %v1856 = vadd.f32 %v1695, %v1855
      %v1857 = vpop.f32.mrb[0].mxu0
      %1858 = vmatprep.mubr.bf16.mxu0 %v949
      %1859 = vmatmul.mubr.bf16.gmra.mrb[0].mxu0 %v948
      %v1860 = vpop.f32.mrb[0].mxu0
      %v1861 = vadd.f32 %v1700, %v1860
      %v1862 = vpop.f32.mrb[0].mxu0
      %v1863 = vpop.f32.mrb[0].mxu0
      %v1864 = vadd.f32 %v1703, %v1863
      %v1865 = vpop.f32.mrb[0].mxu0
      %1866 = vmatprep.mubr.bf16.mxu0 %v958
      %1867 = vmatmul.mubr.bf16.gmra.mrb[0].mxu0 %v957
      %v1868 = vpop.f32.mrb[0].mxu0
      %v1869 = vadd.f32 %v1708, %v1868
      %v1870 = vpop.f32.mrb[0].mxu0
      %v1871 = vpop.f32.mrb[0].mxu0
      %v1872 = vadd.f32 %v1711, %v1871
      %v1873 = vpop.f32.mrb[0].mxu0
      %1874 = vmatprep.mubr.bf16.mxu0 %v967
      %1875 = vmatmul.mubr.bf16.gmra.mrb[0].mxu0 %v966
      %v1876 = vpop.f32.mrb[0].mxu0
      %v1877 = vadd.f32 %v1716, %v1876
      %v1878 = vpop.f32.mrb[0].mxu0
      %v1879 = vpop.f32.mrb[0].mxu0
      %v1880 = vadd.f32 %v1719, %v1879
      %v1881 = vpop.f32.mrb[0].mxu0
      %1882 = vmatprep.mubr.bf16.mxu0 %v976
      %1883 = vmatmul.mubr.bf16.gmra.mrb[0].mxu0 %v975
      %v1884 = vpop.f32.mrb[0].mxu0
      %v1885 = vadd.f32 %v1724, %v1884
      %v1886 = vpop.f32.mrb[0].mxu0
      %v1887 = vpop.f32.mrb[0].mxu0
      %v1888 = vadd.f32 %v1727, %v1887
      %v1889 = vpop.f32.mrb[0].mxu0
      %1890 = vmatprep.mubr.bf16.mxu0 %v985
      %1891 = vmatmul.mubr.bf16.gmra.mrb[0].mxu0 %v984
      %v1892 = vpop.f32.mrb[0].mxu0
      %v1893 = vadd.f32 %v1732, %v1892
      %v1894 = vpop.f32.mrb[0].mxu0
      %v1895 = vpop.f32.mrb[0].mxu0
      %v1896 = vadd.f32 %v1735, %v1895
      %v1897 = vpop.f32.mrb[0].mxu0
      %1898 = vmatprep.mubr.bf16.mxu0 %v994
      %1899 = vmatmul.mubr.bf16.gmra.mrb[0].mxu0 %v993
      %v1900 = vpop.f32.mrb[0].mxu0
      %v1901 = vadd.f32 %v1740, %v1900
      %v1902 = vpop.f32.mrb[0].mxu0
      %v1903 = vpop.f32.mrb[0].mxu0
      %v1904 = vadd.f32 %v1743, %v1903
      %v1905 = vpop.f32.mrb[0].mxu0
      %1906 = vmatprep.mubr.bf16.mxu0 %v1003
      %1907 = vmatmul.mubr.bf16.gmra.mrb[0].mxu0 %v1002
      %v1908 = vpop.f32.mrb[0].mxu0
      %v1909 = vadd.f32 %v1748, %v1908
      %v1910 = vpop.f32.mrb[0].mxu0
      %v1911 = vpop.f32.mrb[0].mxu0
      %v1912 = vadd.f32 %v1751, %v1911
      %v1913 = vpop.f32.mrb[0].mxu0
      %1914 = vmatprep.mubr.bf16.mxu0 %v1012
      %1915 = vmatmul.mubr.bf16.gmra.mrb[0].mxu0 %v1011
      %v1916 = vpop.f32.mrb[0].mxu0
      %v1917 = vadd.f32 %v1756, %v1916
      %v1918 = vpop.f32.mrb[0].mxu0
      %v1919 = vpop.f32.mrb[0].mxu0
      %v1920 = vadd.f32 %v1759, %v1919
      %v1921 = vpop.f32.mrb[0].mxu0
      %1922 = vmatprep.mubr.bf16.mxu0 %v1021
      %1923 = vmatmul.mubr.bf16.gmra.mrb[0].mxu0 %v1020
      %v1924 = vpop.f32.mrb[0].mxu0
      %v1925 = vadd.f32 %v1764, %v1924
      %v1926 = vpop.f32.mrb[0].mxu0
      %v1927 = vpop.f32.mrb[0].mxu0
      %v1928 = vadd.f32 %v1767, %v1927
      %v1929 = vpop.f32.mrb[0].mxu0
      %1930 = vmatprep.mubr.bf16.mxu0 %v1030
      %1931 = vmatmul.mubr.bf16.gmra.mrb[0].mxu0 %v1029
      %v1932 = vpop.f32.mrb[0].mxu0
      %v1933 = vadd.f32 %v1772, %v1932
      %v1934 = vpop.f32.mrb[0].mxu0
      %v1935 = vpop.f32.mrb[0].mxu0
      %v1936 = vadd.f32 %v1775, %v1935
      %v1937 = vpop.f32.mrb[0].mxu0
      %1938 = vmatprep.mubr.bf16.mxu0 %v1039
      %1939 = vmatmul.mubr.bf16.gmra.mrb[0].mxu0 %v1038
      %v1940 = vpop.f32.mrb[0].mxu0
      %v1941 = vadd.f32 %v1780, %v1940
      %v1942 = vpop.f32.mrb[0].mxu0
      %v1943 = vpop.f32.mrb[0].mxu0
      %v1944 = vadd.f32 %v1783, %v1943
      %v1945 = vpop.f32.mrb[0].mxu0
      %1946 = vmatprep.mubr.bf16.mxu0 %v1048
      %1947 = vmatmul.mubr.bf16.gmra.mrb[0].mxu0 %v1047
      %v1948 = vpop.f32.mrb[0].mxu0
      %v1949 = vadd.f32 %v1788, %v1948
      %v1950 = vpop.f32.mrb[0].mxu0
      %v1951 = vpop.f32.mrb[0].mxu0
      %v1952 = vadd.f32 %v1791, %v1951
      %v1953 = vpop.f32.mrb[0].mxu0
      %1954 = vmatprep.mubr.bf16.mxu0 %v1057
      %1955 = vmatmul.mubr.bf16.gmra.mrb[0].mxu0 %v1056
      %v1956 = vpop.f32.mrb[0].mxu0
      %v1957 = vadd.f32 %v1796, %v1956
      %v1958 = vpop.f32.mrb[0].mxu0
      %v1959 = vpop.f32.mrb[0].mxu0
      %v1960 = vadd.f32 %v1799, %v1959
      %v1961 = vpop.f32.mrb[0].mxu0
      %1962 = vmatprep.mubr.bf16.mxu0 %v1066
      %1963 = vmatmul.mubr.bf16.gmra.mrb[0].mxu0 %v1065
      %v1964 = vpop.f32.mrb[0].mxu0
      %v1965 = vadd.f32 %v1804, %v1964
      %v1966 = vpop.f32.mrb[0].mxu0
      %v1967 = vpop.f32.mrb[0].mxu0
      %v1968 = vadd.f32 %v1807, %v1967
      %v1969 = vpop.f32.mrb[0].mxu0
      %1970 = vmatprep.mubr.bf16.mxu0 %v1075
      %1971 = vmatmul.mubr.bf16.gmra.mrb[0].mxu0 %v1074
      %v1972 = vpop.f32.mrb[0].mxu0
      %v1973 = vadd.f32 %v1812, %v1972
      %v1974 = vpop.f32.mrb[0].mxu0
      %v1975 = vpop.f32.mrb[0].mxu0
      %v1976 = vadd.f32 %v1815, %v1975
      %v1977 = vpop.f32.mrb[0].mxu0
      %1978 = vdwg.mxu0
      %1979 = vmatprep.subr.bf16.mxu0 0
      %1980 = vmatpush1.bf16.msra.mxu0 %v1545
      %1981 = vmatprep.subr.bf16.mxu0 0
      %1982 = vmatpush1.bf16.msra.mxu0 %v1546
      %1983 = vmatprep.subr.bf16.mxu0 0
      %1984 = vmatpush1.bf16.msra.mxu0 %v1547
      %1985 = vmatprep.subr.bf16.mxu0 0
      %1986 = vmatpush1.bf16.msra.mxu0 %v1548
      %1987 = vmatprep.subr.bf16.mxu0 0
      %1988 = vmatpush1.bf16.msra.mxu0 %v1549
      %1989 = vmatprep.subr.bf16.mxu0 0
      %1990 = vmatpush1.bf16.msra.mxu0 %v1550
      %1991 = vmatprep.subr.bf16.mxu0 0
      %1992 = vmatpush1.bf16.msra.mxu0 %v1551
      %1993 = vmatprep.subr.bf16.mxu0 0
      %1994 = vmatpush1.bf16.msra.mxu0 %v1552
      %1995 = vmatprep.subr.bf16.mxu0 0
      %1996 = vmatpush1.bf16.msra.mxu0 %v1553
      %1997 = vmatprep.subr.bf16.mxu0 0
      %1998 = vmatpush1.bf16.msra.mxu0 %v1554
      %1999 = vmatprep.subr.bf16.mxu0 0
      %2000 = vmatpush1.bf16.msra.mxu0 %v1555
      %2001 = vmatprep.subr.bf16.mxu0 0
      %2002 = vmatpush1.bf16.msra.mxu0 %v1556
      %2003 = vmatprep.subr.bf16.mxu0 0
      %2004 = vmatpush1.bf16.msra.mxu0 %v1557
      %2005 = vmatprep.subr.bf16.mxu0 0
      %2006 = vmatpush1.bf16.msra.mxu0 %v1558
      %2007 = vmatprep.subr.bf16.mxu0 0
      %2008 = vmatpush1.bf16.msra.mxu0 %v1559
      %2009 = vmatprep.subr.bf16.mxu0 0
      %2010 = vmatpush1.bf16.msra.mxu0 %v1560
      %2011 = vmatprep.mubr.bf16.mxu0 %v942
      %2012 = vmatmul.mubr.bf16.gmra.mrb[0].mxu0 %v941
      %v2013 = vpop.f32.mrb[0].mxu0
      %v2014 = vadd.f32 %v1853, %v2013
      %v2015 = vpop.f32.mrb[0].mxu0
      %v2016 = vpop.f32.mrb[0].mxu0
      %v2017 = vadd.f32 %v1856, %v2016
      %v2018 = vpop.f32.mrb[0].mxu0
      %2019 = vmatprep.mubr.bf16.mxu0 %v951
      %2020 = vmatmul.mubr.bf16.gmra.mrb[0].mxu0 %v950
      %v2021 = vpop.f32.mrb[0].mxu0
      %v2022 = vadd.f32 %v1861, %v2021
      %v2023 = vpop.f32.mrb[0].mxu0
      %v2024 = vpop.f32.mrb[0].mxu0
      %v2025 = vadd.f32 %v1864, %v2024
      %v2026 = vpop.f32.mrb[0].mxu0
      %2027 = vmatprep.mubr.bf16.mxu0 %v960
      %2028 = vmatmul.mubr.bf16.gmra.mrb[0].mxu0 %v959
      %v2029 = vpop.f32.mrb[0].mxu0
      %v2030 = vadd.f32 %v1869, %v2029
      %v2031 = vpop.f32.mrb[0].mxu0
      %v2032 = vpop.f32.mrb[0].mxu0
      %v2033 = vadd.f32 %v1872, %v2032
      %v2034 = vpop.f32.mrb[0].mxu0
      %2035 = vmatprep.mubr.bf16.mxu0 %v969
      %2036 = vmatmul.mubr.bf16.gmra.mrb[0].mxu0 %v968
      %v2037 = vpop.f32.mrb[0].mxu0
      %v2038 = vadd.f32 %v1877, %v2037
      %v2039 = vpop.f32.mrb[0].mxu0
      %v2040 = vpop.f32.mrb[0].mxu0
      %v2041 = vadd.f32 %v1880, %v2040
      %v2042 = vpop.f32.mrb[0].mxu0
      %2043 = vmatprep.mubr.bf16.mxu0 %v978
      %2044 = vmatmul.mubr.bf16.gmra.mrb[0].mxu0 %v977
      %v2045 = vpop.f32.mrb[0].mxu0
      %v2046 = vadd.f32 %v1885, %v2045
      %v2047 = vpop.f32.mrb[0].mxu0
      %v2048 = vpop.f32.mrb[0].mxu0
      %v2049 = vadd.f32 %v1888, %v2048
      %v2050 = vpop.f32.mrb[0].mxu0
      %2051 = vmatprep.mubr.bf16.mxu0 %v987
      %2052 = vmatmul.mubr.bf16.gmra.mrb[0].mxu0 %v986
      %v2053 = vpop.f32.mrb[0].mxu0
      %v2054 = vadd.f32 %v1893, %v2053
      %v2055 = vpop.f32.mrb[0].mxu0
      %v2056 = vpop.f32.mrb[0].mxu0
      %v2057 = vadd.f32 %v1896, %v2056
      %v2058 = vpop.f32.mrb[0].mxu0
      %2059 = vmatprep.mubr.bf16.mxu0 %v996
      %2060 = vmatmul.mubr.bf16.gmra.mrb[0].mxu0 %v995
      %v2061 = vpop.f32.mrb[0].mxu0
      %v2062 = vadd.f32 %v1901, %v2061
      %v2063 = vpop.f32.mrb[0].mxu0
      %v2064 = vpop.f32.mrb[0].mxu0
      %v2065 = vadd.f32 %v1904, %v2064
      %v2066 = vpop.f32.mrb[0].mxu0
      %2067 = vmatprep.mubr.bf16.mxu0 %v1005
      %2068 = vmatmul.mubr.bf16.gmra.mrb[0].mxu0 %v1004
      %v2069 = vpop.f32.mrb[0].mxu0
      %v2070 = vadd.f32 %v1909, %v2069
      %v2071 = vpop.f32.mrb[0].mxu0
      %v2072 = vpop.f32.mrb[0].mxu0
      %v2073 = vadd.f32 %v1912, %v2072
      %v2074 = vpop.f32.mrb[0].mxu0
      %2075 = vmatprep.mubr.bf16.mxu0 %v1014
      %2076 = vmatmul.mubr.bf16.gmra.mrb[0].mxu0 %v1013
      %v2077 = vpop.f32.mrb[0].mxu0
      %v2078 = vadd.f32 %v1917, %v2077
      %v2079 = vpop.f32.mrb[0].mxu0
      %v2080 = vpop.f32.mrb[0].mxu0
      %v2081 = vadd.f32 %v1920, %v2080
      %v2082 = vpop.f32.mrb[0].mxu0
      %2083 = vmatprep.mubr.bf16.mxu0 %v1023
      %2084 = vmatmul.mubr.bf16.gmra.mrb[0].mxu0 %v1022
      %v2085 = vpop.f32.mrb[0].mxu0
      %v2086 = vadd.f32 %v1925, %v2085
      %v2087 = vpop.f32.mrb[0].mxu0
      %v2088 = vpop.f32.mrb[0].mxu0
      %v2089 = vadd.f32 %v1928, %v2088
      %v2090 = vpop.f32.mrb[0].mxu0
      %2091 = vmatprep.mubr.bf16.mxu0 %v1032
      %2092 = vmatmul.mubr.bf16.gmra.mrb[0].mxu0 %v1031
      %v2093 = vpop.f32.mrb[0].mxu0
      %v2094 = vadd.f32 %v1933, %v2093
      %v2095 = vpop.f32.mrb[0].mxu0
      %v2096 = vpop.f32.mrb[0].mxu0
      %v2097 = vadd.f32 %v1936, %v2096
      %v2098 = vpop.f32.mrb[0].mxu0
      %2099 = vmatprep.mubr.bf16.mxu0 %v1041
      %2100 = vmatmul.mubr.bf16.gmra.mrb[0].mxu0 %v1040
      %v2101 = vpop.f32.mrb[0].mxu0
      %v2102 = vadd.f32 %v1941, %v2101
      %v2103 = vpop.f32.mrb[0].mxu0
      %v2104 = vpop.f32.mrb[0].mxu0
      %v2105 = vadd.f32 %v1944, %v2104
      %v2106 = vpop.f32.mrb[0].mxu0
      %2107 = vmatprep.mubr.bf16.mxu0 %v1050
      %2108 = vmatmul.mubr.bf16.gmra.mrb[0].mxu0 %v1049
      %v2109 = vpop.f32.mrb[0].mxu0
      %v2110 = vadd.f32 %v1949, %v2109
      %v2111 = vpop.f32.mrb[0].mxu0
      %v2112 = vpop.f32.mrb[0].mxu0
      %v2113 = vadd.f32 %v1952, %v2112
      %v2114 = vpop.f32.mrb[0].mxu0
      %2115 = vmatprep.mubr.bf16.mxu0 %v1059
      %2116 = vmatmul.mubr.bf16.gmra.mrb[0].mxu0 %v1058
      %v2117 = vpop.f32.mrb[0].mxu0
      %v2118 = vadd.f32 %v1957, %v2117
      %v2119 = vpop.f32.mrb[0].mxu0
      %v2120 = vpop.f32.mrb[0].mxu0
      %v2121 = vadd.f32 %v1960, %v2120
      %v2122 = vpop.f32.mrb[0].mxu0
      %2123 = vmatprep.mubr.bf16.mxu0 %v1068
      %2124 = vmatmul.mubr.bf16.gmra.mrb[0].mxu0 %v1067
      %v2125 = vpop.f32.mrb[0].mxu0
      %v2126 = vadd.f32 %v1965, %v2125
      %v2127 = vpop.f32.mrb[0].mxu0
      %v2128 = vpop.f32.mrb[0].mxu0
      %v2129 = vadd.f32 %v1968, %v2128
      %v2130 = vpop.f32.mrb[0].mxu0
      %2131 = vmatprep.mubr.bf16.mxu0 %v1077
      %2132 = vmatmul.mubr.bf16.gmra.mrb[0].mxu0 %v1076
      %v2133 = vpop.f32.mrb[0].mxu0
      %v2134 = vadd.f32 %v1973, %v2133
      %v2135 = vpop.f32.mrb[0].mxu0
      %v2136 = vpop.f32.mrb[0].mxu0
      %v2137 = vadd.f32 %v1976, %v2136
      %v2138 = vpop.f32.mrb[0].mxu0
      %2139 = vdwg.mxu0
      %2140 = vmatprep.subr.bf16.mxu0 0
      %2141 = vmatpush1.bf16.msra.mxu0 %v1561
      %2142 = vmatprep.subr.bf16.mxu0 0
      %2143 = vmatpush1.bf16.msra.mxu0 %v1562
      %2144 = vmatprep.subr.bf16.mxu0 0
      %2145 = vmatpush1.bf16.msra.mxu0 %v1563
      %2146 = vmatprep.subr.bf16.mxu0 0
      %2147 = vmatpush1.bf16.msra.mxu0 %v1564
      %2148 = vmatprep.subr.bf16.mxu0 0
      %2149 = vmatpush1.bf16.msra.mxu0 %v1565
      %2150 = vmatprep.subr.bf16.mxu0 0
      %2151 = vmatpush1.bf16.msra.mxu0 %v1566
      %2152 = vmatprep.subr.bf16.mxu0 0
      %2153 = vmatpush1.bf16.msra.mxu0 %v1567
      %2154 = vmatprep.subr.bf16.mxu0 0
      %2155 = vmatpush1.bf16.msra.mxu0 %v1568
      %2156 = vmatprep.subr.bf16.mxu0 0
      %2157 = vmatpush1.bf16.msra.mxu0 %v1569
      %2158 = vmatprep.subr.bf16.mxu0 0
      %2159 = vmatpush1.bf16.msra.mxu0 %v1570
      %2160 = vmatprep.subr.bf16.mxu0 0
      %2161 = vmatpush1.bf16.msra.mxu0 %v1571
      %2162 = vmatprep.subr.bf16.mxu0 0
      %2163 = vmatpush1.bf16.msra.mxu0 %v1572
      %2164 = vmatprep.subr.bf16.mxu0 0
      %2165 = vmatpush1.bf16.msra.mxu0 %v1573
      %2166 = vmatprep.subr.bf16.mxu0 0
      %2167 = vmatpush1.bf16.msra.mxu0 %v1574
      %2168 = vmatprep.subr.bf16.mxu0 0
      %2169 = vmatpush1.bf16.msra.mxu0 %v1575
      %2170 = vmatprep.subr.bf16.mxu0 0
      %2171 = vmatpush1.bf16.msra.mxu0 %v1576
      %2172 = vmatprep.mubr.bf16.mxu0 %v944
      %2173 = vmatmul.mubr.bf16.gmra.mrb[0].mxu0 %v943
      %v2174 = vpop.f32.mrb[0].mxu0
      %v2175 = vadd.f32 %v2014, %v2174
      %v2176 = vpop.f32.mrb[0].mxu0
      %v2177 = vpop.f32.mrb[0].mxu0
      %v2178 = vadd.f32 %v2017, %v2177
      %v2179 = vpop.f32.mrb[0].mxu0
      %2180 = vmatprep.mubr.bf16.mxu0 %v953
      %2181 = vmatmul.mubr.bf16.gmra.mrb[0].mxu0 %v952
      %v2182 = vpop.f32.mrb[0].mxu0
      %v2183 = vadd.f32 %v2022, %v2182
      %v2184 = vpop.f32.mrb[0].mxu0
      %v2185 = vpop.f32.mrb[0].mxu0
      %v2186 = vadd.f32 %v2025, %v2185
      %v2187 = vpop.f32.mrb[0].mxu0
      %2188 = vmatprep.mubr.bf16.mxu0 %v962
      %2189 = vmatmul.mubr.bf16.gmra.mrb[0].mxu0 %v961
      %v2190 = vpop.f32.mrb[0].mxu0
      %v2191 = vadd.f32 %v2030, %v2190
      %v2192 = vpop.f32.mrb[0].mxu0
      %v2193 = vpop.f32.mrb[0].mxu0
      %v2194 = vadd.f32 %v2033, %v2193
      %v2195 = vpop.f32.mrb[0].mxu0
      %2196 = vmatprep.mubr.bf16.mxu0 %v971
      %2197 = vmatmul.mubr.bf16.gmra.mrb[0].mxu0 %v970
      %v2198 = vpop.f32.mrb[0].mxu0
      %v2199 = vadd.f32 %v2038, %v2198
      %v2200 = vpop.f32.mrb[0].mxu0
      %v2201 = vpop.f32.mrb[0].mxu0
      %v2202 = vadd.f32 %v2041, %v2201
      %v2203 = vpop.f32.mrb[0].mxu0
      %2204 = vmatprep.mubr.bf16.mxu0 %v980
      %2205 = vmatmul.mubr.bf16.gmra.mrb[0].mxu0 %v979
      %v2206 = vpop.f32.mrb[0].mxu0
      %v2207 = vadd.f32 %v2046, %v2206
      %v2208 = vpop.f32.mrb[0].mxu0
      %v2209 = vpop.f32.mrb[0].mxu0
      %v2210 = vadd.f32 %v2049, %v2209
      %v2211 = vpop.f32.mrb[0].mxu0
      %2212 = vmatprep.mubr.bf16.mxu0 %v989
      %2213 = vmatmul.mubr.bf16.gmra.mrb[0].mxu0 %v988
      %v2214 = vpop.f32.mrb[0].mxu0
      %v2215 = vadd.f32 %v2054, %v2214
      %v2216 = vpop.f32.mrb[0].mxu0
      %v2217 = vpop.f32.mrb[0].mxu0
      %v2218 = vadd.f32 %v2057, %v2217
      %v2219 = vpop.f32.mrb[0].mxu0
      %2220 = vmatprep.mubr.bf16.mxu0 %v998
      %2221 = vmatmul.mubr.bf16.gmra.mrb[0].mxu0 %v997
      %v2222 = vpop.f32.mrb[0].mxu0
      %v2223 = vadd.f32 %v2062, %v2222
      %v2224 = vpop.f32.mrb[0].mxu0
      %v2225 = vpop.f32.mrb[0].mxu0
      %v2226 = vadd.f32 %v2065, %v2225
      %v2227 = vpop.f32.mrb[0].mxu0
      %2228 = vmatprep.mubr.bf16.mxu0 %v1007
      %2229 = vmatmul.mubr.bf16.gmra.mrb[0].mxu0 %v1006
      %v2230 = vpop.f32.mrb[0].mxu0
      %v2231 = vadd.f32 %v2070, %v2230
      %v2232 = vpop.f32.mrb[0].mxu0
      %v2233 = vpop.f32.mrb[0].mxu0
      %v2234 = vadd.f32 %v2073, %v2233
      %v2235 = vpop.f32.mrb[0].mxu0
      %2236 = vmatprep.mubr.bf16.mxu0 %v1016
      %2237 = vmatmul.mubr.bf16.gmra.mrb[0].mxu0 %v1015
      %v2238 = vpop.f32.mrb[0].mxu0
      %v2239 = vadd.f32 %v2078, %v2238
      %v2240 = vpop.f32.mrb[0].mxu0
      %v2241 = vpop.f32.mrb[0].mxu0
      %v2242 = vadd.f32 %v2081, %v2241
      %v2243 = vpop.f32.mrb[0].mxu0
      %2244 = vmatprep.mubr.bf16.mxu0 %v1025
      %2245 = vmatmul.mubr.bf16.gmra.mrb[0].mxu0 %v1024
      %v2246 = vpop.f32.mrb[0].mxu0
      %v2247 = vadd.f32 %v2086, %v2246
      %v2248 = vpop.f32.mrb[0].mxu0
      %v2249 = vpop.f32.mrb[0].mxu0
      %v2250 = vadd.f32 %v2089, %v2249
      %v2251 = vpop.f32.mrb[0].mxu0
      %2252 = vmatprep.mubr.bf16.mxu0 %v1034
      %2253 = vmatmul.mubr.bf16.gmra.mrb[0].mxu0 %v1033
      %v2254 = vpop.f32.mrb[0].mxu0
      %v2255 = vadd.f32 %v2094, %v2254
      %v2256 = vpop.f32.mrb[0].mxu0
      %v2257 = vpop.f32.mrb[0].mxu0
      %v2258 = vadd.f32 %v2097, %v2257
      %v2259 = vpop.f32.mrb[0].mxu0
      %2260 = vmatprep.mubr.bf16.mxu0 %v1043
      %2261 = vmatmul.mubr.bf16.gmra.mrb[0].mxu0 %v1042
      %v2262 = vpop.f32.mrb[0].mxu0
      %v2263 = vadd.f32 %v2102, %v2262
      %v2264 = vpop.f32.mrb[0].mxu0
      %v2265 = vpop.f32.mrb[0].mxu0
      %v2266 = vadd.f32 %v2105, %v2265
      %v2267 = vpop.f32.mrb[0].mxu0
      %2268 = vmatprep.mubr.bf16.mxu0 %v1052
      %2269 = vmatmul.mubr.bf16.gmra.mrb[0].mxu0 %v1051
      %v2270 = vpop.f32.mrb[0].mxu0
      %v2271 = vadd.f32 %v2110, %v2270
      %v2272 = vpop.f32.mrb[0].mxu0
      %v2273 = vpop.f32.mrb[0].mxu0
      %v2274 = vadd.f32 %v2113, %v2273
      %v2275 = vpop.f32.mrb[0].mxu0
      %2276 = vmatprep.mubr.bf16.mxu0 %v1061
      %2277 = vmatmul.mubr.bf16.gmra.mrb[0].mxu0 %v1060
      %v2278 = vpop.f32.mrb[0].mxu0
      %v2279 = vadd.f32 %v2118, %v2278
      %v2280 = vpop.f32.mrb[0].mxu0
      %v2281 = vpop.f32.mrb[0].mxu0
      %v2282 = vadd.f32 %v2121, %v2281
      %v2283 = vpop.f32.mrb[0].mxu0
      %2284 = vmatprep.mubr.bf16.mxu0 %v1070
      %2285 = vmatmul.mubr.bf16.gmra.mrb[0].mxu0 %v1069
      %v2286 = vpop.f32.mrb[0].mxu0
      %v2287 = vadd.f32 %v2126, %v2286
      %v2288 = vpop.f32.mrb[0].mxu0
      %v2289 = vpop.f32.mrb[0].mxu0
      %v2290 = vadd.f32 %v2129, %v2289
      %v2291 = vpop.f32.mrb[0].mxu0
      %2292 = vmatprep.mubr.bf16.mxu0 %v1079
      %2293 = vmatmul.mubr.bf16.gmra.mrb[0].mxu0 %v1078
      %v2294 = vpop.f32.mrb[0].mxu0
      %v2295 = vadd.f32 %v2134, %v2294
      %v2296 = vpop.f32.mrb[0].mxu0
      %v2297 = vpop.f32.mrb[0].mxu0
      %v2298 = vadd.f32 %v2137, %v2297
      %v2299 = vpop.f32.mrb[0].mxu0
      %2300 = vdwg.mxu0
      %2301 = vmatprep.subr.bf16.mxu0 0
      %2302 = vmatpush1.bf16.msra.mxu0 %v1577
      %2303 = vmatprep.subr.bf16.mxu0 0
      %2304 = vmatpush1.bf16.msra.mxu0 %v1578
      %2305 = vmatprep.subr.bf16.mxu0 0
      %2306 = vmatpush1.bf16.msra.mxu0 %v1579
      %2307 = vmatprep.subr.bf16.mxu0 0
      %2308 = vmatpush1.bf16.msra.mxu0 %v1580
      %2309 = vmatprep.subr.bf16.mxu0 0
      %2310 = vmatpush1.bf16.msra.mxu0 %v1581
      %2311 = vmatprep.subr.bf16.mxu0 0
      %2312 = vmatpush1.bf16.msra.mxu0 %v1582
      %2313 = vmatprep.subr.bf16.mxu0 0
      %2314 = vmatpush1.bf16.msra.mxu0 %v1583
      %2315 = vmatprep.subr.bf16.mxu0 0
      %2316 = vmatpush1.bf16.msra.mxu0 %v1584
      %2317 = vmatprep.subr.bf16.mxu0 0
      %2318 = vmatpush1.bf16.msra.mxu0 0
      %2319 = vmatprep.subr.bf16.mxu0 0
      %2320 = vmatpush1.bf16.msra.mxu0 0
      %2321 = vmatprep.subr.bf16.mxu0 0
      %2322 = vmatpush1.bf16.msra.mxu0 0
      %2323 = vmatprep.subr.bf16.mxu0 0
      %2324 = vmatpush1.bf16.msra.mxu0 0
      %2325 = vmatprep.subr.bf16.mxu0 0
      %2326 = vmatpush1.bf16.msra.mxu0 0
      %2327 = vmatprep.subr.bf16.mxu0 0
      %2328 = vmatpush1.bf16.msra.mxu0 0
      %2329 = vmatprep.subr.bf16.mxu0 0
      %2330 = vmatpush1.bf16.msra.mxu0 0
      %2331 = vmatprep.subr.bf16.mxu0 0
      %2332 = vmatpush1.bf16.msra.mxu0 0
      %2333 = vmatprep.mubr.bf16.mxu0 0
      %2334 = vmatmul.mubr.bf16.gmra.mrb[0].mxu0 %v945
      %v2335 = vpop.f32.mrb[0].mxu0
      %v2336 = vadd.f32 %v2175, %v2335
      %v2337 = vpop.f32.mrb[0].mxu0
      %v2338 = vpop.f32.mrb[0].mxu0
      %v2339 = vadd.f32 %v2178, %v2338
      %v2340 = vpop.f32.mrb[0].mxu0
      %2341 = vmatprep.mubr.bf16.mxu0 0
      %2342 = vmatmul.mubr.bf16.gmra.mrb[0].mxu0 %v954
      %v2343 = vpop.f32.mrb[0].mxu0
      %v2344 = vadd.f32 %v2183, %v2343
      %v2345 = vpop.f32.mrb[0].mxu0
      %v2346 = vpop.f32.mrb[0].mxu0
      %v2347 = vadd.f32 %v2186, %v2346
      %v2348 = vpop.f32.mrb[0].mxu0
      %2349 = vmatprep.mubr.bf16.mxu0 0
      %2350 = vmatmul.mubr.bf16.gmra.mrb[0].mxu0 %v963
      %v2351 = vpop.f32.mrb[0].mxu0
      %v2352 = vadd.f32 %v2191, %v2351
      %v2353 = vpop.f32.mrb[0].mxu0
      %v2354 = vpop.f32.mrb[0].mxu0
      %v2355 = vadd.f32 %v2194, %v2354
      %v2356 = vpop.f32.mrb[0].mxu0
      %2357 = vmatprep.mubr.bf16.mxu0 0
      %2358 = vmatmul.mubr.bf16.gmra.mrb[0].mxu0 %v972
      %v2359 = vpop.f32.mrb[0].mxu0
      %v2360 = vadd.f32 %v2199, %v2359
      %v2361 = vpop.f32.mrb[0].mxu0
      %v2362 = vpop.f32.mrb[0].mxu0
      %v2363 = vadd.f32 %v2202, %v2362
      %v2364 = vpop.f32.mrb[0].mxu0
      %2365 = vmatprep.mubr.bf16.mxu0 0
      %2366 = vmatmul.mubr.bf16.gmra.mrb[0].mxu0 %v981
      %v2367 = vpop.f32.mrb[0].mxu0
      %v2368 = vadd.f32 %v2207, %v2367
      %v2369 = vpop.f32.mrb[0].mxu0
      %v2370 = vpop.f32.mrb[0].mxu0
      %v2371 = vadd.f32 %v2210, %v2370
      %v2372 = vpop.f32.mrb[0].mxu0
      %2373 = vmatprep.mubr.bf16.mxu0 0
      %2374 = vmatmul.mubr.bf16.gmra.mrb[0].mxu0 %v990
      %v2375 = vpop.f32.mrb[0].mxu0
      %v2376 = vadd.f32 %v2215, %v2375
      %v2377 = vpop.f32.mrb[0].mxu0
      %v2378 = vpop.f32.mrb[0].mxu0
      %v2379 = vadd.f32 %v2218, %v2378
      %v2380 = vpop.f32.mrb[0].mxu0
      %2381 = vmatprep.mubr.bf16.mxu0 0
      %2382 = vmatmul.mubr.bf16.gmra.mrb[0].mxu0 %v999
      %v2383 = vpop.f32.mrb[0].mxu0
      %v2384 = vadd.f32 %v2223, %v2383
      %v2385 = vpop.f32.mrb[0].mxu0
      %v2386 = vpop.f32.mrb[0].mxu0
      %v2387 = vadd.f32 %v2226, %v2386
      %v2388 = vpop.f32.mrb[0].mxu0
      %2389 = vmatprep.mubr.bf16.mxu0 0
      %2390 = vmatmul.mubr.bf16.gmra.mrb[0].mxu0 %v1008
      %v2391 = vpop.f32.mrb[0].mxu0
      %v2392 = vadd.f32 %v2231, %v2391
      %v2393 = vpop.f32.mrb[0].mxu0
      %v2394 = vpop.f32.mrb[0].mxu0
      %v2395 = vadd.f32 %v2234, %v2394
      %v2396 = vpop.f32.mrb[0].mxu0
      %2397 = vmatprep.mubr.bf16.mxu0 0
      %2398 = vmatmul.mubr.bf16.gmra.mrb[0].mxu0 %v1017
      %v2399 = vpop.f32.mrb[0].mxu0
      %v2400 = vadd.f32 %v2239, %v2399
      %v2401 = vpop.f32.mrb[0].mxu0
      %v2402 = vpop.f32.mrb[0].mxu0
      %v2403 = vadd.f32 %v2242, %v2402
      %v2404 = vpop.f32.mrb[0].mxu0
      %2405 = vmatprep.mubr.bf16.mxu0 0
      %2406 = vmatmul.mubr.bf16.gmra.mrb[0].mxu0 %v1026
      %v2407 = vpop.f32.mrb[0].mxu0
      %v2408 = vadd.f32 %v2247, %v2407
      %v2409 = vpop.f32.mrb[0].mxu0
      %v2410 = vpop.f32.mrb[0].mxu0
      %v2411 = vadd.f32 %v2250, %v2410
      %v2412 = vpop.f32.mrb[0].mxu0
      %2413 = vmatprep.mubr.bf16.mxu0 0
      %2414 = vmatmul.mubr.bf16.gmra.mrb[0].mxu0 %v1035
      %v2415 = vpop.f32.mrb[0].mxu0
      %v2416 = vadd.f32 %v2255, %v2415
      %v2417 = vpop.f32.mrb[0].mxu0
      %v2418 = vpop.f32.mrb[0].mxu0
      %v2419 = vadd.f32 %v2258, %v2418
      %v2420 = vpop.f32.mrb[0].mxu0
      %2421 = vmatprep.mubr.bf16.mxu0 0
      %2422 = vmatmul.mubr.bf16.gmra.mrb[0].mxu0 %v1044
      %v2423 = vpop.f32.mrb[0].mxu0
      %v2424 = vadd.f32 %v2263, %v2423
      %v2425 = vpop.f32.mrb[0].mxu0
      %v2426 = vpop.f32.mrb[0].mxu0
      %v2427 = vadd.f32 %v2266, %v2426
      %v2428 = vpop.f32.mrb[0].mxu0
      %2429 = vmatprep.mubr.bf16.mxu0 0
      %2430 = vmatmul.mubr.bf16.gmra.mrb[0].mxu0 %v1053
      %v2431 = vpop.f32.mrb[0].mxu0
      %v2432 = vadd.f32 %v2271, %v2431
      %v2433 = vpop.f32.mrb[0].mxu0
      %v2434 = vpop.f32.mrb[0].mxu0
      %v2435 = vadd.f32 %v2274, %v2434
      %v2436 = vpop.f32.mrb[0].mxu0
      %2437 = vmatprep.mubr.bf16.mxu0 0
      %2438 = vmatmul.mubr.bf16.gmra.mrb[0].mxu0 %v1062
      %v2439 = vpop.f32.mrb[0].mxu0
      %v2440 = vadd.f32 %v2279, %v2439
      %v2441 = vpop.f32.mrb[0].mxu0
      %v2442 = vpop.f32.mrb[0].mxu0
      %v2443 = vadd.f32 %v2282, %v2442
      %v2444 = vpop.f32.mrb[0].mxu0
      %2445 = vmatprep.mubr.bf16.mxu0 0
      %2446 = vmatmul.mubr.bf16.gmra.mrb[0].mxu0 %v1071
      %v2447 = vpop.f32.mrb[0].mxu0
      %v2448 = vadd.f32 %v2287, %v2447
      %v2449 = vpop.f32.mrb[0].mxu0
      %v2450 = vpop.f32.mrb[0].mxu0
      %v2451 = vadd.f32 %v2290, %v2450
      %v2452 = vpop.f32.mrb[0].mxu0
      %2453 = vmatprep.mubr.bf16.mxu0 0
      %2454 = vmatmul.mubr.bf16.gmra.mrb[0].mxu0 %v1080
      %v2455 = vpop.f32.mrb[0].mxu0
      %v2456 = vadd.f32 %v2295, %v2455
      %v2457 = vpop.f32.mrb[0].mxu0
      %v2458 = vpop.f32.mrb[0].mxu0
      %v2459 = vadd.f32 %v2298, %v2458
      %v2460 = vpop.f32.mrb[0].mxu0
      %2461 = vdwg.mxu0
      %vm2462 = vcmp.ge.f32.partialorder %v2336, 0.0
      %vm2463 = vcmp.ge.f32.partialorder %v2339, 0.0
      %vm2464 = vcmp.ge.f32.partialorder %v2344, 0.0
      %vm2465 = vcmp.ge.f32.partialorder %v2347, 0.0
      %vm2466 = vcmp.ge.f32.partialorder %v2352, 0.0
      %vm2467 = vcmp.ge.f32.partialorder %v2355, 0.0
      %vm2468 = vcmp.ge.f32.partialorder %v2360, 0.0
      %vm2469 = vcmp.ge.f32.partialorder %v2363, 0.0
      %vm2470 = vcmp.ge.f32.partialorder %v2368, 0.0
      %vm2471 = vcmp.ge.f32.partialorder %v2371, 0.0
      %vm2472 = vcmp.ge.f32.partialorder %v2376, 0.0
      %vm2473 = vcmp.ge.f32.partialorder %v2379, 0.0
      %vm2474 = vcmp.ge.f32.partialorder %v2384, 0.0
      %vm2475 = vcmp.ge.f32.partialorder %v2387, 0.0
      %vm2476 = vcmp.ge.f32.partialorder %v2392, 0.0
      %vm2477 = vcmp.ge.f32.partialorder %v2395, 0.0
      %vm2478 = vcmp.ge.f32.partialorder %v2400, 0.0
      %vm2479 = vcmp.ge.f32.partialorder %v2403, 0.0
      %vm2480 = vcmp.ge.f32.partialorder %v2408, 0.0
      %vm2481 = vcmp.ge.f32.partialorder %v2411, 0.0
      %vm2482 = vcmp.ge.f32.partialorder %v2416, 0.0
      %vm2483 = vcmp.ge.f32.partialorder %v2419, 0.0
      %vm2484 = vcmp.ge.f32.partialorder %v2424, 0.0
      %vm2485 = vcmp.ge.f32.partialorder %v2427, 0.0
      %vm2486 = vcmp.ge.f32.partialorder %v2432, 0.0
      %vm2487 = vcmp.ge.f32.partialorder %v2435, 0.0
      %vm2488 = vcmp.ge.f32.partialorder %v2440, 0.0
      %vm2489 = vcmp.ge.f32.partialorder %v2443, 0.0
      %vm2490 = vcmp.ge.f32.partialorder %v2448, 0.0
      %vm2491 = vcmp.ge.f32.partialorder %v2451, 0.0
      %vm2492 = vcmp.ge.f32.partialorder %v2456, 0.0
      %vm2493 = vcmp.ge.f32.partialorder %v2459, 0.0
      %v2494 = vmul.f32 %v2336, 0.1
      %v2495 = vmul.f32 %v2339, 0.1
      %v2496 = vmul.f32 %v2344, 0.1
      %v2497 = vmul.f32 %v2347, 0.1
      %v2498 = vmul.f32 %v2352, 0.1
      %v2499 = vmul.f32 %v2355, 0.1
      %v2500 = vmul.f32 %v2360, 0.1
      %v2501 = vmul.f32 %v2363, 0.1
      %v2502 = vmul.f32 %v2368, 0.1
      %v2503 = vmul.f32 %v2371, 0.1
      %v2504 = vmul.f32 %v2376, 0.1
      %v2505 = vmul.f32 %v2379, 0.1
      %v2506 = vmul.f32 %v2384, 0.1
      %v2507 = vmul.f32 %v2387, 0.1
      %v2508 = vmul.f32 %v2392, 0.1
      %v2509 = vmul.f32 %v2395, 0.1
      %v2510 = vmul.f32 %v2400, 0.1
      %v2511 = vmul.f32 %v2403, 0.1
      %v2512 = vmul.f32 %v2408, 0.1
      %v2513 = vmul.f32 %v2411, 0.1
      %v2514 = vmul.f32 %v2416, 0.1
      %v2515 = vmul.f32 %v2419, 0.1
      %v2516 = vmul.f32 %v2424, 0.1
      %v2517 = vmul.f32 %v2427, 0.1
      %v2518 = vmul.f32 %v2432, 0.1
      %v2519 = vmul.f32 %v2435, 0.1
      %v2520 = vmul.f32 %v2440, 0.1
      %v2521 = vmul.f32 %v2443, 0.1
      %v2522 = vmul.f32 %v2448, 0.1
      %v2523 = vmul.f32 %v2451, 0.1
      %v2524 = vmul.f32 %v2456, 0.1
      %v2525 = vmul.f32 %v2459, 0.1
      %v2526 = vsel %vm2462, %v2336, %v2494
      %v2527 = vsel %vm2463, %v2339, %v2495
      %v2528 = vsel %vm2464, %v2344, %v2496
      %v2529 = vsel %vm2465, %v2347, %v2497
      %v2530 = vsel %vm2466, %v2352, %v2498
      %v2531 = vsel %vm2467, %v2355, %v2499
      %v2532 = vsel %vm2468, %v2360, %v2500
      %v2533 = vsel %vm2469, %v2363, %v2501
      %v2534 = vsel %vm2470, %v2368, %v2502
      %v2535 = vsel %vm2471, %v2371, %v2503
      %v2536 = vsel %vm2472, %v2376, %v2504
      %v2537 = vsel %vm2473, %v2379, %v2505
      %v2538 = vsel %vm2474, %v2384, %v2506
      %v2539 = vsel %vm2475, %v2387, %v2507
      %v2540 = vsel %vm2476, %v2392, %v2508
      %v2541 = vsel %vm2477, %v2395, %v2509
      %v2542 = vsel %vm2478, %v2400, %v2510
      %v2543 = vsel %vm2479, %v2403, %v2511
      %v2544 = vsel %vm2480, %v2408, %v2512
      %v2545 = vsel %vm2481, %v2411, %v2513
      %v2546 = vsel %vm2482, %v2416, %v2514
      %v2547 = vsel %vm2483, %v2419, %v2515
      %v2548 = vsel %vm2484, %v2424, %v2516
      %v2549 = vsel %vm2485, %v2427, %v2517
      %v2550 = vsel %vm2486, %v2432, %v2518
      %v2551 = vsel %vm2487, %v2435, %v2519
      %v2552 = vsel %vm2488, %v2440, %v2520
      %v2553 = vsel %vm2489, %v2443, %v2521
      %v2554 = vsel %vm2490, %v2448, %v2522
      %v2555 = vsel %vm2491, %v2451, %v2523
      %v2556 = vsel %vm2492, %v2456, %v2524
      %v2557 = vsel %vm2493, %v2459, %v2525
      %2558 = vst [vmem:[%s175] sm:$0xff] %v2526
      %2559 = vst [vmem:[%s175 + $0x8] sm:$0xff] %v2527
      %2560 = vst [vmem:[%s175 + $0x10] sm:$0xff] %v2528
      %2561 = vst [vmem:[%s175 + $0x18] sm:$0xff] %v2529
      %2562 = vst [vmem:[%s175 + $0x20] sm:$0xff] %v2530
      %2563 = vst [vmem:[%s175 + $0x28] sm:$0xff] %v2531
      %2564 = vst [vmem:[%s175 + $0x30] sm:$0xff] %v2532
      %2565 = vst [vmem:[%s175 + $0x38] sm:$0xff] %v2533
      %2566 = vst [vmem:[%s175 + $0x40] sm:$0xff] %v2534
      %2567 = vst [vmem:[%s175 + $0x48] sm:$0xff] %v2535
      %2568 = vst [vmem:[%s175 + $0x50] sm:$0xff] %v2536
      %2569 = vst [vmem:[%s175 + $0x58] sm:$0xff] %v2537
      %2570 = vst [vmem:[%s175 + $0x60] sm:$0xff] %v2538
      %2571 = vst [vmem:[%s175 + $0x68] sm:$0xff] %v2539
      %2572 = vst [vmem:[%s175 + $0x70] sm:$0xff] %v2540
      %2573 = vst [vmem:[%s175 + $0x78] sm:$0xff] %v2541
      %2574 = vst [vmem:[%s175 + $0x80] sm:$0xff] %v2542
      %2575 = vst [vmem:[%s175 + $0x88] sm:$0xff] %v2543
      %2576 = vst [vmem:[%s175 + $0x90] sm:$0xff] %v2544
      %2577 = vst [vmem:[%s175 + $0x98] sm:$0xff] %v2545
      %2578 = vst [vmem:[%s175 + $0xa0] sm:$0xff] %v2546
      %2579 = vst [vmem:[%s175 + $0xa8] sm:$0xff] %v2547
      %2580 = vst [vmem:[%s175 + $0xb0] sm:$0xff] %v2548
      %2581 = vst [vmem:[%s175 + $0xb8] sm:$0xff] %v2549
      %2582 = vst [vmem:[%s175 + $0xc0] sm:$0xff] %v2550
      %2583 = vst [vmem:[%s175 + $0xc8] sm:$0xff] %v2551
      %2584 = vst [vmem:[%s175 + $0xd0] sm:$0xff] %v2552
      %2585 = vst [vmem:[%s175 + $0xd8] sm:$0xff] %v2553
      %2586 = vst [vmem:[%s175 + $0xe0] sm:$0xff] %v2554
      %2587 = vst [vmem:[%s175 + $0xe8] sm:$0xff] %v2555
      %2588 = vst [vmem:[%s175 + $0xf0] sm:$0xff] %v2556
      %2589 = vst [vmem:[%s175 + $0xf8] sm:$0xff] %v2557
      %s2590 = smul.u32 32, %s14
      %p2591 = scmp.lt.s32.totalorder %s2590, 63
      %s2592 = scalar_select %p2591, %s2590, 63
      %s2593 = smul.addr %s2592, 8
      %s2594 = scalar_lea.vmem %s3, %s2593
      // Predicated region
      $region33: #{pi_model_forward.12} parent=31 // pred_check
        %p2595 = pneg %p100
      $region34: #{pi_model_forward.12} parent=31 // pred_check_branch
        %2597 = sbr.rel (%p2595) target = $region36
      $region35: #{pi_model_forward.12} parent=31 // pred_region
        %s2598 = smul.u32 32, %s14
      $region36: #{pi_model_forward.12} parent=31 // pred_fallthru
        _
    $region32: #{pi_model_forward.12} parent=5 // pred_fallthru
      _
    %p2599 = scmp.le.s32.totalorder 2, %s9
    // Predicated region
    $region37: #{pi_model_forward.12} parent=5 // pred_check
      %p2600 = pneg %p2599
    $region38: #{pi_model_forward.12} parent=5 // pred_check_branch
      %2602 = sbr.rel (%p2600) target = $region40
    $region39: #{pi_model_forward.12} parent=5 // pred_region
      %s2603 = ssub.s32 %s9, 2
      // Predicated region
      $region41: #{pi_model_forward.12} parent=39 // pred_check
        %p2604 = pneg %p106
      $region42: #{pi_model_forward.12} parent=39 // pred_check_branch
        %2606 = sbr.rel (%p2604) target = $region44
      $region43: #{pi_model_forward.12} parent=39 // pred_region
        %s2607 = smul.u32 32, %s15
        %p2608 = scmp.lt.s32.totalorder %s2607, 63
        %s2609 = scalar_select %p2608, %s2607, 63
        %s2610 = smul.addr %s2609, 8
        %s2611 = scalar_lea.vmem %s3, %s2610
      $region44: #{pi_model_forward.12} parent=39 // pred_fallthru
        _
    $region40: #{pi_model_forward.12} parent=5 // pred_fallthru
      _
  $region6: #{pi_model_forward.12} parent=0 // loop_footer
    %s13 = sadd.s32 1, %s9
  $region7: #{pi_model_forward.12} parent=0 // loop_footer_branch
    %8 = sbr.rel target = $region3
  $region8: #{pi_model_forward.12} parent=0 // loop_exit
    _

// kernel: pi_model_forward.18
$region0: #{pi_model_forward.18}
  #allocation0 [shape = 'u32[]', space=smem, size = 0x4, offset = 0x4, fixed_abs, tag = 'smem constant byte address 0x4 - core index']
  #allocation1 [shape = 'u32[144,128]{1,0:T(1,128)}', space=vmem, size = 0x12000, scoped, tag = 'internal scratch']
  %s0 = inlined_call_operand.vmem [shape: f32[32,256], index: 0, kind: input, shape index: {}]
  %s1 = inlined_call_operand.vmem [shape: f32[32,256], index: 1, kind: input, shape index: {}]
  %s2 = inlined_call_operand.vmem [shape: f32[32,256], index: 2, kind: input, shape index: {}]
  %s3 = inlined_call_operand.vmem [shape: f32[32,256], index: 3, kind: input, shape index: {}]
  %s4 = inlined_call_operand.vmem [shape: f32[32,256], index: 4, kind: output, shape index: {}]
  %s5 = sld [smem:[#allocation0]]
  $region26: #{pi_model_forward.18} parent=0
    _
  %s7 = ssub.s32 1, %s5
  %s8 = scalar_select 0, %s7, %s5
  // Predicated region
  $region2: #{pi_model_forward.18} parent=0 // pred_check
    _
  $region3: #{pi_model_forward.18} parent=0 // pred_check_branch
    %10 = sbr.rel (0) target = $region5
  $region4: #{pi_model_forward.18} parent=0 // pred_region
    _
  $region5: #{pi_model_forward.18} parent=0 // pred_fallthru
    _
  // Predicated region
  $region6: #{pi_model_forward.18} parent=0 // pred_check
    _
  $region7: #{pi_model_forward.18} parent=0 // pred_check_branch
    %12 = sbr.rel (0) target = $region9
  $region8: #{pi_model_forward.18} parent=0 // pred_region
    _
  $region9: #{pi_model_forward.18} parent=0 // pred_fallthru
    _
  // Predicated region
  $region10: #{pi_model_forward.18} parent=0 // pred_check
    _
  $region11: #{pi_model_forward.18} parent=0 // pred_check_branch
    %14 = sbr.rel (0) target = $region13
  $region12: #{pi_model_forward.18} parent=0 // pred_region
    _
  $region13: #{pi_model_forward.18} parent=0 // pred_fallthru
    _
  // Predicated region
  $region14: #{pi_model_forward.18} parent=0 // pred_check
    _
  $region15: #{pi_model_forward.18} parent=0 // pred_check_branch
    %16 = sbr.rel (0) target = $region17
  $region16: #{pi_model_forward.18} parent=0 // pred_region
    _
  $region17: #{pi_model_forward.18} parent=0 // pred_fallthru
    _
  %v17 = vld [vmem:[%s0] sm:$0xff]
  %v18 = vld [vmem:[%s0 + $0x8] sm:$0xff]
  %v19 = vld [vmem:[%s0 + $0x10] sm:$0xff]
  %v20 = vld [vmem:[%s0 + $0x18] sm:$0xff]
  %v21 = vld [vmem:[%s0 + $0x20] sm:$0xff]
  %v22 = vld [vmem:[%s0 + $0x28] sm:$0xff]
  %v23 = vld [vmem:[%s0 + $0x30] sm:$0xff]
  %v24 = vld [vmem:[%s0 + $0x38] sm:$0xff]
  %v25 = vld [vmem:[%s1] sm:$0xff]
  %v26 = vld [vmem:[%s1 + $0x8] sm:$0xff]
  %v27 = vld [vmem:[%s1 + $0x10] sm:$0xff]
  %v28 = vld [vmem:[%s1 + $0x18] sm:$0xff]
  %v29 = vld [vmem:[%s1 + $0x20] sm:$0xff]
  %v30 = vld [vmem:[%s1 + $0x28] sm:$0xff]
  %v31 = vld [vmem:[%s1 + $0x30] sm:$0xff]
  %v32 = vld [vmem:[%s1 + $0x38] sm:$0xff]
  %v33 = vmax.f32 %v17, %v25
  %v34 = vmax.f32 %v18, %v26
  %v35 = vmax.f32 %v19, %v27
  %v36 = vmax.f32 %v20, %v28
  %v37 = vmax.f32 %v21, %v29
  %v38 = vmax.f32 %v22, %v30
  %v39 = vmax.f32 %v23, %v31
  %v40 = vmax.f32 %v24, %v32
  %v41 = vld [vmem:[%s2] sm:$0xff]
  %v42 = vld [vmem:[%s2 + $0x8] sm:$0xff]
  %v43 = vld [vmem:[%s2 + $0x10] sm:$0xff]
  %v44 = vld [vmem:[%s2 + $0x18] sm:$0xff]
  %v45 = vld [vmem:[%s2 + $0x20] sm:$0xff]
  %v46 = vld [vmem:[%s2 + $0x28] sm:$0xff]
  %v47 = vld [vmem:[%s2 + $0x30] sm:$0xff]
  %v48 = vld [vmem:[%s2 + $0x38] sm:$0xff]
  %v49 = vld [vmem:[%s3] sm:$0xff]
  %v50 = vld [vmem:[%s3 + $0x8] sm:$0xff]
  %v51 = vld [vmem:[%s3 + $0x10] sm:$0xff]
  %v52 = vld [vmem:[%s3 + $0x18] sm:$0xff]
  %v53 = vld [vmem:[%s3 + $0x20] sm:$0xff]
  %v54 = vld [vmem:[%s3 + $0x28] sm:$0xff]
  %v55 = vld [vmem:[%s3 + $0x30] sm:$0xff]
  %v56 = vld [vmem:[%s3 + $0x38] sm:$0xff]
  %v57 = vmax.f32 %v41, %v49
  %v58 = vmax.f32 %v42, %v50
  %v59 = vmax.f32 %v43, %v51
  %v60 = vmax.f32 %v44, %v52
  %v61 = vmax.f32 %v45, %v53
  %v62 = vmax.f32 %v46, %v54
  %v63 = vmax.f32 %v47, %v55
  %v64 = vmax.f32 %v48, %v56
  %v65 = vmax.f32 %v33, %v57
  %v66 = vmax.f32 %v34, %v58
  %v67 = vmax.f32 %v35, %v59
  %v68 = vmax.f32 %v36, %v60
  %v69 = vmax.f32 %v37, %v61
  %v70 = vmax.f32 %v38, %v62
  %v71 = vmax.f32 %v39, %v63
  %v72 = vmax.f32 %v40, %v64
  %73 = vst [vmem:[%s4] sm:$0xff] %v65
  %74 = vst [vmem:[%s4 + $0x8] sm:$0xff] %v66
  %75 = vst [vmem:[%s4 + $0x10] sm:$0xff] %v67
  %76 = vst [vmem:[%s4 + $0x18] sm:$0xff] %v68
  %77 = vst [vmem:[%s4 + $0x20] sm:$0xff] %v69
  %78 = vst [vmem:[%s4 + $0x28] sm:$0xff] %v70
  %79 = vst [vmem:[%s4 + $0x30] sm:$0xff] %v71
  %80 = vst [vmem:[%s4 + $0x38] sm:$0xff] %v72
  // Predicated region
  $region18: #{pi_model_forward.18} parent=0 // pred_check
    _
  $region19: #{pi_model_forward.18} parent=0 // pred_check_branch
    %82 = sbr.rel (0) target = $region21
  $region20: #{pi_model_forward.18} parent=0 // pred_region
    _
  $region21: #{pi_model_forward.18} parent=0 // pred_fallthru
    _
  // Predicated region
  $region22: #{pi_model_forward.18} parent=0 // pred_check
    _
  $region23: #{pi_model_forward.18} parent=0 // pred_check_branch
    %84 = sbr.rel (0) target = $region25
  $region24: #{pi_model_forward.18} parent=0 // pred_region
    _
  $region25: #{pi_model_forward.18} parent=0 // pred_fallthru
    _

// kernel: pi_model_forward.15
$region0: #{pi_model_forward.15}
  #allocation0 [shape = 'u32[]', space=smem, size = 0x4, offset = 0x4, fixed_abs, tag = 'smem constant byte address 0x4 - core index']
  #allocation1 [shape = 'u32[144,128]{1,0:T(1,128)}', space=vmem, size = 0x12000, scoped, tag = 'internal scratch']
  %s0 = inlined_call_operand.vmem [shape: bf16[128,1152], index: 0, kind: input, shape index: {}]
  %s1 = inlined_call_operand.vmem [shape: bf16[1152,256], index: 1, kind: input, shape index: {}]
  %s2 = inlined_call_operand.vmem [shape: f32[1,256], index: 2, kind: input, shape index: {}]
  %s3 = inlined_call_operand.vmem [shape: f32[128,256], index: 3, kind: output, shape index: {}]
  %s4 = sld [smem:[#allocation0]]
  $region22: #{pi_model_forward.15} parent=0
    _
  %s6 = ssub.s32 1, %s4
  %s7 = scalar_select 0, %s6, %s4
  // Predicated region
  $region2: #{pi_model_forward.15} parent=0 // pred_check
    _
  $region3: #{pi_model_forward.15} parent=0 // pred_check_branch
    %9 = sbr.rel (0) target = $region5
  $region4: #{pi_model_forward.15} parent=0 // pred_region
    _
  $region5: #{pi_model_forward.15} parent=0 // pred_fallthru
    _
  // Predicated region
  $region6: #{pi_model_forward.15} parent=0 // pred_check
    _
  $region7: #{pi_model_forward.15} parent=0 // pred_check_branch
    %11 = sbr.rel (0) target = $region9
  $region8: #{pi_model_forward.15} parent=0 // pred_region
    _
  $region9: #{pi_model_forward.15} parent=0 // pred_fallthru
    _
  // Predicated region
  $region10: #{pi_model_forward.15} parent=0 // pred_check
    _
  $region11: #{pi_model_forward.15} parent=0 // pred_check_branch
    %13 = sbr.rel (0) target = $region13
  $region12: #{pi_model_forward.15} parent=0 // pred_region
    _
  $region13: #{pi_model_forward.15} parent=0 // pred_fallthru
    _
  %v15 = vld [vmem:[%s0] sm:$0xff]
  %v16 = vld [vmem:[%s0 + $0x8] sm:$0xff]
  %v17 = vld [vmem:[%s0 + $0x10] sm:$0xff]
  %v18 = vld [vmem:[%s0 + $0x18] sm:$0xff]
  %v19 = vld [vmem:[%s0 + $0x20] sm:$0xf]
  %v20 = vld [vmem:[%s0 + $0x24] sm:$0xff]
  %v21 = vld [vmem:[%s0 + $0x2c] sm:$0xff]
  %v22 = vld [vmem:[%s0 + $0x34] sm:$0xff]
  %v23 = vld [vmem:[%s0 + $0x3c] sm:$0xff]
  %v24 = vld [vmem:[%s0 + $0x44] sm:$0xf]
  %v25 = vld [vmem:[%s0 + $0x48] sm:$0xff]
  %v26 = vld [vmem:[%s0 + $0x50] sm:$0xff]
  %v27 = vld [vmem:[%s0 + $0x58] sm:$0xff]
  %v28 = vld [vmem:[%s0 + $0x60] sm:$0xff]
  %v29 = vld [vmem:[%s0 + $0x68] sm:$0xf]
  %v30 = vld [vmem:[%s0 + $0x6c] sm:$0xff]
  %v31 = vld [vmem:[%s0 + $0x74] sm:$0xff]
  %v32 = vld [vmem:[%s0 + $0x7c] sm:$0xff]
  %v33 = vld [vmem:[%s0 + $0x84] sm:$0xff]
  %v34 = vld [vmem:[%s0 + $0x8c] sm:$0xf]
  %v35 = vld [vmem:[%s0 + $0x90] sm:$0xff]
  %v36 = vld [vmem:[%s0 + $0x98] sm:$0xff]
  %v37 = vld [vmem:[%s0 + $0xa0] sm:$0xff]
  %v38 = vld [vmem:[%s0 + $0xa8] sm:$0xff]
  %v39 = vld [vmem:[%s0 + $0xb0] sm:$0xf]
  %v40 = vld [vmem:[%s0 + $0xb4] sm:$0xff]
  %v41 = vld [vmem:[%s0 + $0xbc] sm:$0xff]
  %v42 = vld [vmem:[%s0 + $0xc4] sm:$0xff]
  %v43 = vld [vmem:[%s0 + $0xcc] sm:$0xff]
  %v44 = vld [vmem:[%s0 + $0xd4] sm:$0xf]
  %v45 = vld [vmem:[%s0 + $0xd8] sm:$0xff]
  %v46 = vld [vmem:[%s0 + $0xe0] sm:$0xff]
  %v47 = vld [vmem:[%s0 + $0xe8] sm:$0xff]
  %v48 = vld [vmem:[%s0 + $0xf0] sm:$0xff]
  %v49 = vld [vmem:[%s0 + $0xf8] sm:$0xf]
  %v50 = vld [vmem:[%s0 + $0xfc] sm:$0xff]
  %v51 = vld [vmem:[%s0 + $0x104] sm:$0xff]
  %v52 = vld [vmem:[%s0 + $0x10c] sm:$0xff]
  %v53 = vld [vmem:[%s0 + $0x114] sm:$0xff]
  %v54 = vld [vmem:[%s0 + $0x11c] sm:$0xf]
  %v55 = vld [vmem:[%s0 + $0x120] sm:$0xff]
  %v56 = vld [vmem:[%s0 + $0x128] sm:$0xff]
  %v57 = vld [vmem:[%s0 + $0x130] sm:$0xff]
  %v58 = vld [vmem:[%s0 + $0x138] sm:$0xff]
  %v59 = vld [vmem:[%s0 + $0x140] sm:$0xf]
  %v60 = vld [vmem:[%s0 + $0x144] sm:$0xff]
  %v61 = vld [vmem:[%s0 + $0x14c] sm:$0xff]
  %v62 = vld [vmem:[%s0 + $0x154] sm:$0xff]
  %v63 = vld [vmem:[%s0 + $0x15c] sm:$0xff]
  %v64 = vld [vmem:[%s0 + $0x164] sm:$0xf]
  %v65 = vld [vmem:[%s0 + $0x168] sm:$0xff]
  %v66 = vld [vmem:[%s0 + $0x170] sm:$0xff]
  %v67 = vld [vmem:[%s0 + $0x178] sm:$0xff]
  %v68 = vld [vmem:[%s0 + $0x180] sm:$0xff]
  %v69 = vld [vmem:[%s0 + $0x188] sm:$0xf]
  %v70 = vld [vmem:[%s0 + $0x18c] sm:$0xff]
  %v71 = vld [vmem:[%s0 + $0x194] sm:$0xff]
  %v72 = vld [vmem:[%s0 + $0x19c] sm:$0xff]
  %v73 = vld [vmem:[%s0 + $0x1a4] sm:$0xff]
  %v74 = vld [vmem:[%s0 + $0x1ac] sm:$0xf]
  %v75 = vld [vmem:[%s0 + $0x1b0] sm:$0xff]
  %v76 = vld [vmem:[%s0 + $0x1b8] sm:$0xff]
  %v77 = vld [vmem:[%s0 + $0x1c0] sm:$0xff]
  %v78 = vld [vmem:[%s0 + $0x1c8] sm:$0xff]
  %v79 = vld [vmem:[%s0 + $0x1d0] sm:$0xf]
  %v80 = vld [vmem:[%s0 + $0x1d4] sm:$0xff]
  %v81 = vld [vmem:[%s0 + $0x1dc] sm:$0xff]
  %v82 = vld [vmem:[%s0 + $0x1e4] sm:$0xff]
  %v83 = vld [vmem:[%s0 + $0x1ec] sm:$0xff]
  %v84 = vld [vmem:[%s0 + $0x1f4] sm:$0xf]
  %v85 = vld [vmem:[%s0 + $0x1f8] sm:$0xff]
  %v86 = vld [vmem:[%s0 + $0x200] sm:$0xff]
  %v87 = vld [vmem:[%s0 + $0x208] sm:$0xff]
  %v88 = vld [vmem:[%s0 + $0x210] sm:$0xff]
  %v89 = vld [vmem:[%s0 + $0x218] sm:$0xf]
  %v90 = vld [vmem:[%s0 + $0x21c] sm:$0xff]
  %v91 = vld [vmem:[%s0 + $0x224] sm:$0xff]
  %v92 = vld [vmem:[%s0 + $0x22c] sm:$0xff]
  %v93 = vld [vmem:[%s0 + $0x234] sm:$0xff]
  %v94 = vld [vmem:[%s0 + $0x23c] sm:$0xf]
  %v95 = vld [vmem:[%s1] sm:$0xff]
  %v96 = vld [vmem:[%s1 + $0x8] sm:$0xff]
  %v97 = vld [vmem:[%s1 + $0x10] sm:$0xff]
  %v98 = vld [vmem:[%s1 + $0x18] sm:$0xff]
  %v99 = vld [vmem:[%s1 + $0x20] sm:$0xff]
  %v100 = vld [vmem:[%s1 + $0x28] sm:$0xff]
  %v101 = vld [vmem:[%s1 + $0x30] sm:$0xff]
  %v102 = vld [vmem:[%s1 + $0x38] sm:$0xff]
  %v103 = vld [vmem:[%s1 + $0x40] sm:$0xff]
  %v104 = vld [vmem:[%s1 + $0x48] sm:$0xff]
  %v105 = vld [vmem:[%s1 + $0x50] sm:$0xff]
  %v106 = vld [vmem:[%s1 + $0x58] sm:$0xff]
  %v107 = vld [vmem:[%s1 + $0x60] sm:$0xff]
  %v108 = vld [vmem:[%s1 + $0x68] sm:$0xff]
  %v109 = vld [vmem:[%s1 + $0x70] sm:$0xff]
  %v110 = vld [vmem:[%s1 + $0x78] sm:$0xff]
  %v111 = vld [vmem:[%s1 + $0x80] sm:$0xff]
  %v112 = vld [vmem:[%s1 + $0x88] sm:$0xff]
  %v113 = vld [vmem:[%s1 + $0x90] sm:$0xff]
  %v114 = vld [vmem:[%s1 + $0x98] sm:$0xff]
  %v115 = vld [vmem:[%s1 + $0xa0] sm:$0xff]
  %v116 = vld [vmem:[%s1 + $0xa8] sm:$0xff]
  %v117 = vld [vmem:[%s1 + $0xb0] sm:$0xff]
  %v118 = vld [vmem:[%s1 + $0xb8] sm:$0xff]
  %v119 = vld [vmem:[%s1 + $0xc0] sm:$0xff]
  %v120 = vld [vmem:[%s1 + $0xc8] sm:$0xff]
  %v121 = vld [vmem:[%s1 + $0xd0] sm:$0xff]
  %v122 = vld [vmem:[%s1 + $0xd8] sm:$0xff]
  %v123 = vld [vmem:[%s1 + $0xe0] sm:$0xff]
  %v124 = vld [vmem:[%s1 + $0xe8] sm:$0xff]
  %v125 = vld [vmem:[%s1 + $0xf0] sm:$0xff]
  %v126 = vld [vmem:[%s1 + $0xf8] sm:$0xff]
  %v127 = vld [vmem:[%s1 + $0x100] sm:$0xff]
  %v128 = vld [vmem:[%s1 + $0x108] sm:$0xff]
  %v129 = vld [vmem:[%s1 + $0x110] sm:$0xff]
  %v130 = vld [vmem:[%s1 + $0x118] sm:$0xff]
  %v131 = vld [vmem:[%s1 + $0x120] sm:$0xff]
  %v132 = vld [vmem:[%s1 + $0x128] sm:$0xff]
  %v133 = vld [vmem:[%s1 + $0x130] sm:$0xff]
  %v134 = vld [vmem:[%s1 + $0x138] sm:$0xff]
  %v135 = vld [vmem:[%s1 + $0x140] sm:$0xff]
  %v136 = vld [vmem:[%s1 + $0x148] sm:$0xff]
  %v137 = vld [vmem:[%s1 + $0x150] sm:$0xff]
  %v138 = vld [vmem:[%s1 + $0x158] sm:$0xff]
  %v139 = vld [vmem:[%s1 + $0x160] sm:$0xff]
  %v140 = vld [vmem:[%s1 + $0x168] sm:$0xff]
  %v141 = vld [vmem:[%s1 + $0x170] sm:$0xff]
  %v142 = vld [vmem:[%s1 + $0x178] sm:$0xff]
  %v143 = vld [vmem:[%s1 + $0x180] sm:$0xff]
  %v144 = vld [vmem:[%s1 + $0x188] sm:$0xff]
  %v145 = vld [vmem:[%s1 + $0x190] sm:$0xff]
  %v146 = vld [vmem:[%s1 + $0x198] sm:$0xff]
  %v147 = vld [vmem:[%s1 + $0x1a0] sm:$0xff]
  %v148 = vld [vmem:[%s1 + $0x1a8] sm:$0xff]
  %v149 = vld [vmem:[%s1 + $0x1b0] sm:$0xff]
  %v150 = vld [vmem:[%s1 + $0x1b8] sm:$0xff]
  %v151 = vld [vmem:[%s1 + $0x1c0] sm:$0xff]
  %v152 = vld [vmem:[%s1 + $0x1c8] sm:$0xff]
  %v153 = vld [vmem:[%s1 + $0x1d0] sm:$0xff]
  %v154 = vld [vmem:[%s1 + $0x1d8] sm:$0xff]
  %v155 = vld [vmem:[%s1 + $0x1e0] sm:$0xff]
  %v156 = vld [vmem:[%s1 + $0x1e8] sm:$0xff]
  %v157 = vld [vmem:[%s1 + $0x1f0] sm:$0xff]
  %v158 = vld [vmem:[%s1 + $0x1f8] sm:$0xff]
  %v159 = vld [vmem:[%s1 + $0x200] sm:$0xff]
  %v160 = vld [vmem:[%s1 + $0x208] sm:$0xff]
  %v161 = vld [vmem:[%s1 + $0x210] sm:$0xff]
  %v162 = vld [vmem:[%s1 + $0x218] sm:$0xff]
  %v163 = vld [vmem:[%s1 + $0x220] sm:$0xff]
  %v164 = vld [vmem:[%s1 + $0x228] sm:$0xff]
  %v165 = vld [vmem:[%s1 + $0x230] sm:$0xff]
  %v166 = vld [vmem:[%s1 + $0x238] sm:$0xff]
  %v167 = vld [vmem:[%s1 + $0x240] sm:$0xff]
  %v168 = vld [vmem:[%s1 + $0x248] sm:$0xff]
  %v169 = vld [vmem:[%s1 + $0x250] sm:$0xff]
  %v170 = vld [vmem:[%s1 + $0x258] sm:$0xff]
  %v171 = vld [vmem:[%s1 + $0x260] sm:$0xff]
  %v172 = vld [vmem:[%s1 + $0x268] sm:$0xff]
  %v173 = vld [vmem:[%s1 + $0x270] sm:$0xff]
  %v174 = vld [vmem:[%s1 + $0x278] sm:$0xff]
  %v175 = vld [vmem:[%s1 + $0x280] sm:$0xff]
  %v176 = vld [vmem:[%s1 + $0x288] sm:$0xff]
  %v177 = vld [vmem:[%s1 + $0x290] sm:$0xff]
  %v178 = vld [vmem:[%s1 + $0x298] sm:$0xff]
  %v179 = vld [vmem:[%s1 + $0x2a0] sm:$0xff]
  %v180 = vld [vmem:[%s1 + $0x2a8] sm:$0xff]
  %v181 = vld [vmem:[%s1 + $0x2b0] sm:$0xff]
  %v182 = vld [vmem:[%s1 + $0x2b8] sm:$0xff]
  %v183 = vld [vmem:[%s1 + $0x2c0] sm:$0xff]
  %v184 = vld [vmem:[%s1 + $0x2c8] sm:$0xff]
  %v185 = vld [vmem:[%s1 + $0x2d0] sm:$0xff]
  %v186 = vld [vmem:[%s1 + $0x2d8] sm:$0xff]
  %v187 = vld [vmem:[%s1 + $0x2e0] sm:$0xff]
  %v188 = vld [vmem:[%s1 + $0x2e8] sm:$0xff]
  %v189 = vld [vmem:[%s1 + $0x2f0] sm:$0xff]
  %v190 = vld [vmem:[%s1 + $0x2f8] sm:$0xff]
  %v191 = vld [vmem:[%s1 + $0x300] sm:$0xff]
  %v192 = vld [vmem:[%s1 + $0x308] sm:$0xff]
  %v193 = vld [vmem:[%s1 + $0x310] sm:$0xff]
  %v194 = vld [vmem:[%s1 + $0x318] sm:$0xff]
  %v195 = vld [vmem:[%s1 + $0x320] sm:$0xff]
  %v196 = vld [vmem:[%s1 + $0x328] sm:$0xff]
  %v197 = vld [vmem:[%s1 + $0x330] sm:$0xff]
  %v198 = vld [vmem:[%s1 + $0x338] sm:$0xff]
  %v199 = vld [vmem:[%s1 + $0x340] sm:$0xff]
  %v200 = vld [vmem:[%s1 + $0x348] sm:$0xff]
  %v201 = vld [vmem:[%s1 + $0x350] sm:$0xff]
  %v202 = vld [vmem:[%s1 + $0x358] sm:$0xff]
  %v203 = vld [vmem:[%s1 + $0x360] sm:$0xff]
  %v204 = vld [vmem:[%s1 + $0x368] sm:$0xff]
  %v205 = vld [vmem:[%s1 + $0x370] sm:$0xff]
  %v206 = vld [vmem:[%s1 + $0x378] sm:$0xff]
  %v207 = vld [vmem:[%s1 + $0x380] sm:$0xff]
  %v208 = vld [vmem:[%s1 + $0x388] sm:$0xff]
  %v209 = vld [vmem:[%s1 + $0x390] sm:$0xff]
  %v210 = vld [vmem:[%s1 + $0x398] sm:$0xff]
  %v211 = vld [vmem:[%s1 + $0x3a0] sm:$0xff]
  %v212 = vld [vmem:[%s1 + $0x3a8] sm:$0xff]
  %v213 = vld [vmem:[%s1 + $0x3b0] sm:$0xff]
  %v214 = vld [vmem:[%s1 + $0x3b8] sm:$0xff]
  %v215 = vld [vmem:[%s1 + $0x3c0] sm:$0xff]
  %v216 = vld [vmem:[%s1 + $0x3c8] sm:$0xff]
  %v217 = vld [vmem:[%s1 + $0x3d0] sm:$0xff]
  %v218 = vld [vmem:[%s1 + $0x3d8] sm:$0xff]
  %v219 = vld [vmem:[%s1 + $0x3e0] sm:$0xff]
  %v220 = vld [vmem:[%s1 + $0x3e8] sm:$0xff]
  %v221 = vld [vmem:[%s1 + $0x3f0] sm:$0xff]
  %v222 = vld [vmem:[%s1 + $0x3f8] sm:$0xff]
  %v223 = vld [vmem:[%s1 + $0x400] sm:$0xff]
  %v224 = vld [vmem:[%s1 + $0x408] sm:$0xff]
  %v225 = vld [vmem:[%s1 + $0x410] sm:$0xff]
  %v226 = vld [vmem:[%s1 + $0x418] sm:$0xff]
  %v227 = vld [vmem:[%s1 + $0x420] sm:$0xff]
  %v228 = vld [vmem:[%s1 + $0x428] sm:$0xff]
  %v229 = vld [vmem:[%s1 + $0x430] sm:$0xff]
  %v230 = vld [vmem:[%s1 + $0x438] sm:$0xff]
  %v231 = vld [vmem:[%s1 + $0x440] sm:$0xff]
  %v232 = vld [vmem:[%s1 + $0x448] sm:$0xff]
  %v233 = vld [vmem:[%s1 + $0x450] sm:$0xff]
  %v234 = vld [vmem:[%s1 + $0x458] sm:$0xff]
  %v235 = vld [vmem:[%s1 + $0x460] sm:$0xff]
  %v236 = vld [vmem:[%s1 + $0x468] sm:$0xff]
  %v237 = vld [vmem:[%s1 + $0x470] sm:$0xff]
  %v238 = vld [vmem:[%s1 + $0x478] sm:$0xff]
  %v239 = vld [vmem:[%s2] sm:$0x3]
  %v241 = vlaneseq
  %v242 = vshrl.u32 %v241, 7
  %v243 = vsub.s32 0, %v242
  %v244 = vrot.slane %v239, %v243
  %v245 = vlaneseq
  %v246 = vshrl.u32 %v245, 7
  %v247 = vsub.s32 1, %v246
  %v248 = vrot.slane %v239, %v247
  %v331 = vunpack.c.l.b16 %v15
  %v332 = vunpack.c.h.b16 %v15
  %v333 = vunpack.c.l.b16 %v16
  %v334 = vunpack.c.h.b16 %v16
  %v335 = vunpack.c.l.b16 %v17
  %v336 = vunpack.c.h.b16 %v17
  %v337 = vunpack.c.l.b16 %v18
  %v338 = vunpack.c.h.b16 %v18
  %v339 = vunpack.c.l.b16 %v19
  %v340 = vunpack.c.l.b16 %v20
  %v341 = vunpack.c.h.b16 %v20
  %v342 = vunpack.c.l.b16 %v21
  %v343 = vunpack.c.h.b16 %v21
  %v344 = vunpack.c.l.b16 %v22
  %v345 = vunpack.c.h.b16 %v22
  %v346 = vunpack.c.l.b16 %v23
  %v347 = vunpack.c.h.b16 %v23
  %v348 = vunpack.c.l.b16 %v24
  %v349 = vunpack.c.l.b16 %v25
  %v350 = vunpack.c.h.b16 %v25
  %v351 = vunpack.c.l.b16 %v26
  %v352 = vunpack.c.h.b16 %v26
  %v353 = vunpack.c.l.b16 %v27
  %v354 = vunpack.c.h.b16 %v27
  %v355 = vunpack.c.l.b16 %v28
  %v356 = vunpack.c.h.b16 %v28
  %v357 = vunpack.c.l.b16 %v29
  %v358 = vunpack.c.l.b16 %v30
  %v359 = vunpack.c.h.b16 %v30
  %v360 = vunpack.c.l.b16 %v31
  %v361 = vunpack.c.h.b16 %v31
  %v362 = vunpack.c.l.b16 %v32
  %v363 = vunpack.c.h.b16 %v32
  %v364 = vunpack.c.l.b16 %v33
  %v365 = vunpack.c.h.b16 %v33
  %v366 = vunpack.c.l.b16 %v34
  %v367 = vunpack.c.l.b16 %v35
  %v368 = vunpack.c.h.b16 %v35
  %v369 = vunpack.c.l.b16 %v36
  %v370 = vunpack.c.h.b16 %v36
  %v371 = vunpack.c.l.b16 %v37
  %v372 = vunpack.c.h.b16 %v37
  %v373 = vunpack.c.l.b16 %v38
  %v374 = vunpack.c.h.b16 %v38
  %v375 = vunpack.c.l.b16 %v39
  %v376 = vunpack.c.l.b16 %v40
  %v377 = vunpack.c.h.b16 %v40
  %v378 = vunpack.c.l.b16 %v41
  %v379 = vunpack.c.h.b16 %v41
  %v380 = vunpack.c.l.b16 %v42
  %v381 = vunpack.c.h.b16 %v42
  %v382 = vunpack.c.l.b16 %v43
  %v383 = vunpack.c.h.b16 %v43
  %v384 = vunpack.c.l.b16 %v44
  %v385 = vunpack.c.l.b16 %v45
  %v386 = vunpack.c.h.b16 %v45
  %v387 = vunpack.c.l.b16 %v46
  %v388 = vunpack.c.h.b16 %v46
  %v389 = vunpack.c.l.b16 %v47
  %v390 = vunpack.c.h.b16 %v47
  %v391 = vunpack.c.l.b16 %v48
  %v392 = vunpack.c.h.b16 %v48
  %v393 = vunpack.c.l.b16 %v49
  %v394 = vunpack.c.l.b16 %v50
  %v395 = vunpack.c.h.b16 %v50
  %v396 = vunpack.c.l.b16 %v51
  %v397 = vunpack.c.h.b16 %v51
  %v398 = vunpack.c.l.b16 %v52
  %v399 = vunpack.c.h.b16 %v52
  %v400 = vunpack.c.l.b16 %v53
  %v401 = vunpack.c.h.b16 %v53
  %v402 = vunpack.c.l.b16 %v54
  %v403 = vunpack.c.l.b16 %v55
  %v404 = vunpack.c.h.b16 %v55
  %v405 = vunpack.c.l.b16 %v56
  %v406 = vunpack.c.h.b16 %v56
  %v407 = vunpack.c.l.b16 %v57
  %v408 = vunpack.c.h.b16 %v57
  %v409 = vunpack.c.l.b16 %v58
  %v410 = vunpack.c.h.b16 %v58
  %v411 = vunpack.c.l.b16 %v59
  %v412 = vunpack.c.l.b16 %v60
  %v413 = vunpack.c.h.b16 %v60
  %v414 = vunpack.c.l.b16 %v61
  %v415 = vunpack.c.h.b16 %v61
  %v416 = vunpack.c.l.b16 %v62
  %v417 = vunpack.c.h.b16 %v62
  %v418 = vunpack.c.l.b16 %v63
  %v419 = vunpack.c.h.b16 %v63
  %v420 = vunpack.c.l.b16 %v64
  %v421 = vunpack.c.l.b16 %v65
  %v422 = vunpack.c.h.b16 %v65
  %v423 = vunpack.c.l.b16 %v66
  %v424 = vunpack.c.h.b16 %v66
  %v425 = vunpack.c.l.b16 %v67
  %v426 = vunpack.c.h.b16 %v67
  %v427 = vunpack.c.l.b16 %v68
  %v428 = vunpack.c.h.b16 %v68
  %v429 = vunpack.c.l.b16 %v69
  %v430 = vunpack.c.l.b16 %v70
  %v431 = vunpack.c.h.b16 %v70
  %v432 = vunpack.c.l.b16 %v71
  %v433 = vunpack.c.h.b16 %v71
  %v434 = vunpack.c.l.b16 %v72
  %v435 = vunpack.c.h.b16 %v72
  %v436 = vunpack.c.l.b16 %v73
  %v437 = vunpack.c.h.b16 %v73
  %v438 = vunpack.c.l.b16 %v74
  %v439 = vunpack.c.l.b16 %v75
  %v440 = vunpack.c.h.b16 %v75
  %v441 = vunpack.c.l.b16 %v76
  %v442 = vunpack.c.h.b16 %v76
  %v443 = vunpack.c.l.b16 %v77
  %v444 = vunpack.c.h.b16 %v77
  %v445 = vunpack.c.l.b16 %v78
  %v446 = vunpack.c.h.b16 %v78
  %v447 = vunpack.c.l.b16 %v79
  %v448 = vunpack.c.l.b16 %v80
  %v449 = vunpack.c.h.b16 %v80
  %v450 = vunpack.c.l.b16 %v81
  %v451 = vunpack.c.h.b16 %v81
  %v452 = vunpack.c.l.b16 %v82
  %v453 = vunpack.c.h.b16 %v82
  %v454 = vunpack.c.l.b16 %v83
  %v455 = vunpack.c.h.b16 %v83
  %v456 = vunpack.c.l.b16 %v84
  %v457 = vunpack.c.l.b16 %v85
  %v458 = vunpack.c.h.b16 %v85
  %v459 = vunpack.c.l.b16 %v86
  %v460 = vunpack.c.h.b16 %v86
  %v461 = vunpack.c.l.b16 %v87
  %v462 = vunpack.c.h.b16 %v87
  %v463 = vunpack.c.l.b16 %v88
  %v464 = vunpack.c.h.b16 %v88
  %v465 = vunpack.c.l.b16 %v89
  %v466 = vunpack.c.l.b16 %v90
  %v467 = vunpack.c.h.b16 %v90
  %v468 = vunpack.c.l.b16 %v91
  %v469 = vunpack.c.h.b16 %v91
  %v470 = vunpack.c.l.b16 %v92
  %v471 = vunpack.c.h.b16 %v92
  %v472 = vunpack.c.l.b16 %v93
  %v473 = vunpack.c.h.b16 %v93
  %v474 = vunpack.c.l.b16 %v94
  %v475 = vpack.c.b16 %v340, %v331
  %v476 = vpack.c.b16 %v341, %v332
  %v477 = vpack.c.b16 %v342, %v333
  %v478 = vpack.c.b16 %v343, %v334
  %v479 = vpack.c.b16 %v344, %v335
  %v480 = vpack.c.b16 %v345, %v336
  %v481 = vpack.c.b16 %v346, %v337
  %v482 = vpack.c.b16 %v347, %v338
  %v483 = vpack.c.b16 %v348, %v339
  %v484 = vpack.c.b16 %v358, %v349
  %v485 = vpack.c.b16 %v359, %v350
  %v486 = vpack.c.b16 %v360, %v351
  %v487 = vpack.c.b16 %v361, %v352
  %v488 = vpack.c.b16 %v362, %v353
  %v489 = vpack.c.b16 %v363, %v354
  %v490 = vpack.c.b16 %v364, %v355
  %v491 = vpack.c.b16 %v365, %v356
  %v492 = vpack.c.b16 %v366, %v357
  %v493 = vpack.c.b16 %v376, %v367
  %v494 = vpack.c.b16 %v377, %v368
  %v495 = vpack.c.b16 %v378, %v369
  %v496 = vpack.c.b16 %v379, %v370
  %v497 = vpack.c.b16 %v380, %v371
  %v498 = vpack.c.b16 %v381, %v372
  %v499 = vpack.c.b16 %v382, %v373
  %v500 = vpack.c.b16 %v383, %v374
  %v501 = vpack.c.b16 %v384, %v375
  %v502 = vpack.c.b16 %v394, %v385
  %v503 = vpack.c.b16 %v395, %v386
  %v504 = vpack.c.b16 %v396, %v387
  %v505 = vpack.c.b16 %v397, %v388
  %v506 = vpack.c.b16 %v398, %v389
  %v507 = vpack.c.b16 %v399, %v390
  %v508 = vpack.c.b16 %v400, %v391
  %v509 = vpack.c.b16 %v401, %v392
  %v510 = vpack.c.b16 %v402, %v393
  %v511 = vpack.c.b16 %v412, %v403
  %v512 = vpack.c.b16 %v413, %v404
  %v513 = vpack.c.b16 %v414, %v405
  %v514 = vpack.c.b16 %v415, %v406
  %v515 = vpack.c.b16 %v416, %v407
  %v516 = vpack.c.b16 %v417, %v408
  %v517 = vpack.c.b16 %v418, %v409
  %v518 = vpack.c.b16 %v419, %v410
  %v519 = vpack.c.b16 %v420, %v411
  %v520 = vpack.c.b16 %v430, %v421
  %v521 = vpack.c.b16 %v431, %v422
  %v522 = vpack.c.b16 %v432, %v423
  %v523 = vpack.c.b16 %v433, %v424
  %v524 = vpack.c.b16 %v434, %v425
  %v525 = vpack.c.b16 %v435, %v426
  %v526 = vpack.c.b16 %v436, %v427
  %v527 = vpack.c.b16 %v437, %v428
  %v528 = vpack.c.b16 %v438, %v429
  %v529 = vpack.c.b16 %v448, %v439
  %v530 = vpack.c.b16 %v449, %v440
  %v531 = vpack.c.b16 %v450, %v441
  %v532 = vpack.c.b16 %v451, %v442
  %v533 = vpack.c.b16 %v452, %v443
  %v534 = vpack.c.b16 %v453, %v444
  %v535 = vpack.c.b16 %v454, %v445
  %v536 = vpack.c.b16 %v455, %v446
  %v537 = vpack.c.b16 %v456, %v447
  %v538 = vpack.c.b16 %v466, %v457
  %v539 = vpack.c.b16 %v467, %v458
  %v540 = vpack.c.b16 %v468, %v459
  %v541 = vpack.c.b16 %v469, %v460
  %v542 = vpack.c.b16 %v470, %v461
  %v543 = vpack.c.b16 %v471, %v462
  %v544 = vpack.c.b16 %v472, %v463
  %v545 = vpack.c.b16 %v473, %v464
  %v546 = vpack.c.b16 %v474, %v465
  %v763 = vunpack.c.l.b16 %v95
  %v764 = vunpack.c.h.b16 %v95
  %v765 = vunpack.c.l.b16 %v96
  %v766 = vunpack.c.h.b16 %v96
  %v767 = vunpack.c.l.b16 %v97
  %v768 = vunpack.c.h.b16 %v97
  %v769 = vunpack.c.l.b16 %v98
  %v770 = vunpack.c.h.b16 %v98
  %v771 = vunpack.c.l.b16 %v99
  %v772 = vunpack.c.h.b16 %v99
  %v773 = vunpack.c.l.b16 %v100
  %v774 = vunpack.c.h.b16 %v100
  %v775 = vunpack.c.l.b16 %v101
  %v776 = vunpack.c.h.b16 %v101
  %v777 = vunpack.c.l.b16 %v102
  %v778 = vunpack.c.h.b16 %v102
  %v779 = vunpack.c.l.b16 %v103
  %v780 = vunpack.c.h.b16 %v103
  %v781 = vunpack.c.l.b16 %v104
  %v782 = vunpack.c.h.b16 %v104
  %v783 = vunpack.c.l.b16 %v105
  %v784 = vunpack.c.h.b16 %v105
  %v785 = vunpack.c.l.b16 %v106
  %v786 = vunpack.c.h.b16 %v106
  %v787 = vunpack.c.l.b16 %v107
  %v788 = vunpack.c.h.b16 %v107
  %v789 = vunpack.c.l.b16 %v108
  %v790 = vunpack.c.h.b16 %v108
  %v791 = vunpack.c.l.b16 %v109
  %v792 = vunpack.c.h.b16 %v109
  %v793 = vunpack.c.l.b16 %v110
  %v794 = vunpack.c.h.b16 %v110
  %v795 = vunpack.c.l.b16 %v111
  %v796 = vunpack.c.h.b16 %v111
  %v797 = vunpack.c.l.b16 %v112
  %v798 = vunpack.c.h.b16 %v112
  %v799 = vunpack.c.l.b16 %v113
  %v800 = vunpack.c.h.b16 %v113
  %v801 = vunpack.c.l.b16 %v114
  %v802 = vunpack.c.h.b16 %v114
  %v803 = vunpack.c.l.b16 %v115
  %v804 = vunpack.c.h.b16 %v115
  %v805 = vunpack.c.l.b16 %v116
  %v806 = vunpack.c.h.b16 %v116
  %v807 = vunpack.c.l.b16 %v117
  %v808 = vunpack.c.h.b16 %v117
  %v809 = vunpack.c.l.b16 %v118
  %v810 = vunpack.c.h.b16 %v118
  %v811 = vunpack.c.l.b16 %v119
  %v812 = vunpack.c.h.b16 %v119
  %v813 = vunpack.c.l.b16 %v120
  %v814 = vunpack.c.h.b16 %v120
  %v815 = vunpack.c.l.b16 %v121
  %v816 = vunpack.c.h.b16 %v121
  %v817 = vunpack.c.l.b16 %v122
  %v818 = vunpack.c.h.b16 %v122
  %v819 = vunpack.c.l.b16 %v123
  %v820 = vunpack.c.h.b16 %v123
  %v821 = vunpack.c.l.b16 %v124
  %v822 = vunpack.c.h.b16 %v124
  %v823 = vunpack.c.l.b16 %v125
  %v824 = vunpack.c.h.b16 %v125
  %v825 = vunpack.c.l.b16 %v126
  %v826 = vunpack.c.h.b16 %v126
  %v827 = vunpack.c.l.b16 %v127
  %v828 = vunpack.c.h.b16 %v127
  %v829 = vunpack.c.l.b16 %v128
  %v830 = vunpack.c.h.b16 %v128
  %v831 = vunpack.c.l.b16 %v129
  %v832 = vunpack.c.h.b16 %v129
  %v833 = vunpack.c.l.b16 %v130
  %v834 = vunpack.c.h.b16 %v130
  %v835 = vunpack.c.l.b16 %v131
  %v836 = vunpack.c.h.b16 %v131
  %v837 = vunpack.c.l.b16 %v132
  %v838 = vunpack.c.h.b16 %v132
  %v839 = vunpack.c.l.b16 %v133
  %v840 = vunpack.c.h.b16 %v133
  %v841 = vunpack.c.l.b16 %v134
  %v842 = vunpack.c.h.b16 %v134
  %v843 = vunpack.c.l.b16 %v135
  %v844 = vunpack.c.h.b16 %v135
  %v845 = vunpack.c.l.b16 %v136
  %v846 = vunpack.c.h.b16 %v136
  %v847 = vunpack.c.l.b16 %v137
  %v848 = vunpack.c.h.b16 %v137
  %v849 = vunpack.c.l.b16 %v138
  %v850 = vunpack.c.h.b16 %v138
  %v851 = vunpack.c.l.b16 %v139
  %v852 = vunpack.c.h.b16 %v139
  %v853 = vunpack.c.l.b16 %v140
  %v854 = vunpack.c.h.b16 %v140
  %v855 = vunpack.c.l.b16 %v141
  %v856 = vunpack.c.h.b16 %v141
  %v857 = vunpack.c.l.b16 %v142
  %v858 = vunpack.c.h.b16 %v142
  %v859 = vunpack.c.l.b16 %v143
  %v860 = vunpack.c.h.b16 %v143
  %v861 = vunpack.c.l.b16 %v144
  %v862 = vunpack.c.h.b16 %v144
  %v863 = vunpack.c.l.b16 %v145
  %v864 = vunpack.c.h.b16 %v145
  %v865 = vunpack.c.l.b16 %v146
  %v866 = vunpack.c.h.b16 %v146
  %v867 = vunpack.c.l.b16 %v147
  %v868 = vunpack.c.h.b16 %v147
  %v869 = vunpack.c.l.b16 %v148
  %v870 = vunpack.c.h.b16 %v148
  %v871 = vunpack.c.l.b16 %v149
  %v872 = vunpack.c.h.b16 %v149
  %v873 = vunpack.c.l.b16 %v150
  %v874 = vunpack.c.h.b16 %v150
  %v875 = vunpack.c.l.b16 %v151
  %v876 = vunpack.c.h.b16 %v151
  %v877 = vunpack.c.l.b16 %v152
  %v878 = vunpack.c.h.b16 %v152
  %v879 = vunpack.c.l.b16 %v153
  %v880 = vunpack.c.h.b16 %v153
  %v881 = vunpack.c.l.b16 %v154
  %v882 = vunpack.c.h.b16 %v154
  %v883 = vunpack.c.l.b16 %v155
  %v884 = vunpack.c.h.b16 %v155
  %v885 = vunpack.c.l.b16 %v156
  %v886 = vunpack.c.h.b16 %v156
  %v887 = vunpack.c.l.b16 %v157
  %v888 = vunpack.c.h.b16 %v157
  %v889 = vunpack.c.l.b16 %v158
  %v890 = vunpack.c.h.b16 %v158
  %v891 = vunpack.c.l.b16 %v159
  %v892 = vunpack.c.h.b16 %v159
  %v893 = vunpack.c.l.b16 %v160
  %v894 = vunpack.c.h.b16 %v160
  %v895 = vunpack.c.l.b16 %v161
  %v896 = vunpack.c.h.b16 %v161
  %v897 = vunpack.c.l.b16 %v162
  %v898 = vunpack.c.h.b16 %v162
  %v899 = vunpack.c.l.b16 %v163
  %v900 = vunpack.c.h.b16 %v163
  %v901 = vunpack.c.l.b16 %v164
  %v902 = vunpack.c.h.b16 %v164
  %v903 = vunpack.c.l.b16 %v165
  %v904 = vunpack.c.h.b16 %v165
  %v905 = vunpack.c.l.b16 %v166
  %v906 = vunpack.c.h.b16 %v166
  %v907 = vunpack.c.l.b16 %v167
  %v908 = vunpack.c.h.b16 %v167
  %v909 = vunpack.c.l.b16 %v168
  %v910 = vunpack.c.h.b16 %v168
  %v911 = vunpack.c.l.b16 %v169
  %v912 = vunpack.c.h.b16 %v169
  %v913 = vunpack.c.l.b16 %v170
  %v914 = vunpack.c.h.b16 %v170
  %v915 = vunpack.c.l.b16 %v171
  %v916 = vunpack.c.h.b16 %v171
  %v917 = vunpack.c.l.b16 %v172
  %v918 = vunpack.c.h.b16 %v172
  %v919 = vunpack.c.l.b16 %v173
  %v920 = vunpack.c.h.b16 %v173
  %v921 = vunpack.c.l.b16 %v174
  %v922 = vunpack.c.h.b16 %v174
  %v923 = vunpack.c.l.b16 %v175
  %v924 = vunpack.c.h.b16 %v175
  %v925 = vunpack.c.l.b16 %v176
  %v926 = vunpack.c.h.b16 %v176
  %v927 = vunpack.c.l.b16 %v177
  %v928 = vunpack.c.h.b16 %v177
  %v929 = vunpack.c.l.b16 %v178
  %v930 = vunpack.c.h.b16 %v178
  %v931 = vunpack.c.l.b16 %v179
  %v932 = vunpack.c.h.b16 %v179
  %v933 = vunpack.c.l.b16 %v180
  %v934 = vunpack.c.h.b16 %v180
  %v935 = vunpack.c.l.b16 %v181
  %v936 = vunpack.c.h.b16 %v181
  %v937 = vunpack.c.l.b16 %v182
  %v938 = vunpack.c.h.b16 %v182
  %v939 = vunpack.c.l.b16 %v183
  %v940 = vunpack.c.h.b16 %v183
  %v941 = vunpack.c.l.b16 %v184
  %v942 = vunpack.c.h.b16 %v184
  %v943 = vunpack.c.l.b16 %v185
  %v944 = vunpack.c.h.b16 %v185
  %v945 = vunpack.c.l.b16 %v186
  %v946 = vunpack.c.h.b16 %v186
  %v947 = vunpack.c.l.b16 %v187
  %v948 = vunpack.c.h.b16 %v187
  %v949 = vunpack.c.l.b16 %v188
  %v950 = vunpack.c.h.b16 %v188
  %v951 = vunpack.c.l.b16 %v189
  %v952 = vunpack.c.h.b16 %v189
  %v953 = vunpack.c.l.b16 %v190
  %v954 = vunpack.c.h.b16 %v190
  %v955 = vunpack.c.l.b16 %v191
  %v956 = vunpack.c.h.b16 %v191
  %v957 = vunpack.c.l.b16 %v192
  %v958 = vunpack.c.h.b16 %v192
  %v959 = vunpack.c.l.b16 %v193
  %v960 = vunpack.c.h.b16 %v193
  %v961 = vunpack.c.l.b16 %v194
  %v962 = vunpack.c.h.b16 %v194
  %v963 = vunpack.c.l.b16 %v195
  %v964 = vunpack.c.h.b16 %v195
  %v965 = vunpack.c.l.b16 %v196
  %v966 = vunpack.c.h.b16 %v196
  %v967 = vunpack.c.l.b16 %v197
  %v968 = vunpack.c.h.b16 %v197
  %v969 = vunpack.c.l.b16 %v198
  %v970 = vunpack.c.h.b16 %v198
  %v971 = vunpack.c.l.b16 %v199
  %v972 = vunpack.c.h.b16 %v199
  %v973 = vunpack.c.l.b16 %v200
  %v974 = vunpack.c.h.b16 %v200
  %v975 = vunpack.c.l.b16 %v201
  %v976 = vunpack.c.h.b16 %v201
  %v977 = vunpack.c.l.b16 %v202
  %v978 = vunpack.c.h.b16 %v202
  %v979 = vunpack.c.l.b16 %v203
  %v980 = vunpack.c.h.b16 %v203
  %v981 = vunpack.c.l.b16 %v204
  %v982 = vunpack.c.h.b16 %v204
  %v983 = vunpack.c.l.b16 %v205
  %v984 = vunpack.c.h.b16 %v205
  %v985 = vunpack.c.l.b16 %v206
  %v986 = vunpack.c.h.b16 %v206
  %v987 = vunpack.c.l.b16 %v207
  %v988 = vunpack.c.h.b16 %v207
  %v989 = vunpack.c.l.b16 %v208
  %v990 = vunpack.c.h.b16 %v208
  %v991 = vunpack.c.l.b16 %v209
  %v992 = vunpack.c.h.b16 %v209
  %v993 = vunpack.c.l.b16 %v210
  %v994 = vunpack.c.h.b16 %v210
  %v995 = vunpack.c.l.b16 %v211
  %v996 = vunpack.c.h.b16 %v211
  %v997 = vunpack.c.l.b16 %v212
  %v998 = vunpack.c.h.b16 %v212
  %v999 = vunpack.c.l.b16 %v213
  %v1000 = vunpack.c.h.b16 %v213
  %v1001 = vunpack.c.l.b16 %v214
  %v1002 = vunpack.c.h.b16 %v214
  %v1003 = vunpack.c.l.b16 %v215
  %v1004 = vunpack.c.h.b16 %v215
  %v1005 = vunpack.c.l.b16 %v216
  %v1006 = vunpack.c.h.b16 %v216
  %v1007 = vunpack.c.l.b16 %v217
  %v1008 = vunpack.c.h.b16 %v217
  %v1009 = vunpack.c.l.b16 %v218
  %v1010 = vunpack.c.h.b16 %v218
  %v1011 = vunpack.c.l.b16 %v219
  %v1012 = vunpack.c.h.b16 %v219
  %v1013 = vunpack.c.l.b16 %v220
  %v1014 = vunpack.c.h.b16 %v220
  %v1015 = vunpack.c.l.b16 %v221
  %v1016 = vunpack.c.h.b16 %v221
  %v1017 = vunpack.c.l.b16 %v222
  %v1018 = vunpack.c.h.b16 %v222
  %v1019 = vunpack.c.l.b16 %v223
  %v1020 = vunpack.c.h.b16 %v223
  %v1021 = vunpack.c.l.b16 %v224
  %v1022 = vunpack.c.h.b16 %v224
  %v1023 = vunpack.c.l.b16 %v225
  %v1024 = vunpack.c.h.b16 %v225
  %v1025 = vunpack.c.l.b16 %v226
  %v1026 = vunpack.c.h.b16 %v226
  %v1027 = vunpack.c.l.b16 %v227
  %v1028 = vunpack.c.h.b16 %v227
  %v1029 = vunpack.c.l.b16 %v228
  %v1030 = vunpack.c.h.b16 %v228
  %v1031 = vunpack.c.l.b16 %v229
  %v1032 = vunpack.c.h.b16 %v229
  %v1033 = vunpack.c.l.b16 %v230
  %v1034 = vunpack.c.h.b16 %v230
  %v1035 = vunpack.c.l.b16 %v231
  %v1036 = vunpack.c.h.b16 %v231
  %v1037 = vunpack.c.l.b16 %v232
  %v1038 = vunpack.c.h.b16 %v232
  %v1039 = vunpack.c.l.b16 %v233
  %v1040 = vunpack.c.h.b16 %v233
  %v1041 = vunpack.c.l.b16 %v234
  %v1042 = vunpack.c.h.b16 %v234
  %v1043 = vunpack.c.l.b16 %v235
  %v1044 = vunpack.c.h.b16 %v235
  %v1045 = vunpack.c.l.b16 %v236
  %v1046 = vunpack.c.h.b16 %v236
  %v1047 = vunpack.c.l.b16 %v237
  %v1048 = vunpack.c.h.b16 %v237
  %v1049 = vunpack.c.l.b16 %v238
  %v1050 = vunpack.c.h.b16 %v238
  %v1051 = vpack.c.b16 %v765, %v763
  %v1052 = vpack.c.b16 %v766, %v764
  %v1053 = vpack.c.b16 %v769, %v767
  %v1054 = vpack.c.b16 %v770, %v768
  %v1055 = vpack.c.b16 %v773, %v771
  %v1056 = vpack.c.b16 %v774, %v772
  %v1057 = vpack.c.b16 %v777, %v775
  %v1058 = vpack.c.b16 %v778, %v776
  %v1059 = vpack.c.b16 %v781, %v779
  %v1060 = vpack.c.b16 %v782, %v780
  %v1061 = vpack.c.b16 %v785, %v783
  %v1062 = vpack.c.b16 %v786, %v784
  %v1063 = vpack.c.b16 %v789, %v787
  %v1064 = vpack.c.b16 %v790, %v788
  %v1065 = vpack.c.b16 %v793, %v791
  %v1066 = vpack.c.b16 %v794, %v792
  %v1067 = vpack.c.b16 %v797, %v795
  %v1068 = vpack.c.b16 %v798, %v796
  %v1069 = vpack.c.b16 %v801, %v799
  %v1070 = vpack.c.b16 %v802, %v800
  %v1071 = vpack.c.b16 %v805, %v803
  %v1072 = vpack.c.b16 %v806, %v804
  %v1073 = vpack.c.b16 %v809, %v807
  %v1074 = vpack.c.b16 %v810, %v808
  %v1075 = vpack.c.b16 %v813, %v811
  %v1076 = vpack.c.b16 %v814, %v812
  %v1077 = vpack.c.b16 %v817, %v815
  %v1078 = vpack.c.b16 %v818, %v816
  %v1079 = vpack.c.b16 %v821, %v819
  %v1080 = vpack.c.b16 %v822, %v820
  %v1081 = vpack.c.b16 %v825, %v823
  %v1082 = vpack.c.b16 %v826, %v824
  %v1083 = vpack.c.b16 %v829, %v827
  %v1084 = vpack.c.b16 %v830, %v828
  %v1085 = vpack.c.b16 %v833, %v831
  %v1086 = vpack.c.b16 %v834, %v832
  %v1087 = vpack.c.b16 %v837, %v835
  %v1088 = vpack.c.b16 %v838, %v836
  %v1089 = vpack.c.b16 %v841, %v839
  %v1090 = vpack.c.b16 %v842, %v840
  %v1091 = vpack.c.b16 %v845, %v843
  %v1092 = vpack.c.b16 %v846, %v844
  %v1093 = vpack.c.b16 %v849, %v847
  %v1094 = vpack.c.b16 %v850, %v848
  %v1095 = vpack.c.b16 %v853, %v851
  %v1096 = vpack.c.b16 %v854, %v852
  %v1097 = vpack.c.b16 %v857, %v855
  %v1098 = vpack.c.b16 %v858, %v856
  %v1099 = vpack.c.b16 %v861, %v859
  %v1100 = vpack.c.b16 %v862, %v860
  %v1101 = vpack.c.b16 %v865, %v863
  %v1102 = vpack.c.b16 %v866, %v864
  %v1103 = vpack.c.b16 %v869, %v867
  %v1104 = vpack.c.b16 %v870, %v868
  %v1105 = vpack.c.b16 %v873, %v871
  %v1106 = vpack.c.b16 %v874, %v872
  %v1107 = vpack.c.b16 %v877, %v875
  %v1108 = vpack.c.b16 %v878, %v876
  %v1109 = vpack.c.b16 %v881, %v879
  %v1110 = vpack.c.b16 %v882, %v880
  %v1111 = vpack.c.b16 %v885, %v883
  %v1112 = vpack.c.b16 %v886, %v884
  %v1113 = vpack.c.b16 %v889, %v887
  %v1114 = vpack.c.b16 %v890, %v888
  %v1115 = vpack.c.b16 %v893, %v891
  %v1116 = vpack.c.b16 %v894, %v892
  %v1117 = vpack.c.b16 %v897, %v895
  %v1118 = vpack.c.b16 %v898, %v896
  %v1119 = vpack.c.b16 %v901, %v899
  %v1120 = vpack.c.b16 %v902, %v900
  %v1121 = vpack.c.b16 %v905, %v903
  %v1122 = vpack.c.b16 %v906, %v904
  %v1123 = vpack.c.b16 %v909, %v907
  %v1124 = vpack.c.b16 %v910, %v908
  %v1125 = vpack.c.b16 %v913, %v911
  %v1126 = vpack.c.b16 %v914, %v912
  %v1127 = vpack.c.b16 %v917, %v915
  %v1128 = vpack.c.b16 %v918, %v916
  %v1129 = vpack.c.b16 %v921, %v919
  %v1130 = vpack.c.b16 %v922, %v920
  %v1131 = vpack.c.b16 %v925, %v923
  %v1132 = vpack.c.b16 %v926, %v924
  %v1133 = vpack.c.b16 %v929, %v927
  %v1134 = vpack.c.b16 %v930, %v928
  %v1135 = vpack.c.b16 %v933, %v931
  %v1136 = vpack.c.b16 %v934, %v932
  %v1137 = vpack.c.b16 %v937, %v935
  %v1138 = vpack.c.b16 %v938, %v936
  %v1139 = vpack.c.b16 %v941, %v939
  %v1140 = vpack.c.b16 %v942, %v940
  %v1141 = vpack.c.b16 %v945, %v943
  %v1142 = vpack.c.b16 %v946, %v944
  %v1143 = vpack.c.b16 %v949, %v947
  %v1144 = vpack.c.b16 %v950, %v948
  %v1145 = vpack.c.b16 %v953, %v951
  %v1146 = vpack.c.b16 %v954, %v952
  %v1147 = vpack.c.b16 %v957, %v955
  %v1148 = vpack.c.b16 %v958, %v956
  %v1149 = vpack.c.b16 %v961, %v959
  %v1150 = vpack.c.b16 %v962, %v960
  %v1151 = vpack.c.b16 %v965, %v963
  %v1152 = vpack.c.b16 %v966, %v964
  %v1153 = vpack.c.b16 %v969, %v967
  %v1154 = vpack.c.b16 %v970, %v968
  %v1155 = vpack.c.b16 %v973, %v971
  %v1156 = vpack.c.b16 %v974, %v972
  %v1157 = vpack.c.b16 %v977, %v975
  %v1158 = vpack.c.b16 %v978, %v976
  %v1159 = vpack.c.b16 %v981, %v979
  %v1160 = vpack.c.b16 %v982, %v980
  %v1161 = vpack.c.b16 %v985, %v983
  %v1162 = vpack.c.b16 %v986, %v984
  %v1163 = vpack.c.b16 %v989, %v987
  %v1164 = vpack.c.b16 %v990, %v988
  %v1165 = vpack.c.b16 %v993, %v991
  %v1166 = vpack.c.b16 %v994, %v992
  %v1167 = vpack.c.b16 %v997, %v995
  %v1168 = vpack.c.b16 %v998, %v996
  %v1169 = vpack.c.b16 %v1001, %v999
  %v1170 = vpack.c.b16 %v1002, %v1000
  %v1171 = vpack.c.b16 %v1005, %v1003
  %v1172 = vpack.c.b16 %v1006, %v1004
  %v1173 = vpack.c.b16 %v1009, %v1007
  %v1174 = vpack.c.b16 %v1010, %v1008
  %v1175 = vpack.c.b16 %v1013, %v1011
  %v1176 = vpack.c.b16 %v1014, %v1012
  %v1177 = vpack.c.b16 %v1017, %v1015
  %v1178 = vpack.c.b16 %v1018, %v1016
  %v1179 = vpack.c.b16 %v1021, %v1019
  %v1180 = vpack.c.b16 %v1022, %v1020
  %v1181 = vpack.c.b16 %v1025, %v1023
  %v1182 = vpack.c.b16 %v1026, %v1024
  %v1183 = vpack.c.b16 %v1029, %v1027
  %v1184 = vpack.c.b16 %v1030, %v1028
  %v1185 = vpack.c.b16 %v1033, %v1031
  %v1186 = vpack.c.b16 %v1034, %v1032
  %v1187 = vpack.c.b16 %v1037, %v1035
  %v1188 = vpack.c.b16 %v1038, %v1036
  %v1189 = vpack.c.b16 %v1041, %v1039
  %v1190 = vpack.c.b16 %v1042, %v1040
  %v1191 = vpack.c.b16 %v1045, %v1043
  %v1192 = vpack.c.b16 %v1046, %v1044
  %v1193 = vpack.c.b16 %v1049, %v1047
  %v1194 = vpack.c.b16 %v1050, %v1048
  %1339 = vmatprep.subr.bf16.mxu0 %v1052
  %1340 = vmatpush1.bf16.msra.mxu0 %v1051
  %1341 = vmatprep.subr.bf16.mxu0 %v1054
  %1342 = vmatpush1.bf16.msra.mxu0 %v1053
  %1343 = vmatprep.subr.bf16.mxu0 %v1056
  %1344 = vmatpush1.bf16.msra.mxu0 %v1055
  %1345 = vmatprep.subr.bf16.mxu0 %v1058
  %1346 = vmatpush1.bf16.msra.mxu0 %v1057
  %1347 = vmatprep.subr.bf16.mxu0 %v1060
  %1348 = vmatpush1.bf16.msra.mxu0 %v1059
  %1349 = vmatprep.subr.bf16.mxu0 %v1062
  %1350 = vmatpush1.bf16.msra.mxu0 %v1061
  %1351 = vmatprep.subr.bf16.mxu0 %v1064
  %1352 = vmatpush1.bf16.msra.mxu0 %v1063
  %1353 = vmatprep.subr.bf16.mxu0 %v1066
  %1354 = vmatpush1.bf16.msra.mxu0 %v1065
  %1355 = vmatprep.subr.bf16.mxu0 %v1068
  %1356 = vmatpush1.bf16.msra.mxu0 %v1067
  %1357 = vmatprep.subr.bf16.mxu0 %v1070
  %1358 = vmatpush1.bf16.msra.mxu0 %v1069
  %1359 = vmatprep.subr.bf16.mxu0 %v1072
  %1360 = vmatpush1.bf16.msra.mxu0 %v1071
  %1361 = vmatprep.subr.bf16.mxu0 %v1074
  %1362 = vmatpush1.bf16.msra.mxu0 %v1073
  %1363 = vmatprep.subr.bf16.mxu0 %v1076
  %1364 = vmatpush1.bf16.msra.mxu0 %v1075
  %1365 = vmatprep.subr.bf16.mxu0 %v1078
  %1366 = vmatpush1.bf16.msra.mxu0 %v1077
  %1367 = vmatprep.subr.bf16.mxu0 %v1080
  %1368 = vmatpush1.bf16.msra.mxu0 %v1079
  %1369 = vmatprep.subr.bf16.mxu0 %v1082
  %1370 = vmatpush1.bf16.msra.mxu0 %v1081
  %1371 = vmatprep.mubr.bf16.mxu0 %v476
  %1372 = vmatmul.mubr.bf16.gmra.mrb[0].mxu0 %v475
  %v1373 = vpop.f32.mrb[0].mxu0
  %v1374 = vadd.f32 %v244, %v1373
  %v1375 = vpop.f32.mrb[0].mxu0
  %v1376 = vadd.f32 %v248, %v1375
  %v1377 = vpop.f32.mrb[0].mxu0
  %v1378 = vadd.f32 %v244, %v1377
  %v1379 = vpop.f32.mrb[0].mxu0
  %v1380 = vadd.f32 %v248, %v1379
  %1381 = vmatprep.mubr.bf16.mxu0 %v485
  %1382 = vmatmul.mubr.bf16.gmra.mrb[0].mxu0 %v484
  %v1383 = vpop.f32.mrb[0].mxu0
  %v1384 = vadd.f32 %v244, %v1383
  %v1385 = vpop.f32.mrb[0].mxu0
  %v1386 = vadd.f32 %v248, %v1385
  %v1387 = vpop.f32.mrb[0].mxu0
  %v1388 = vadd.f32 %v244, %v1387
  %v1389 = vpop.f32.mrb[0].mxu0
  %v1390 = vadd.f32 %v248, %v1389
  %1391 = vmatprep.mubr.bf16.mxu0 %v494
  %1392 = vmatmul.mubr.bf16.gmra.mrb[0].mxu0 %v493
  %v1393 = vpop.f32.mrb[0].mxu0
  %v1394 = vadd.f32 %v244, %v1393
  %v1395 = vpop.f32.mrb[0].mxu0
  %v1396 = vadd.f32 %v248, %v1395
  %v1397 = vpop.f32.mrb[0].mxu0
  %v1398 = vadd.f32 %v244, %v1397
  %v1399 = vpop.f32.mrb[0].mxu0
  %v1400 = vadd.f32 %v248, %v1399
  %1401 = vmatprep.mubr.bf16.mxu0 %v503
  %1402 = vmatmul.mubr.bf16.gmra.mrb[0].mxu0 %v502
  %v1403 = vpop.f32.mrb[0].mxu0
  %v1404 = vadd.f32 %v244, %v1403
  %v1405 = vpop.f32.mrb[0].mxu0
  %v1406 = vadd.f32 %v248, %v1405
  %v1407 = vpop.f32.mrb[0].mxu0
  %v1408 = vadd.f32 %v244, %v1407
  %v1409 = vpop.f32.mrb[0].mxu0
  %v1410 = vadd.f32 %v248, %v1409
  %1411 = vmatprep.mubr.bf16.mxu0 %v512
  %1412 = vmatmul.mubr.bf16.gmra.mrb[0].mxu0 %v511
  %v1413 = vpop.f32.mrb[0].mxu0
  %v1414 = vadd.f32 %v244, %v1413
  %v1415 = vpop.f32.mrb[0].mxu0
  %v1416 = vadd.f32 %v248, %v1415
  %v1417 = vpop.f32.mrb[0].mxu0
  %v1418 = vadd.f32 %v244, %v1417
  %v1419 = vpop.f32.mrb[0].mxu0
  %v1420 = vadd.f32 %v248, %v1419
  %1421 = vmatprep.mubr.bf16.mxu0 %v521
  %1422 = vmatmul.mubr.bf16.gmra.mrb[0].mxu0 %v520
  %v1423 = vpop.f32.mrb[0].mxu0
  %v1424 = vadd.f32 %v244, %v1423
  %v1425 = vpop.f32.mrb[0].mxu0
  %v1426 = vadd.f32 %v248, %v1425
  %v1427 = vpop.f32.mrb[0].mxu0
  %v1428 = vadd.f32 %v244, %v1427
  %v1429 = vpop.f32.mrb[0].mxu0
  %v1430 = vadd.f32 %v248, %v1429
  %1431 = vmatprep.mubr.bf16.mxu0 %v530
  %1432 = vmatmul.mubr.bf16.gmra.mrb[0].mxu0 %v529
  %v1433 = vpop.f32.mrb[0].mxu0
  %v1434 = vadd.f32 %v244, %v1433
  %v1435 = vpop.f32.mrb[0].mxu0
  %v1436 = vadd.f32 %v248, %v1435
  %v1437 = vpop.f32.mrb[0].mxu0
  %v1438 = vadd.f32 %v244, %v1437
  %v1439 = vpop.f32.mrb[0].mxu0
  %v1440 = vadd.f32 %v248, %v1439
  %1441 = vmatprep.mubr.bf16.mxu0 %v539
  %1442 = vmatmul.mubr.bf16.gmra.mrb[0].mxu0 %v538
  %v1443 = vpop.f32.mrb[0].mxu0
  %v1444 = vadd.f32 %v244, %v1443
  %v1445 = vpop.f32.mrb[0].mxu0
  %v1446 = vadd.f32 %v248, %v1445
  %v1447 = vpop.f32.mrb[0].mxu0
  %v1448 = vadd.f32 %v244, %v1447
  %v1449 = vpop.f32.mrb[0].mxu0
  %v1450 = vadd.f32 %v248, %v1449
  %1451 = vdwg.mxu0
  %1452 = vmatprep.subr.bf16.mxu0 %v1084
  %1453 = vmatpush1.bf16.msra.mxu0 %v1083
  %1454 = vmatprep.subr.bf16.mxu0 %v1086
  %1455 = vmatpush1.bf16.msra.mxu0 %v1085
  %1456 = vmatprep.subr.bf16.mxu0 %v1088
  %1457 = vmatpush1.bf16.msra.mxu0 %v1087
  %1458 = vmatprep.subr.bf16.mxu0 %v1090
  %1459 = vmatpush1.bf16.msra.mxu0 %v1089
  %1460 = vmatprep.subr.bf16.mxu0 %v1092
  %1461 = vmatpush1.bf16.msra.mxu0 %v1091
  %1462 = vmatprep.subr.bf16.mxu0 %v1094
  %1463 = vmatpush1.bf16.msra.mxu0 %v1093
  %1464 = vmatprep.subr.bf16.mxu0 %v1096
  %1465 = vmatpush1.bf16.msra.mxu0 %v1095
  %1466 = vmatprep.subr.bf16.mxu0 %v1098
  %1467 = vmatpush1.bf16.msra.mxu0 %v1097
  %1468 = vmatprep.subr.bf16.mxu0 %v1100
  %1469 = vmatpush1.bf16.msra.mxu0 %v1099
  %1470 = vmatprep.subr.bf16.mxu0 %v1102
  %1471 = vmatpush1.bf16.msra.mxu0 %v1101
  %1472 = vmatprep.subr.bf16.mxu0 %v1104
  %1473 = vmatpush1.bf16.msra.mxu0 %v1103
  %1474 = vmatprep.subr.bf16.mxu0 %v1106
  %1475 = vmatpush1.bf16.msra.mxu0 %v1105
  %1476 = vmatprep.subr.bf16.mxu0 %v1108
  %1477 = vmatpush1.bf16.msra.mxu0 %v1107
  %1478 = vmatprep.subr.bf16.mxu0 %v1110
  %1479 = vmatpush1.bf16.msra.mxu0 %v1109
  %1480 = vmatprep.subr.bf16.mxu0 %v1112
  %1481 = vmatpush1.bf16.msra.mxu0 %v1111
  %1482 = vmatprep.subr.bf16.mxu0 %v1114
  %1483 = vmatpush1.bf16.msra.mxu0 %v1113
  %1484 = vmatprep.mubr.bf16.mxu0 %v478
  %1485 = vmatmul.mubr.bf16.gmra.mrb[0].mxu0 %v477
  %v1486 = vpop.f32.mrb[0].mxu0
  %v1487 = vadd.f32 %v1374, %v1486
  %v1488 = vpop.f32.mrb[0].mxu0
  %v1489 = vadd.f32 %v1376, %v1488
  %v1490 = vpop.f32.mrb[0].mxu0
  %v1491 = vadd.f32 %v1378, %v1490
  %v1492 = vpop.f32.mrb[0].mxu0
  %v1493 = vadd.f32 %v1380, %v1492
  %1494 = vmatprep.mubr.bf16.mxu0 %v487
  %1495 = vmatmul.mubr.bf16.gmra.mrb[0].mxu0 %v486
  %v1496 = vpop.f32.mrb[0].mxu0
  %v1497 = vadd.f32 %v1384, %v1496
  %v1498 = vpop.f32.mrb[0].mxu0
  %v1499 = vadd.f32 %v1386, %v1498
  %v1500 = vpop.f32.mrb[0].mxu0
  %v1501 = vadd.f32 %v1388, %v1500
  %v1502 = vpop.f32.mrb[0].mxu0
  %v1503 = vadd.f32 %v1390, %v1502
  %1504 = vmatprep.mubr.bf16.mxu0 %v496
  %1505 = vmatmul.mubr.bf16.gmra.mrb[0].mxu0 %v495
  %v1506 = vpop.f32.mrb[0].mxu0
  %v1507 = vadd.f32 %v1394, %v1506
  %v1508 = vpop.f32.mrb[0].mxu0
  %v1509 = vadd.f32 %v1396, %v1508
  %v1510 = vpop.f32.mrb[0].mxu0
  %v1511 = vadd.f32 %v1398, %v1510
  %v1512 = vpop.f32.mrb[0].mxu0
  %v1513 = vadd.f32 %v1400, %v1512
  %1514 = vmatprep.mubr.bf16.mxu0 %v505
  %1515 = vmatmul.mubr.bf16.gmra.mrb[0].mxu0 %v504
  %v1516 = vpop.f32.mrb[0].mxu0
  %v1517 = vadd.f32 %v1404, %v1516
  %v1518 = vpop.f32.mrb[0].mxu0
  %v1519 = vadd.f32 %v1406, %v1518
  %v1520 = vpop.f32.mrb[0].mxu0
  %v1521 = vadd.f32 %v1408, %v1520
  %v1522 = vpop.f32.mrb[0].mxu0
  %v1523 = vadd.f32 %v1410, %v1522
  %1524 = vmatprep.mubr.bf16.mxu0 %v514
  %1525 = vmatmul.mubr.bf16.gmra.mrb[0].mxu0 %v513
  %v1526 = vpop.f32.mrb[0].mxu0
  %v1527 = vadd.f32 %v1414, %v1526
  %v1528 = vpop.f32.mrb[0].mxu0
  %v1529 = vadd.f32 %v1416, %v1528
  %v1530 = vpop.f32.mrb[0].mxu0
  %v1531 = vadd.f32 %v1418, %v1530
  %v1532 = vpop.f32.mrb[0].mxu0
  %v1533 = vadd.f32 %v1420, %v1532
  %1534 = vmatprep.mubr.bf16.mxu0 %v523
  %1535 = vmatmul.mubr.bf16.gmra.mrb[0].mxu0 %v522
  %v1536 = vpop.f32.mrb[0].mxu0
  %v1537 = vadd.f32 %v1424, %v1536
  %v1538 = vpop.f32.mrb[0].mxu0
  %v1539 = vadd.f32 %v1426, %v1538
  %v1540 = vpop.f32.mrb[0].mxu0
  %v1541 = vadd.f32 %v1428, %v1540
  %v1542 = vpop.f32.mrb[0].mxu0
  %v1543 = vadd.f32 %v1430, %v1542
  %1544 = vmatprep.mubr.bf16.mxu0 %v532
  %1545 = vmatmul.mubr.bf16.gmra.mrb[0].mxu0 %v531
  %v1546 = vpop.f32.mrb[0].mxu0
  %v1547 = vadd.f32 %v1434, %v1546
  %v1548 = vpop.f32.mrb[0].mxu0
  %v1549 = vadd.f32 %v1436, %v1548
  %v1550 = vpop.f32.mrb[0].mxu0
  %v1551 = vadd.f32 %v1438, %v1550
  %v1552 = vpop.f32.mrb[0].mxu0
  %v1553 = vadd.f32 %v1440, %v1552
  %1554 = vmatprep.mubr.bf16.mxu0 %v541
  %1555 = vmatmul.mubr.bf16.gmra.mrb[0].mxu0 %v540
  %v1556 = vpop.f32.mrb[0].mxu0
  %v1557 = vadd.f32 %v1444, %v1556
  %v1558 = vpop.f32.mrb[0].mxu0
  %v1559 = vadd.f32 %v1446, %v1558
  %v1560 = vpop.f32.mrb[0].mxu0
  %v1561 = vadd.f32 %v1448, %v1560
  %v1562 = vpop.f32.mrb[0].mxu0
  %v1563 = vadd.f32 %v1450, %v1562
  %1564 = vdwg.mxu0
  %1565 = vmatprep.subr.bf16.mxu0 %v1116
  %1566 = vmatpush1.bf16.msra.mxu0 %v1115
  %1567 = vmatprep.subr.bf16.mxu0 %v1118
  %1568 = vmatpush1.bf16.msra.mxu0 %v1117
  %1569 = vmatprep.subr.bf16.mxu0 %v1120
  %1570 = vmatpush1.bf16.msra.mxu0 %v1119
  %1571 = vmatprep.subr.bf16.mxu0 %v1122
  %1572 = vmatpush1.bf16.msra.mxu0 %v1121
  %1573 = vmatprep.subr.bf16.mxu0 %v1124
  %1574 = vmatpush1.bf16.msra.mxu0 %v1123
  %1575 = vmatprep.subr.bf16.mxu0 %v1126
  %1576 = vmatpush1.bf16.msra.mxu0 %v1125
  %1577 = vmatprep.subr.bf16.mxu0 %v1128
  %1578 = vmatpush1.bf16.msra.mxu0 %v1127
  %1579 = vmatprep.subr.bf16.mxu0 %v1130
  %1580 = vmatpush1.bf16.msra.mxu0 %v1129
  %1581 = vmatprep.subr.bf16.mxu0 %v1132
  %1582 = vmatpush1.bf16.msra.mxu0 %v1131
  %1583 = vmatprep.subr.bf16.mxu0 %v1134
  %1584 = vmatpush1.bf16.msra.mxu0 %v1133
  %1585 = vmatprep.subr.bf16.mxu0 %v1136
  %1586 = vmatpush1.bf16.msra.mxu0 %v1135
  %1587 = vmatprep.subr.bf16.mxu0 %v1138
  %1588 = vmatpush1.bf16.msra.mxu0 %v1137
  %1589 = vmatprep.subr.bf16.mxu0 %v1140
  %1590 = vmatpush1.bf16.msra.mxu0 %v1139
  %1591 = vmatprep.subr.bf16.mxu0 %v1142
  %1592 = vmatpush1.bf16.msra.mxu0 %v1141
  %1593 = vmatprep.subr.bf16.mxu0 %v1144
  %1594 = vmatpush1.bf16.msra.mxu0 %v1143
  %1595 = vmatprep.subr.bf16.mxu0 %v1146
  %1596 = vmatpush1.bf16.msra.mxu0 %v1145
  %1597 = vmatprep.mubr.bf16.mxu0 %v480
  %1598 = vmatmul.mubr.bf16.gmra.mrb[0].mxu0 %v479
  %v1599 = vpop.f32.mrb[0].mxu0
  %v1600 = vadd.f32 %v1487, %v1599
  %v1601 = vpop.f32.mrb[0].mxu0
  %v1602 = vadd.f32 %v1489, %v1601
  %v1603 = vpop.f32.mrb[0].mxu0
  %v1604 = vadd.f32 %v1491, %v1603
  %v1605 = vpop.f32.mrb[0].mxu0
  %v1606 = vadd.f32 %v1493, %v1605
  %1607 = vmatprep.mubr.bf16.mxu0 %v489
  %1608 = vmatmul.mubr.bf16.gmra.mrb[0].mxu0 %v488
  %v1609 = vpop.f32.mrb[0].mxu0
  %v1610 = vadd.f32 %v1497, %v1609
  %v1611 = vpop.f32.mrb[0].mxu0
  %v1612 = vadd.f32 %v1499, %v1611
  %v1613 = vpop.f32.mrb[0].mxu0
  %v1614 = vadd.f32 %v1501, %v1613
  %v1615 = vpop.f32.mrb[0].mxu0
  %v1616 = vadd.f32 %v1503, %v1615
  %1617 = vmatprep.mubr.bf16.mxu0 %v498
  %1618 = vmatmul.mubr.bf16.gmra.mrb[0].mxu0 %v497
  %v1619 = vpop.f32.mrb[0].mxu0
  %v1620 = vadd.f32 %v1507, %v1619
  %v1621 = vpop.f32.mrb[0].mxu0
  %v1622 = vadd.f32 %v1509, %v1621
  %v1623 = vpop.f32.mrb[0].mxu0
  %v1624 = vadd.f32 %v1511, %v1623
  %v1625 = vpop.f32.mrb[0].mxu0
  %v1626 = vadd.f32 %v1513, %v1625
  %1627 = vmatprep.mubr.bf16.mxu0 %v507
  %1628 = vmatmul.mubr.bf16.gmra.mrb[0].mxu0 %v506
  %v1629 = vpop.f32.mrb[0].mxu0
  %v1630 = vadd.f32 %v1517, %v1629
  %v1631 = vpop.f32.mrb[0].mxu0
  %v1632 = vadd.f32 %v1519, %v1631
  %v1633 = vpop.f32.mrb[0].mxu0
  %v1634 = vadd.f32 %v1521, %v1633
  %v1635 = vpop.f32.mrb[0].mxu0
  %v1636 = vadd.f32 %v1523, %v1635
  %1637 = vmatprep.mubr.bf16.mxu0 %v516
  %1638 = vmatmul.mubr.bf16.gmra.mrb[0].mxu0 %v515
  %v1639 = vpop.f32.mrb[0].mxu0
  %v1640 = vadd.f32 %v1527, %v1639
  %v1641 = vpop.f32.mrb[0].mxu0
  %v1642 = vadd.f32 %v1529, %v1641
  %v1643 = vpop.f32.mrb[0].mxu0
  %v1644 = vadd.f32 %v1531, %v1643
  %v1645 = vpop.f32.mrb[0].mxu0
  %v1646 = vadd.f32 %v1533, %v1645
  %1647 = vmatprep.mubr.bf16.mxu0 %v525
  %1648 = vmatmul.mubr.bf16.gmra.mrb[0].mxu0 %v524
  %v1649 = vpop.f32.mrb[0].mxu0
  %v1650 = vadd.f32 %v1537, %v1649
  %v1651 = vpop.f32.mrb[0].mxu0
  %v1652 = vadd.f32 %v1539, %v1651
  %v1653 = vpop.f32.mrb[0].mxu0
  %v1654 = vadd.f32 %v1541, %v1653
  %v1655 = vpop.f32.mrb[0].mxu0
  %v1656 = vadd.f32 %v1543, %v1655
  %1657 = vmatprep.mubr.bf16.mxu0 %v534
  %1658 = vmatmul.mubr.bf16.gmra.mrb[0].mxu0 %v533
  %v1659 = vpop.f32.mrb[0].mxu0
  %v1660 = vadd.f32 %v1547, %v1659
  %v1661 = vpop.f32.mrb[0].mxu0
  %v1662 = vadd.f32 %v1549, %v1661
  %v1663 = vpop.f32.mrb[0].mxu0
  %v1664 = vadd.f32 %v1551, %v1663
  %v1665 = vpop.f32.mrb[0].mxu0
  %v1666 = vadd.f32 %v1553, %v1665
  %1667 = vmatprep.mubr.bf16.mxu0 %v543
  %1668 = vmatmul.mubr.bf16.gmra.mrb[0].mxu0 %v542
  %v1669 = vpop.f32.mrb[0].mxu0
  %v1670 = vadd.f32 %v1557, %v1669
  %v1671 = vpop.f32.mrb[0].mxu0
  %v1672 = vadd.f32 %v1559, %v1671
  %v1673 = vpop.f32.mrb[0].mxu0
  %v1674 = vadd.f32 %v1561, %v1673
  %v1675 = vpop.f32.mrb[0].mxu0
  %v1676 = vadd.f32 %v1563, %v1675
  %1677 = vdwg.mxu0
  %1678 = vmatprep.subr.bf16.mxu0 %v1148
  %1679 = vmatpush1.bf16.msra.mxu0 %v1147
  %1680 = vmatprep.subr.bf16.mxu0 %v1150
  %1681 = vmatpush1.bf16.msra.mxu0 %v1149
  %1682 = vmatprep.subr.bf16.mxu0 %v1152
  %1683 = vmatpush1.bf16.msra.mxu0 %v1151
  %1684 = vmatprep.subr.bf16.mxu0 %v1154
  %1685 = vmatpush1.bf16.msra.mxu0 %v1153
  %1686 = vmatprep.subr.bf16.mxu0 %v1156
  %1687 = vmatpush1.bf16.msra.mxu0 %v1155
  %1688 = vmatprep.subr.bf16.mxu0 %v1158
  %1689 = vmatpush1.bf16.msra.mxu0 %v1157
  %1690 = vmatprep.subr.bf16.mxu0 %v1160
  %1691 = vmatpush1.bf16.msra.mxu0 %v1159
  %1692 = vmatprep.subr.bf16.mxu0 %v1162
  %1693 = vmatpush1.bf16.msra.mxu0 %v1161
  %1694 = vmatprep.subr.bf16.mxu0 %v1164
  %1695 = vmatpush1.bf16.msra.mxu0 %v1163
  %1696 = vmatprep.subr.bf16.mxu0 %v1166
  %1697 = vmatpush1.bf16.msra.mxu0 %v1165
  %1698 = vmatprep.subr.bf16.mxu0 %v1168
  %1699 = vmatpush1.bf16.msra.mxu0 %v1167
  %1700 = vmatprep.subr.bf16.mxu0 %v1170
  %1701 = vmatpush1.bf16.msra.mxu0 %v1169
  %1702 = vmatprep.subr.bf16.mxu0 %v1172
  %1703 = vmatpush1.bf16.msra.mxu0 %v1171
  %1704 = vmatprep.subr.bf16.mxu0 %v1174
  %1705 = vmatpush1.bf16.msra.mxu0 %v1173
  %1706 = vmatprep.subr.bf16.mxu0 %v1176
  %1707 = vmatpush1.bf16.msra.mxu0 %v1175
  %1708 = vmatprep.subr.bf16.mxu0 %v1178
  %1709 = vmatpush1.bf16.msra.mxu0 %v1177
  %1710 = vmatprep.mubr.bf16.mxu0 %v482
  %1711 = vmatmul.mubr.bf16.gmra.mrb[0].mxu0 %v481
  %v1712 = vpop.f32.mrb[0].mxu0
  %v1713 = vadd.f32 %v1600, %v1712
  %v1714 = vpop.f32.mrb[0].mxu0
  %v1715 = vadd.f32 %v1602, %v1714
  %v1716 = vpop.f32.mrb[0].mxu0
  %v1717 = vadd.f32 %v1604, %v1716
  %v1718 = vpop.f32.mrb[0].mxu0
  %v1719 = vadd.f32 %v1606, %v1718
  %1720 = vmatprep.mubr.bf16.mxu0 %v491
  %1721 = vmatmul.mubr.bf16.gmra.mrb[0].mxu0 %v490
  %v1722 = vpop.f32.mrb[0].mxu0
  %v1723 = vadd.f32 %v1610, %v1722
  %v1724 = vpop.f32.mrb[0].mxu0
  %v1725 = vadd.f32 %v1612, %v1724
  %v1726 = vpop.f32.mrb[0].mxu0
  %v1727 = vadd.f32 %v1614, %v1726
  %v1728 = vpop.f32.mrb[0].mxu0
  %v1729 = vadd.f32 %v1616, %v1728
  %1730 = vmatprep.mubr.bf16.mxu0 %v500
  %1731 = vmatmul.mubr.bf16.gmra.mrb[0].mxu0 %v499
  %v1732 = vpop.f32.mrb[0].mxu0
  %v1733 = vadd.f32 %v1620, %v1732
  %v1734 = vpop.f32.mrb[0].mxu0
  %v1735 = vadd.f32 %v1622, %v1734
  %v1736 = vpop.f32.mrb[0].mxu0
  %v1737 = vadd.f32 %v1624, %v1736
  %v1738 = vpop.f32.mrb[0].mxu0
  %v1739 = vadd.f32 %v1626, %v1738
  %1740 = vmatprep.mubr.bf16.mxu0 %v509
  %1741 = vmatmul.mubr.bf16.gmra.mrb[0].mxu0 %v508
  %v1742 = vpop.f32.mrb[0].mxu0
  %v1743 = vadd.f32 %v1630, %v1742
  %v1744 = vpop.f32.mrb[0].mxu0
  %v1745 = vadd.f32 %v1632, %v1744
  %v1746 = vpop.f32.mrb[0].mxu0
  %v1747 = vadd.f32 %v1634, %v1746
  %v1748 = vpop.f32.mrb[0].mxu0
  %v1749 = vadd.f32 %v1636, %v1748
  %1750 = vmatprep.mubr.bf16.mxu0 %v518
  %1751 = vmatmul.mubr.bf16.gmra.mrb[0].mxu0 %v517
  %v1752 = vpop.f32.mrb[0].mxu0
  %v1753 = vadd.f32 %v1640, %v1752
  %v1754 = vpop.f32.mrb[0].mxu0
  %v1755 = vadd.f32 %v1642, %v1754
  %v1756 = vpop.f32.mrb[0].mxu0
  %v1757 = vadd.f32 %v1644, %v1756
  %v1758 = vpop.f32.mrb[0].mxu0
  %v1759 = vadd.f32 %v1646, %v1758
  %1760 = vmatprep.mubr.bf16.mxu0 %v527
  %1761 = vmatmul.mubr.bf16.gmra.mrb[0].mxu0 %v526
  %v1762 = vpop.f32.mrb[0].mxu0
  %v1763 = vadd.f32 %v1650, %v1762
  %v1764 = vpop.f32.mrb[0].mxu0
  %v1765 = vadd.f32 %v1652, %v1764
  %v1766 = vpop.f32.mrb[0].mxu0
  %v1767 = vadd.f32 %v1654, %v1766
  %v1768 = vpop.f32.mrb[0].mxu0
  %v1769 = vadd.f32 %v1656, %v1768
  %1770 = vmatprep.mubr.bf16.mxu0 %v536
  %1771 = vmatmul.mubr.bf16.gmra.mrb[0].mxu0 %v535
  %v1772 = vpop.f32.mrb[0].mxu0
  %v1773 = vadd.f32 %v1660, %v1772
  %v1774 = vpop.f32.mrb[0].mxu0
  %v1775 = vadd.f32 %v1662, %v1774
  %v1776 = vpop.f32.mrb[0].mxu0
  %v1777 = vadd.f32 %v1664, %v1776
  %v1778 = vpop.f32.mrb[0].mxu0
  %v1779 = vadd.f32 %v1666, %v1778
  %1780 = vmatprep.mubr.bf16.mxu0 %v545
  %1781 = vmatmul.mubr.bf16.gmra.mrb[0].mxu0 %v544
  %v1782 = vpop.f32.mrb[0].mxu0
  %v1783 = vadd.f32 %v1670, %v1782
  %v1784 = vpop.f32.mrb[0].mxu0
  %v1785 = vadd.f32 %v1672, %v1784
  %v1786 = vpop.f32.mrb[0].mxu0
  %v1787 = vadd.f32 %v1674, %v1786
  %v1788 = vpop.f32.mrb[0].mxu0
  %v1789 = vadd.f32 %v1676, %v1788
  %1790 = vdwg.mxu0
  %1791 = vmatprep.subr.bf16.mxu0 %v1180
  %1792 = vmatpush1.bf16.msra.mxu0 %v1179
  %1793 = vmatprep.subr.bf16.mxu0 %v1182
  %1794 = vmatpush1.bf16.msra.mxu0 %v1181
  %1795 = vmatprep.subr.bf16.mxu0 %v1184
  %1796 = vmatpush1.bf16.msra.mxu0 %v1183
  %1797 = vmatprep.subr.bf16.mxu0 %v1186
  %1798 = vmatpush1.bf16.msra.mxu0 %v1185
  %1799 = vmatprep.subr.bf16.mxu0 %v1188
  %1800 = vmatpush1.bf16.msra.mxu0 %v1187
  %1801 = vmatprep.subr.bf16.mxu0 %v1190
  %1802 = vmatpush1.bf16.msra.mxu0 %v1189
  %1803 = vmatprep.subr.bf16.mxu0 %v1192
  %1804 = vmatpush1.bf16.msra.mxu0 %v1191
  %1805 = vmatprep.subr.bf16.mxu0 %v1194
  %1806 = vmatpush1.bf16.msra.mxu0 %v1193
  %1807 = vmatprep.subr.bf16.mxu0 0
  %1808 = vmatpush1.bf16.msra.mxu0 0
  %1809 = vmatprep.subr.bf16.mxu0 0
  %1810 = vmatpush1.bf16.msra.mxu0 0
  %1811 = vmatprep.subr.bf16.mxu0 0
  %1812 = vmatpush1.bf16.msra.mxu0 0
  %1813 = vmatprep.subr.bf16.mxu0 0
  %1814 = vmatpush1.bf16.msra.mxu0 0
  %1815 = vmatprep.subr.bf16.mxu0 0
  %1816 = vmatpush1.bf16.msra.mxu0 0
  %1817 = vmatprep.subr.bf16.mxu0 0
  %1818 = vmatpush1.bf16.msra.mxu0 0
  %1819 = vmatprep.subr.bf16.mxu0 0
  %1820 = vmatpush1.bf16.msra.mxu0 0
  %1821 = vmatprep.subr.bf16.mxu0 0
  %1822 = vmatpush1.bf16.msra.mxu0 0
  %1823 = vmatprep.mubr.bf16.mxu0 0
  %1824 = vmatmul.mubr.bf16.gmra.mrb[0].mxu0 %v483
  %v1825 = vpop.f32.mrb[0].mxu0
  %v1826 = vadd.f32 %v1713, %v1825
  %v1827 = vpop.f32.mrb[0].mxu0
  %v1828 = vadd.f32 %v1715, %v1827
  %v1829 = vpop.f32.mrb[0].mxu0
  %v1830 = vadd.f32 %v1717, %v1829
  %v1831 = vpop.f32.mrb[0].mxu0
  %v1832 = vadd.f32 %v1719, %v1831
  %1833 = vmatprep.mubr.bf16.mxu0 0
  %1834 = vmatmul.mubr.bf16.gmra.mrb[0].mxu0 %v492
  %v1835 = vpop.f32.mrb[0].mxu0
  %v1836 = vadd.f32 %v1723, %v1835
  %v1837 = vpop.f32.mrb[0].mxu0
  %v1838 = vadd.f32 %v1725, %v1837
  %v1839 = vpop.f32.mrb[0].mxu0
  %v1840 = vadd.f32 %v1727, %v1839
  %v1841 = vpop.f32.mrb[0].mxu0
  %v1842 = vadd.f32 %v1729, %v1841
  %1843 = vmatprep.mubr.bf16.mxu0 0
  %1844 = vmatmul.mubr.bf16.gmra.mrb[0].mxu0 %v501
  %v1845 = vpop.f32.mrb[0].mxu0
  %v1846 = vadd.f32 %v1733, %v1845
  %v1847 = vpop.f32.mrb[0].mxu0
  %v1848 = vadd.f32 %v1735, %v1847
  %v1849 = vpop.f32.mrb[0].mxu0
  %v1850 = vadd.f32 %v1737, %v1849
  %v1851 = vpop.f32.mrb[0].mxu0
  %v1852 = vadd.f32 %v1739, %v1851
  %1853 = vmatprep.mubr.bf16.mxu0 0
  %1854 = vmatmul.mubr.bf16.gmra.mrb[0].mxu0 %v510
  %v1855 = vpop.f32.mrb[0].mxu0
  %v1856 = vadd.f32 %v1743, %v1855
  %v1857 = vpop.f32.mrb[0].mxu0
  %v1858 = vadd.f32 %v1745, %v1857
  %v1859 = vpop.f32.mrb[0].mxu0
  %v1860 = vadd.f32 %v1747, %v1859
  %v1861 = vpop.f32.mrb[0].mxu0
  %v1862 = vadd.f32 %v1749, %v1861
  %1863 = vmatprep.mubr.bf16.mxu0 0
  %1864 = vmatmul.mubr.bf16.gmra.mrb[0].mxu0 %v519
  %v1865 = vpop.f32.mrb[0].mxu0
  %v1866 = vadd.f32 %v1753, %v1865
  %v1867 = vpop.f32.mrb[0].mxu0
  %v1868 = vadd.f32 %v1755, %v1867
  %v1869 = vpop.f32.mrb[0].mxu0
  %v1870 = vadd.f32 %v1757, %v1869
  %v1871 = vpop.f32.mrb[0].mxu0
  %v1872 = vadd.f32 %v1759, %v1871
  %1873 = vmatprep.mubr.bf16.mxu0 0
  %1874 = vmatmul.mubr.bf16.gmra.mrb[0].mxu0 %v528
  %v1875 = vpop.f32.mrb[0].mxu0
  %v1876 = vadd.f32 %v1763, %v1875
  %v1877 = vpop.f32.mrb[0].mxu0
  %v1878 = vadd.f32 %v1765, %v1877
  %v1879 = vpop.f32.mrb[0].mxu0
  %v1880 = vadd.f32 %v1767, %v1879
  %v1881 = vpop.f32.mrb[0].mxu0
  %v1882 = vadd.f32 %v1769, %v1881
  %1883 = vmatprep.mubr.bf16.mxu0 0
  %1884 = vmatmul.mubr.bf16.gmra.mrb[0].mxu0 %v537
  %v1885 = vpop.f32.mrb[0].mxu0
  %v1886 = vadd.f32 %v1773, %v1885
  %v1887 = vpop.f32.mrb[0].mxu0
  %v1888 = vadd.f32 %v1775, %v1887
  %v1889 = vpop.f32.mrb[0].mxu0
  %v1890 = vadd.f32 %v1777, %v1889
  %v1891 = vpop.f32.mrb[0].mxu0
  %v1892 = vadd.f32 %v1779, %v1891
  %1893 = vmatprep.mubr.bf16.mxu0 0
  %1894 = vmatmul.mubr.bf16.gmra.mrb[0].mxu0 %v546
  %v1895 = vpop.f32.mrb[0].mxu0
  %v1896 = vadd.f32 %v1783, %v1895
  %v1897 = vpop.f32.mrb[0].mxu0
  %v1898 = vadd.f32 %v1785, %v1897
  %v1899 = vpop.f32.mrb[0].mxu0
  %v1900 = vadd.f32 %v1787, %v1899
  %v1901 = vpop.f32.mrb[0].mxu0
  %v1902 = vadd.f32 %v1789, %v1901
  %1903 = vdwg.mxu0
  %vm1904 = vcmp.ge.f32.partialorder %v1826, 0.0
  %vm1905 = vcmp.ge.f32.partialorder %v1828, 0.0
  %vm1906 = vcmp.ge.f32.partialorder %v1830, 0.0
  %vm1907 = vcmp.ge.f32.partialorder %v1832, 0.0
  %vm1908 = vcmp.ge.f32.partialorder %v1836, 0.0
  %vm1909 = vcmp.ge.f32.partialorder %v1838, 0.0
  %vm1910 = vcmp.ge.f32.partialorder %v1840, 0.0
  %vm1911 = vcmp.ge.f32.partialorder %v1842, 0.0
  %vm1912 = vcmp.ge.f32.partialorder %v1846, 0.0
  %vm1913 = vcmp.ge.f32.partialorder %v1848, 0.0
  %vm1914 = vcmp.ge.f32.partialorder %v1850, 0.0
  %vm1915 = vcmp.ge.f32.partialorder %v1852, 0.0
  %vm1916 = vcmp.ge.f32.partialorder %v1856, 0.0
  %vm1917 = vcmp.ge.f32.partialorder %v1858, 0.0
  %vm1918 = vcmp.ge.f32.partialorder %v1860, 0.0
  %vm1919 = vcmp.ge.f32.partialorder %v1862, 0.0
  %vm1920 = vcmp.ge.f32.partialorder %v1866, 0.0
  %vm1921 = vcmp.ge.f32.partialorder %v1868, 0.0
  %vm1922 = vcmp.ge.f32.partialorder %v1870, 0.0
  %vm1923 = vcmp.ge.f32.partialorder %v1872, 0.0
  %vm1924 = vcmp.ge.f32.partialorder %v1876, 0.0
  %vm1925 = vcmp.ge.f32.partialorder %v1878, 0.0
  %vm1926 = vcmp.ge.f32.partialorder %v1880, 0.0
  %vm1927 = vcmp.ge.f32.partialorder %v1882, 0.0
  %vm1928 = vcmp.ge.f32.partialorder %v1886, 0.0
  %vm1929 = vcmp.ge.f32.partialorder %v1888, 0.0
  %vm1930 = vcmp.ge.f32.partialorder %v1890, 0.0
  %vm1931 = vcmp.ge.f32.partialorder %v1892, 0.0
  %vm1932 = vcmp.ge.f32.partialorder %v1896, 0.0
  %vm1933 = vcmp.ge.f32.partialorder %v1898, 0.0
  %vm1934 = vcmp.ge.f32.partialorder %v1900, 0.0
  %vm1935 = vcmp.ge.f32.partialorder %v1902, 0.0
  %v1936 = vmul.f32 %v1826, 0.1
  %v1937 = vmul.f32 %v1828, 0.1
  %v1938 = vmul.f32 %v1830, 0.1
  %v1939 = vmul.f32 %v1832, 0.1
  %v1940 = vmul.f32 %v1836, 0.1
  %v1941 = vmul.f32 %v1838, 0.1
  %v1942 = vmul.f32 %v1840, 0.1
  %v1943 = vmul.f32 %v1842, 0.1
  %v1944 = vmul.f32 %v1846, 0.1
  %v1945 = vmul.f32 %v1848, 0.1
  %v1946 = vmul.f32 %v1850, 0.1
  %v1947 = vmul.f32 %v1852, 0.1
  %v1948 = vmul.f32 %v1856, 0.1
  %v1949 = vmul.f32 %v1858, 0.1
  %v1950 = vmul.f32 %v1860, 0.1
  %v1951 = vmul.f32 %v1862, 0.1
  %v1952 = vmul.f32 %v1866, 0.1
  %v1953 = vmul.f32 %v1868, 0.1
  %v1954 = vmul.f32 %v1870, 0.1
  %v1955 = vmul.f32 %v1872, 0.1
  %v1956 = vmul.f32 %v1876, 0.1
  %v1957 = vmul.f32 %v1878, 0.1
  %v1958 = vmul.f32 %v1880, 0.1
  %v1959 = vmul.f32 %v1882, 0.1
  %v1960 = vmul.f32 %v1886, 0.1
  %v1961 = vmul.f32 %v1888, 0.1
  %v1962 = vmul.f32 %v1890, 0.1
  %v1963 = vmul.f32 %v1892, 0.1
  %v1964 = vmul.f32 %v1896, 0.1
  %v1965 = vmul.f32 %v1898, 0.1
  %v1966 = vmul.f32 %v1900, 0.1
  %v1967 = vmul.f32 %v1902, 0.1
  %v1968 = vsel %vm1904, %v1826, %v1936
  %v1969 = vsel %vm1905, %v1828, %v1937
  %v1970 = vsel %vm1906, %v1830, %v1938
  %v1971 = vsel %vm1907, %v1832, %v1939
  %v1972 = vsel %vm1908, %v1836, %v1940
  %v1973 = vsel %vm1909, %v1838, %v1941
  %v1974 = vsel %vm1910, %v1840, %v1942
  %v1975 = vsel %vm1911, %v1842, %v1943
  %v1976 = vsel %vm1912, %v1846, %v1944
  %v1977 = vsel %vm1913, %v1848, %v1945
  %v1978 = vsel %vm1914, %v1850, %v1946
  %v1979 = vsel %vm1915, %v1852, %v1947
  %v1980 = vsel %vm1916, %v1856, %v1948
  %v1981 = vsel %vm1917, %v1858, %v1949
  %v1982 = vsel %vm1918, %v1860, %v1950
  %v1983 = vsel %vm1919, %v1862, %v1951
  %v1984 = vsel %vm1920, %v1866, %v1952
  %v1985 = vsel %vm1921, %v1868, %v1953
  %v1986 = vsel %vm1922, %v1870, %v1954
  %v1987 = vsel %vm1923, %v1872, %v1955
  %v1988 = vsel %vm1924, %v1876, %v1956
  %v1989 = vsel %vm1925, %v1878, %v1957
  %v1990 = vsel %vm1926, %v1880, %v1958
  %v1991 = vsel %vm1927, %v1882, %v1959
  %v1992 = vsel %vm1928, %v1886, %v1960
  %v1993 = vsel %vm1929, %v1888, %v1961
  %v1994 = vsel %vm1930, %v1890, %v1962
  %v1995 = vsel %vm1931, %v1892, %v1963
  %v1996 = vsel %vm1932, %v1896, %v1964
  %v1997 = vsel %vm1933, %v1898, %v1965
  %v1998 = vsel %vm1934, %v1900, %v1966
  %v1999 = vsel %vm1935, %v1902, %v1967
  %2000 = vst [vmem:[%s3] sm:$0xff] %v1968
  %2001 = vst [vmem:[%s3 + $0x8] sm:$0xff] %v1969
  %2002 = vst [vmem:[%s3 + $0x10] sm:$0xff] %v1970
  %2003 = vst [vmem:[%s3 + $0x18] sm:$0xff] %v1971
  %2004 = vst [vmem:[%s3 + $0x20] sm:$0xff] %v1972
  %2005 = vst [vmem:[%s3 + $0x28] sm:$0xff] %v1973
  %2006 = vst [vmem:[%s3 + $0x30] sm:$0xff] %v1974
  %2007 = vst [vmem:[%s3 + $0x38] sm:$0xff] %v1975
  %2008 = vst [vmem:[%s3 + $0x40] sm:$0xff] %v1976
  %2009 = vst [vmem:[%s3 + $0x48] sm:$0xff] %v1977
  %2010 = vst [vmem:[%s3 + $0x50] sm:$0xff] %v1978
  %2011 = vst [vmem:[%s3 + $0x58] sm:$0xff] %v1979
  %2012 = vst [vmem:[%s3 + $0x60] sm:$0xff] %v1980
  %2013 = vst [vmem:[%s3 + $0x68] sm:$0xff] %v1981
  %2014 = vst [vmem:[%s3 + $0x70] sm:$0xff] %v1982
  %2015 = vst [vmem:[%s3 + $0x78] sm:$0xff] %v1983
  %2016 = vst [vmem:[%s3 + $0x80] sm:$0xff] %v1984
  %2017 = vst [vmem:[%s3 + $0x88] sm:$0xff] %v1985
  %2018 = vst [vmem:[%s3 + $0x90] sm:$0xff] %v1986
  %2019 = vst [vmem:[%s3 + $0x98] sm:$0xff] %v1987
  %2020 = vst [vmem:[%s3 + $0xa0] sm:$0xff] %v1988
  %2021 = vst [vmem:[%s3 + $0xa8] sm:$0xff] %v1989
  %2022 = vst [vmem:[%s3 + $0xb0] sm:$0xff] %v1990
  %2023 = vst [vmem:[%s3 + $0xb8] sm:$0xff] %v1991
  %2024 = vst [vmem:[%s3 + $0xc0] sm:$0xff] %v1992
  %2025 = vst [vmem:[%s3 + $0xc8] sm:$0xff] %v1993
  %2026 = vst [vmem:[%s3 + $0xd0] sm:$0xff] %v1994
  %2027 = vst [vmem:[%s3 + $0xd8] sm:$0xff] %v1995
  %2028 = vst [vmem:[%s3 + $0xe0] sm:$0xff] %v1996
  %2029 = vst [vmem:[%s3 + $0xe8] sm:$0xff] %v1997
  %2030 = vst [vmem:[%s3 + $0xf0] sm:$0xff] %v1998
  %2031 = vst [vmem:[%s3 + $0xf8] sm:$0xff] %v1999
  // Predicated region
  $region14: #{pi_model_forward.15} parent=0 // pred_check
    _
  $region15: #{pi_model_forward.15} parent=0 // pred_check_branch
    %2033 = sbr.rel (0) target = $region17
  $region16: #{pi_model_forward.15} parent=0 // pred_region
    _
  $region17: #{pi_model_forward.15} parent=0 // pred_fallthru
    _
  // Predicated region
  $region18: #{pi_model_forward.15} parent=0 // pred_check
    _
  $region19: #{pi_model_forward.15} parent=0 // pred_check_branch
    %2035 = sbr.rel (0) target = $region21
  $region20: #{pi_model_forward.15} parent=0 // pred_region
    _
  $region21: #{pi_model_forward.15} parent=0 // pred_fallthru
    _

// kernel: pi_model_forward.16
$region0: #{pi_model_forward.16}
  #allocation0 [shape = 'u32[]', space=smem, size = 0x4, offset = 0x4, fixed_abs, tag = 'smem constant byte address 0x4 - core index']
  #allocation1 [shape = 'u32[144,128]{1,0:T(1,128)}', space=vmem, size = 0x12000, scoped, tag = 'internal scratch']
  %s0 = inlined_call_operand.vmem [shape: bf16[128,2304], index: 0, kind: input, shape index: {}]
  %s1 = inlined_call_operand.vmem [shape: bf16[2304,256], index: 1, kind: input, shape index: {}]
  %s2 = inlined_call_operand.vmem [shape: f32[1,256], index: 2, kind: input, shape index: {}]
  %s3 = inlined_call_operand.vmem [shape: f32[128,256], index: 3, kind: output, shape index: {}]
  %s4 = sld [smem:[#allocation0]]
  $region22: #{pi_model_forward.16} parent=0
    _
  %s6 = ssub.s32 1, %s4
  %s7 = scalar_select 0, %s6, %s4
  // Predicated region
  $region2: #{pi_model_forward.16} parent=0 // pred_check
    _
  $region3: #{pi_model_forward.16} parent=0 // pred_check_branch
    %9 = sbr.rel (0) target = $region5
  $region4: #{pi_model_forward.16} parent=0 // pred_region
    _
  $region5: #{pi_model_forward.16} parent=0 // pred_fallthru
    _
  // Predicated region
  $region6: #{pi_model_forward.16} parent=0 // pred_check
    _
  $region7: #{pi_model_forward.16} parent=0 // pred_check_branch
    %11 = sbr.rel (0) target = $region9
  $region8: #{pi_model_forward.16} parent=0 // pred_region
    _
  $region9: #{pi_model_forward.16} parent=0 // pred_fallthru
    _
  // Predicated region
  $region10: #{pi_model_forward.16} parent=0 // pred_check
    _
  $region11: #{pi_model_forward.16} parent=0 // pred_check_branch
    %13 = sbr.rel (0) target = $region13
  $region12: #{pi_model_forward.16} parent=0 // pred_region
    _
  $region13: #{pi_model_forward.16} parent=0 // pred_fallthru
    _
  %v14 = vld [vmem:[%s0] sm:$0xff]
  %v15 = vld [vmem:[%s0 + $0x8] sm:$0xff]
  %v16 = vld [vmem:[%s0 + $0x10] sm:$0xff]
  %v17 = vld [vmem:[%s0 + $0x18] sm:$0xff]
  %v18 = vld [vmem:[%s0 + $0x20] sm:$0xff]
  %v19 = vld [vmem:[%s0 + $0x28] sm:$0xff]
  %v20 = vld [vmem:[%s0 + $0x30] sm:$0xff]
  %v21 = vld [vmem:[%s0 + $0x38] sm:$0xff]
  %v22 = vld [vmem:[%s0 + $0x40] sm:$0xff]
  %v23 = vld [vmem:[%s0 + $0x48] sm:$0xff]
  %v24 = vld [vmem:[%s0 + $0x50] sm:$0xff]
  %v25 = vld [vmem:[%s0 + $0x58] sm:$0xff]
  %v26 = vld [vmem:[%s0 + $0x60] sm:$0xff]
  %v27 = vld [vmem:[%s0 + $0x68] sm:$0xff]
  %v28 = vld [vmem:[%s0 + $0x70] sm:$0xff]
  %v29 = vld [vmem:[%s0 + $0x78] sm:$0xff]
  %v30 = vld [vmem:[%s0 + $0x80] sm:$0xff]
  %v31 = vld [vmem:[%s0 + $0x88] sm:$0xff]
  %v32 = vld [vmem:[%s0 + $0x90] sm:$0xff]
  %v33 = vld [vmem:[%s0 + $0x98] sm:$0xff]
  %v34 = vld [vmem:[%s0 + $0xa0] sm:$0xff]
  %v35 = vld [vmem:[%s0 + $0xa8] sm:$0xff]
  %v36 = vld [vmem:[%s0 + $0xb0] sm:$0xff]
  %v37 = vld [vmem:[%s0 + $0xb8] sm:$0xff]
  %v38 = vld [vmem:[%s0 + $0xc0] sm:$0xff]
  %v39 = vld [vmem:[%s0 + $0xc8] sm:$0xff]
  %v40 = vld [vmem:[%s0 + $0xd0] sm:$0xff]
  %v41 = vld [vmem:[%s0 + $0xd8] sm:$0xff]
  %v42 = vld [vmem:[%s0 + $0xe0] sm:$0xff]
  %v43 = vld [vmem:[%s0 + $0xe8] sm:$0xff]
  %v44 = vld [vmem:[%s0 + $0xf0] sm:$0xff]
  %v45 = vld [vmem:[%s0 + $0xf8] sm:$0xff]
  %v46 = vld [vmem:[%s0 + $0x100] sm:$0xff]
  %v47 = vld [vmem:[%s0 + $0x108] sm:$0xff]
  %v48 = vld [vmem:[%s0 + $0x110] sm:$0xff]
  %v49 = vld [vmem:[%s0 + $0x118] sm:$0xff]
  %v50 = vld [vmem:[%s0 + $0x120] sm:$0xff]
  %v51 = vld [vmem:[%s0 + $0x128] sm:$0xff]
  %v52 = vld [vmem:[%s0 + $0x130] sm:$0xff]
  %v53 = vld [vmem:[%s0 + $0x138] sm:$0xff]
  %v54 = vld [vmem:[%s0 + $0x140] sm:$0xff]
  %v55 = vld [vmem:[%s0 + $0x148] sm:$0xff]
  %v56 = vld [vmem:[%s0 + $0x150] sm:$0xff]
  %v57 = vld [vmem:[%s0 + $0x158] sm:$0xff]
  %v58 = vld [vmem:[%s0 + $0x160] sm:$0xff]
  %v59 = vld [vmem:[%s0 + $0x168] sm:$0xff]
  %v60 = vld [vmem:[%s0 + $0x170] sm:$0xff]
  %v61 = vld [vmem:[%s0 + $0x178] sm:$0xff]
  %v62 = vld [vmem:[%s0 + $0x180] sm:$0xff]
  %v63 = vld [vmem:[%s0 + $0x188] sm:$0xff]
  %v64 = vld [vmem:[%s0 + $0x190] sm:$0xff]
  %v65 = vld [vmem:[%s0 + $0x198] sm:$0xff]
  %v66 = vld [vmem:[%s0 + $0x1a0] sm:$0xff]
  %v67 = vld [vmem:[%s0 + $0x1a8] sm:$0xff]
  %v68 = vld [vmem:[%s0 + $0x1b0] sm:$0xff]
  %v69 = vld [vmem:[%s0 + $0x1b8] sm:$0xff]
  %v70 = vld [vmem:[%s0 + $0x1c0] sm:$0xff]
  %v71 = vld [vmem:[%s0 + $0x1c8] sm:$0xff]
  %v72 = vld [vmem:[%s0 + $0x1d0] sm:$0xff]
  %v73 = vld [vmem:[%s0 + $0x1d8] sm:$0xff]
  %v74 = vld [vmem:[%s0 + $0x1e0] sm:$0xff]
  %v75 = vld [vmem:[%s0 + $0x1e8] sm:$0xff]
  %v76 = vld [vmem:[%s0 + $0x1f0] sm:$0xff]
  %v77 = vld [vmem:[%s0 + $0x1f8] sm:$0xff]
  %v78 = vld [vmem:[%s0 + $0x200] sm:$0xff]
  %v79 = vld [vmem:[%s0 + $0x208] sm:$0xff]
  %v80 = vld [vmem:[%s0 + $0x210] sm:$0xff]
  %v81 = vld [vmem:[%s0 + $0x218] sm:$0xff]
  %v82 = vld [vmem:[%s0 + $0x220] sm:$0xff]
  %v83 = vld [vmem:[%s0 + $0x228] sm:$0xff]
  %v84 = vld [vmem:[%s0 + $0x230] sm:$0xff]
  %v85 = vld [vmem:[%s0 + $0x238] sm:$0xff]
  %v86 = vld [vmem:[%s0 + $0x240] sm:$0xff]
  %v87 = vld [vmem:[%s0 + $0x248] sm:$0xff]
  %v88 = vld [vmem:[%s0 + $0x250] sm:$0xff]
  %v89 = vld [vmem:[%s0 + $0x258] sm:$0xff]
  %v90 = vld [vmem:[%s0 + $0x260] sm:$0xff]
  %v91 = vld [vmem:[%s0 + $0x268] sm:$0xff]
  %v92 = vld [vmem:[%s0 + $0x270] sm:$0xff]
  %v93 = vld [vmem:[%s0 + $0x278] sm:$0xff]
  %v94 = vld [vmem:[%s0 + $0x280] sm:$0xff]
  %v95 = vld [vmem:[%s0 + $0x288] sm:$0xff]
  %v96 = vld [vmem:[%s0 + $0x290] sm:$0xff]
  %v97 = vld [vmem:[%s0 + $0x298] sm:$0xff]
  %v98 = vld [vmem:[%s0 + $0x2a0] sm:$0xff]
  %v99 = vld [vmem:[%s0 + $0x2a8] sm:$0xff]
  %v100 = vld [vmem:[%s0 + $0x2b0] sm:$0xff]
  %v101 = vld [vmem:[%s0 + $0x2b8] sm:$0xff]
  %v102 = vld [vmem:[%s0 + $0x2c0] sm:$0xff]
  %v103 = vld [vmem:[%s0 + $0x2c8] sm:$0xff]
  %v104 = vld [vmem:[%s0 + $0x2d0] sm:$0xff]
  %v105 = vld [vmem:[%s0 + $0x2d8] sm:$0xff]
  %v106 = vld [vmem:[%s0 + $0x2e0] sm:$0xff]
  %v107 = vld [vmem:[%s0 + $0x2e8] sm:$0xff]
  %v108 = vld [vmem:[%s0 + $0x2f0] sm:$0xff]
  %v109 = vld [vmem:[%s0 + $0x2f8] sm:$0xff]
  %v110 = vld [vmem:[%s0 + $0x300] sm:$0xff]
  %v111 = vld [vmem:[%s0 + $0x308] sm:$0xff]
  %v112 = vld [vmem:[%s0 + $0x310] sm:$0xff]
  %v113 = vld [vmem:[%s0 + $0x318] sm:$0xff]
  %v114 = vld [vmem:[%s0 + $0x320] sm:$0xff]
  %v115 = vld [vmem:[%s0 + $0x328] sm:$0xff]
  %v116 = vld [vmem:[%s0 + $0x330] sm:$0xff]
  %v117 = vld [vmem:[%s0 + $0x338] sm:$0xff]
  %v118 = vld [vmem:[%s0 + $0x340] sm:$0xff]
  %v119 = vld [vmem:[%s0 + $0x348] sm:$0xff]
  %v120 = vld [vmem:[%s0 + $0x350] sm:$0xff]
  %v121 = vld [vmem:[%s0 + $0x358] sm:$0xff]
  %v122 = vld [vmem:[%s0 + $0x360] sm:$0xff]
  %v123 = vld [vmem:[%s0 + $0x368] sm:$0xff]
  %v124 = vld [vmem:[%s0 + $0x370] sm:$0xff]
  %v125 = vld [vmem:[%s0 + $0x378] sm:$0xff]
  %v126 = vld [vmem:[%s0 + $0x380] sm:$0xff]
  %v127 = vld [vmem:[%s0 + $0x388] sm:$0xff]
  %v128 = vld [vmem:[%s0 + $0x390] sm:$0xff]
  %v129 = vld [vmem:[%s0 + $0x398] sm:$0xff]
  %v130 = vld [vmem:[%s0 + $0x3a0] sm:$0xff]
  %v131 = vld [vmem:[%s0 + $0x3a8] sm:$0xff]
  %v132 = vld [vmem:[%s0 + $0x3b0] sm:$0xff]
  %v133 = vld [vmem:[%s0 + $0x3b8] sm:$0xff]
  %v134 = vld [vmem:[%s0 + $0x3c0] sm:$0xff]
  %v135 = vld [vmem:[%s0 + $0x3c8] sm:$0xff]
  %v136 = vld [vmem:[%s0 + $0x3d0] sm:$0xff]
  %v137 = vld [vmem:[%s0 + $0x3d8] sm:$0xff]
  %v138 = vld [vmem:[%s0 + $0x3e0] sm:$0xff]
  %v139 = vld [vmem:[%s0 + $0x3e8] sm:$0xff]
  %v140 = vld [vmem:[%s0 + $0x3f0] sm:$0xff]
  %v141 = vld [vmem:[%s0 + $0x3f8] sm:$0xff]
  %v142 = vld [vmem:[%s0 + $0x400] sm:$0xff]
  %v143 = vld [vmem:[%s0 + $0x408] sm:$0xff]
  %v144 = vld [vmem:[%s0 + $0x410] sm:$0xff]
  %v145 = vld [vmem:[%s0 + $0x418] sm:$0xff]
  %v146 = vld [vmem:[%s0 + $0x420] sm:$0xff]
  %v147 = vld [vmem:[%s0 + $0x428] sm:$0xff]
  %v148 = vld [vmem:[%s0 + $0x430] sm:$0xff]
  %v149 = vld [vmem:[%s0 + $0x438] sm:$0xff]
  %v150 = vld [vmem:[%s0 + $0x440] sm:$0xff]
  %v151 = vld [vmem:[%s0 + $0x448] sm:$0xff]
  %v152 = vld [vmem:[%s0 + $0x450] sm:$0xff]
  %v153 = vld [vmem:[%s0 + $0x458] sm:$0xff]
  %v154 = vld [vmem:[%s0 + $0x460] sm:$0xff]
  %v155 = vld [vmem:[%s0 + $0x468] sm:$0xff]
  %v156 = vld [vmem:[%s0 + $0x470] sm:$0xff]
  %v157 = vld [vmem:[%s0 + $0x478] sm:$0xff]
  %v158 = vld [vmem:[%s1] sm:$0xff]
  %v159 = vld [vmem:[%s1 + $0x8] sm:$0xff]
  %v160 = vld [vmem:[%s1 + $0x10] sm:$0xff]
  %v161 = vld [vmem:[%s1 + $0x18] sm:$0xff]
  %v162 = vld [vmem:[%s1 + $0x20] sm:$0xff]
  %v163 = vld [vmem:[%s1 + $0x28] sm:$0xff]
  %v164 = vld [vmem:[%s1 + $0x30] sm:$0xff]
  %v165 = vld [vmem:[%s1 + $0x38] sm:$0xff]
  %v166 = vld [vmem:[%s1 + $0x40] sm:$0xff]
  %v167 = vld [vmem:[%s1 + $0x48] sm:$0xff]
  %v168 = vld [vmem:[%s1 + $0x50] sm:$0xff]
  %v169 = vld [vmem:[%s1 + $0x58] sm:$0xff]
  %v170 = vld [vmem:[%s1 + $0x60] sm:$0xff]
  %v171 = vld [vmem:[%s1 + $0x68] sm:$0xff]
  %v172 = vld [vmem:[%s1 + $0x70] sm:$0xff]
  %v173 = vld [vmem:[%s1 + $0x78] sm:$0xff]
  %v174 = vld [vmem:[%s1 + $0x80] sm:$0xff]
  %v175 = vld [vmem:[%s1 + $0x88] sm:$0xff]
  %v176 = vld [vmem:[%s1 + $0x90] sm:$0xff]
  %v177 = vld [vmem:[%s1 + $0x98] sm:$0xff]
  %v178 = vld [vmem:[%s1 + $0xa0] sm:$0xff]
  %v179 = vld [vmem:[%s1 + $0xa8] sm:$0xff]
  %v180 = vld [vmem:[%s1 + $0xb0] sm:$0xff]
  %v181 = vld [vmem:[%s1 + $0xb8] sm:$0xff]
  %v182 = vld [vmem:[%s1 + $0xc0] sm:$0xff]
  %v183 = vld [vmem:[%s1 + $0xc8] sm:$0xff]
  %v184 = vld [vmem:[%s1 + $0xd0] sm:$0xff]
  %v185 = vld [vmem:[%s1 + $0xd8] sm:$0xff]
  %v186 = vld [vmem:[%s1 + $0xe0] sm:$0xff]
  %v187 = vld [vmem:[%s1 + $0xe8] sm:$0xff]
  %v188 = vld [vmem:[%s1 + $0xf0] sm:$0xff]
  %v189 = vld [vmem:[%s1 + $0xf8] sm:$0xff]
  %v190 = vld [vmem:[%s1 + $0x100] sm:$0xff]
  %v191 = vld [vmem:[%s1 + $0x108] sm:$0xff]
  %v192 = vld [vmem:[%s1 + $0x110] sm:$0xff]
  %v193 = vld [vmem:[%s1 + $0x118] sm:$0xff]
  %v194 = vld [vmem:[%s1 + $0x120] sm:$0xff]
  %v195 = vld [vmem:[%s1 + $0x128] sm:$0xff]
  %v196 = vld [vmem:[%s1 + $0x130] sm:$0xff]
  %v197 = vld [vmem:[%s1 + $0x138] sm:$0xff]
  %v198 = vld [vmem:[%s1 + $0x140] sm:$0xff]
  %v199 = vld [vmem:[%s1 + $0x148] sm:$0xff]
  %v200 = vld [vmem:[%s1 + $0x150] sm:$0xff]
  %v201 = vld [vmem:[%s1 + $0x158] sm:$0xff]
  %v202 = vld [vmem:[%s1 + $0x160] sm:$0xff]
  %v203 = vld [vmem:[%s1 + $0x168] sm:$0xff]
  %v204 = vld [vmem:[%s1 + $0x170] sm:$0xff]
  %v205 = vld [vmem:[%s1 + $0x178] sm:$0xff]
  %v206 = vld [vmem:[%s1 + $0x180] sm:$0xff]
  %v207 = vld [vmem:[%s1 + $0x188] sm:$0xff]
  %v208 = vld [vmem:[%s1 + $0x190] sm:$0xff]
  %v209 = vld [vmem:[%s1 + $0x198] sm:$0xff]
  %v210 = vld [vmem:[%s1 + $0x1a0] sm:$0xff]
  %v211 = vld [vmem:[%s1 + $0x1a8] sm:$0xff]
  %v212 = vld [vmem:[%s1 + $0x1b0] sm:$0xff]
  %v213 = vld [vmem:[%s1 + $0x1b8] sm:$0xff]
  %v214 = vld [vmem:[%s1 + $0x1c0] sm:$0xff]
  %v215 = vld [vmem:[%s1 + $0x1c8] sm:$0xff]
  %v216 = vld [vmem:[%s1 + $0x1d0] sm:$0xff]
  %v217 = vld [vmem:[%s1 + $0x1d8] sm:$0xff]
  %v218 = vld [vmem:[%s1 + $0x1e0] sm:$0xff]
  %v219 = vld [vmem:[%s1 + $0x1e8] sm:$0xff]
  %v220 = vld [vmem:[%s1 + $0x1f0] sm:$0xff]
  %v221 = vld [vmem:[%s1 + $0x1f8] sm:$0xff]
  %v222 = vld [vmem:[%s1 + $0x200] sm:$0xff]
  %v223 = vld [vmem:[%s1 + $0x208] sm:$0xff]
  %v224 = vld [vmem:[%s1 + $0x210] sm:$0xff]
  %v225 = vld [vmem:[%s1 + $0x218] sm:$0xff]
  %v226 = vld [vmem:[%s1 + $0x220] sm:$0xff]
  %v227 = vld [vmem:[%s1 + $0x228] sm:$0xff]
  %v228 = vld [vmem:[%s1 + $0x230] sm:$0xff]
  %v229 = vld [vmem:[%s1 + $0x238] sm:$0xff]
  %v230 = vld [vmem:[%s1 + $0x240] sm:$0xff]
  %v231 = vld [vmem:[%s1 + $0x248] sm:$0xff]
  %v232 = vld [vmem:[%s1 + $0x250] sm:$0xff]
  %v233 = vld [vmem:[%s1 + $0x258] sm:$0xff]
  %v234 = vld [vmem:[%s1 + $0x260] sm:$0xff]
  %v235 = vld [vmem:[%s1 + $0x268] sm:$0xff]
  %v236 = vld [vmem:[%s1 + $0x270] sm:$0xff]
  %v237 = vld [vmem:[%s1 + $0x278] sm:$0xff]
  %v238 = vld [vmem:[%s1 + $0x280] sm:$0xff]
  %v239 = vld [vmem:[%s1 + $0x288] sm:$0xff]
  %v240 = vld [vmem:[%s1 + $0x290] sm:$0xff]
  %v241 = vld [vmem:[%s1 + $0x298] sm:$0xff]
  %v242 = vld [vmem:[%s1 + $0x2a0] sm:$0xff]
  %v243 = vld [vmem:[%s1 + $0x2a8] sm:$0xff]
  %v244 = vld [vmem:[%s1 + $0x2b0] sm:$0xff]
  %v245 = vld [vmem:[%s1 + $0x2b8] sm:$0xff]
  %v246 = vld [vmem:[%s1 + $0x2c0] sm:$0xff]
  %v247 = vld [vmem:[%s1 + $0x2c8] sm:$0xff]
  %v248 = vld [vmem:[%s1 + $0x2d0] sm:$0xff]
  %v249 = vld [vmem:[%s1 + $0x2d8] sm:$0xff]
  %v250 = vld [vmem:[%s1 + $0x2e0] sm:$0xff]
  %v251 = vld [vmem:[%s1 + $0x2e8] sm:$0xff]
  %v252 = vld [vmem:[%s1 + $0x2f0] sm:$0xff]
  %v253 = vld [vmem:[%s1 + $0x2f8] sm:$0xff]
  %v254 = vld [vmem:[%s1 + $0x300] sm:$0xff]
  %v255 = vld [vmem:[%s1 + $0x308] sm:$0xff]
  %v256 = vld [vmem:[%s1 + $0x310] sm:$0xff]
  %v257 = vld [vmem:[%s1 + $0x318] sm:$0xff]
  %v258 = vld [vmem:[%s1 + $0x320] sm:$0xff]
  %v259 = vld [vmem:[%s1 + $0x328] sm:$0xff]
  %v260 = vld [vmem:[%s1 + $0x330] sm:$0xff]
  %v261 = vld [vmem:[%s1 + $0x338] sm:$0xff]
  %v262 = vld [vmem:[%s1 + $0x340] sm:$0xff]
  %v263 = vld [vmem:[%s1 + $0x348] sm:$0xff]
  %v264 = vld [vmem:[%s1 + $0x350] sm:$0xff]
  %v265 = vld [vmem:[%s1 + $0x358] sm:$0xff]
  %v266 = vld [vmem:[%s1 + $0x360] sm:$0xff]
  %v267 = vld [vmem:[%s1 + $0x368] sm:$0xff]
  %v268 = vld [vmem:[%s1 + $0x370] sm:$0xff]
  %v269 = vld [vmem:[%s1 + $0x378] sm:$0xff]
  %v270 = vld [vmem:[%s1 + $0x380] sm:$0xff]
  %v271 = vld [vmem:[%s1 + $0x388] sm:$0xff]
  %v272 = vld [vmem:[%s1 + $0x390] sm:$0xff]
  %v273 = vld [vmem:[%s1 + $0x398] sm:$0xff]
  %v274 = vld [vmem:[%s1 + $0x3a0] sm:$0xff]
  %v275 = vld [vmem:[%s1 + $0x3a8] sm:$0xff]
  %v276 = vld [vmem:[%s1 + $0x3b0] sm:$0xff]
  %v277 = vld [vmem:[%s1 + $0x3b8] sm:$0xff]
  %v278 = vld [vmem:[%s1 + $0x3c0] sm:$0xff]
  %v279 = vld [vmem:[%s1 + $0x3c8] sm:$0xff]
  %v280 = vld [vmem:[%s1 + $0x3d0] sm:$0xff]
  %v281 = vld [vmem:[%s1 + $0x3d8] sm:$0xff]
  %v282 = vld [vmem:[%s1 + $0x3e0] sm:$0xff]
  %v283 = vld [vmem:[%s1 + $0x3e8] sm:$0xff]
  %v284 = vld [vmem:[%s1 + $0x3f0] sm:$0xff]
  %v285 = vld [vmem:[%s1 + $0x3f8] sm:$0xff]
  %v286 = vld [vmem:[%s1 + $0x400] sm:$0xff]
  %v287 = vld [vmem:[%s1 + $0x408] sm:$0xff]
  %v288 = vld [vmem:[%s1 + $0x410] sm:$0xff]
  %v289 = vld [vmem:[%s1 + $0x418] sm:$0xff]
  %v290 = vld [vmem:[%s1 + $0x420] sm:$0xff]
  %v291 = vld [vmem:[%s1 + $0x428] sm:$0xff]
  %v292 = vld [vmem:[%s1 + $0x430] sm:$0xff]
  %v293 = vld [vmem:[%s1 + $0x438] sm:$0xff]
  %v294 = vld [vmem:[%s1 + $0x440] sm:$0xff]
  %v295 = vld [vmem:[%s1 + $0x448] sm:$0xff]
  %v296 = vld [vmem:[%s1 + $0x450] sm:$0xff]
  %v297 = vld [vmem:[%s1 + $0x458] sm:$0xff]
  %v298 = vld [vmem:[%s1 + $0x460] sm:$0xff]
  %v299 = vld [vmem:[%s1 + $0x468] sm:$0xff]
  %v300 = vld [vmem:[%s1 + $0x470] sm:$0xff]
  %v301 = vld [vmem:[%s1 + $0x478] sm:$0xff]
  %v302 = vld [vmem:[%s1 + $0x480] sm:$0xff]
  %v303 = vld [vmem:[%s1 + $0x488] sm:$0xff]
  %v304 = vld [vmem:[%s1 + $0x490] sm:$0xff]
  %v305 = vld [vmem:[%s1 + $0x498] sm:$0xff]
  %v306 = vld [vmem:[%s1 + $0x4a0] sm:$0xff]
  %v307 = vld [vmem:[%s1 + $0x4a8] sm:$0xff]
  %v308 = vld [vmem:[%s1 + $0x4b0] sm:$0xff]
  %v309 = vld [vmem:[%s1 + $0x4b8] sm:$0xff]
  %v310 = vld [vmem:[%s1 + $0x4c0] sm:$0xff]
  %v311 = vld [vmem:[%s1 + $0x4c8] sm:$0xff]
  %v312 = vld [vmem:[%s1 + $0x4d0] sm:$0xff]
  %v313 = vld [vmem:[%s1 + $0x4d8] sm:$0xff]
  %v314 = vld [vmem:[%s1 + $0x4e0] sm:$0xff]
  %v315 = vld [vmem:[%s1 + $0x4e8] sm:$0xff]
  %v316 = vld [vmem:[%s1 + $0x4f0] sm:$0xff]
  %v317 = vld [vmem:[%s1 + $0x4f8] sm:$0xff]
  %v318 = vld [vmem:[%s1 + $0x500] sm:$0xff]
  %v319 = vld [vmem:[%s1 + $0x508] sm:$0xff]
  %v320 = vld [vmem:[%s1 + $0x510] sm:$0xff]
  %v321 = vld [vmem:[%s1 + $0x518] sm:$0xff]
  %v322 = vld [vmem:[%s1 + $0x520] sm:$0xff]
  %v323 = vld [vmem:[%s1 + $0x528] sm:$0xff]
  %v324 = vld [vmem:[%s1 + $0x530] sm:$0xff]
  %v325 = vld [vmem:[%s1 + $0x538] sm:$0xff]
  %v326 = vld [vmem:[%s1 + $0x540] sm:$0xff]
  %v327 = vld [vmem:[%s1 + $0x548] sm:$0xff]
  %v328 = vld [vmem:[%s1 + $0x550] sm:$0xff]
  %v329 = vld [vmem:[%s1 + $0x558] sm:$0xff]
  %v330 = vld [vmem:[%s1 + $0x560] sm:$0xff]
  %v331 = vld [vmem:[%s1 + $0x568] sm:$0xff]
  %v332 = vld [vmem:[%s1 + $0x570] sm:$0xff]
  %v333 = vld [vmem:[%s1 + $0x578] sm:$0xff]
  %v334 = vld [vmem:[%s1 + $0x580] sm:$0xff]
  %v335 = vld [vmem:[%s1 + $0x588] sm:$0xff]
  %v336 = vld [vmem:[%s1 + $0x590] sm:$0xff]
  %v337 = vld [vmem:[%s1 + $0x598] sm:$0xff]
  %v338 = vld [vmem:[%s1 + $0x5a0] sm:$0xff]
  %v339 = vld [vmem:[%s1 + $0x5a8] sm:$0xff]
  %v340 = vld [vmem:[%s1 + $0x5b0] sm:$0xff]
  %v341 = vld [vmem:[%s1 + $0x5b8] sm:$0xff]
  %v342 = vld [vmem:[%s1 + $0x5c0] sm:$0xff]
  %v343 = vld [vmem:[%s1 + $0x5c8] sm:$0xff]
  %v344 = vld [vmem:[%s1 + $0x5d0] sm:$0xff]
  %v345 = vld [vmem:[%s1 + $0x5d8] sm:$0xff]
  %v346 = vld [vmem:[%s1 + $0x5e0] sm:$0xff]
  %v347 = vld [vmem:[%s1 + $0x5e8] sm:$0xff]
  %v348 = vld [vmem:[%s1 + $0x5f0] sm:$0xff]
  %v349 = vld [vmem:[%s1 + $0x5f8] sm:$0xff]
  %v350 = vld [vmem:[%s1 + $0x600] sm:$0xff]
  %v351 = vld [vmem:[%s1 + $0x608] sm:$0xff]
  %v352 = vld [vmem:[%s1 + $0x610] sm:$0xff]
  %v353 = vld [vmem:[%s1 + $0x618] sm:$0xff]
  %v354 = vld [vmem:[%s1 + $0x620] sm:$0xff]
  %v355 = vld [vmem:[%s1 + $0x628] sm:$0xff]
  %v356 = vld [vmem:[%s1 + $0x630] sm:$0xff]
  %v357 = vld [vmem:[%s1 + $0x638] sm:$0xff]
  %v358 = vld [vmem:[%s1 + $0x640] sm:$0xff]
  %v359 = vld [vmem:[%s1 + $0x648] sm:$0xff]
  %v360 = vld [vmem:[%s1 + $0x650] sm:$0xff]
  %v361 = vld [vmem:[%s1 + $0x658] sm:$0xff]
  %v362 = vld [vmem:[%s1 + $0x660] sm:$0xff]
  %v363 = vld [vmem:[%s1 + $0x668] sm:$0xff]
  %v364 = vld [vmem:[%s1 + $0x670] sm:$0xff]
  %v365 = vld [vmem:[%s1 + $0x678] sm:$0xff]
  %v366 = vld [vmem:[%s1 + $0x680] sm:$0xff]
  %v367 = vld [vmem:[%s1 + $0x688] sm:$0xff]
  %v368 = vld [vmem:[%s1 + $0x690] sm:$0xff]
  %v369 = vld [vmem:[%s1 + $0x698] sm:$0xff]
  %v370 = vld [vmem:[%s1 + $0x6a0] sm:$0xff]
  %v371 = vld [vmem:[%s1 + $0x6a8] sm:$0xff]
  %v372 = vld [vmem:[%s1 + $0x6b0] sm:$0xff]
  %v373 = vld [vmem:[%s1 + $0x6b8] sm:$0xff]
  %v374 = vld [vmem:[%s1 + $0x6c0] sm:$0xff]
  %v375 = vld [vmem:[%s1 + $0x6c8] sm:$0xff]
  %v376 = vld [vmem:[%s1 + $0x6d0] sm:$0xff]
  %v377 = vld [vmem:[%s1 + $0x6d8] sm:$0xff]
  %v378 = vld [vmem:[%s1 + $0x6e0] sm:$0xff]
  %v379 = vld [vmem:[%s1 + $0x6e8] sm:$0xff]
  %v380 = vld [vmem:[%s1 + $0x6f0] sm:$0xff]
  %v381 = vld [vmem:[%s1 + $0x6f8] sm:$0xff]
  %v382 = vld [vmem:[%s1 + $0x700] sm:$0xff]
  %v383 = vld [vmem:[%s1 + $0x708] sm:$0xff]
  %v384 = vld [vmem:[%s1 + $0x710] sm:$0xff]
  %v385 = vld [vmem:[%s1 + $0x718] sm:$0xff]
  %v386 = vld [vmem:[%s1 + $0x720] sm:$0xff]
  %v387 = vld [vmem:[%s1 + $0x728] sm:$0xff]
  %v388 = vld [vmem:[%s1 + $0x730] sm:$0xff]
  %v389 = vld [vmem:[%s1 + $0x738] sm:$0xff]
  %v390 = vld [vmem:[%s1 + $0x740] sm:$0xff]
  %v391 = vld [vmem:[%s1 + $0x748] sm:$0xff]
  %v392 = vld [vmem:[%s1 + $0x750] sm:$0xff]
  %v393 = vld [vmem:[%s1 + $0x758] sm:$0xff]
  %v394 = vld [vmem:[%s1 + $0x760] sm:$0xff]
  %v395 = vld [vmem:[%s1 + $0x768] sm:$0xff]
  %v396 = vld [vmem:[%s1 + $0x770] sm:$0xff]
  %v397 = vld [vmem:[%s1 + $0x778] sm:$0xff]
  %v398 = vld [vmem:[%s1 + $0x780] sm:$0xff]
  %v399 = vld [vmem:[%s1 + $0x788] sm:$0xff]
  %v400 = vld [vmem:[%s1 + $0x790] sm:$0xff]
  %v401 = vld [vmem:[%s1 + $0x798] sm:$0xff]
  %v402 = vld [vmem:[%s1 + $0x7a0] sm:$0xff]
  %v403 = vld [vmem:[%s1 + $0x7a8] sm:$0xff]
  %v404 = vld [vmem:[%s1 + $0x7b0] sm:$0xff]
  %v405 = vld [vmem:[%s1 + $0x7b8] sm:$0xff]
  %v406 = vld [vmem:[%s1 + $0x7c0] sm:$0xff]
  %v407 = vld [vmem:[%s1 + $0x7c8] sm:$0xff]
  %v408 = vld [vmem:[%s1 + $0x7d0] sm:$0xff]
  %v409 = vld [vmem:[%s1 + $0x7d8] sm:$0xff]
  %v410 = vld [vmem:[%s1 + $0x7e0] sm:$0xff]
  %v411 = vld [vmem:[%s1 + $0x7e8] sm:$0xff]
  %v412 = vld [vmem:[%s1 + $0x7f0] sm:$0xff]
  %v413 = vld [vmem:[%s1 + $0x7f8] sm:$0xff]
  %v414 = vld [vmem:[%s1 + $0x800] sm:$0xff]
  %v415 = vld [vmem:[%s1 + $0x808] sm:$0xff]
  %v416 = vld [vmem:[%s1 + $0x810] sm:$0xff]
  %v417 = vld [vmem:[%s1 + $0x818] sm:$0xff]
  %v418 = vld [vmem:[%s1 + $0x820] sm:$0xff]
  %v419 = vld [vmem:[%s1 + $0x828] sm:$0xff]
  %v420 = vld [vmem:[%s1 + $0x830] sm:$0xff]
  %v421 = vld [vmem:[%s1 + $0x838] sm:$0xff]
  %v422 = vld [vmem:[%s1 + $0x840] sm:$0xff]
  %v423 = vld [vmem:[%s1 + $0x848] sm:$0xff]
  %v424 = vld [vmem:[%s1 + $0x850] sm:$0xff]
  %v425 = vld [vmem:[%s1 + $0x858] sm:$0xff]
  %v426 = vld [vmem:[%s1 + $0x860] sm:$0xff]
  %v427 = vld [vmem:[%s1 + $0x868] sm:$0xff]
  %v428 = vld [vmem:[%s1 + $0x870] sm:$0xff]
  %v429 = vld [vmem:[%s1 + $0x878] sm:$0xff]
  %v430 = vld [vmem:[%s1 + $0x880] sm:$0xff]
  %v431 = vld [vmem:[%s1 + $0x888] sm:$0xff]
  %v432 = vld [vmem:[%s1 + $0x890] sm:$0xff]
  %v433 = vld [vmem:[%s1 + $0x898] sm:$0xff]
  %v434 = vld [vmem:[%s1 + $0x8a0] sm:$0xff]
  %v435 = vld [vmem:[%s1 + $0x8a8] sm:$0xff]
  %v436 = vld [vmem:[%s1 + $0x8b0] sm:$0xff]
  %v437 = vld [vmem:[%s1 + $0x8b8] sm:$0xff]
  %v438 = vld [vmem:[%s1 + $0x8c0] sm:$0xff]
  %v439 = vld [vmem:[%s1 + $0x8c8] sm:$0xff]
  %v440 = vld [vmem:[%s1 + $0x8d0] sm:$0xff]
  %v441 = vld [vmem:[%s1 + $0x8d8] sm:$0xff]
  %v442 = vld [vmem:[%s1 + $0x8e0] sm:$0xff]
  %v443 = vld [vmem:[%s1 + $0x8e8] sm:$0xff]
  %v444 = vld [vmem:[%s1 + $0x8f0] sm:$0xff]
  %v445 = vld [vmem:[%s1 + $0x8f8] sm:$0xff]
  %v446 = vld [vmem:[%s2] sm:$0x3]
  %v448 = vlaneseq
  %v449 = vshrl.u32 %v448, 7
  %v450 = vsub.s32 0, %v449
  %v451 = vrot.slane %v446, %v450
  %v452 = vlaneseq
  %v453 = vshrl.u32 %v452, 7
  %v454 = vsub.s32 1, %v453
  %v455 = vrot.slane %v446, %v454
  %v602 = vunpack.c.l.b16 %v14
  %v603 = vunpack.c.h.b16 %v14
  %v604 = vunpack.c.l.b16 %v15
  %v605 = vunpack.c.h.b16 %v15
  %v606 = vunpack.c.l.b16 %v16
  %v607 = vunpack.c.h.b16 %v16
  %v608 = vunpack.c.l.b16 %v17
  %v609 = vunpack.c.h.b16 %v17
  %v610 = vunpack.c.l.b16 %v18
  %v611 = vunpack.c.h.b16 %v18
  %v612 = vunpack.c.l.b16 %v19
  %v613 = vunpack.c.h.b16 %v19
  %v614 = vunpack.c.l.b16 %v20
  %v615 = vunpack.c.h.b16 %v20
  %v616 = vunpack.c.l.b16 %v21
  %v617 = vunpack.c.h.b16 %v21
  %v618 = vunpack.c.l.b16 %v22
  %v619 = vunpack.c.h.b16 %v22
  %v620 = vunpack.c.l.b16 %v23
  %v621 = vunpack.c.h.b16 %v23
  %v622 = vunpack.c.l.b16 %v24
  %v623 = vunpack.c.h.b16 %v24
  %v624 = vunpack.c.l.b16 %v25
  %v625 = vunpack.c.h.b16 %v25
  %v626 = vunpack.c.l.b16 %v26
  %v627 = vunpack.c.h.b16 %v26
  %v628 = vunpack.c.l.b16 %v27
  %v629 = vunpack.c.h.b16 %v27
  %v630 = vunpack.c.l.b16 %v28
  %v631 = vunpack.c.h.b16 %v28
  %v632 = vunpack.c.l.b16 %v29
  %v633 = vunpack.c.h.b16 %v29
  %v634 = vunpack.c.l.b16 %v30
  %v635 = vunpack.c.h.b16 %v30
  %v636 = vunpack.c.l.b16 %v31
  %v637 = vunpack.c.h.b16 %v31
  %v638 = vunpack.c.l.b16 %v32
  %v639 = vunpack.c.h.b16 %v32
  %v640 = vunpack.c.l.b16 %v33
  %v641 = vunpack.c.h.b16 %v33
  %v642 = vunpack.c.l.b16 %v34
  %v643 = vunpack.c.h.b16 %v34
  %v644 = vunpack.c.l.b16 %v35
  %v645 = vunpack.c.h.b16 %v35
  %v646 = vunpack.c.l.b16 %v36
  %v647 = vunpack.c.h.b16 %v36
  %v648 = vunpack.c.l.b16 %v37
  %v649 = vunpack.c.h.b16 %v37
  %v650 = vunpack.c.l.b16 %v38
  %v651 = vunpack.c.h.b16 %v38
  %v652 = vunpack.c.l.b16 %v39
  %v653 = vunpack.c.h.b16 %v39
  %v654 = vunpack.c.l.b16 %v40
  %v655 = vunpack.c.h.b16 %v40
  %v656 = vunpack.c.l.b16 %v41
  %v657 = vunpack.c.h.b16 %v41
  %v658 = vunpack.c.l.b16 %v42
  %v659 = vunpack.c.h.b16 %v42
  %v660 = vunpack.c.l.b16 %v43
  %v661 = vunpack.c.h.b16 %v43
  %v662 = vunpack.c.l.b16 %v44
  %v663 = vunpack.c.h.b16 %v44
  %v664 = vunpack.c.l.b16 %v45
  %v665 = vunpack.c.h.b16 %v45
  %v666 = vunpack.c.l.b16 %v46
  %v667 = vunpack.c.h.b16 %v46
  %v668 = vunpack.c.l.b16 %v47
  %v669 = vunpack.c.h.b16 %v47
  %v670 = vunpack.c.l.b16 %v48
  %v671 = vunpack.c.h.b16 %v48
  %v672 = vunpack.c.l.b16 %v49
  %v673 = vunpack.c.h.b16 %v49
  %v674 = vunpack.c.l.b16 %v50
  %v675 = vunpack.c.h.b16 %v50
  %v676 = vunpack.c.l.b16 %v51
  %v677 = vunpack.c.h.b16 %v51
  %v678 = vunpack.c.l.b16 %v52
  %v679 = vunpack.c.h.b16 %v52
  %v680 = vunpack.c.l.b16 %v53
  %v681 = vunpack.c.h.b16 %v53
  %v682 = vunpack.c.l.b16 %v54
  %v683 = vunpack.c.h.b16 %v54
  %v684 = vunpack.c.l.b16 %v55
  %v685 = vunpack.c.h.b16 %v55
  %v686 = vunpack.c.l.b16 %v56
  %v687 = vunpack.c.h.b16 %v56
  %v688 = vunpack.c.l.b16 %v57
  %v689 = vunpack.c.h.b16 %v57
  %v690 = vunpack.c.l.b16 %v58
  %v691 = vunpack.c.h.b16 %v58
  %v692 = vunpack.c.l.b16 %v59
  %v693 = vunpack.c.h.b16 %v59
  %v694 = vunpack.c.l.b16 %v60
  %v695 = vunpack.c.h.b16 %v60
  %v696 = vunpack.c.l.b16 %v61
  %v697 = vunpack.c.h.b16 %v61
  %v698 = vunpack.c.l.b16 %v62
  %v699 = vunpack.c.h.b16 %v62
  %v700 = vunpack.c.l.b16 %v63
  %v701 = vunpack.c.h.b16 %v63
  %v702 = vunpack.c.l.b16 %v64
  %v703 = vunpack.c.h.b16 %v64
  %v704 = vunpack.c.l.b16 %v65
  %v705 = vunpack.c.h.b16 %v65
  %v706 = vunpack.c.l.b16 %v66
  %v707 = vunpack.c.h.b16 %v66
  %v708 = vunpack.c.l.b16 %v67
  %v709 = vunpack.c.h.b16 %v67
  %v710 = vunpack.c.l.b16 %v68
  %v711 = vunpack.c.h.b16 %v68
  %v712 = vunpack.c.l.b16 %v69
  %v713 = vunpack.c.h.b16 %v69
  %v714 = vunpack.c.l.b16 %v70
  %v715 = vunpack.c.h.b16 %v70
  %v716 = vunpack.c.l.b16 %v71
  %v717 = vunpack.c.h.b16 %v71
  %v718 = vunpack.c.l.b16 %v72
  %v719 = vunpack.c.h.b16 %v72
  %v720 = vunpack.c.l.b16 %v73
  %v721 = vunpack.c.h.b16 %v73
  %v722 = vunpack.c.l.b16 %v74
  %v723 = vunpack.c.h.b16 %v74
  %v724 = vunpack.c.l.b16 %v75
  %v725 = vunpack.c.h.b16 %v75
  %v726 = vunpack.c.l.b16 %v76
  %v727 = vunpack.c.h.b16 %v76
  %v728 = vunpack.c.l.b16 %v77
  %v729 = vunpack.c.h.b16 %v77
  %v730 = vunpack.c.l.b16 %v78
  %v731 = vunpack.c.h.b16 %v78
  %v732 = vunpack.c.l.b16 %v79
  %v733 = vunpack.c.h.b16 %v79
  %v734 = vunpack.c.l.b16 %v80
  %v735 = vunpack.c.h.b16 %v80
  %v736 = vunpack.c.l.b16 %v81
  %v737 = vunpack.c.h.b16 %v81
  %v738 = vunpack.c.l.b16 %v82
  %v739 = vunpack.c.h.b16 %v82
  %v740 = vunpack.c.l.b16 %v83
  %v741 = vunpack.c.h.b16 %v83
  %v742 = vunpack.c.l.b16 %v84
  %v743 = vunpack.c.h.b16 %v84
  %v744 = vunpack.c.l.b16 %v85
  %v745 = vunpack.c.h.b16 %v85
  %v746 = vunpack.c.l.b16 %v86
  %v747 = vunpack.c.h.b16 %v86
  %v748 = vunpack.c.l.b16 %v87
  %v749 = vunpack.c.h.b16 %v87
  %v750 = vunpack.c.l.b16 %v88
  %v751 = vunpack.c.h.b16 %v88
  %v752 = vunpack.c.l.b16 %v89
  %v753 = vunpack.c.h.b16 %v89
  %v754 = vunpack.c.l.b16 %v90
  %v755 = vunpack.c.h.b16 %v90
  %v756 = vunpack.c.l.b16 %v91
  %v757 = vunpack.c.h.b16 %v91
  %v758 = vunpack.c.l.b16 %v92
  %v759 = vunpack.c.h.b16 %v92
  %v760 = vunpack.c.l.b16 %v93
  %v761 = vunpack.c.h.b16 %v93
  %v762 = vunpack.c.l.b16 %v94
  %v763 = vunpack.c.h.b16 %v94
  %v764 = vunpack.c.l.b16 %v95
  %v765 = vunpack.c.h.b16 %v95
  %v766 = vunpack.c.l.b16 %v96
  %v767 = vunpack.c.h.b16 %v96
  %v768 = vunpack.c.l.b16 %v97
  %v769 = vunpack.c.h.b16 %v97
  %v770 = vunpack.c.l.b16 %v98
  %v771 = vunpack.c.h.b16 %v98
  %v772 = vunpack.c.l.b16 %v99
  %v773 = vunpack.c.h.b16 %v99
  %v774 = vunpack.c.l.b16 %v100
  %v775 = vunpack.c.h.b16 %v100
  %v776 = vunpack.c.l.b16 %v101
  %v777 = vunpack.c.h.b16 %v101
  %v778 = vunpack.c.l.b16 %v102
  %v779 = vunpack.c.h.b16 %v102
  %v780 = vunpack.c.l.b16 %v103
  %v781 = vunpack.c.h.b16 %v103
  %v782 = vunpack.c.l.b16 %v104
  %v783 = vunpack.c.h.b16 %v104
  %v784 = vunpack.c.l.b16 %v105
  %v785 = vunpack.c.h.b16 %v105
  %v786 = vunpack.c.l.b16 %v106
  %v787 = vunpack.c.h.b16 %v106
  %v788 = vunpack.c.l.b16 %v107
  %v789 = vunpack.c.h.b16 %v107
  %v790 = vunpack.c.l.b16 %v108
  %v791 = vunpack.c.h.b16 %v108
  %v792 = vunpack.c.l.b16 %v109
  %v793 = vunpack.c.h.b16 %v109
  %v794 = vunpack.c.l.b16 %v110
  %v795 = vunpack.c.h.b16 %v110
  %v796 = vunpack.c.l.b16 %v111
  %v797 = vunpack.c.h.b16 %v111
  %v798 = vunpack.c.l.b16 %v112
  %v799 = vunpack.c.h.b16 %v112
  %v800 = vunpack.c.l.b16 %v113
  %v801 = vunpack.c.h.b16 %v113
  %v802 = vunpack.c.l.b16 %v114
  %v803 = vunpack.c.h.b16 %v114
  %v804 = vunpack.c.l.b16 %v115
  %v805 = vunpack.c.h.b16 %v115
  %v806 = vunpack.c.l.b16 %v116
  %v807 = vunpack.c.h.b16 %v116
  %v808 = vunpack.c.l.b16 %v117
  %v809 = vunpack.c.h.b16 %v117
  %v810 = vunpack.c.l.b16 %v118
  %v811 = vunpack.c.h.b16 %v118
  %v812 = vunpack.c.l.b16 %v119
  %v813 = vunpack.c.h.b16 %v119
  %v814 = vunpack.c.l.b16 %v120
  %v815 = vunpack.c.h.b16 %v120
  %v816 = vunpack.c.l.b16 %v121
  %v817 = vunpack.c.h.b16 %v121
  %v818 = vunpack.c.l.b16 %v122
  %v819 = vunpack.c.h.b16 %v122
  %v820 = vunpack.c.l.b16 %v123
  %v821 = vunpack.c.h.b16 %v123
  %v822 = vunpack.c.l.b16 %v124
  %v823 = vunpack.c.h.b16 %v124
  %v824 = vunpack.c.l.b16 %v125
  %v825 = vunpack.c.h.b16 %v125
  %v826 = vunpack.c.l.b16 %v126
  %v827 = vunpack.c.h.b16 %v126
  %v828 = vunpack.c.l.b16 %v127
  %v829 = vunpack.c.h.b16 %v127
  %v830 = vunpack.c.l.b16 %v128
  %v831 = vunpack.c.h.b16 %v128
  %v832 = vunpack.c.l.b16 %v129
  %v833 = vunpack.c.h.b16 %v129
  %v834 = vunpack.c.l.b16 %v130
  %v835 = vunpack.c.h.b16 %v130
  %v836 = vunpack.c.l.b16 %v131
  %v837 = vunpack.c.h.b16 %v131
  %v838 = vunpack.c.l.b16 %v132
  %v839 = vunpack.c.h.b16 %v132
  %v840 = vunpack.c.l.b16 %v133
  %v841 = vunpack.c.h.b16 %v133
  %v842 = vunpack.c.l.b16 %v134
  %v843 = vunpack.c.h.b16 %v134
  %v844 = vunpack.c.l.b16 %v135
  %v845 = vunpack.c.h.b16 %v135
  %v846 = vunpack.c.l.b16 %v136
  %v847 = vunpack.c.h.b16 %v136
  %v848 = vunpack.c.l.b16 %v137
  %v849 = vunpack.c.h.b16 %v137
  %v850 = vunpack.c.l.b16 %v138
  %v851 = vunpack.c.h.b16 %v138
  %v852 = vunpack.c.l.b16 %v139
  %v853 = vunpack.c.h.b16 %v139
  %v854 = vunpack.c.l.b16 %v140
  %v855 = vunpack.c.h.b16 %v140
  %v856 = vunpack.c.l.b16 %v141
  %v857 = vunpack.c.h.b16 %v141
  %v858 = vunpack.c.l.b16 %v142
  %v859 = vunpack.c.h.b16 %v142
  %v860 = vunpack.c.l.b16 %v143
  %v861 = vunpack.c.h.b16 %v143
  %v862 = vunpack.c.l.b16 %v144
  %v863 = vunpack.c.h.b16 %v144
  %v864 = vunpack.c.l.b16 %v145
  %v865 = vunpack.c.h.b16 %v145
  %v866 = vunpack.c.l.b16 %v146
  %v867 = vunpack.c.h.b16 %v146
  %v868 = vunpack.c.l.b16 %v147
  %v869 = vunpack.c.h.b16 %v147
  %v870 = vunpack.c.l.b16 %v148
  %v871 = vunpack.c.h.b16 %v148
  %v872 = vunpack.c.l.b16 %v149
  %v873 = vunpack.c.h.b16 %v149
  %v874 = vunpack.c.l.b16 %v150
  %v875 = vunpack.c.h.b16 %v150
  %v876 = vunpack.c.l.b16 %v151
  %v877 = vunpack.c.h.b16 %v151
  %v878 = vunpack.c.l.b16 %v152
  %v879 = vunpack.c.h.b16 %v152
  %v880 = vunpack.c.l.b16 %v153
  %v881 = vunpack.c.h.b16 %v153
  %v882 = vunpack.c.l.b16 %v154
  %v883 = vunpack.c.h.b16 %v154
  %v884 = vunpack.c.l.b16 %v155
  %v885 = vunpack.c.h.b16 %v155
  %v886 = vunpack.c.l.b16 %v156
  %v887 = vunpack.c.h.b16 %v156
  %v888 = vunpack.c.l.b16 %v157
  %v889 = vunpack.c.h.b16 %v157
  %v890 = vpack.c.b16 %v620, %v602
  %v891 = vpack.c.b16 %v621, %v603
  %v892 = vpack.c.b16 %v622, %v604
  %v893 = vpack.c.b16 %v623, %v605
  %v894 = vpack.c.b16 %v624, %v606
  %v895 = vpack.c.b16 %v625, %v607
  %v896 = vpack.c.b16 %v626, %v608
  %v897 = vpack.c.b16 %v627, %v609
  %v898 = vpack.c.b16 %v628, %v610
  %v899 = vpack.c.b16 %v629, %v611
  %v900 = vpack.c.b16 %v630, %v612
  %v901 = vpack.c.b16 %v631, %v613
  %v902 = vpack.c.b16 %v632, %v614
  %v903 = vpack.c.b16 %v633, %v615
  %v904 = vpack.c.b16 %v634, %v616
  %v905 = vpack.c.b16 %v635, %v617
  %v906 = vpack.c.b16 %v636, %v618
  %v907 = vpack.c.b16 %v637, %v619
  %v908 = vpack.c.b16 %v656, %v638
  %v909 = vpack.c.b16 %v657, %v639
  %v910 = vpack.c.b16 %v658, %v640
  %v911 = vpack.c.b16 %v659, %v641
  %v912 = vpack.c.b16 %v660, %v642
  %v913 = vpack.c.b16 %v661, %v643
  %v914 = vpack.c.b16 %v662, %v644
  %v915 = vpack.c.b16 %v663, %v645
  %v916 = vpack.c.b16 %v664, %v646
  %v917 = vpack.c.b16 %v665, %v647
  %v918 = vpack.c.b16 %v666, %v648
  %v919 = vpack.c.b16 %v667, %v649
  %v920 = vpack.c.b16 %v668, %v650
  %v921 = vpack.c.b16 %v669, %v651
  %v922 = vpack.c.b16 %v670, %v652
  %v923 = vpack.c.b16 %v671, %v653
  %v924 = vpack.c.b16 %v672, %v654
  %v925 = vpack.c.b16 %v673, %v655
  %v926 = vpack.c.b16 %v692, %v674
  %v927 = vpack.c.b16 %v693, %v675
  %v928 = vpack.c.b16 %v694, %v676
  %v929 = vpack.c.b16 %v695, %v677
  %v930 = vpack.c.b16 %v696, %v678
  %v931 = vpack.c.b16 %v697, %v679
  %v932 = vpack.c.b16 %v698, %v680
  %v933 = vpack.c.b16 %v699, %v681
  %v934 = vpack.c.b16 %v700, %v682
  %v935 = vpack.c.b16 %v701, %v683
  %v936 = vpack.c.b16 %v702, %v684
  %v937 = vpack.c.b16 %v703, %v685
  %v938 = vpack.c.b16 %v704, %v686
  %v939 = vpack.c.b16 %v705, %v687
  %v940 = vpack.c.b16 %v706, %v688
  %v941 = vpack.c.b16 %v707, %v689
  %v942 = vpack.c.b16 %v708, %v690
  %v943 = vpack.c.b16 %v709, %v691
  %v944 = vpack.c.b16 %v728, %v710
  %v945 = vpack.c.b16 %v729, %v711
  %v946 = vpack.c.b16 %v730, %v712
  %v947 = vpack.c.b16 %v731, %v713
  %v948 = vpack.c.b16 %v732, %v714
  %v949 = vpack.c.b16 %v733, %v715
  %v950 = vpack.c.b16 %v734, %v716
  %v951 = vpack.c.b16 %v735, %v717
  %v952 = vpack.c.b16 %v736, %v718
  %v953 = vpack.c.b16 %v737, %v719
  %v954 = vpack.c.b16 %v738, %v720
  %v955 = vpack.c.b16 %v739, %v721
  %v956 = vpack.c.b16 %v740, %v722
  %v957 = vpack.c.b16 %v741, %v723
  %v958 = vpack.c.b16 %v742, %v724
  %v959 = vpack.c.b16 %v743, %v725
  %v960 = vpack.c.b16 %v744, %v726
  %v961 = vpack.c.b16 %v745, %v727
  %v962 = vpack.c.b16 %v764, %v746
  %v963 = vpack.c.b16 %v765, %v747
  %v964 = vpack.c.b16 %v766, %v748
  %v965 = vpack.c.b16 %v767, %v749
  %v966 = vpack.c.b16 %v768, %v750
  %v967 = vpack.c.b16 %v769, %v751
  %v968 = vpack.c.b16 %v770, %v752
  %v969 = vpack.c.b16 %v771, %v753
  %v970 = vpack.c.b16 %v772, %v754
  %v971 = vpack.c.b16 %v773, %v755
  %v972 = vpack.c.b16 %v774, %v756
  %v973 = vpack.c.b16 %v775, %v757
  %v974 = vpack.c.b16 %v776, %v758
  %v975 = vpack.c.b16 %v777, %v759
  %v976 = vpack.c.b16 %v778, %v760
  %v977 = vpack.c.b16 %v779, %v761
  %v978 = vpack.c.b16 %v780, %v762
  %v979 = vpack.c.b16 %v781, %v763
  %v980 = vpack.c.b16 %v800, %v782
  %v981 = vpack.c.b16 %v801, %v783
  %v982 = vpack.c.b16 %v802, %v784
  %v983 = vpack.c.b16 %v803, %v785
  %v984 = vpack.c.b16 %v804, %v786
  %v985 = vpack.c.b16 %v805, %v787
  %v986 = vpack.c.b16 %v806, %v788
  %v987 = vpack.c.b16 %v807, %v789
  %v988 = vpack.c.b16 %v808, %v790
  %v989 = vpack.c.b16 %v809, %v791
  %v990 = vpack.c.b16 %v810, %v792
  %v991 = vpack.c.b16 %v811, %v793
  %v992 = vpack.c.b16 %v812, %v794
  %v993 = vpack.c.b16 %v813, %v795
  %v994 = vpack.c.b16 %v814, %v796
  %v995 = vpack.c.b16 %v815, %v797
  %v996 = vpack.c.b16 %v816, %v798
  %v997 = vpack.c.b16 %v817, %v799
  %v998 = vpack.c.b16 %v836, %v818
  %v999 = vpack.c.b16 %v837, %v819
  %v1000 = vpack.c.b16 %v838, %v820
  %v1001 = vpack.c.b16 %v839, %v821
  %v1002 = vpack.c.b16 %v840, %v822
  %v1003 = vpack.c.b16 %v841, %v823
  %v1004 = vpack.c.b16 %v842, %v824
  %v1005 = vpack.c.b16 %v843, %v825
  %v1006 = vpack.c.b16 %v844, %v826
  %v1007 = vpack.c.b16 %v845, %v827
  %v1008 = vpack.c.b16 %v846, %v828
  %v1009 = vpack.c.b16 %v847, %v829
  %v1010 = vpack.c.b16 %v848, %v830
  %v1011 = vpack.c.b16 %v849, %v831
  %v1012 = vpack.c.b16 %v850, %v832
  %v1013 = vpack.c.b16 %v851, %v833
  %v1014 = vpack.c.b16 %v852, %v834
  %v1015 = vpack.c.b16 %v853, %v835
  %v1016 = vpack.c.b16 %v872, %v854
  %v1017 = vpack.c.b16 %v873, %v855
  %v1018 = vpack.c.b16 %v874, %v856
  %v1019 = vpack.c.b16 %v875, %v857
  %v1020 = vpack.c.b16 %v876, %v858
  %v1021 = vpack.c.b16 %v877, %v859
  %v1022 = vpack.c.b16 %v878, %v860
  %v1023 = vpack.c.b16 %v879, %v861
  %v1024 = vpack.c.b16 %v880, %v862
  %v1025 = vpack.c.b16 %v881, %v863
  %v1026 = vpack.c.b16 %v882, %v864
  %v1027 = vpack.c.b16 %v883, %v865
  %v1028 = vpack.c.b16 %v884, %v866
  %v1029 = vpack.c.b16 %v885, %v867
  %v1030 = vpack.c.b16 %v886, %v868
  %v1031 = vpack.c.b16 %v887, %v869
  %v1032 = vpack.c.b16 %v888, %v870
  %v1033 = vpack.c.b16 %v889, %v871
  %v1466 = vunpack.c.l.b16 %v158
  %v1467 = vunpack.c.h.b16 %v158
  %v1468 = vunpack.c.l.b16 %v159
  %v1469 = vunpack.c.h.b16 %v159
  %v1470 = vunpack.c.l.b16 %v160
  %v1471 = vunpack.c.h.b16 %v160
  %v1472 = vunpack.c.l.b16 %v161
  %v1473 = vunpack.c.h.b16 %v161
  %v1474 = vunpack.c.l.b16 %v162
  %v1475 = vunpack.c.h.b16 %v162
  %v1476 = vunpack.c.l.b16 %v163
  %v1477 = vunpack.c.h.b16 %v163
  %v1478 = vunpack.c.l.b16 %v164
  %v1479 = vunpack.c.h.b16 %v164
  %v1480 = vunpack.c.l.b16 %v165
  %v1481 = vunpack.c.h.b16 %v165
  %v1482 = vunpack.c.l.b16 %v166
  %v1483 = vunpack.c.h.b16 %v166
  %v1484 = vunpack.c.l.b16 %v167
  %v1485 = vunpack.c.h.b16 %v167
  %v1486 = vunpack.c.l.b16 %v168
  %v1487 = vunpack.c.h.b16 %v168
  %v1488 = vunpack.c.l.b16 %v169
  %v1489 = vunpack.c.h.b16 %v169
  %v1490 = vunpack.c.l.b16 %v170
  %v1491 = vunpack.c.h.b16 %v170
  %v1492 = vunpack.c.l.b16 %v171
  %v1493 = vunpack.c.h.b16 %v171
  %v1494 = vunpack.c.l.b16 %v172
  %v1495 = vunpack.c.h.b16 %v172
  %v1496 = vunpack.c.l.b16 %v173
  %v1497 = vunpack.c.h.b16 %v173
  %v1498 = vunpack.c.l.b16 %v174
  %v1499 = vunpack.c.h.b16 %v174
  %v1500 = vunpack.c.l.b16 %v175
  %v1501 = vunpack.c.h.b16 %v175
  %v1502 = vunpack.c.l.b16 %v176
  %v1503 = vunpack.c.h.b16 %v176
  %v1504 = vunpack.c.l.b16 %v177
  %v1505 = vunpack.c.h.b16 %v177
  %v1506 = vunpack.c.l.b16 %v178
  %v1507 = vunpack.c.h.b16 %v178
  %v1508 = vunpack.c.l.b16 %v179
  %v1509 = vunpack.c.h.b16 %v179
  %v1510 = vunpack.c.l.b16 %v180
  %v1511 = vunpack.c.h.b16 %v180
  %v1512 = vunpack.c.l.b16 %v181
  %v1513 = vunpack.c.h.b16 %v181
  %v1514 = vunpack.c.l.b16 %v182
  %v1515 = vunpack.c.h.b16 %v182
  %v1516 = vunpack.c.l.b16 %v183
  %v1517 = vunpack.c.h.b16 %v183
  %v1518 = vunpack.c.l.b16 %v184
  %v1519 = vunpack.c.h.b16 %v184
  %v1520 = vunpack.c.l.b16 %v185
  %v1521 = vunpack.c.h.b16 %v185
  %v1522 = vunpack.c.l.b16 %v186
  %v1523 = vunpack.c.h.b16 %v186
  %v1524 = vunpack.c.l.b16 %v187
  %v1525 = vunpack.c.h.b16 %v187
  %v1526 = vunpack.c.l.b16 %v188
  %v1527 = vunpack.c.h.b16 %v188
  %v1528 = vunpack.c.l.b16 %v189
  %v1529 = vunpack.c.h.b16 %v189
  %v1530 = vunpack.c.l.b16 %v190
  %v1531 = vunpack.c.h.b16 %v190
  %v1532 = vunpack.c.l.b16 %v191
  %v1533 = vunpack.c.h.b16 %v191
  %v1534 = vunpack.c.l.b16 %v192
  %v1535 = vunpack.c.h.b16 %v192
  %v1536 = vunpack.c.l.b16 %v193
  %v1537 = vunpack.c.h.b16 %v193
  %v1538 = vunpack.c.l.b16 %v194
  %v1539 = vunpack.c.h.b16 %v194
  %v1540 = vunpack.c.l.b16 %v195
  %v1541 = vunpack.c.h.b16 %v195
  %v1542 = vunpack.c.l.b16 %v196
  %v1543 = vunpack.c.h.b16 %v196
  %v1544 = vunpack.c.l.b16 %v197
  %v1545 = vunpack.c.h.b16 %v197
  %v1546 = vunpack.c.l.b16 %v198
  %v1547 = vunpack.c.h.b16 %v198
  %v1548 = vunpack.c.l.b16 %v199
  %v1549 = vunpack.c.h.b16 %v199
  %v1550 = vunpack.c.l.b16 %v200
  %v1551 = vunpack.c.h.b16 %v200
  %v1552 = vunpack.c.l.b16 %v201
  %v1553 = vunpack.c.h.b16 %v201
  %v1554 = vunpack.c.l.b16 %v202
  %v1555 = vunpack.c.h.b16 %v202
  %v1556 = vunpack.c.l.b16 %v203
  %v1557 = vunpack.c.h.b16 %v203
  %v1558 = vunpack.c.l.b16 %v204
  %v1559 = vunpack.c.h.b16 %v204
  %v1560 = vunpack.c.l.b16 %v205
  %v1561 = vunpack.c.h.b16 %v205
  %v1562 = vunpack.c.l.b16 %v206
  %v1563 = vunpack.c.h.b16 %v206
  %v1564 = vunpack.c.l.b16 %v207
  %v1565 = vunpack.c.h.b16 %v207
  %v1566 = vunpack.c.l.b16 %v208
  %v1567 = vunpack.c.h.b16 %v208
  %v1568 = vunpack.c.l.b16 %v209
  %v1569 = vunpack.c.h.b16 %v209
  %v1570 = vunpack.c.l.b16 %v210
  %v1571 = vunpack.c.h.b16 %v210
  %v1572 = vunpack.c.l.b16 %v211
  %v1573 = vunpack.c.h.b16 %v211
  %v1574 = vunpack.c.l.b16 %v212
  %v1575 = vunpack.c.h.b16 %v212
  %v1576 = vunpack.c.l.b16 %v213
  %v1577 = vunpack.c.h.b16 %v213
  %v1578 = vunpack.c.l.b16 %v214
  %v1579 = vunpack.c.h.b16 %v214
  %v1580 = vunpack.c.l.b16 %v215
  %v1581 = vunpack.c.h.b16 %v215
  %v1582 = vunpack.c.l.b16 %v216
  %v1583 = vunpack.c.h.b16 %v216
  %v1584 = vunpack.c.l.b16 %v217
  %v1585 = vunpack.c.h.b16 %v217
  %v1586 = vunpack.c.l.b16 %v218
  %v1587 = vunpack.c.h.b16 %v218
  %v1588 = vunpack.c.l.b16 %v219
  %v1589 = vunpack.c.h.b16 %v219
  %v1590 = vunpack.c.l.b16 %v220
  %v1591 = vunpack.c.h.b16 %v220
  %v1592 = vunpack.c.l.b16 %v221
  %v1593 = vunpack.c.h.b16 %v221
  %v1594 = vunpack.c.l.b16 %v222
  %v1595 = vunpack.c.h.b16 %v222
  %v1596 = vunpack.c.l.b16 %v223
  %v1597 = vunpack.c.h.b16 %v223
  %v1598 = vunpack.c.l.b16 %v224
  %v1599 = vunpack.c.h.b16 %v224
  %v1600 = vunpack.c.l.b16 %v225
  %v1601 = vunpack.c.h.b16 %v225
  %v1602 = vunpack.c.l.b16 %v226
  %v1603 = vunpack.c.h.b16 %v226
  %v1604 = vunpack.c.l.b16 %v227
  %v1605 = vunpack.c.h.b16 %v227
  %v1606 = vunpack.c.l.b16 %v228
  %v1607 = vunpack.c.h.b16 %v228
  %v1608 = vunpack.c.l.b16 %v229
  %v1609 = vunpack.c.h.b16 %v229
  %v1610 = vunpack.c.l.b16 %v230
  %v1611 = vunpack.c.h.b16 %v230
  %v1612 = vunpack.c.l.b16 %v231
  %v1613 = vunpack.c.h.b16 %v231
  %v1614 = vunpack.c.l.b16 %v232
  %v1615 = vunpack.c.h.b16 %v232
  %v1616 = vunpack.c.l.b16 %v233
  %v1617 = vunpack.c.h.b16 %v233
  %v1618 = vunpack.c.l.b16 %v234
  %v1619 = vunpack.c.h.b16 %v234
  %v1620 = vunpack.c.l.b16 %v235
  %v1621 = vunpack.c.h.b16 %v235
  %v1622 = vunpack.c.l.b16 %v236
  %v1623 = vunpack.c.h.b16 %v236
  %v1624 = vunpack.c.l.b16 %v237
  %v1625 = vunpack.c.h.b16 %v237
  %v1626 = vunpack.c.l.b16 %v238
  %v1627 = vunpack.c.h.b16 %v238
  %v1628 = vunpack.c.l.b16 %v239
  %v1629 = vunpack.c.h.b16 %v239
  %v1630 = vunpack.c.l.b16 %v240
  %v1631 = vunpack.c.h.b16 %v240
  %v1632 = vunpack.c.l.b16 %v241
  %v1633 = vunpack.c.h.b16 %v241
  %v1634 = vunpack.c.l.b16 %v242
  %v1635 = vunpack.c.h.b16 %v242
  %v1636 = vunpack.c.l.b16 %v243
  %v1637 = vunpack.c.h.b16 %v243
  %v1638 = vunpack.c.l.b16 %v244
  %v1639 = vunpack.c.h.b16 %v244
  %v1640 = vunpack.c.l.b16 %v245
  %v1641 = vunpack.c.h.b16 %v245
  %v1642 = vunpack.c.l.b16 %v246
  %v1643 = vunpack.c.h.b16 %v246
  %v1644 = vunpack.c.l.b16 %v247
  %v1645 = vunpack.c.h.b16 %v247
  %v1646 = vunpack.c.l.b16 %v248
  %v1647 = vunpack.c.h.b16 %v248
  %v1648 = vunpack.c.l.b16 %v249
  %v1649 = vunpack.c.h.b16 %v249
  %v1650 = vunpack.c.l.b16 %v250
  %v1651 = vunpack.c.h.b16 %v250
  %v1652 = vunpack.c.l.b16 %v251
  %v1653 = vunpack.c.h.b16 %v251
  %v1654 = vunpack.c.l.b16 %v252
  %v1655 = vunpack.c.h.b16 %v252
  %v1656 = vunpack.c.l.b16 %v253
  %v1657 = vunpack.c.h.b16 %v253
  %v1658 = vunpack.c.l.b16 %v254
  %v1659 = vunpack.c.h.b16 %v254
  %v1660 = vunpack.c.l.b16 %v255
  %v1661 = vunpack.c.h.b16 %v255
  %v1662 = vunpack.c.l.b16 %v256
  %v1663 = vunpack.c.h.b16 %v256
  %v1664 = vunpack.c.l.b16 %v257
  %v1665 = vunpack.c.h.b16 %v257
  %v1666 = vunpack.c.l.b16 %v258
  %v1667 = vunpack.c.h.b16 %v258
  %v1668 = vunpack.c.l.b16 %v259
  %v1669 = vunpack.c.h.b16 %v259
  %v1670 = vunpack.c.l.b16 %v260
  %v1671 = vunpack.c.h.b16 %v260
  %v1672 = vunpack.c.l.b16 %v261
  %v1673 = vunpack.c.h.b16 %v261
  %v1674 = vunpack.c.l.b16 %v262
  %v1675 = vunpack.c.h.b16 %v262
  %v1676 = vunpack.c.l.b16 %v263
  %v1677 = vunpack.c.h.b16 %v263
  %v1678 = vunpack.c.l.b16 %v264
  %v1679 = vunpack.c.h.b16 %v264
  %v1680 = vunpack.c.l.b16 %v265
  %v1681 = vunpack.c.h.b16 %v265
  %v1682 = vunpack.c.l.b16 %v266
  %v1683 = vunpack.c.h.b16 %v266
  %v1684 = vunpack.c.l.b16 %v267
  %v1685 = vunpack.c.h.b16 %v267
  %v1686 = vunpack.c.l.b16 %v268
  %v1687 = vunpack.c.h.b16 %v268
  %v1688 = vunpack.c.l.b16 %v269
  %v1689 = vunpack.c.h.b16 %v269
  %v1690 = vunpack.c.l.b16 %v270
  %v1691 = vunpack.c.h.b16 %v270
  %v1692 = vunpack.c.l.b16 %v271
  %v1693 = vunpack.c.h.b16 %v271
  %v1694 = vunpack.c.l.b16 %v272
  %v1695 = vunpack.c.h.b16 %v272
  %v1696 = vunpack.c.l.b16 %v273
  %v1697 = vunpack.c.h.b16 %v273
  %v1698 = vunpack.c.l.b16 %v274
  %v1699 = vunpack.c.h.b16 %v274
  %v1700 = vunpack.c.l.b16 %v275
  %v1701 = vunpack.c.h.b16 %v275
  %v1702 = vunpack.c.l.b16 %v276
  %v1703 = vunpack.c.h.b16 %v276
  %v1704 = vunpack.c.l.b16 %v277
  %v1705 = vunpack.c.h.b16 %v277
  %v1706 = vunpack.c.l.b16 %v278
  %v1707 = vunpack.c.h.b16 %v278
  %v1708 = vunpack.c.l.b16 %v279
  %v1709 = vunpack.c.h.b16 %v279
  %v1710 = vunpack.c.l.b16 %v280
  %v1711 = vunpack.c.h.b16 %v280
  %v1712 = vunpack.c.l.b16 %v281
  %v1713 = vunpack.c.h.b16 %v281
  %v1714 = vunpack.c.l.b16 %v282
  %v1715 = vunpack.c.h.b16 %v282
  %v1716 = vunpack.c.l.b16 %v283
  %v1717 = vunpack.c.h.b16 %v283
  %v1718 = vunpack.c.l.b16 %v284
  %v1719 = vunpack.c.h.b16 %v284
  %v1720 = vunpack.c.l.b16 %v285
  %v1721 = vunpack.c.h.b16 %v285
  %v1722 = vunpack.c.l.b16 %v286
  %v1723 = vunpack.c.h.b16 %v286
  %v1724 = vunpack.c.l.b16 %v287
  %v1725 = vunpack.c.h.b16 %v287
  %v1726 = vunpack.c.l.b16 %v288
  %v1727 = vunpack.c.h.b16 %v288
  %v1728 = vunpack.c.l.b16 %v289
  %v1729 = vunpack.c.h.b16 %v289
  %v1730 = vunpack.c.l.b16 %v290
  %v1731 = vunpack.c.h.b16 %v290
  %v1732 = vunpack.c.l.b16 %v291
  %v1733 = vunpack.c.h.b16 %v291
  %v1734 = vunpack.c.l.b16 %v292
  %v1735 = vunpack.c.h.b16 %v292
  %v1736 = vunpack.c.l.b16 %v293
  %v1737 = vunpack.c.h.b16 %v293
  %v1738 = vunpack.c.l.b16 %v294
  %v1739 = vunpack.c.h.b16 %v294
  %v1740 = vunpack.c.l.b16 %v295
  %v1741 = vunpack.c.h.b16 %v295
  %v1742 = vunpack.c.l.b16 %v296
  %v1743 = vunpack.c.h.b16 %v296
  %v1744 = vunpack.c.l.b16 %v297
  %v1745 = vunpack.c.h.b16 %v297
  %v1746 = vunpack.c.l.b16 %v298
  %v1747 = vunpack.c.h.b16 %v298
  %v1748 = vunpack.c.l.b16 %v299
  %v1749 = vunpack.c.h.b16 %v299
  %v1750 = vunpack.c.l.b16 %v300
  %v1751 = vunpack.c.h.b16 %v300
  %v1752 = vunpack.c.l.b16 %v301
  %v1753 = vunpack.c.h.b16 %v301
  %v1754 = vunpack.c.l.b16 %v302
  %v1755 = vunpack.c.h.b16 %v302
  %v1756 = vunpack.c.l.b16 %v303
  %v1757 = vunpack.c.h.b16 %v303
  %v1758 = vunpack.c.l.b16 %v304
  %v1759 = vunpack.c.h.b16 %v304
  %v1760 = vunpack.c.l.b16 %v305
  %v1761 = vunpack.c.h.b16 %v305
  %v1762 = vunpack.c.l.b16 %v306
  %v1763 = vunpack.c.h.b16 %v306
  %v1764 = vunpack.c.l.b16 %v307
  %v1765 = vunpack.c.h.b16 %v307
  %v1766 = vunpack.c.l.b16 %v308
  %v1767 = vunpack.c.h.b16 %v308
  %v1768 = vunpack.c.l.b16 %v309
  %v1769 = vunpack.c.h.b16 %v309
  %v1770 = vunpack.c.l.b16 %v310
  %v1771 = vunpack.c.h.b16 %v310
  %v1772 = vunpack.c.l.b16 %v311
  %v1773 = vunpack.c.h.b16 %v311
  %v1774 = vunpack.c.l.b16 %v312
  %v1775 = vunpack.c.h.b16 %v312
  %v1776 = vunpack.c.l.b16 %v313
  %v1777 = vunpack.c.h.b16 %v313
  %v1778 = vunpack.c.l.b16 %v314
  %v1779 = vunpack.c.h.b16 %v314
  %v1780 = vunpack.c.l.b16 %v315
  %v1781 = vunpack.c.h.b16 %v315
  %v1782 = vunpack.c.l.b16 %v316
  %v1783 = vunpack.c.h.b16 %v316
  %v1784 = vunpack.c.l.b16 %v317
  %v1785 = vunpack.c.h.b16 %v317
  %v1786 = vunpack.c.l.b16 %v318
  %v1787 = vunpack.c.h.b16 %v318
  %v1788 = vunpack.c.l.b16 %v319
  %v1789 = vunpack.c.h.b16 %v319
  %v1790 = vunpack.c.l.b16 %v320
  %v1791 = vunpack.c.h.b16 %v320
  %v1792 = vunpack.c.l.b16 %v321
  %v1793 = vunpack.c.h.b16 %v321
  %v1794 = vunpack.c.l.b16 %v322
  %v1795 = vunpack.c.h.b16 %v322
  %v1796 = vunpack.c.l.b16 %v323
  %v1797 = vunpack.c.h.b16 %v323
  %v1798 = vunpack.c.l.b16 %v324
  %v1799 = vunpack.c.h.b16 %v324
  %v1800 = vunpack.c.l.b16 %v325
  %v1801 = vunpack.c.h.b16 %v325
  %v1802 = vunpack.c.l.b16 %v326
  %v1803 = vunpack.c.h.b16 %v326
  %v1804 = vunpack.c.l.b16 %v327
  %v1805 = vunpack.c.h.b16 %v327
  %v1806 = vunpack.c.l.b16 %v328
  %v1807 = vunpack.c.h.b16 %v328
  %v1808 = vunpack.c.l.b16 %v329
  %v1809 = vunpack.c.h.b16 %v329
  %v1810 = vunpack.c.l.b16 %v330
  %v1811 = vunpack.c.h.b16 %v330
  %v1812 = vunpack.c.l.b16 %v331
  %v1813 = vunpack.c.h.b16 %v331
  %v1814 = vunpack.c.l.b16 %v332
  %v1815 = vunpack.c.h.b16 %v332
  %v1816 = vunpack.c.l.b16 %v333
  %v1817 = vunpack.c.h.b16 %v333
  %v1818 = vunpack.c.l.b16 %v334
  %v1819 = vunpack.c.h.b16 %v334
  %v1820 = vunpack.c.l.b16 %v335
  %v1821 = vunpack.c.h.b16 %v335
  %v1822 = vunpack.c.l.b16 %v336
  %v1823 = vunpack.c.h.b16 %v336
  %v1824 = vunpack.c.l.b16 %v337
  %v1825 = vunpack.c.h.b16 %v337
  %v1826 = vunpack.c.l.b16 %v338
  %v1827 = vunpack.c.h.b16 %v338
  %v1828 = vunpack.c.l.b16 %v339
  %v1829 = vunpack.c.h.b16 %v339
  %v1830 = vunpack.c.l.b16 %v340
  %v1831 = vunpack.c.h.b16 %v340
  %v1832 = vunpack.c.l.b16 %v341
  %v1833 = vunpack.c.h.b16 %v341
  %v1834 = vunpack.c.l.b16 %v342
  %v1835 = vunpack.c.h.b16 %v342
  %v1836 = vunpack.c.l.b16 %v343
  %v1837 = vunpack.c.h.b16 %v343
  %v1838 = vunpack.c.l.b16 %v344
  %v1839 = vunpack.c.h.b16 %v344
  %v1840 = vunpack.c.l.b16 %v345
  %v1841 = vunpack.c.h.b16 %v345
  %v1842 = vunpack.c.l.b16 %v346
  %v1843 = vunpack.c.h.b16 %v346
  %v1844 = vunpack.c.l.b16 %v347
  %v1845 = vunpack.c.h.b16 %v347
  %v1846 = vunpack.c.l.b16 %v348
  %v1847 = vunpack.c.h.b16 %v348
  %v1848 = vunpack.c.l.b16 %v349
  %v1849 = vunpack.c.h.b16 %v349
  %v1850 = vunpack.c.l.b16 %v350
  %v1851 = vunpack.c.h.b16 %v350
  %v1852 = vunpack.c.l.b16 %v351
  %v1853 = vunpack.c.h.b16 %v351
  %v1854 = vunpack.c.l.b16 %v352
  %v1855 = vunpack.c.h.b16 %v352
  %v1856 = vunpack.c.l.b16 %v353
  %v1857 = vunpack.c.h.b16 %v353
  %v1858 = vunpack.c.l.b16 %v354
  %v1859 = vunpack.c.h.b16 %v354
  %v1860 = vunpack.c.l.b16 %v355
  %v1861 = vunpack.c.h.b16 %v355
  %v1862 = vunpack.c.l.b16 %v356
  %v1863 = vunpack.c.h.b16 %v356
  %v1864 = vunpack.c.l.b16 %v357
  %v1865 = vunpack.c.h.b16 %v357
  %v1866 = vunpack.c.l.b16 %v358
  %v1867 = vunpack.c.h.b16 %v358
  %v1868 = vunpack.c.l.b16 %v359
  %v1869 = vunpack.c.h.b16 %v359
  %v1870 = vunpack.c.l.b16 %v360
  %v1871 = vunpack.c.h.b16 %v360
  %v1872 = vunpack.c.l.b16 %v361
  %v1873 = vunpack.c.h.b16 %v361
  %v1874 = vunpack.c.l.b16 %v362
  %v1875 = vunpack.c.h.b16 %v362
  %v1876 = vunpack.c.l.b16 %v363
  %v1877 = vunpack.c.h.b16 %v363
  %v1878 = vunpack.c.l.b16 %v364
  %v1879 = vunpack.c.h.b16 %v364
  %v1880 = vunpack.c.l.b16 %v365
  %v1881 = vunpack.c.h.b16 %v365
  %v1882 = vunpack.c.l.b16 %v366
  %v1883 = vunpack.c.h.b16 %v366
  %v1884 = vunpack.c.l.b16 %v367
  %v1885 = vunpack.c.h.b16 %v367
  %v1886 = vunpack.c.l.b16 %v368
  %v1887 = vunpack.c.h.b16 %v368
  %v1888 = vunpack.c.l.b16 %v369
  %v1889 = vunpack.c.h.b16 %v369
  %v1890 = vunpack.c.l.b16 %v370
  %v1891 = vunpack.c.h.b16 %v370
  %v1892 = vunpack.c.l.b16 %v371
  %v1893 = vunpack.c.h.b16 %v371
  %v1894 = vunpack.c.l.b16 %v372
  %v1895 = vunpack.c.h.b16 %v372
  %v1896 = vunpack.c.l.b16 %v373
  %v1897 = vunpack.c.h.b16 %v373
  %v1898 = vunpack.c.l.b16 %v374
  %v1899 = vunpack.c.h.b16 %v374
  %v1900 = vunpack.c.l.b16 %v375
  %v1901 = vunpack.c.h.b16 %v375
  %v1902 = vunpack.c.l.b16 %v376
  %v1903 = vunpack.c.h.b16 %v376
  %v1904 = vunpack.c.l.b16 %v377
  %v1905 = vunpack.c.h.b16 %v377
  %v1906 = vunpack.c.l.b16 %v378
  %v1907 = vunpack.c.h.b16 %v378
  %v1908 = vunpack.c.l.b16 %v379
  %v1909 = vunpack.c.h.b16 %v379
  %v1910 = vunpack.c.l.b16 %v380
  %v1911 = vunpack.c.h.b16 %v380
  %v1912 = vunpack.c.l.b16 %v381
  %v1913 = vunpack.c.h.b16 %v381
  %v1914 = vunpack.c.l.b16 %v382
  %v1915 = vunpack.c.h.b16 %v382
  %v1916 = vunpack.c.l.b16 %v383
  %v1917 = vunpack.c.h.b16 %v383
  %v1918 = vunpack.c.l.b16 %v384
  %v1919 = vunpack.c.h.b16 %v384
  %v1920 = vunpack.c.l.b16 %v385
  %v1921 = vunpack.c.h.b16 %v385
  %v1922 = vunpack.c.l.b16 %v386
  %v1923 = vunpack.c.h.b16 %v386
  %v1924 = vunpack.c.l.b16 %v387
  %v1925 = vunpack.c.h.b16 %v387
  %v1926 = vunpack.c.l.b16 %v388
  %v1927 = vunpack.c.h.b16 %v388
  %v1928 = vunpack.c.l.b16 %v389
  %v1929 = vunpack.c.h.b16 %v389
  %v1930 = vunpack.c.l.b16 %v390
  %v1931 = vunpack.c.h.b16 %v390
  %v1932 = vunpack.c.l.b16 %v391
  %v1933 = vunpack.c.h.b16 %v391
  %v1934 = vunpack.c.l.b16 %v392
  %v1935 = vunpack.c.h.b16 %v392
  %v1936 = vunpack.c.l.b16 %v393
  %v1937 = vunpack.c.h.b16 %v393
  %v1938 = vunpack.c.l.b16 %v394
  %v1939 = vunpack.c.h.b16 %v394
  %v1940 = vunpack.c.l.b16 %v395
  %v1941 = vunpack.c.h.b16 %v395
  %v1942 = vunpack.c.l.b16 %v396
  %v1943 = vunpack.c.h.b16 %v396
  %v1944 = vunpack.c.l.b16 %v397
  %v1945 = vunpack.c.h.b16 %v397
  %v1946 = vunpack.c.l.b16 %v398
  %v1947 = vunpack.c.h.b16 %v398
  %v1948 = vunpack.c.l.b16 %v399
  %v1949 = vunpack.c.h.b16 %v399
  %v1950 = vunpack.c.l.b16 %v400
  %v1951 = vunpack.c.h.b16 %v400
  %v1952 = vunpack.c.l.b16 %v401
  %v1953 = vunpack.c.h.b16 %v401
  %v1954 = vunpack.c.l.b16 %v402
  %v1955 = vunpack.c.h.b16 %v402
  %v1956 = vunpack.c.l.b16 %v403
  %v1957 = vunpack.c.h.b16 %v403
  %v1958 = vunpack.c.l.b16 %v404
  %v1959 = vunpack.c.h.b16 %v404
  %v1960 = vunpack.c.l.b16 %v405
  %v1961 = vunpack.c.h.b16 %v405
  %v1962 = vunpack.c.l.b16 %v406
  %v1963 = vunpack.c.h.b16 %v406
  %v1964 = vunpack.c.l.b16 %v407
  %v1965 = vunpack.c.h.b16 %v407
  %v1966 = vunpack.c.l.b16 %v408
  %v1967 = vunpack.c.h.b16 %v408
  %v1968 = vunpack.c.l.b16 %v409
  %v1969 = vunpack.c.h.b16 %v409
  %v1970 = vunpack.c.l.b16 %v410
  %v1971 = vunpack.c.h.b16 %v410
  %v1972 = vunpack.c.l.b16 %v411
  %v1973 = vunpack.c.h.b16 %v411
  %v1974 = vunpack.c.l.b16 %v412
  %v1975 = vunpack.c.h.b16 %v412
  %v1976 = vunpack.c.l.b16 %v413
  %v1977 = vunpack.c.h.b16 %v413
  %v1978 = vunpack.c.l.b16 %v414
  %v1979 = vunpack.c.h.b16 %v414
  %v1980 = vunpack.c.l.b16 %v415
  %v1981 = vunpack.c.h.b16 %v415
  %v1982 = vunpack.c.l.b16 %v416
  %v1983 = vunpack.c.h.b16 %v416
  %v1984 = vunpack.c.l.b16 %v417
  %v1985 = vunpack.c.h.b16 %v417
  %v1986 = vunpack.c.l.b16 %v418
  %v1987 = vunpack.c.h.b16 %v418
  %v1988 = vunpack.c.l.b16 %v419
  %v1989 = vunpack.c.h.b16 %v419
  %v1990 = vunpack.c.l.b16 %v420
  %v1991 = vunpack.c.h.b16 %v420
  %v1992 = vunpack.c.l.b16 %v421
  %v1993 = vunpack.c.h.b16 %v421
  %v1994 = vunpack.c.l.b16 %v422
  %v1995 = vunpack.c.h.b16 %v422
  %v1996 = vunpack.c.l.b16 %v423
  %v1997 = vunpack.c.h.b16 %v423
  %v1998 = vunpack.c.l.b16 %v424
  %v1999 = vunpack.c.h.b16 %v424
  %v2000 = vunpack.c.l.b16 %v425
  %v2001 = vunpack.c.h.b16 %v425
  %v2002 = vunpack.c.l.b16 %v426
  %v2003 = vunpack.c.h.b16 %v426
  %v2004 = vunpack.c.l.b16 %v427
  %v2005 = vunpack.c.h.b16 %v427
  %v2006 = vunpack.c.l.b16 %v428
  %v2007 = vunpack.c.h.b16 %v428
  %v2008 = vunpack.c.l.b16 %v429
  %v2009 = vunpack.c.h.b16 %v429
  %v2010 = vunpack.c.l.b16 %v430
  %v2011 = vunpack.c.h.b16 %v430
  %v2012 = vunpack.c.l.b16 %v431
  %v2013 = vunpack.c.h.b16 %v431
  %v2014 = vunpack.c.l.b16 %v432
  %v2015 = vunpack.c.h.b16 %v432
  %v2016 = vunpack.c.l.b16 %v433
  %v2017 = vunpack.c.h.b16 %v433
  %v2018 = vunpack.c.l.b16 %v434
  %v2019 = vunpack.c.h.b16 %v434
  %v2020 = vunpack.c.l.b16 %v435
  %v2021 = vunpack.c.h.b16 %v435
  %v2022 = vunpack.c.l.b16 %v436
  %v2023 = vunpack.c.h.b16 %v436
  %v2024 = vunpack.c.l.b16 %v437
  %v2025 = vunpack.c.h.b16 %v437
  %v2026 = vunpack.c.l.b16 %v438
  %v2027 = vunpack.c.h.b16 %v438
  %v2028 = vunpack.c.l.b16 %v439
  %v2029 = vunpack.c.h.b16 %v439
  %v2030 = vunpack.c.l.b16 %v440
  %v2031 = vunpack.c.h.b16 %v440
  %v2032 = vunpack.c.l.b16 %v441
  %v2033 = vunpack.c.h.b16 %v441
  %v2034 = vunpack.c.l.b16 %v442
  %v2035 = vunpack.c.h.b16 %v442
  %v2036 = vunpack.c.l.b16 %v443
  %v2037 = vunpack.c.h.b16 %v443
  %v2038 = vunpack.c.l.b16 %v444
  %v2039 = vunpack.c.h.b16 %v444
  %v2040 = vunpack.c.l.b16 %v445
  %v2041 = vunpack.c.h.b16 %v445
  %v2042 = vpack.c.b16 %v1468, %v1466
  %v2043 = vpack.c.b16 %v1469, %v1467
  %v2044 = vpack.c.b16 %v1472, %v1470
  %v2045 = vpack.c.b16 %v1473, %v1471
  %v2046 = vpack.c.b16 %v1476, %v1474
  %v2047 = vpack.c.b16 %v1477, %v1475
  %v2048 = vpack.c.b16 %v1480, %v1478
  %v2049 = vpack.c.b16 %v1481, %v1479
  %v2050 = vpack.c.b16 %v1484, %v1482
  %v2051 = vpack.c.b16 %v1485, %v1483
  %v2052 = vpack.c.b16 %v1488, %v1486
  %v2053 = vpack.c.b16 %v1489, %v1487
  %v2054 = vpack.c.b16 %v1492, %v1490
  %v2055 = vpack.c.b16 %v1493, %v1491
  %v2056 = vpack.c.b16 %v1496, %v1494
  %v2057 = vpack.c.b16 %v1497, %v1495
  %v2058 = vpack.c.b16 %v1500, %v1498
  %v2059 = vpack.c.b16 %v1501, %v1499
  %v2060 = vpack.c.b16 %v1504, %v1502
  %v2061 = vpack.c.b16 %v1505, %v1503
  %v2062 = vpack.c.b16 %v1508, %v1506
  %v2063 = vpack.c.b16 %v1509, %v1507
  %v2064 = vpack.c.b16 %v1512, %v1510
  %v2065 = vpack.c.b16 %v1513, %v1511
  %v2066 = vpack.c.b16 %v1516, %v1514
  %v2067 = vpack.c.b16 %v1517, %v1515
  %v2068 = vpack.c.b16 %v1520, %v1518
  %v2069 = vpack.c.b16 %v1521, %v1519
  %v2070 = vpack.c.b16 %v1524, %v1522
  %v2071 = vpack.c.b16 %v1525, %v1523
  %v2072 = vpack.c.b16 %v1528, %v1526
  %v2073 = vpack.c.b16 %v1529, %v1527
  %v2074 = vpack.c.b16 %v1532, %v1530
  %v2075 = vpack.c.b16 %v1533, %v1531
  %v2076 = vpack.c.b16 %v1536, %v1534
  %v2077 = vpack.c.b16 %v1537, %v1535
  %v2078 = vpack.c.b16 %v1540, %v1538
  %v2079 = vpack.c.b16 %v1541, %v1539
  %v2080 = vpack.c.b16 %v1544, %v1542
  %v2081 = vpack.c.b16 %v1545, %v1543
  %v2082 = vpack.c.b16 %v1548, %v1546
  %v2083 = vpack.c.b16 %v1549, %v1547
  %v2084 = vpack.c.b16 %v1552, %v1550
  %v2085 = vpack.c.b16 %v1553, %v1551
  %v2086 = vpack.c.b16 %v1556, %v1554
  %v2087 = vpack.c.b16 %v1557, %v1555
  %v2088 = vpack.c.b16 %v1560, %v1558
  %v2089 = vpack.c.b16 %v1561, %v1559
  %v2090 = vpack.c.b16 %v1564, %v1562
  %v2091 = vpack.c.b16 %v1565, %v1563
  %v2092 = vpack.c.b16 %v1568, %v1566
  %v2093 = vpack.c.b16 %v1569, %v1567
  %v2094 = vpack.c.b16 %v1572, %v1570
  %v2095 = vpack.c.b16 %v1573, %v1571
  %v2096 = vpack.c.b16 %v1576, %v1574
  %v2097 = vpack.c.b16 %v1577, %v1575
  %v2098 = vpack.c.b16 %v1580, %v1578
  %v2099 = vpack.c.b16 %v1581, %v1579
  %v2100 = vpack.c.b16 %v1584, %v1582
  %v2101 = vpack.c.b16 %v1585, %v1583
  %v2102 = vpack.c.b16 %v1588, %v1586
  %v2103 = vpack.c.b16 %v1589, %v1587
  %v2104 = vpack.c.b16 %v1592, %v1590
  %v2105 = vpack.c.b16 %v1593, %v1591
  %v2106 = vpack.c.b16 %v1596, %v1594
  %v2107 = vpack.c.b16 %v1597, %v1595
  %v2108 = vpack.c.b16 %v1600, %v1598
  %v2109 = vpack.c.b16 %v1601, %v1599
  %v2110 = vpack.c.b16 %v1604, %v1602
  %v2111 = vpack.c.b16 %v1605, %v1603
  %v2112 = vpack.c.b16 %v1608, %v1606
  %v2113 = vpack.c.b16 %v1609, %v1607
  %v2114 = vpack.c.b16 %v1612, %v1610
  %v2115 = vpack.c.b16 %v1613, %v1611
  %v2116 = vpack.c.b16 %v1616, %v1614
  %v2117 = vpack.c.b16 %v1617, %v1615
  %v2118 = vpack.c.b16 %v1620, %v1618
  %v2119 = vpack.c.b16 %v1621, %v1619
  %v2120 = vpack.c.b16 %v1624, %v1622
  %v2121 = vpack.c.b16 %v1625, %v1623
  %v2122 = vpack.c.b16 %v1628, %v1626
  %v2123 = vpack.c.b16 %v1629, %v1627
  %v2124 = vpack.c.b16 %v1632, %v1630
  %v2125 = vpack.c.b16 %v1633, %v1631
  %v2126 = vpack.c.b16 %v1636, %v1634
  %v2127 = vpack.c.b16 %v1637, %v1635
  %v2128 = vpack.c.b16 %v1640, %v1638
  %v2129 = vpack.c.b16 %v1641, %v1639
  %v2130 = vpack.c.b16 %v1644, %v1642
  %v2131 = vpack.c.b16 %v1645, %v1643
  %v2132 = vpack.c.b16 %v1648, %v1646
  %v2133 = vpack.c.b16 %v1649, %v1647
  %v2134 = vpack.c.b16 %v1652, %v1650
  %v2135 = vpack.c.b16 %v1653, %v1651
  %v2136 = vpack.c.b16 %v1656, %v1654
  %v2137 = vpack.c.b16 %v1657, %v1655
  %v2138 = vpack.c.b16 %v1660, %v1658
  %v2139 = vpack.c.b16 %v1661, %v1659
  %v2140 = vpack.c.b16 %v1664, %v1662
  %v2141 = vpack.c.b16 %v1665, %v1663
  %v2142 = vpack.c.b16 %v1668, %v1666
  %v2143 = vpack.c.b16 %v1669, %v1667
  %v2144 = vpack.c.b16 %v1672, %v1670
  %v2145 = vpack.c.b16 %v1673, %v1671
  %v2146 = vpack.c.b16 %v1676, %v1674
  %v2147 = vpack.c.b16 %v1677, %v1675
  %v2148 = vpack.c.b16 %v1680, %v1678
  %v2149 = vpack.c.b16 %v1681, %v1679
  %v2150 = vpack.c.b16 %v1684, %v1682
  %v2151 = vpack.c.b16 %v1685, %v1683
  %v2152 = vpack.c.b16 %v1688, %v1686
  %v2153 = vpack.c.b16 %v1689, %v1687
  %v2154 = vpack.c.b16 %v1692, %v1690
  %v2155 = vpack.c.b16 %v1693, %v1691
  %v2156 = vpack.c.b16 %v1696, %v1694
  %v2157 = vpack.c.b16 %v1697, %v1695
  %v2158 = vpack.c.b16 %v1700, %v1698
  %v2159 = vpack.c.b16 %v1701, %v1699
  %v2160 = vpack.c.b16 %v1704, %v1702
  %v2161 = vpack.c.b16 %v1705, %v1703
  %v2162 = vpack.c.b16 %v1708, %v1706
  %v2163 = vpack.c.b16 %v1709, %v1707
  %v2164 = vpack.c.b16 %v1712, %v1710
  %v2165 = vpack.c.b16 %v1713, %v1711
  %v2166 = vpack.c.b16 %v1716, %v1714
  %v2167 = vpack.c.b16 %v1717, %v1715
  %v2168 = vpack.c.b16 %v1720, %v1718
  %v2169 = vpack.c.b16 %v1721, %v1719
  %v2170 = vpack.c.b16 %v1724, %v1722
  %v2171 = vpack.c.b16 %v1725, %v1723
  %v2172 = vpack.c.b16 %v1728, %v1726
  %v2173 = vpack.c.b16 %v1729, %v1727
  %v2174 = vpack.c.b16 %v1732, %v1730
  %v2175 = vpack.c.b16 %v1733, %v1731
  %v2176 = vpack.c.b16 %v1736, %v1734
  %v2177 = vpack.c.b16 %v1737, %v1735
  %v2178 = vpack.c.b16 %v1740, %v1738
  %v2179 = vpack.c.b16 %v1741, %v1739
  %v2180 = vpack.c.b16 %v1744, %v1742
  %v2181 = vpack.c.b16 %v1745, %v1743
  %v2182 = vpack.c.b16 %v1748, %v1746
  %v2183 = vpack.c.b16 %v1749, %v1747
  %v2184 = vpack.c.b16 %v1752, %v1750
  %v2185 = vpack.c.b16 %v1753, %v1751
  %v2186 = vpack.c.b16 %v1756, %v1754
  %v2187 = vpack.c.b16 %v1757, %v1755
  %v2188 = vpack.c.b16 %v1760, %v1758
  %v2189 = vpack.c.b16 %v1761, %v1759
  %v2190 = vpack.c.b16 %v1764, %v1762
  %v2191 = vpack.c.b16 %v1765, %v1763
  %v2192 = vpack.c.b16 %v1768, %v1766
  %v2193 = vpack.c.b16 %v1769, %v1767
  %v2194 = vpack.c.b16 %v1772, %v1770
  %v2195 = vpack.c.b16 %v1773, %v1771
  %v2196 = vpack.c.b16 %v1776, %v1774
  %v2197 = vpack.c.b16 %v1777, %v1775
  %v2198 = vpack.c.b16 %v1780, %v1778
  %v2199 = vpack.c.b16 %v1781, %v1779
  %v2200 = vpack.c.b16 %v1784, %v1782
  %v2201 = vpack.c.b16 %v1785, %v1783
  %v2202 = vpack.c.b16 %v1788, %v1786
  %v2203 = vpack.c.b16 %v1789, %v1787
  %v2204 = vpack.c.b16 %v1792, %v1790
  %v2205 = vpack.c.b16 %v1793, %v1791
  %v2206 = vpack.c.b16 %v1796, %v1794
  %v2207 = vpack.c.b16 %v1797, %v1795
  %v2208 = vpack.c.b16 %v1800, %v1798
  %v2209 = vpack.c.b16 %v1801, %v1799
  %v2210 = vpack.c.b16 %v1804, %v1802
  %v2211 = vpack.c.b16 %v1805, %v1803
  %v2212 = vpack.c.b16 %v1808, %v1806
  %v2213 = vpack.c.b16 %v1809, %v1807
  %v2214 = vpack.c.b16 %v1812, %v1810
  %v2215 = vpack.c.b16 %v1813, %v1811
  %v2216 = vpack.c.b16 %v1816, %v1814
  %v2217 = vpack.c.b16 %v1817, %v1815
  %v2218 = vpack.c.b16 %v1820, %v1818
  %v2219 = vpack.c.b16 %v1821, %v1819
  %v2220 = vpack.c.b16 %v1824, %v1822
  %v2221 = vpack.c.b16 %v1825, %v1823
  %v2222 = vpack.c.b16 %v1828, %v1826
  %v2223 = vpack.c.b16 %v1829, %v1827
  %v2224 = vpack.c.b16 %v1832, %v1830
  %v2225 = vpack.c.b16 %v1833, %v1831
  %v2226 = vpack.c.b16 %v1836, %v1834
  %v2227 = vpack.c.b16 %v1837, %v1835
  %v2228 = vpack.c.b16 %v1840, %v1838
  %v2229 = vpack.c.b16 %v1841, %v1839
  %v2230 = vpack.c.b16 %v1844, %v1842
  %v2231 = vpack.c.b16 %v1845, %v1843
  %v2232 = vpack.c.b16 %v1848, %v1846
  %v2233 = vpack.c.b16 %v1849, %v1847
  %v2234 = vpack.c.b16 %v1852, %v1850
  %v2235 = vpack.c.b16 %v1853, %v1851
  %v2236 = vpack.c.b16 %v1856, %v1854
  %v2237 = vpack.c.b16 %v1857, %v1855
  %v2238 = vpack.c.b16 %v1860, %v1858
  %v2239 = vpack.c.b16 %v1861, %v1859
  %v2240 = vpack.c.b16 %v1864, %v1862
  %v2241 = vpack.c.b16 %v1865, %v1863
  %v2242 = vpack.c.b16 %v1868, %v1866
  %v2243 = vpack.c.b16 %v1869, %v1867
  %v2244 = vpack.c.b16 %v1872, %v1870
  %v2245 = vpack.c.b16 %v1873, %v1871
  %v2246 = vpack.c.b16 %v1876, %v1874
  %v2247 = vpack.c.b16 %v1877, %v1875
  %v2248 = vpack.c.b16 %v1880, %v1878
  %v2249 = vpack.c.b16 %v1881, %v1879
  %v2250 = vpack.c.b16 %v1884, %v1882
  %v2251 = vpack.c.b16 %v1885, %v1883
  %v2252 = vpack.c.b16 %v1888, %v1886
  %v2253 = vpack.c.b16 %v1889, %v1887
  %v2254 = vpack.c.b16 %v1892, %v1890
  %v2255 = vpack.c.b16 %v1893, %v1891
  %v2256 = vpack.c.b16 %v1896, %v1894
  %v2257 = vpack.c.b16 %v1897, %v1895
  %v2258 = vpack.c.b16 %v1900, %v1898
  %v2259 = vpack.c.b16 %v1901, %v1899
  %v2260 = vpack.c.b16 %v1904, %v1902
  %v2261 = vpack.c.b16 %v1905, %v1903
  %v2262 = vpack.c.b16 %v1908, %v1906
  %v2263 = vpack.c.b16 %v1909, %v1907
  %v2264 = vpack.c.b16 %v1912, %v1910
  %v2265 = vpack.c.b16 %v1913, %v1911
  %v2266 = vpack.c.b16 %v1916, %v1914
  %v2267 = vpack.c.b16 %v1917, %v1915
  %v2268 = vpack.c.b16 %v1920, %v1918
  %v2269 = vpack.c.b16 %v1921, %v1919
  %v2270 = vpack.c.b16 %v1924, %v1922
  %v2271 = vpack.c.b16 %v1925, %v1923
  %v2272 = vpack.c.b16 %v1928, %v1926
  %v2273 = vpack.c.b16 %v1929, %v1927
  %v2274 = vpack.c.b16 %v1932, %v1930
  %v2275 = vpack.c.b16 %v1933, %v1931
  %v2276 = vpack.c.b16 %v1936, %v1934
  %v2277 = vpack.c.b16 %v1937, %v1935
  %v2278 = vpack.c.b16 %v1940, %v1938
  %v2279 = vpack.c.b16 %v1941, %v1939
  %v2280 = vpack.c.b16 %v1944, %v1942
  %v2281 = vpack.c.b16 %v1945, %v1943
  %v2282 = vpack.c.b16 %v1948, %v1946
  %v2283 = vpack.c.b16 %v1949, %v1947
  %v2284 = vpack.c.b16 %v1952, %v1950
  %v2285 = vpack.c.b16 %v1953, %v1951
  %v2286 = vpack.c.b16 %v1956, %v1954
  %v2287 = vpack.c.b16 %v1957, %v1955
  %v2288 = vpack.c.b16 %v1960, %v1958
  %v2289 = vpack.c.b16 %v1961, %v1959
  %v2290 = vpack.c.b16 %v1964, %v1962
  %v2291 = vpack.c.b16 %v1965, %v1963
  %v2292 = vpack.c.b16 %v1968, %v1966
  %v2293 = vpack.c.b16 %v1969, %v1967
  %v2294 = vpack.c.b16 %v1972, %v1970
  %v2295 = vpack.c.b16 %v1973, %v1971
  %v2296 = vpack.c.b16 %v1976, %v1974
  %v2297 = vpack.c.b16 %v1977, %v1975
  %v2298 = vpack.c.b16 %v1980, %v1978
  %v2299 = vpack.c.b16 %v1981, %v1979
  %v2300 = vpack.c.b16 %v1984, %v1982
  %v2301 = vpack.c.b16 %v1985, %v1983
  %v2302 = vpack.c.b16 %v1988, %v1986
  %v2303 = vpack.c.b16 %v1989, %v1987
  %v2304 = vpack.c.b16 %v1992, %v1990
  %v2305 = vpack.c.b16 %v1993, %v1991
  %v2306 = vpack.c.b16 %v1996, %v1994
  %v2307 = vpack.c.b16 %v1997, %v1995
  %v2308 = vpack.c.b16 %v2000, %v1998
  %v2309 = vpack.c.b16 %v2001, %v1999
  %v2310 = vpack.c.b16 %v2004, %v2002
  %v2311 = vpack.c.b16 %v2005, %v2003
  %v2312 = vpack.c.b16 %v2008, %v2006
  %v2313 = vpack.c.b16 %v2009, %v2007
  %v2314 = vpack.c.b16 %v2012, %v2010
  %v2315 = vpack.c.b16 %v2013, %v2011
  %v2316 = vpack.c.b16 %v2016, %v2014
  %v2317 = vpack.c.b16 %v2017, %v2015
  %v2318 = vpack.c.b16 %v2020, %v2018
  %v2319 = vpack.c.b16 %v2021, %v2019
  %v2320 = vpack.c.b16 %v2024, %v2022
  %v2321 = vpack.c.b16 %v2025, %v2023
  %v2322 = vpack.c.b16 %v2028, %v2026
  %v2323 = vpack.c.b16 %v2029, %v2027
  %v2324 = vpack.c.b16 %v2032, %v2030
  %v2325 = vpack.c.b16 %v2033, %v2031
  %v2326 = vpack.c.b16 %v2036, %v2034
  %v2327 = vpack.c.b16 %v2037, %v2035
  %v2328 = vpack.c.b16 %v2040, %v2038
  %v2329 = vpack.c.b16 %v2041, %v2039
  %2618 = vmatprep.subr.bf16.mxu0 %v2043
  %2619 = vmatpush1.bf16.msra.mxu0 %v2042
  %2620 = vmatprep.subr.bf16.mxu0 %v2045
  %2621 = vmatpush1.bf16.msra.mxu0 %v2044
  %2622 = vmatprep.subr.bf16.mxu0 %v2047
  %2623 = vmatpush1.bf16.msra.mxu0 %v2046
  %2624 = vmatprep.subr.bf16.mxu0 %v2049
  %2625 = vmatpush1.bf16.msra.mxu0 %v2048
  %2626 = vmatprep.subr.bf16.mxu0 %v2051
  %2627 = vmatpush1.bf16.msra.mxu0 %v2050
  %2628 = vmatprep.subr.bf16.mxu0 %v2053
  %2629 = vmatpush1.bf16.msra.mxu0 %v2052
  %2630 = vmatprep.subr.bf16.mxu0 %v2055
  %2631 = vmatpush1.bf16.msra.mxu0 %v2054
  %2632 = vmatprep.subr.bf16.mxu0 %v2057
  %2633 = vmatpush1.bf16.msra.mxu0 %v2056
  %2634 = vmatprep.subr.bf16.mxu0 %v2059
  %2635 = vmatpush1.bf16.msra.mxu0 %v2058
  %2636 = vmatprep.subr.bf16.mxu0 %v2061
  %2637 = vmatpush1.bf16.msra.mxu0 %v2060
  %2638 = vmatprep.subr.bf16.mxu0 %v2063
  %2639 = vmatpush1.bf16.msra.mxu0 %v2062
  %2640 = vmatprep.subr.bf16.mxu0 %v2065
  %2641 = vmatpush1.bf16.msra.mxu0 %v2064
  %2642 = vmatprep.subr.bf16.mxu0 %v2067
  %2643 = vmatpush1.bf16.msra.mxu0 %v2066
  %2644 = vmatprep.subr.bf16.mxu0 %v2069
  %2645 = vmatpush1.bf16.msra.mxu0 %v2068
  %2646 = vmatprep.subr.bf16.mxu0 %v2071
  %2647 = vmatpush1.bf16.msra.mxu0 %v2070
  %2648 = vmatprep.subr.bf16.mxu0 %v2073
  %2649 = vmatpush1.bf16.msra.mxu0 %v2072
  %2650 = vmatprep.mubr.bf16.mxu0 %v891
  %2651 = vmatmul.mubr.bf16.gmra.mrb[0].mxu0 %v890
  %v2652 = vpop.f32.mrb[0].mxu0
  %v2653 = vadd.f32 %v451, %v2652
  %v2654 = vpop.f32.mrb[0].mxu0
  %v2655 = vadd.f32 %v455, %v2654
  %v2656 = vpop.f32.mrb[0].mxu0
  %v2657 = vadd.f32 %v451, %v2656
  %v2658 = vpop.f32.mrb[0].mxu0
  %v2659 = vadd.f32 %v455, %v2658
  %2660 = vmatprep.mubr.bf16.mxu0 %v909
  %2661 = vmatmul.mubr.bf16.gmra.mrb[0].mxu0 %v908
  %v2662 = vpop.f32.mrb[0].mxu0
  %v2663 = vadd.f32 %v451, %v2662
  %v2664 = vpop.f32.mrb[0].mxu0
  %v2665 = vadd.f32 %v455, %v2664
  %v2666 = vpop.f32.mrb[0].mxu0
  %v2667 = vadd.f32 %v451, %v2666
  %v2668 = vpop.f32.mrb[0].mxu0
  %v2669 = vadd.f32 %v455, %v2668
  %2670 = vmatprep.mubr.bf16.mxu0 %v927
  %2671 = vmatmul.mubr.bf16.gmra.mrb[0].mxu0 %v926
  %v2672 = vpop.f32.mrb[0].mxu0
  %v2673 = vadd.f32 %v451, %v2672
  %v2674 = vpop.f32.mrb[0].mxu0
  %v2675 = vadd.f32 %v455, %v2674
  %v2676 = vpop.f32.mrb[0].mxu0
  %v2677 = vadd.f32 %v451, %v2676
  %v2678 = vpop.f32.mrb[0].mxu0
  %v2679 = vadd.f32 %v455, %v2678
  %2680 = vmatprep.mubr.bf16.mxu0 %v945
  %2681 = vmatmul.mubr.bf16.gmra.mrb[0].mxu0 %v944
  %v2682 = vpop.f32.mrb[0].mxu0
  %v2683 = vadd.f32 %v451, %v2682
  %v2684 = vpop.f32.mrb[0].mxu0
  %v2685 = vadd.f32 %v455, %v2684
  %v2686 = vpop.f32.mrb[0].mxu0
  %v2687 = vadd.f32 %v451, %v2686
  %v2688 = vpop.f32.mrb[0].mxu0
  %v2689 = vadd.f32 %v455, %v2688
  %2690 = vmatprep.mubr.bf16.mxu0 %v963
  %2691 = vmatmul.mubr.bf16.gmra.mrb[0].mxu0 %v962
  %v2692 = vpop.f32.mrb[0].mxu0
  %v2693 = vadd.f32 %v451, %v2692
  %v2694 = vpop.f32.mrb[0].mxu0
  %v2695 = vadd.f32 %v455, %v2694
  %v2696 = vpop.f32.mrb[0].mxu0
  %v2697 = vadd.f32 %v451, %v2696
  %v2698 = vpop.f32.mrb[0].mxu0
  %v2699 = vadd.f32 %v455, %v2698
  %2700 = vmatprep.mubr.bf16.mxu0 %v981
  %2701 = vmatmul.mubr.bf16.gmra.mrb[0].mxu0 %v980
  %v2702 = vpop.f32.mrb[0].mxu0
  %v2703 = vadd.f32 %v451, %v2702
  %v2704 = vpop.f32.mrb[0].mxu0
  %v2705 = vadd.f32 %v455, %v2704
  %v2706 = vpop.f32.mrb[0].mxu0
  %v2707 = vadd.f32 %v451, %v2706
  %v2708 = vpop.f32.mrb[0].mxu0
  %v2709 = vadd.f32 %v455, %v2708
  %2710 = vmatprep.mubr.bf16.mxu0 %v999
  %2711 = vmatmul.mubr.bf16.gmra.mrb[0].mxu0 %v998
  %v2712 = vpop.f32.mrb[0].mxu0
  %v2713 = vadd.f32 %v451, %v2712
  %v2714 = vpop.f32.mrb[0].mxu0
  %v2715 = vadd.f32 %v455, %v2714
  %v2716 = vpop.f32.mrb[0].mxu0
  %v2717 = vadd.f32 %v451, %v2716
  %v2718 = vpop.f32.mrb[0].mxu0
  %v2719 = vadd.f32 %v455, %v2718
  %2720 = vmatprep.mubr.bf16.mxu0 %v1017
  %2721 = vmatmul.mubr.bf16.gmra.mrb[0].mxu0 %v1016
  %v2722 = vpop.f32.mrb[0].mxu0
  %v2723 = vadd.f32 %v451, %v2722
  %v2724 = vpop.f32.mrb[0].mxu0
  %v2725 = vadd.f32 %v455, %v2724
  %v2726 = vpop.f32.mrb[0].mxu0
  %v2727 = vadd.f32 %v451, %v2726
  %v2728 = vpop.f32.mrb[0].mxu0
  %v2729 = vadd.f32 %v455, %v2728
  %2730 = vdwg.mxu0
  %2731 = vmatprep.subr.bf16.mxu0 %v2075
  %2732 = vmatpush1.bf16.msra.mxu0 %v2074
  %2733 = vmatprep.subr.bf16.mxu0 %v2077
  %2734 = vmatpush1.bf16.msra.mxu0 %v2076
  %2735 = vmatprep.subr.bf16.mxu0 %v2079
  %2736 = vmatpush1.bf16.msra.mxu0 %v2078
  %2737 = vmatprep.subr.bf16.mxu0 %v2081
  %2738 = vmatpush1.bf16.msra.mxu0 %v2080
  %2739 = vmatprep.subr.bf16.mxu0 %v2083
  %2740 = vmatpush1.bf16.msra.mxu0 %v2082
  %2741 = vmatprep.subr.bf16.mxu0 %v2085
  %2742 = vmatpush1.bf16.msra.mxu0 %v2084
  %2743 = vmatprep.subr.bf16.mxu0 %v2087
  %2744 = vmatpush1.bf16.msra.mxu0 %v2086
  %2745 = vmatprep.subr.bf16.mxu0 %v2089
  %2746 = vmatpush1.bf16.msra.mxu0 %v2088
  %2747 = vmatprep.subr.bf16.mxu0 %v2091
  %2748 = vmatpush1.bf16.msra.mxu0 %v2090
  %2749 = vmatprep.subr.bf16.mxu0 %v2093
  %2750 = vmatpush1.bf16.msra.mxu0 %v2092
  %2751 = vmatprep.subr.bf16.mxu0 %v2095
  %2752 = vmatpush1.bf16.msra.mxu0 %v2094
  %2753 = vmatprep.subr.bf16.mxu0 %v2097
  %2754 = vmatpush1.bf16.msra.mxu0 %v2096
  %2755 = vmatprep.subr.bf16.mxu0 %v2099
  %2756 = vmatpush1.bf16.msra.mxu0 %v2098
  %2757 = vmatprep.subr.bf16.mxu0 %v2101
  %2758 = vmatpush1.bf16.msra.mxu0 %v2100
  %2759 = vmatprep.subr.bf16.mxu0 %v2103
  %2760 = vmatpush1.bf16.msra.mxu0 %v2102
  %2761 = vmatprep.subr.bf16.mxu0 %v2105
  %2762 = vmatpush1.bf16.msra.mxu0 %v2104
  %2763 = vmatprep.mubr.bf16.mxu0 %v893
  %2764 = vmatmul.mubr.bf16.gmra.mrb[0].mxu0 %v892
  %v2765 = vpop.f32.mrb[0].mxu0
  %v2766 = vadd.f32 %v2653, %v2765
  %v2767 = vpop.f32.mrb[0].mxu0
  %v2768 = vadd.f32 %v2655, %v2767
  %v2769 = vpop.f32.mrb[0].mxu0
  %v2770 = vadd.f32 %v2657, %v2769
  %v2771 = vpop.f32.mrb[0].mxu0
  %v2772 = vadd.f32 %v2659, %v2771
  %2773 = vmatprep.mubr.bf16.mxu0 %v911
  %2774 = vmatmul.mubr.bf16.gmra.mrb[0].mxu0 %v910
  %v2775 = vpop.f32.mrb[0].mxu0
  %v2776 = vadd.f32 %v2663, %v2775
  %v2777 = vpop.f32.mrb[0].mxu0
  %v2778 = vadd.f32 %v2665, %v2777
  %v2779 = vpop.f32.mrb[0].mxu0
  %v2780 = vadd.f32 %v2667, %v2779
  %v2781 = vpop.f32.mrb[0].mxu0
  %v2782 = vadd.f32 %v2669, %v2781
  %2783 = vmatprep.mubr.bf16.mxu0 %v929
  %2784 = vmatmul.mubr.bf16.gmra.mrb[0].mxu0 %v928
  %v2785 = vpop.f32.mrb[0].mxu0
  %v2786 = vadd.f32 %v2673, %v2785
  %v2787 = vpop.f32.mrb[0].mxu0
  %v2788 = vadd.f32 %v2675, %v2787
  %v2789 = vpop.f32.mrb[0].mxu0
  %v2790 = vadd.f32 %v2677, %v2789
  %v2791 = vpop.f32.mrb[0].mxu0
  %v2792 = vadd.f32 %v2679, %v2791
  %2793 = vmatprep.mubr.bf16.mxu0 %v947
  %2794 = vmatmul.mubr.bf16.gmra.mrb[0].mxu0 %v946
  %v2795 = vpop.f32.mrb[0].mxu0
  %v2796 = vadd.f32 %v2683, %v2795
  %v2797 = vpop.f32.mrb[0].mxu0
  %v2798 = vadd.f32 %v2685, %v2797
  %v2799 = vpop.f32.mrb[0].mxu0
  %v2800 = vadd.f32 %v2687, %v2799
  %v2801 = vpop.f32.mrb[0].mxu0
  %v2802 = vadd.f32 %v2689, %v2801
  %2803 = vmatprep.mubr.bf16.mxu0 %v965
  %2804 = vmatmul.mubr.bf16.gmra.mrb[0].mxu0 %v964
  %v2805 = vpop.f32.mrb[0].mxu0
  %v2806 = vadd.f32 %v2693, %v2805
  %v2807 = vpop.f32.mrb[0].mxu0
  %v2808 = vadd.f32 %v2695, %v2807
  %v2809 = vpop.f32.mrb[0].mxu0
  %v2810 = vadd.f32 %v2697, %v2809
  %v2811 = vpop.f32.mrb[0].mxu0
  %v2812 = vadd.f32 %v2699, %v2811
  %2813 = vmatprep.mubr.bf16.mxu0 %v983
  %2814 = vmatmul.mubr.bf16.gmra.mrb[0].mxu0 %v982
  %v2815 = vpop.f32.mrb[0].mxu0
  %v2816 = vadd.f32 %v2703, %v2815
  %v2817 = vpop.f32.mrb[0].mxu0
  %v2818 = vadd.f32 %v2705, %v2817
  %v2819 = vpop.f32.mrb[0].mxu0
  %v2820 = vadd.f32 %v2707, %v2819
  %v2821 = vpop.f32.mrb[0].mxu0
  %v2822 = vadd.f32 %v2709, %v2821
  %2823 = vmatprep.mubr.bf16.mxu0 %v1001
  %2824 = vmatmul.mubr.bf16.gmra.mrb[0].mxu0 %v1000
  %v2825 = vpop.f32.mrb[0].mxu0
  %v2826 = vadd.f32 %v2713, %v2825
  %v2827 = vpop.f32.mrb[0].mxu0
  %v2828 = vadd.f32 %v2715, %v2827
  %v2829 = vpop.f32.mrb[0].mxu0
  %v2830 = vadd.f32 %v2717, %v2829
  %v2831 = vpop.f32.mrb[0].mxu0
  %v2832 = vadd.f32 %v2719, %v2831
  %2833 = vmatprep.mubr.bf16.mxu0 %v1019
  %2834 = vmatmul.mubr.bf16.gmra.mrb[0].mxu0 %v1018
  %v2835 = vpop.f32.mrb[0].mxu0
  %v2836 = vadd.f32 %v2723, %v2835
  %v2837 = vpop.f32.mrb[0].mxu0
  %v2838 = vadd.f32 %v2725, %v2837
  %v2839 = vpop.f32.mrb[0].mxu0
  %v2840 = vadd.f32 %v2727, %v2839
  %v2841 = vpop.f32.mrb[0].mxu0
  %v2842 = vadd.f32 %v2729, %v2841
  %2843 = vdwg.mxu0
  %2844 = vmatprep.subr.bf16.mxu0 %v2107
  %2845 = vmatpush1.bf16.msra.mxu0 %v2106
  %2846 = vmatprep.subr.bf16.mxu0 %v2109
  %2847 = vmatpush1.bf16.msra.mxu0 %v2108
  %2848 = vmatprep.subr.bf16.mxu0 %v2111
  %2849 = vmatpush1.bf16.msra.mxu0 %v2110
  %2850 = vmatprep.subr.bf16.mxu0 %v2113
  %2851 = vmatpush1.bf16.msra.mxu0 %v2112
  %2852 = vmatprep.subr.bf16.mxu0 %v2115
  %2853 = vmatpush1.bf16.msra.mxu0 %v2114
  %2854 = vmatprep.subr.bf16.mxu0 %v2117
  %2855 = vmatpush1.bf16.msra.mxu0 %v2116
  %2856 = vmatprep.subr.bf16.mxu0 %v2119
  %2857 = vmatpush1.bf16.msra.mxu0 %v2118
  %2858 = vmatprep.subr.bf16.mxu0 %v2121
  %2859 = vmatpush1.bf16.msra.mxu0 %v2120
  %2860 = vmatprep.subr.bf16.mxu0 %v2123
  %2861 = vmatpush1.bf16.msra.mxu0 %v2122
  %2862 = vmatprep.subr.bf16.mxu0 %v2125
  %2863 = vmatpush1.bf16.msra.mxu0 %v2124
  %2864 = vmatprep.subr.bf16.mxu0 %v2127
  %2865 = vmatpush1.bf16.msra.mxu0 %v2126
  %2866 = vmatprep.subr.bf16.mxu0 %v2129
  %2867 = vmatpush1.bf16.msra.mxu0 %v2128
  %2868 = vmatprep.subr.bf16.mxu0 %v2131
  %2869 = vmatpush1.bf16.msra.mxu0 %v2130
  %2870 = vmatprep.subr.bf16.mxu0 %v2133
  %2871 = vmatpush1.bf16.msra.mxu0 %v2132
  %2872 = vmatprep.subr.bf16.mxu0 %v2135
  %2873 = vmatpush1.bf16.msra.mxu0 %v2134
  %2874 = vmatprep.subr.bf16.mxu0 %v2137
  %2875 = vmatpush1.bf16.msra.mxu0 %v2136
  %2876 = vmatprep.mubr.bf16.mxu0 %v895
  %2877 = vmatmul.mubr.bf16.gmra.mrb[0].mxu0 %v894
  %v2878 = vpop.f32.mrb[0].mxu0
  %v2879 = vadd.f32 %v2766, %v2878
  %v2880 = vpop.f32.mrb[0].mxu0
  %v2881 = vadd.f32 %v2768, %v2880
  %v2882 = vpop.f32.mrb[0].mxu0
  %v2883 = vadd.f32 %v2770, %v2882
  %v2884 = vpop.f32.mrb[0].mxu0
  %v2885 = vadd.f32 %v2772, %v2884
  %2886 = vmatprep.mubr.bf16.mxu0 %v913
  %2887 = vmatmul.mubr.bf16.gmra.mrb[0].mxu0 %v912
  %v2888 = vpop.f32.mrb[0].mxu0
  %v2889 = vadd.f32 %v2776, %v2888
  %v2890 = vpop.f32.mrb[0].mxu0
  %v2891 = vadd.f32 %v2778, %v2890
  %v2892 = vpop.f32.mrb[0].mxu0
  %v2893 = vadd.f32 %v2780, %v2892
  %v2894 = vpop.f32.mrb[0].mxu0
  %v2895 = vadd.f32 %v2782, %v2894
  %2896 = vmatprep.mubr.bf16.mxu0 %v931
  %2897 = vmatmul.mubr.bf16.gmra.mrb[0].mxu0 %v930
  %v2898 = vpop.f32.mrb[0].mxu0
  %v2899 = vadd.f32 %v2786, %v2898
  %v2900 = vpop.f32.mrb[0].mxu0
  %v2901 = vadd.f32 %v2788, %v2900
  %v2902 = vpop.f32.mrb[0].mxu0
  %v2903 = vadd.f32 %v2790, %v2902
  %v2904 = vpop.f32.mrb[0].mxu0
  %v2905 = vadd.f32 %v2792, %v2904
  %2906 = vmatprep.mubr.bf16.mxu0 %v949
  %2907 = vmatmul.mubr.bf16.gmra.mrb[0].mxu0 %v948
  %v2908 = vpop.f32.mrb[0].mxu0
  %v2909 = vadd.f32 %v2796, %v2908
  %v2910 = vpop.f32.mrb[0].mxu0
  %v2911 = vadd.f32 %v2798, %v2910
  %v2912 = vpop.f32.mrb[0].mxu0
  %v2913 = vadd.f32 %v2800, %v2912
  %v2914 = vpop.f32.mrb[0].mxu0
  %v2915 = vadd.f32 %v2802, %v2914
  %2916 = vmatprep.mubr.bf16.mxu0 %v967
  %2917 = vmatmul.mubr.bf16.gmra.mrb[0].mxu0 %v966
  %v2918 = vpop.f32.mrb[0].mxu0
  %v2919 = vadd.f32 %v2806, %v2918
  %v2920 = vpop.f32.mrb[0].mxu0
  %v2921 = vadd.f32 %v2808, %v2920
  %v2922 = vpop.f32.mrb[0].mxu0
  %v2923 = vadd.f32 %v2810, %v2922
  %v2924 = vpop.f32.mrb[0].mxu0
  %v2925 = vadd.f32 %v2812, %v2924
  %2926 = vmatprep.mubr.bf16.mxu0 %v985
  %2927 = vmatmul.mubr.bf16.gmra.mrb[0].mxu0 %v984
  %v2928 = vpop.f32.mrb[0].mxu0
  %v2929 = vadd.f32 %v2816, %v2928
  %v2930 = vpop.f32.mrb[0].mxu0
  %v2931 = vadd.f32 %v2818, %v2930
  %v2932 = vpop.f32.mrb[0].mxu0
  %v2933 = vadd.f32 %v2820, %v2932
  %v2934 = vpop.f32.mrb[0].mxu0
  %v2935 = vadd.f32 %v2822, %v2934
  %2936 = vmatprep.mubr.bf16.mxu0 %v1003
  %2937 = vmatmul.mubr.bf16.gmra.mrb[0].mxu0 %v1002
  %v2938 = vpop.f32.mrb[0].mxu0
  %v2939 = vadd.f32 %v2826, %v2938
  %v2940 = vpop.f32.mrb[0].mxu0
  %v2941 = vadd.f32 %v2828, %v2940
  %v2942 = vpop.f32.mrb[0].mxu0
  %v2943 = vadd.f32 %v2830, %v2942
  %v2944 = vpop.f32.mrb[0].mxu0
  %v2945 = vadd.f32 %v2832, %v2944
  %2946 = vmatprep.mubr.bf16.mxu0 %v1021
  %2947 = vmatmul.mubr.bf16.gmra.mrb[0].mxu0 %v1020
  %v2948 = vpop.f32.mrb[0].mxu0
  %v2949 = vadd.f32 %v2836, %v2948
  %v2950 = vpop.f32.mrb[0].mxu0
  %v2951 = vadd.f32 %v2838, %v2950
  %v2952 = vpop.f32.mrb[0].mxu0
  %v2953 = vadd.f32 %v2840, %v2952
  %v2954 = vpop.f32.mrb[0].mxu0
  %v2955 = vadd.f32 %v2842, %v2954
  %2956 = vdwg.mxu0
  %2957 = vmatprep.subr.bf16.mxu0 %v2139
  %2958 = vmatpush1.bf16.msra.mxu0 %v2138
  %2959 = vmatprep.subr.bf16.mxu0 %v2141
  %2960 = vmatpush1.bf16.msra.mxu0 %v2140
  %2961 = vmatprep.subr.bf16.mxu0 %v2143
  %2962 = vmatpush1.bf16.msra.mxu0 %v2142
  %2963 = vmatprep.subr.bf16.mxu0 %v2145
  %2964 = vmatpush1.bf16.msra.mxu0 %v2144
  %2965 = vmatprep.subr.bf16.mxu0 %v2147
  %2966 = vmatpush1.bf16.msra.mxu0 %v2146
  %2967 = vmatprep.subr.bf16.mxu0 %v2149
  %2968 = vmatpush1.bf16.msra.mxu0 %v2148
  %2969 = vmatprep.subr.bf16.mxu0 %v2151
  %2970 = vmatpush1.bf16.msra.mxu0 %v2150
  %2971 = vmatprep.subr.bf16.mxu0 %v2153
  %2972 = vmatpush1.bf16.msra.mxu0 %v2152
  %2973 = vmatprep.subr.bf16.mxu0 %v2155
  %2974 = vmatpush1.bf16.msra.mxu0 %v2154
  %2975 = vmatprep.subr.bf16.mxu0 %v2157
  %2976 = vmatpush1.bf16.msra.mxu0 %v2156
  %2977 = vmatprep.subr.bf16.mxu0 %v2159
  %2978 = vmatpush1.bf16.msra.mxu0 %v2158
  %2979 = vmatprep.subr.bf16.mxu0 %v2161
  %2980 = vmatpush1.bf16.msra.mxu0 %v2160
  %2981 = vmatprep.subr.bf16.mxu0 %v2163
  %2982 = vmatpush1.bf16.msra.mxu0 %v2162
  %2983 = vmatprep.subr.bf16.mxu0 %v2165
  %2984 = vmatpush1.bf16.msra.mxu0 %v2164
  %2985 = vmatprep.subr.bf16.mxu0 %v2167
  %2986 = vmatpush1.bf16.msra.mxu0 %v2166
  %2987 = vmatprep.subr.bf16.mxu0 %v2169
  %2988 = vmatpush1.bf16.msra.mxu0 %v2168
  %2989 = vmatprep.mubr.bf16.mxu0 %v897
  %2990 = vmatmul.mubr.bf16.gmra.mrb[0].mxu0 %v896
  %v2991 = vpop.f32.mrb[0].mxu0
  %v2992 = vadd.f32 %v2879, %v2991
  %v2993 = vpop.f32.mrb[0].mxu0
  %v2994 = vadd.f32 %v2881, %v2993
  %v2995 = vpop.f32.mrb[0].mxu0
  %v2996 = vadd.f32 %v2883, %v2995
  %v2997 = vpop.f32.mrb[0].mxu0
  %v2998 = vadd.f32 %v2885, %v2997
  %2999 = vmatprep.mubr.bf16.mxu0 %v915
  %3000 = vmatmul.mubr.bf16.gmra.mrb[0].mxu0 %v914
  %v3001 = vpop.f32.mrb[0].mxu0
  %v3002 = vadd.f32 %v2889, %v3001
  %v3003 = vpop.f32.mrb[0].mxu0
  %v3004 = vadd.f32 %v2891, %v3003
  %v3005 = vpop.f32.mrb[0].mxu0
  %v3006 = vadd.f32 %v2893, %v3005
  %v3007 = vpop.f32.mrb[0].mxu0
  %v3008 = vadd.f32 %v2895, %v3007
  %3009 = vmatprep.mubr.bf16.mxu0 %v933
  %3010 = vmatmul.mubr.bf16.gmra.mrb[0].mxu0 %v932
  %v3011 = vpop.f32.mrb[0].mxu0
  %v3012 = vadd.f32 %v2899, %v3011
  %v3013 = vpop.f32.mrb[0].mxu0
  %v3014 = vadd.f32 %v2901, %v3013
  %v3015 = vpop.f32.mrb[0].mxu0
  %v3016 = vadd.f32 %v2903, %v3015
  %v3017 = vpop.f32.mrb[0].mxu0
  %v3018 = vadd.f32 %v2905, %v3017
  %3019 = vmatprep.mubr.bf16.mxu0 %v951
  %3020 = vmatmul.mubr.bf16.gmra.mrb[0].mxu0 %v950
  %v3021 = vpop.f32.mrb[0].mxu0
  %v3022 = vadd.f32 %v2909, %v3021
  %v3023 = vpop.f32.mrb[0].mxu0
  %v3024 = vadd.f32 %v2911, %v3023
  %v3025 = vpop.f32.mrb[0].mxu0
  %v3026 = vadd.f32 %v2913, %v3025
  %v3027 = vpop.f32.mrb[0].mxu0
  %v3028 = vadd.f32 %v2915, %v3027
  %3029 = vmatprep.mubr.bf16.mxu0 %v969
  %3030 = vmatmul.mubr.bf16.gmra.mrb[0].mxu0 %v968
  %v3031 = vpop.f32.mrb[0].mxu0
  %v3032 = vadd.f32 %v2919, %v3031
  %v3033 = vpop.f32.mrb[0].mxu0
  %v3034 = vadd.f32 %v2921, %v3033
  %v3035 = vpop.f32.mrb[0].mxu0
  %v3036 = vadd.f32 %v2923, %v3035
  %v3037 = vpop.f32.mrb[0].mxu0
  %v3038 = vadd.f32 %v2925, %v3037
  %3039 = vmatprep.mubr.bf16.mxu0 %v987
  %3040 = vmatmul.mubr.bf16.gmra.mrb[0].mxu0 %v986
  %v3041 = vpop.f32.mrb[0].mxu0
  %v3042 = vadd.f32 %v2929, %v3041
  %v3043 = vpop.f32.mrb[0].mxu0
  %v3044 = vadd.f32 %v2931, %v3043
  %v3045 = vpop.f32.mrb[0].mxu0
  %v3046 = vadd.f32 %v2933, %v3045
  %v3047 = vpop.f32.mrb[0].mxu0
  %v3048 = vadd.f32 %v2935, %v3047
  %3049 = vmatprep.mubr.bf16.mxu0 %v1005
  %3050 = vmatmul.mubr.bf16.gmra.mrb[0].mxu0 %v1004
  %v3051 = vpop.f32.mrb[0].mxu0
  %v3052 = vadd.f32 %v2939, %v3051
  %v3053 = vpop.f32.mrb[0].mxu0
  %v3054 = vadd.f32 %v2941, %v3053
  %v3055 = vpop.f32.mrb[0].mxu0
  %v3056 = vadd.f32 %v2943, %v3055
  %v3057 = vpop.f32.mrb[0].mxu0
  %v3058 = vadd.f32 %v2945, %v3057
  %3059 = vmatprep.mubr.bf16.mxu0 %v1023
  %3060 = vmatmul.mubr.bf16.gmra.mrb[0].mxu0 %v1022
  %v3061 = vpop.f32.mrb[0].mxu0
  %v3062 = vadd.f32 %v2949, %v3061
  %v3063 = vpop.f32.mrb[0].mxu0
  %v3064 = vadd.f32 %v2951, %v3063
  %v3065 = vpop.f32.mrb[0].mxu0
  %v3066 = vadd.f32 %v2953, %v3065
  %v3067 = vpop.f32.mrb[0].mxu0
  %v3068 = vadd.f32 %v2955, %v3067
  %3069 = vdwg.mxu0
  %3070 = vmatprep.subr.bf16.mxu0 %v2171
  %3071 = vmatpush1.bf16.msra.mxu0 %v2170
  %3072 = vmatprep.subr.bf16.mxu0 %v2173
  %3073 = vmatpush1.bf16.msra.mxu0 %v2172
  %3074 = vmatprep.subr.bf16.mxu0 %v2175
  %3075 = vmatpush1.bf16.msra.mxu0 %v2174
  %3076 = vmatprep.subr.bf16.mxu0 %v2177
  %3077 = vmatpush1.bf16.msra.mxu0 %v2176
  %3078 = vmatprep.subr.bf16.mxu0 %v2179
  %3079 = vmatpush1.bf16.msra.mxu0 %v2178
  %3080 = vmatprep.subr.bf16.mxu0 %v2181
  %3081 = vmatpush1.bf16.msra.mxu0 %v2180
  %3082 = vmatprep.subr.bf16.mxu0 %v2183
  %3083 = vmatpush1.bf16.msra.mxu0 %v2182
  %3084 = vmatprep.subr.bf16.mxu0 %v2185
  %3085 = vmatpush1.bf16.msra.mxu0 %v2184
  %3086 = vmatprep.subr.bf16.mxu0 %v2187
  %3087 = vmatpush1.bf16.msra.mxu0 %v2186
  %3088 = vmatprep.subr.bf16.mxu0 %v2189
  %3089 = vmatpush1.bf16.msra.mxu0 %v2188
  %3090 = vmatprep.subr.bf16.mxu0 %v2191
  %3091 = vmatpush1.bf16.msra.mxu0 %v2190
  %3092 = vmatprep.subr.bf16.mxu0 %v2193
  %3093 = vmatpush1.bf16.msra.mxu0 %v2192
  %3094 = vmatprep.subr.bf16.mxu0 %v2195
  %3095 = vmatpush1.bf16.msra.mxu0 %v2194
  %3096 = vmatprep.subr.bf16.mxu0 %v2197
  %3097 = vmatpush1.bf16.msra.mxu0 %v2196
  %3098 = vmatprep.subr.bf16.mxu0 %v2199
  %3099 = vmatpush1.bf16.msra.mxu0 %v2198
  %3100 = vmatprep.subr.bf16.mxu0 %v2201
  %3101 = vmatpush1.bf16.msra.mxu0 %v2200
  %3102 = vmatprep.mubr.bf16.mxu0 %v899
  %3103 = vmatmul.mubr.bf16.gmra.mrb[0].mxu0 %v898
  %v3104 = vpop.f32.mrb[0].mxu0
  %v3105 = vadd.f32 %v2992, %v3104
  %v3106 = vpop.f32.mrb[0].mxu0
  %v3107 = vadd.f32 %v2994, %v3106
  %v3108 = vpop.f32.mrb[0].mxu0
  %v3109 = vadd.f32 %v2996, %v3108
  %v3110 = vpop.f32.mrb[0].mxu0
  %v3111 = vadd.f32 %v2998, %v3110
  %3112 = vmatprep.mubr.bf16.mxu0 %v917
  %3113 = vmatmul.mubr.bf16.gmra.mrb[0].mxu0 %v916
  %v3114 = vpop.f32.mrb[0].mxu0
  %v3115 = vadd.f32 %v3002, %v3114
  %v3116 = vpop.f32.mrb[0].mxu0
  %v3117 = vadd.f32 %v3004, %v3116
  %v3118 = vpop.f32.mrb[0].mxu0
  %v3119 = vadd.f32 %v3006, %v3118
  %v3120 = vpop.f32.mrb[0].mxu0
  %v3121 = vadd.f32 %v3008, %v3120
  %3122 = vmatprep.mubr.bf16.mxu0 %v935
  %3123 = vmatmul.mubr.bf16.gmra.mrb[0].mxu0 %v934
  %v3124 = vpop.f32.mrb[0].mxu0
  %v3125 = vadd.f32 %v3012, %v3124
  %v3126 = vpop.f32.mrb[0].mxu0
  %v3127 = vadd.f32 %v3014, %v3126
  %v3128 = vpop.f32.mrb[0].mxu0
  %v3129 = vadd.f32 %v3016, %v3128
  %v3130 = vpop.f32.mrb[0].mxu0
  %v3131 = vadd.f32 %v3018, %v3130
  %3132 = vmatprep.mubr.bf16.mxu0 %v953
  %3133 = vmatmul.mubr.bf16.gmra.mrb[0].mxu0 %v952
  %v3134 = vpop.f32.mrb[0].mxu0
  %v3135 = vadd.f32 %v3022, %v3134
  %v3136 = vpop.f32.mrb[0].mxu0
  %v3137 = vadd.f32 %v3024, %v3136
  %v3138 = vpop.f32.mrb[0].mxu0
  %v3139 = vadd.f32 %v3026, %v3138
  %v3140 = vpop.f32.mrb[0].mxu0
  %v3141 = vadd.f32 %v3028, %v3140
  %3142 = vmatprep.mubr.bf16.mxu0 %v971
  %3143 = vmatmul.mubr.bf16.gmra.mrb[0].mxu0 %v970
  %v3144 = vpop.f32.mrb[0].mxu0
  %v3145 = vadd.f32 %v3032, %v3144
  %v3146 = vpop.f32.mrb[0].mxu0
  %v3147 = vadd.f32 %v3034, %v3146
  %v3148 = vpop.f32.mrb[0].mxu0
  %v3149 = vadd.f32 %v3036, %v3148
  %v3150 = vpop.f32.mrb[0].mxu0
  %v3151 = vadd.f32 %v3038, %v3150
  %3152 = vmatprep.mubr.bf16.mxu0 %v989
  %3153 = vmatmul.mubr.bf16.gmra.mrb[0].mxu0 %v988
  %v3154 = vpop.f32.mrb[0].mxu0
  %v3155 = vadd.f32 %v3042, %v3154
  %v3156 = vpop.f32.mrb[0].mxu0
  %v3157 = vadd.f32 %v3044, %v3156
  %v3158 = vpop.f32.mrb[0].mxu0
  %v3159 = vadd.f32 %v3046, %v3158
  %v3160 = vpop.f32.mrb[0].mxu0
  %v3161 = vadd.f32 %v3048, %v3160
  %3162 = vmatprep.mubr.bf16.mxu0 %v1007
  %3163 = vmatmul.mubr.bf16.gmra.mrb[0].mxu0 %v1006
  %v3164 = vpop.f32.mrb[0].mxu0
  %v3165 = vadd.f32 %v3052, %v3164
  %v3166 = vpop.f32.mrb[0].mxu0
  %v3167 = vadd.f32 %v3054, %v3166
  %v3168 = vpop.f32.mrb[0].mxu0
  %v3169 = vadd.f32 %v3056, %v3168
  %v3170 = vpop.f32.mrb[0].mxu0
  %v3171 = vadd.f32 %v3058, %v3170
  %3172 = vmatprep.mubr.bf16.mxu0 %v1025
  %3173 = vmatmul.mubr.bf16.gmra.mrb[0].mxu0 %v1024
  %v3174 = vpop.f32.mrb[0].mxu0
  %v3175 = vadd.f32 %v3062, %v3174
  %v3176 = vpop.f32.mrb[0].mxu0
  %v3177 = vadd.f32 %v3064, %v3176
  %v3178 = vpop.f32.mrb[0].mxu0
  %v3179 = vadd.f32 %v3066, %v3178
  %v3180 = vpop.f32.mrb[0].mxu0
  %v3181 = vadd.f32 %v3068, %v3180
  %3182 = vdwg.mxu0
  %3183 = vmatprep.subr.bf16.mxu0 %v2203
  %3184 = vmatpush1.bf16.msra.mxu0 %v2202
  %3185 = vmatprep.subr.bf16.mxu0 %v2205
  %3186 = vmatpush1.bf16.msra.mxu0 %v2204
  %3187 = vmatprep.subr.bf16.mxu0 %v2207
  %3188 = vmatpush1.bf16.msra.mxu0 %v2206
  %3189 = vmatprep.subr.bf16.mxu0 %v2209
  %3190 = vmatpush1.bf16.msra.mxu0 %v2208
  %3191 = vmatprep.subr.bf16.mxu0 %v2211
  %3192 = vmatpush1.bf16.msra.mxu0 %v2210
  %3193 = vmatprep.subr.bf16.mxu0 %v2213
  %3194 = vmatpush1.bf16.msra.mxu0 %v2212
  %3195 = vmatprep.subr.bf16.mxu0 %v2215
  %3196 = vmatpush1.bf16.msra.mxu0 %v2214
  %3197 = vmatprep.subr.bf16.mxu0 %v2217
  %3198 = vmatpush1.bf16.msra.mxu0 %v2216
  %3199 = vmatprep.subr.bf16.mxu0 %v2219
  %3200 = vmatpush1.bf16.msra.mxu0 %v2218
  %3201 = vmatprep.subr.bf16.mxu0 %v2221
  %3202 = vmatpush1.bf16.msra.mxu0 %v2220
  %3203 = vmatprep.subr.bf16.mxu0 %v2223
  %3204 = vmatpush1.bf16.msra.mxu0 %v2222
  %3205 = vmatprep.subr.bf16.mxu0 %v2225
  %3206 = vmatpush1.bf16.msra.mxu0 %v2224
  %3207 = vmatprep.subr.bf16.mxu0 %v2227
  %3208 = vmatpush1.bf16.msra.mxu0 %v2226
  %3209 = vmatprep.subr.bf16.mxu0 %v2229
  %3210 = vmatpush1.bf16.msra.mxu0 %v2228
  %3211 = vmatprep.subr.bf16.mxu0 %v2231
  %3212 = vmatpush1.bf16.msra.mxu0 %v2230
  %3213 = vmatprep.subr.bf16.mxu0 %v2233
  %3214 = vmatpush1.bf16.msra.mxu0 %v2232
  %3215 = vmatprep.mubr.bf16.mxu0 %v901
  %3216 = vmatmul.mubr.bf16.gmra.mrb[0].mxu0 %v900
  %v3217 = vpop.f32.mrb[0].mxu0
  %v3218 = vadd.f32 %v3105, %v3217
  %v3219 = vpop.f32.mrb[0].mxu0
  %v3220 = vadd.f32 %v3107, %v3219
  %v3221 = vpop.f32.mrb[0].mxu0
  %v3222 = vadd.f32 %v3109, %v3221
  %v3223 = vpop.f32.mrb[0].mxu0
  %v3224 = vadd.f32 %v3111, %v3223
  %3225 = vmatprep.mubr.bf16.mxu0 %v919
  %3226 = vmatmul.mubr.bf16.gmra.mrb[0].mxu0 %v918
  %v3227 = vpop.f32.mrb[0].mxu0
  %v3228 = vadd.f32 %v3115, %v3227
  %v3229 = vpop.f32.mrb[0].mxu0
  %v3230 = vadd.f32 %v3117, %v3229
  %v3231 = vpop.f32.mrb[0].mxu0
  %v3232 = vadd.f32 %v3119, %v3231
  %v3233 = vpop.f32.mrb[0].mxu0
  %v3234 = vadd.f32 %v3121, %v3233
  %3235 = vmatprep.mubr.bf16.mxu0 %v937
  %3236 = vmatmul.mubr.bf16.gmra.mrb[0].mxu0 %v936
  %v3237 = vpop.f32.mrb[0].mxu0
  %v3238 = vadd.f32 %v3125, %v3237
  %v3239 = vpop.f32.mrb[0].mxu0
  %v3240 = vadd.f32 %v3127, %v3239
  %v3241 = vpop.f32.mrb[0].mxu0
  %v3242 = vadd.f32 %v3129, %v3241
  %v3243 = vpop.f32.mrb[0].mxu0
  %v3244 = vadd.f32 %v3131, %v3243
  %3245 = vmatprep.mubr.bf16.mxu0 %v955
  %3246 = vmatmul.mubr.bf16.gmra.mrb[0].mxu0 %v954
  %v3247 = vpop.f32.mrb[0].mxu0
  %v3248 = vadd.f32 %v3135, %v3247
  %v3249 = vpop.f32.mrb[0].mxu0
  %v3250 = vadd.f32 %v3137, %v3249
  %v3251 = vpop.f32.mrb[0].mxu0
  %v3252 = vadd.f32 %v3139, %v3251
  %v3253 = vpop.f32.mrb[0].mxu0
  %v3254 = vadd.f32 %v3141, %v3253
  %3255 = vmatprep.mubr.bf16.mxu0 %v973
  %3256 = vmatmul.mubr.bf16.gmra.mrb[0].mxu0 %v972
  %v3257 = vpop.f32.mrb[0].mxu0
  %v3258 = vadd.f32 %v3145, %v3257
  %v3259 = vpop.f32.mrb[0].mxu0
  %v3260 = vadd.f32 %v3147, %v3259
  %v3261 = vpop.f32.mrb[0].mxu0
  %v3262 = vadd.f32 %v3149, %v3261
  %v3263 = vpop.f32.mrb[0].mxu0
  %v3264 = vadd.f32 %v3151, %v3263
  %3265 = vmatprep.mubr.bf16.mxu0 %v991
  %3266 = vmatmul.mubr.bf16.gmra.mrb[0].mxu0 %v990
  %v3267 = vpop.f32.mrb[0].mxu0
  %v3268 = vadd.f32 %v3155, %v3267
  %v3269 = vpop.f32.mrb[0].mxu0
  %v3270 = vadd.f32 %v3157, %v3269
  %v3271 = vpop.f32.mrb[0].mxu0
  %v3272 = vadd.f32 %v3159, %v3271
  %v3273 = vpop.f32.mrb[0].mxu0
  %v3274 = vadd.f32 %v3161, %v3273
  %3275 = vmatprep.mubr.bf16.mxu0 %v1009
  %3276 = vmatmul.mubr.bf16.gmra.mrb[0].mxu0 %v1008
  %v3277 = vpop.f32.mrb[0].mxu0
  %v3278 = vadd.f32 %v3165, %v3277
  %v3279 = vpop.f32.mrb[0].mxu0
  %v3280 = vadd.f32 %v3167, %v3279
  %v3281 = vpop.f32.mrb[0].mxu0
  %v3282 = vadd.f32 %v3169, %v3281
  %v3283 = vpop.f32.mrb[0].mxu0
  %v3284 = vadd.f32 %v3171, %v3283
  %3285 = vmatprep.mubr.bf16.mxu0 %v1027
  %3286 = vmatmul.mubr.bf16.gmra.mrb[0].mxu0 %v1026
  %v3287 = vpop.f32.mrb[0].mxu0
  %v3288 = vadd.f32 %v3175, %v3287
  %v3289 = vpop.f32.mrb[0].mxu0
  %v3290 = vadd.f32 %v3177, %v3289
  %v3291 = vpop.f32.mrb[0].mxu0
  %v3292 = vadd.f32 %v3179, %v3291
  %v3293 = vpop.f32.mrb[0].mxu0
  %v3294 = vadd.f32 %v3181, %v3293
  %3295 = vdwg.mxu0
  %3296 = vmatprep.subr.bf16.mxu0 %v2235
  %3297 = vmatpush1.bf16.msra.mxu0 %v2234
  %3298 = vmatprep.subr.bf16.mxu0 %v2237
  %3299 = vmatpush1.bf16.msra.mxu0 %v2236
  %3300 = vmatprep.subr.bf16.mxu0 %v2239
  %3301 = vmatpush1.bf16.msra.mxu0 %v2238
  %3302 = vmatprep.subr.bf16.mxu0 %v2241
  %3303 = vmatpush1.bf16.msra.mxu0 %v2240
  %3304 = vmatprep.subr.bf16.mxu0 %v2243
  %3305 = vmatpush1.bf16.msra.mxu0 %v2242
  %3306 = vmatprep.subr.bf16.mxu0 %v2245
  %3307 = vmatpush1.bf16.msra.mxu0 %v2244
  %3308 = vmatprep.subr.bf16.mxu0 %v2247
  %3309 = vmatpush1.bf16.msra.mxu0 %v2246
  %3310 = vmatprep.subr.bf16.mxu0 %v2249
  %3311 = vmatpush1.bf16.msra.mxu0 %v2248
  %3312 = vmatprep.subr.bf16.mxu0 %v2251
  %3313 = vmatpush1.bf16.msra.mxu0 %v2250
  %3314 = vmatprep.subr.bf16.mxu0 %v2253
  %3315 = vmatpush1.bf16.msra.mxu0 %v2252
  %3316 = vmatprep.subr.bf16.mxu0 %v2255
  %3317 = vmatpush1.bf16.msra.mxu0 %v2254
  %3318 = vmatprep.subr.bf16.mxu0 %v2257
  %3319 = vmatpush1.bf16.msra.mxu0 %v2256
  %3320 = vmatprep.subr.bf16.mxu0 %v2259
  %3321 = vmatpush1.bf16.msra.mxu0 %v2258
  %3322 = vmatprep.subr.bf16.mxu0 %v2261
  %3323 = vmatpush1.bf16.msra.mxu0 %v2260
  %3324 = vmatprep.subr.bf16.mxu0 %v2263
  %3325 = vmatpush1.bf16.msra.mxu0 %v2262
  %3326 = vmatprep.subr.bf16.mxu0 %v2265
  %3327 = vmatpush1.bf16.msra.mxu0 %v2264
  %3328 = vmatprep.mubr.bf16.mxu0 %v903
  %3329 = vmatmul.mubr.bf16.gmra.mrb[0].mxu0 %v902
  %v3330 = vpop.f32.mrb[0].mxu0
  %v3331 = vadd.f32 %v3218, %v3330
  %v3332 = vpop.f32.mrb[0].mxu0
  %v3333 = vadd.f32 %v3220, %v3332
  %v3334 = vpop.f32.mrb[0].mxu0
  %v3335 = vadd.f32 %v3222, %v3334
  %v3336 = vpop.f32.mrb[0].mxu0
  %v3337 = vadd.f32 %v3224, %v3336
  %3338 = vmatprep.mubr.bf16.mxu0 %v921
  %3339 = vmatmul.mubr.bf16.gmra.mrb[0].mxu0 %v920
  %v3340 = vpop.f32.mrb[0].mxu0
  %v3341 = vadd.f32 %v3228, %v3340
  %v3342 = vpop.f32.mrb[0].mxu0
  %v3343 = vadd.f32 %v3230, %v3342
  %v3344 = vpop.f32.mrb[0].mxu0
  %v3345 = vadd.f32 %v3232, %v3344
  %v3346 = vpop.f32.mrb[0].mxu0
  %v3347 = vadd.f32 %v3234, %v3346
  %3348 = vmatprep.mubr.bf16.mxu0 %v939
  %3349 = vmatmul.mubr.bf16.gmra.mrb[0].mxu0 %v938
  %v3350 = vpop.f32.mrb[0].mxu0
  %v3351 = vadd.f32 %v3238, %v3350
  %v3352 = vpop.f32.mrb[0].mxu0
  %v3353 = vadd.f32 %v3240, %v3352
  %v3354 = vpop.f32.mrb[0].mxu0
  %v3355 = vadd.f32 %v3242, %v3354
  %v3356 = vpop.f32.mrb[0].mxu0
  %v3357 = vadd.f32 %v3244, %v3356
  %3358 = vmatprep.mubr.bf16.mxu0 %v957
  %3359 = vmatmul.mubr.bf16.gmra.mrb[0].mxu0 %v956
  %v3360 = vpop.f32.mrb[0].mxu0
  %v3361 = vadd.f32 %v3248, %v3360
  %v3362 = vpop.f32.mrb[0].mxu0
  %v3363 = vadd.f32 %v3250, %v3362
  %v3364 = vpop.f32.mrb[0].mxu0
  %v3365 = vadd.f32 %v3252, %v3364
  %v3366 = vpop.f32.mrb[0].mxu0
  %v3367 = vadd.f32 %v3254, %v3366
  %3368 = vmatprep.mubr.bf16.mxu0 %v975
  %3369 = vmatmul.mubr.bf16.gmra.mrb[0].mxu0 %v974
  %v3370 = vpop.f32.mrb[0].mxu0
  %v3371 = vadd.f32 %v3258, %v3370
  %v3372 = vpop.f32.mrb[0].mxu0
  %v3373 = vadd.f32 %v3260, %v3372
  %v3374 = vpop.f32.mrb[0].mxu0
  %v3375 = vadd.f32 %v3262, %v3374
  %v3376 = vpop.f32.mrb[0].mxu0
  %v3377 = vadd.f32 %v3264, %v3376
  %3378 = vmatprep.mubr.bf16.mxu0 %v993
  %3379 = vmatmul.mubr.bf16.gmra.mrb[0].mxu0 %v992
  %v3380 = vpop.f32.mrb[0].mxu0
  %v3381 = vadd.f32 %v3268, %v3380
  %v3382 = vpop.f32.mrb[0].mxu0
  %v3383 = vadd.f32 %v3270, %v3382
  %v3384 = vpop.f32.mrb[0].mxu0
  %v3385 = vadd.f32 %v3272, %v3384
  %v3386 = vpop.f32.mrb[0].mxu0
  %v3387 = vadd.f32 %v3274, %v3386
  %3388 = vmatprep.mubr.bf16.mxu0 %v1011
  %3389 = vmatmul.mubr.bf16.gmra.mrb[0].mxu0 %v1010
  %v3390 = vpop.f32.mrb[0].mxu0
  %v3391 = vadd.f32 %v3278, %v3390
  %v3392 = vpop.f32.mrb[0].mxu0
  %v3393 = vadd.f32 %v3280, %v3392
  %v3394 = vpop.f32.mrb[0].mxu0
  %v3395 = vadd.f32 %v3282, %v3394
  %v3396 = vpop.f32.mrb[0].mxu0
  %v3397 = vadd.f32 %v3284, %v3396
  %3398 = vmatprep.mubr.bf16.mxu0 %v1029
  %3399 = vmatmul.mubr.bf16.gmra.mrb[0].mxu0 %v1028
  %v3400 = vpop.f32.mrb[0].mxu0
  %v3401 = vadd.f32 %v3288, %v3400
  %v3402 = vpop.f32.mrb[0].mxu0
  %v3403 = vadd.f32 %v3290, %v3402
  %v3404 = vpop.f32.mrb[0].mxu0
  %v3405 = vadd.f32 %v3292, %v3404
  %v3406 = vpop.f32.mrb[0].mxu0
  %v3407 = vadd.f32 %v3294, %v3406
  %3408 = vdwg.mxu0
  %3409 = vmatprep.subr.bf16.mxu0 %v2267
  %3410 = vmatpush1.bf16.msra.mxu0 %v2266
  %3411 = vmatprep.subr.bf16.mxu0 %v2269
  %3412 = vmatpush1.bf16.msra.mxu0 %v2268
  %3413 = vmatprep.subr.bf16.mxu0 %v2271
  %3414 = vmatpush1.bf16.msra.mxu0 %v2270
  %3415 = vmatprep.subr.bf16.mxu0 %v2273
  %3416 = vmatpush1.bf16.msra.mxu0 %v2272
  %3417 = vmatprep.subr.bf16.mxu0 %v2275
  %3418 = vmatpush1.bf16.msra.mxu0 %v2274
  %3419 = vmatprep.subr.bf16.mxu0 %v2277
  %3420 = vmatpush1.bf16.msra.mxu0 %v2276
  %3421 = vmatprep.subr.bf16.mxu0 %v2279
  %3422 = vmatpush1.bf16.msra.mxu0 %v2278
  %3423 = vmatprep.subr.bf16.mxu0 %v2281
  %3424 = vmatpush1.bf16.msra.mxu0 %v2280
  %3425 = vmatprep.subr.bf16.mxu0 %v2283
  %3426 = vmatpush1.bf16.msra.mxu0 %v2282
  %3427 = vmatprep.subr.bf16.mxu0 %v2285
  %3428 = vmatpush1.bf16.msra.mxu0 %v2284
  %3429 = vmatprep.subr.bf16.mxu0 %v2287
  %3430 = vmatpush1.bf16.msra.mxu0 %v2286
  %3431 = vmatprep.subr.bf16.mxu0 %v2289
  %3432 = vmatpush1.bf16.msra.mxu0 %v2288
  %3433 = vmatprep.subr.bf16.mxu0 %v2291
  %3434 = vmatpush1.bf16.msra.mxu0 %v2290
  %3435 = vmatprep.subr.bf16.mxu0 %v2293
  %3436 = vmatpush1.bf16.msra.mxu0 %v2292
  %3437 = vmatprep.subr.bf16.mxu0 %v2295
  %3438 = vmatpush1.bf16.msra.mxu0 %v2294
  %3439 = vmatprep.subr.bf16.mxu0 %v2297
  %3440 = vmatpush1.bf16.msra.mxu0 %v2296
  %3441 = vmatprep.mubr.bf16.mxu0 %v905
  %3442 = vmatmul.mubr.bf16.gmra.mrb[0].mxu0 %v904
  %v3443 = vpop.f32.mrb[0].mxu0
  %v3444 = vadd.f32 %v3331, %v3443
  %v3445 = vpop.f32.mrb[0].mxu0
  %v3446 = vadd.f32 %v3333, %v3445
  %v3447 = vpop.f32.mrb[0].mxu0
  %v3448 = vadd.f32 %v3335, %v3447
  %v3449 = vpop.f32.mrb[0].mxu0
  %v3450 = vadd.f32 %v3337, %v3449
  %3451 = vmatprep.mubr.bf16.mxu0 %v923
  %3452 = vmatmul.mubr.bf16.gmra.mrb[0].mxu0 %v922
  %v3453 = vpop.f32.mrb[0].mxu0
  %v3454 = vadd.f32 %v3341, %v3453
  %v3455 = vpop.f32.mrb[0].mxu0
  %v3456 = vadd.f32 %v3343, %v3455
  %v3457 = vpop.f32.mrb[0].mxu0
  %v3458 = vadd.f32 %v3345, %v3457
  %v3459 = vpop.f32.mrb[0].mxu0
  %v3460 = vadd.f32 %v3347, %v3459
  %3461 = vmatprep.mubr.bf16.mxu0 %v941
  %3462 = vmatmul.mubr.bf16.gmra.mrb[0].mxu0 %v940
  %v3463 = vpop.f32.mrb[0].mxu0
  %v3464 = vadd.f32 %v3351, %v3463
  %v3465 = vpop.f32.mrb[0].mxu0
  %v3466 = vadd.f32 %v3353, %v3465
  %v3467 = vpop.f32.mrb[0].mxu0
  %v3468 = vadd.f32 %v3355, %v3467
  %v3469 = vpop.f32.mrb[0].mxu0
  %v3470 = vadd.f32 %v3357, %v3469
  %3471 = vmatprep.mubr.bf16.mxu0 %v959
  %3472 = vmatmul.mubr.bf16.gmra.mrb[0].mxu0 %v958
  %v3473 = vpop.f32.mrb[0].mxu0
  %v3474 = vadd.f32 %v3361, %v3473
  %v3475 = vpop.f32.mrb[0].mxu0
  %v3476 = vadd.f32 %v3363, %v3475
  %v3477 = vpop.f32.mrb[0].mxu0
  %v3478 = vadd.f32 %v3365, %v3477
  %v3479 = vpop.f32.mrb[0].mxu0
  %v3480 = vadd.f32 %v3367, %v3479
  %3481 = vmatprep.mubr.bf16.mxu0 %v977
  %3482 = vmatmul.mubr.bf16.gmra.mrb[0].mxu0 %v976
  %v3483 = vpop.f32.mrb[0].mxu0
  %v3484 = vadd.f32 %v3371, %v3483
  %v3485 = vpop.f32.mrb[0].mxu0
  %v3486 = vadd.f32 %v3373, %v3485
  %v3487 = vpop.f32.mrb[0].mxu0
  %v3488 = vadd.f32 %v3375, %v3487
  %v3489 = vpop.f32.mrb[0].mxu0
  %v3490 = vadd.f32 %v3377, %v3489
  %3491 = vmatprep.mubr.bf16.mxu0 %v995
  %3492 = vmatmul.mubr.bf16.gmra.mrb[0].mxu0 %v994
  %v3493 = vpop.f32.mrb[0].mxu0
  %v3494 = vadd.f32 %v3381, %v3493
  %v3495 = vpop.f32.mrb[0].mxu0
  %v3496 = vadd.f32 %v3383, %v3495
  %v3497 = vpop.f32.mrb[0].mxu0
  %v3498 = vadd.f32 %v3385, %v3497
  %v3499 = vpop.f32.mrb[0].mxu0
  %v3500 = vadd.f32 %v3387, %v3499
  %3501 = vmatprep.mubr.bf16.mxu0 %v1013
  %3502 = vmatmul.mubr.bf16.gmra.mrb[0].mxu0 %v1012
  %v3503 = vpop.f32.mrb[0].mxu0
  %v3504 = vadd.f32 %v3391, %v3503
  %v3505 = vpop.f32.mrb[0].mxu0
  %v3506 = vadd.f32 %v3393, %v3505
  %v3507 = vpop.f32.mrb[0].mxu0
  %v3508 = vadd.f32 %v3395, %v3507
  %v3509 = vpop.f32.mrb[0].mxu0
  %v3510 = vadd.f32 %v3397, %v3509
  %3511 = vmatprep.mubr.bf16.mxu0 %v1031
  %3512 = vmatmul.mubr.bf16.gmra.mrb[0].mxu0 %v1030
  %v3513 = vpop.f32.mrb[0].mxu0
  %v3514 = vadd.f32 %v3401, %v3513
  %v3515 = vpop.f32.mrb[0].mxu0
  %v3516 = vadd.f32 %v3403, %v3515
  %v3517 = vpop.f32.mrb[0].mxu0
  %v3518 = vadd.f32 %v3405, %v3517
  %v3519 = vpop.f32.mrb[0].mxu0
  %v3520 = vadd.f32 %v3407, %v3519
  %3521 = vdwg.mxu0
  %3522 = vmatprep.subr.bf16.mxu0 %v2299
  %3523 = vmatpush1.bf16.msra.mxu0 %v2298
  %3524 = vmatprep.subr.bf16.mxu0 %v2301
  %3525 = vmatpush1.bf16.msra.mxu0 %v2300
  %3526 = vmatprep.subr.bf16.mxu0 %v2303
  %3527 = vmatpush1.bf16.msra.mxu0 %v2302
  %3528 = vmatprep.subr.bf16.mxu0 %v2305
  %3529 = vmatpush1.bf16.msra.mxu0 %v2304
  %3530 = vmatprep.subr.bf16.mxu0 %v2307
  %3531 = vmatpush1.bf16.msra.mxu0 %v2306
  %3532 = vmatprep.subr.bf16.mxu0 %v2309
  %3533 = vmatpush1.bf16.msra.mxu0 %v2308
  %3534 = vmatprep.subr.bf16.mxu0 %v2311
  %3535 = vmatpush1.bf16.msra.mxu0 %v2310
  %3536 = vmatprep.subr.bf16.mxu0 %v2313
  %3537 = vmatpush1.bf16.msra.mxu0 %v2312
  %3538 = vmatprep.subr.bf16.mxu0 %v2315
  %3539 = vmatpush1.bf16.msra.mxu0 %v2314
  %3540 = vmatprep.subr.bf16.mxu0 %v2317
  %3541 = vmatpush1.bf16.msra.mxu0 %v2316
  %3542 = vmatprep.subr.bf16.mxu0 %v2319
  %3543 = vmatpush1.bf16.msra.mxu0 %v2318
  %3544 = vmatprep.subr.bf16.mxu0 %v2321
  %3545 = vmatpush1.bf16.msra.mxu0 %v2320
  %3546 = vmatprep.subr.bf16.mxu0 %v2323
  %3547 = vmatpush1.bf16.msra.mxu0 %v2322
  %3548 = vmatprep.subr.bf16.mxu0 %v2325
  %3549 = vmatpush1.bf16.msra.mxu0 %v2324
  %3550 = vmatprep.subr.bf16.mxu0 %v2327
  %3551 = vmatpush1.bf16.msra.mxu0 %v2326
  %3552 = vmatprep.subr.bf16.mxu0 %v2329
  %3553 = vmatpush1.bf16.msra.mxu0 %v2328
  %3554 = vmatprep.mubr.bf16.mxu0 %v907
  %3555 = vmatmul.mubr.bf16.gmra.mrb[0].mxu0 %v906
  %v3556 = vpop.f32.mrb[0].mxu0
  %v3557 = vadd.f32 %v3444, %v3556
  %v3558 = vpop.f32.mrb[0].mxu0
  %v3559 = vadd.f32 %v3446, %v3558
  %v3560 = vpop.f32.mrb[0].mxu0
  %v3561 = vadd.f32 %v3448, %v3560
  %v3562 = vpop.f32.mrb[0].mxu0
  %v3563 = vadd.f32 %v3450, %v3562
  %3564 = vmatprep.mubr.bf16.mxu0 %v925
  %3565 = vmatmul.mubr.bf16.gmra.mrb[0].mxu0 %v924
  %v3566 = vpop.f32.mrb[0].mxu0
  %v3567 = vadd.f32 %v3454, %v3566
  %v3568 = vpop.f32.mrb[0].mxu0
  %v3569 = vadd.f32 %v3456, %v3568
  %v3570 = vpop.f32.mrb[0].mxu0
  %v3571 = vadd.f32 %v3458, %v3570
  %v3572 = vpop.f32.mrb[0].mxu0
  %v3573 = vadd.f32 %v3460, %v3572
  %3574 = vmatprep.mubr.bf16.mxu0 %v943
  %3575 = vmatmul.mubr.bf16.gmra.mrb[0].mxu0 %v942
  %v3576 = vpop.f32.mrb[0].mxu0
  %v3577 = vadd.f32 %v3464, %v3576
  %v3578 = vpop.f32.mrb[0].mxu0
  %v3579 = vadd.f32 %v3466, %v3578
  %v3580 = vpop.f32.mrb[0].mxu0
  %v3581 = vadd.f32 %v3468, %v3580
  %v3582 = vpop.f32.mrb[0].mxu0
  %v3583 = vadd.f32 %v3470, %v3582
  %3584 = vmatprep.mubr.bf16.mxu0 %v961
  %3585 = vmatmul.mubr.bf16.gmra.mrb[0].mxu0 %v960
  %v3586 = vpop.f32.mrb[0].mxu0
  %v3587 = vadd.f32 %v3474, %v3586
  %v3588 = vpop.f32.mrb[0].mxu0
  %v3589 = vadd.f32 %v3476, %v3588
  %v3590 = vpop.f32.mrb[0].mxu0
  %v3591 = vadd.f32 %v3478, %v3590
  %v3592 = vpop.f32.mrb[0].mxu0
  %v3593 = vadd.f32 %v3480, %v3592
  %3594 = vmatprep.mubr.bf16.mxu0 %v979
  %3595 = vmatmul.mubr.bf16.gmra.mrb[0].mxu0 %v978
  %v3596 = vpop.f32.mrb[0].mxu0
  %v3597 = vadd.f32 %v3484, %v3596
  %v3598 = vpop.f32.mrb[0].mxu0
  %v3599 = vadd.f32 %v3486, %v3598
  %v3600 = vpop.f32.mrb[0].mxu0
  %v3601 = vadd.f32 %v3488, %v3600
  %v3602 = vpop.f32.mrb[0].mxu0
  %v3603 = vadd.f32 %v3490, %v3602
  %3604 = vmatprep.mubr.bf16.mxu0 %v997
  %3605 = vmatmul.mubr.bf16.gmra.mrb[0].mxu0 %v996
  %v3606 = vpop.f32.mrb[0].mxu0
  %v3607 = vadd.f32 %v3494, %v3606
  %v3608 = vpop.f32.mrb[0].mxu0
  %v3609 = vadd.f32 %v3496, %v3608
  %v3610 = vpop.f32.mrb[0].mxu0
  %v3611 = vadd.f32 %v3498, %v3610
  %v3612 = vpop.f32.mrb[0].mxu0
  %v3613 = vadd.f32 %v3500, %v3612
  %3614 = vmatprep.mubr.bf16.mxu0 %v1015
  %3615 = vmatmul.mubr.bf16.gmra.mrb[0].mxu0 %v1014
  %v3616 = vpop.f32.mrb[0].mxu0
  %v3617 = vadd.f32 %v3504, %v3616
  %v3618 = vpop.f32.mrb[0].mxu0
  %v3619 = vadd.f32 %v3506, %v3618
  %v3620 = vpop.f32.mrb[0].mxu0
  %v3621 = vadd.f32 %v3508, %v3620
  %v3622 = vpop.f32.mrb[0].mxu0
  %v3623 = vadd.f32 %v3510, %v3622
  %3624 = vmatprep.mubr.bf16.mxu0 %v1033
  %3625 = vmatmul.mubr.bf16.gmra.mrb[0].mxu0 %v1032
  %v3626 = vpop.f32.mrb[0].mxu0
  %v3627 = vadd.f32 %v3514, %v3626
  %v3628 = vpop.f32.mrb[0].mxu0
  %v3629 = vadd.f32 %v3516, %v3628
  %v3630 = vpop.f32.mrb[0].mxu0
  %v3631 = vadd.f32 %v3518, %v3630
  %v3632 = vpop.f32.mrb[0].mxu0
  %v3633 = vadd.f32 %v3520, %v3632
  %3634 = vdwg.mxu0
  %vm3635 = vcmp.ge.f32.partialorder %v3557, 0.0
  %vm3636 = vcmp.ge.f32.partialorder %v3559, 0.0
  %vm3637 = vcmp.ge.f32.partialorder %v3561, 0.0
  %vm3638 = vcmp.ge.f32.partialorder %v3563, 0.0
  %vm3639 = vcmp.ge.f32.partialorder %v3567, 0.0
  %vm3640 = vcmp.ge.f32.partialorder %v3569, 0.0
  %vm3641 = vcmp.ge.f32.partialorder %v3571, 0.0
  %vm3642 = vcmp.ge.f32.partialorder %v3573, 0.0
  %vm3643 = vcmp.ge.f32.partialorder %v3577, 0.0
  %vm3644 = vcmp.ge.f32.partialorder %v3579, 0.0
  %vm3645 = vcmp.ge.f32.partialorder %v3581, 0.0
  %vm3646 = vcmp.ge.f32.partialorder %v3583, 0.0
  %vm3647 = vcmp.ge.f32.partialorder %v3587, 0.0
  %vm3648 = vcmp.ge.f32.partialorder %v3589, 0.0
  %vm3649 = vcmp.ge.f32.partialorder %v3591, 0.0
  %vm3650 = vcmp.ge.f32.partialorder %v3593, 0.0
  %vm3651 = vcmp.ge.f32.partialorder %v3597, 0.0
  %vm3652 = vcmp.ge.f32.partialorder %v3599, 0.0
  %vm3653 = vcmp.ge.f32.partialorder %v3601, 0.0
  %vm3654 = vcmp.ge.f32.partialorder %v3603, 0.0
  %vm3655 = vcmp.ge.f32.partialorder %v3607, 0.0
  %vm3656 = vcmp.ge.f32.partialorder %v3609, 0.0
  %vm3657 = vcmp.ge.f32.partialorder %v3611, 0.0
  %vm3658 = vcmp.ge.f32.partialorder %v3613, 0.0
  %vm3659 = vcmp.ge.f32.partialorder %v3617, 0.0
  %vm3660 = vcmp.ge.f32.partialorder %v3619, 0.0
  %vm3661 = vcmp.ge.f32.partialorder %v3621, 0.0
  %vm3662 = vcmp.ge.f32.partialorder %v3623, 0.0
  %vm3663 = vcmp.ge.f32.partialorder %v3627, 0.0
  %vm3664 = vcmp.ge.f32.partialorder %v3629, 0.0
  %vm3665 = vcmp.ge.f32.partialorder %v3631, 0.0
  %vm3666 = vcmp.ge.f32.partialorder %v3633, 0.0
  %v3667 = vmul.f32 %v3557, 0.1
  %v3668 = vmul.f32 %v3559, 0.1
  %v3669 = vmul.f32 %v3561, 0.1
  %v3670 = vmul.f32 %v3563, 0.1
  %v3671 = vmul.f32 %v3567, 0.1
  %v3672 = vmul.f32 %v3569, 0.1
  %v3673 = vmul.f32 %v3571, 0.1
  %v3674 = vmul.f32 %v3573, 0.1
  %v3675 = vmul.f32 %v3577, 0.1
  %v3676 = vmul.f32 %v3579, 0.1
  %v3677 = vmul.f32 %v3581, 0.1
  %v3678 = vmul.f32 %v3583, 0.1
  %v3679 = vmul.f32 %v3587, 0.1
  %v3680 = vmul.f32 %v3589, 0.1
  %v3681 = vmul.f32 %v3591, 0.1
  %v3682 = vmul.f32 %v3593, 0.1
  %v3683 = vmul.f32 %v3597, 0.1
  %v3684 = vmul.f32 %v3599, 0.1
  %v3685 = vmul.f32 %v3601, 0.1
  %v3686 = vmul.f32 %v3603, 0.1
  %v3687 = vmul.f32 %v3607, 0.1
  %v3688 = vmul.f32 %v3609, 0.1
  %v3689 = vmul.f32 %v3611, 0.1
  %v3690 = vmul.f32 %v3613, 0.1
  %v3691 = vmul.f32 %v3617, 0.1
  %v3692 = vmul.f32 %v3619, 0.1
  %v3693 = vmul.f32 %v3621, 0.1
  %v3694 = vmul.f32 %v3623, 0.1
  %v3695 = vmul.f32 %v3627, 0.1
  %v3696 = vmul.f32 %v3629, 0.1
  %v3697 = vmul.f32 %v3631, 0.1
  %v3698 = vmul.f32 %v3633, 0.1
  %v3699 = vsel %vm3635, %v3557, %v3667
  %v3700 = vsel %vm3636, %v3559, %v3668
  %v3701 = vsel %vm3637, %v3561, %v3669
  %v3702 = vsel %vm3638, %v3563, %v3670
  %v3703 = vsel %vm3639, %v3567, %v3671
  %v3704 = vsel %vm3640, %v3569, %v3672
  %v3705 = vsel %vm3641, %v3571, %v3673
  %v3706 = vsel %vm3642, %v3573, %v3674
  %v3707 = vsel %vm3643, %v3577, %v3675
  %v3708 = vsel %vm3644, %v3579, %v3676
  %v3709 = vsel %vm3645, %v3581, %v3677
  %v3710 = vsel %vm3646, %v3583, %v3678
  %v3711 = vsel %vm3647, %v3587, %v3679
  %v3712 = vsel %vm3648, %v3589, %v3680
  %v3713 = vsel %vm3649, %v3591, %v3681
  %v3714 = vsel %vm3650, %v3593, %v3682
  %v3715 = vsel %vm3651, %v3597, %v3683
  %v3716 = vsel %vm3652, %v3599, %v3684
  %v3717 = vsel %vm3653, %v3601, %v3685
  %v3718 = vsel %vm3654, %v3603, %v3686
  %v3719 = vsel %vm3655, %v3607, %v3687
  %v3720 = vsel %vm3656, %v3609, %v3688
  %v3721 = vsel %vm3657, %v3611, %v3689
  %v3722 = vsel %vm3658, %v3613, %v3690
  %v3723 = vsel %vm3659, %v3617, %v3691
  %v3724 = vsel %vm3660, %v3619, %v3692
  %v3725 = vsel %vm3661, %v3621, %v3693
  %v3726 = vsel %vm3662, %v3623, %v3694
  %v3727 = vsel %vm3663, %v3627, %v3695
  %v3728 = vsel %vm3664, %v3629, %v3696
  %v3729 = vsel %vm3665, %v3631, %v3697
  %v3730 = vsel %vm3666, %v3633, %v3698
  %3731 = vst [vmem:[%s3] sm:$0xff] %v3699
  %3732 = vst [vmem:[%s3 + $0x8] sm:$0xff] %v3700
  %3733 = vst [vmem:[%s3 + $0x10] sm:$0xff] %v3701
  %3734 = vst [vmem:[%s3 + $0x18] sm:$0xff] %v3702
  %3735 = vst [vmem:[%s3 + $0x20] sm:$0xff] %v3703
  %3736 = vst [vmem:[%s3 + $0x28] sm:$0xff] %v3704
  %3737 = vst [vmem:[%s3 + $0x30] sm:$0xff] %v3705
  %3738 = vst [vmem:[%s3 + $0x38] sm:$0xff] %v3706
  %3739 = vst [vmem:[%s3 + $0x40] sm:$0xff] %v3707
  %3740 = vst [vmem:[%s3 + $0x48] sm:$0xff] %v3708
  %3741 = vst [vmem:[%s3 + $0x50] sm:$0xff] %v3709
  %3742 = vst [vmem:[%s3 + $0x58] sm:$0xff] %v3710
  %3743 = vst [vmem:[%s3 + $0x60] sm:$0xff] %v3711
  %3744 = vst [vmem:[%s3 + $0x68] sm:$0xff] %v3712
  %3745 = vst [vmem:[%s3 + $0x70] sm:$0xff] %v3713
  %3746 = vst [vmem:[%s3 + $0x78] sm:$0xff] %v3714
  %3747 = vst [vmem:[%s3 + $0x80] sm:$0xff] %v3715
  %3748 = vst [vmem:[%s3 + $0x88] sm:$0xff] %v3716
  %3749 = vst [vmem:[%s3 + $0x90] sm:$0xff] %v3717
  %3750 = vst [vmem:[%s3 + $0x98] sm:$0xff] %v3718
  %3751 = vst [vmem:[%s3 + $0xa0] sm:$0xff] %v3719
  %3752 = vst [vmem:[%s3 + $0xa8] sm:$0xff] %v3720
  %3753 = vst [vmem:[%s3 + $0xb0] sm:$0xff] %v3721
  %3754 = vst [vmem:[%s3 + $0xb8] sm:$0xff] %v3722
  %3755 = vst [vmem:[%s3 + $0xc0] sm:$0xff] %v3723
  %3756 = vst [vmem:[%s3 + $0xc8] sm:$0xff] %v3724
  %3757 = vst [vmem:[%s3 + $0xd0] sm:$0xff] %v3725
  %3758 = vst [vmem:[%s3 + $0xd8] sm:$0xff] %v3726
  %3759 = vst [vmem:[%s3 + $0xe0] sm:$0xff] %v3727
  %3760 = vst [vmem:[%s3 + $0xe8] sm:$0xff] %v3728
  %3761 = vst [vmem:[%s3 + $0xf0] sm:$0xff] %v3729
  %3762 = vst [vmem:[%s3 + $0xf8] sm:$0xff] %v3730
  // Predicated region
  $region14: #{pi_model_forward.16} parent=0 // pred_check
    _
  $region15: #{pi_model_forward.16} parent=0 // pred_check_branch
    %3764 = sbr.rel (0) target = $region17
  $region16: #{pi_model_forward.16} parent=0 // pred_region
    _
  $region17: #{pi_model_forward.16} parent=0 // pred_fallthru
    _
  // Predicated region
  $region18: #{pi_model_forward.16} parent=0 // pred_check
    _
  $region19: #{pi_model_forward.16} parent=0 // pred_check_branch
    %3766 = sbr.rel (0) target = $region21
  $region20: #{pi_model_forward.16} parent=0 // pred_region
    _
  $region21: #{pi_model_forward.16} parent=0 // pred_fallthru
    _

// kernel: pi_model_forward.20
$region0: #{pi_model_forward.20}
  #allocation0 [shape = 'u32[]', space=smem, size = 0x4, offset = 0x4, fixed_abs, tag = 'smem constant byte address 0x4 - core index']
  #allocation1 [shape = 'u32[144,128]{1,0:T(1,128)}', space=vmem, size = 0x12000, scoped, tag = 'internal scratch']
  %s0 = inlined_call_operand.vmem [shape: bf16[8,512], index: 0, kind: input, shape index: {}]
  %s1 = inlined_call_operand.vmem [shape: bf16[512,256], index: 1, kind: input, shape index: {}]
  %s2 = inlined_call_operand.vmem [shape: f32[1,256], index: 2, kind: input, shape index: {}]
  %s3 = inlined_call_operand.vmem [shape: bf16[256,128], index: 3, kind: input, shape index: {}]
  %s4 = inlined_call_operand.vmem [shape: f32[1,128], index: 4, kind: input, shape index: {}]
  %s5 = inlined_call_operand.vmem [shape: f32[8,128], index: 5, kind: output, shape index: {}]
  %s6 = sld [smem:[#allocation0]]
  $region30: #{pi_model_forward.20} parent=0
    _
  %s8 = ssub.s32 1, %s6
  %s9 = scalar_select 0, %s8, %s6
  // Predicated region
  $region2: #{pi_model_forward.20} parent=0 // pred_check
    _
  $region3: #{pi_model_forward.20} parent=0 // pred_check_branch
    %11 = sbr.rel (0) target = $region5
  $region4: #{pi_model_forward.20} parent=0 // pred_region
    _
  $region5: #{pi_model_forward.20} parent=0 // pred_fallthru
    _
  // Predicated region
  $region6: #{pi_model_forward.20} parent=0 // pred_check
    _
  $region7: #{pi_model_forward.20} parent=0 // pred_check_branch
    %13 = sbr.rel (0) target = $region9
  $region8: #{pi_model_forward.20} parent=0 // pred_region
    _
  $region9: #{pi_model_forward.20} parent=0 // pred_fallthru
    _
  // Predicated region
  $region10: #{pi_model_forward.20} parent=0 // pred_check
    _
  $region11: #{pi_model_forward.20} parent=0 // pred_check_branch
    %15 = sbr.rel (0) target = $region13
  $region12: #{pi_model_forward.20} parent=0 // pred_region
    _
  $region13: #{pi_model_forward.20} parent=0 // pred_fallthru
    _
  // Predicated region
  $region14: #{pi_model_forward.20} parent=0 // pred_check
    _
  $region15: #{pi_model_forward.20} parent=0 // pred_check_branch
    %17 = sbr.rel (0) target = $region17
  $region16: #{pi_model_forward.20} parent=0 // pred_region
    _
  $region17: #{pi_model_forward.20} parent=0 // pred_fallthru
    _
  // Predicated region
  $region18: #{pi_model_forward.20} parent=0 // pred_check
    _
  $region19: #{pi_model_forward.20} parent=0 // pred_check_branch
    %19 = sbr.rel (0) target = $region21
  $region20: #{pi_model_forward.20} parent=0 // pred_region
    _
  $region21: #{pi_model_forward.20} parent=0 // pred_fallthru
    _
  %v21 = vld [vmem:[%s0] sm:$0xff]
  %v22 = vld [vmem:[%s0 + $0x8] sm:$0xff]
  %v23 = vld [vmem:[%s1] sm:$0xff]
  %v24 = vld [vmem:[%s1 + $0x8] sm:$0xff]
  %v25 = vld [vmem:[%s1 + $0x10] sm:$0xff]
  %v26 = vld [vmem:[%s1 + $0x18] sm:$0xff]
  %v27 = vld [vmem:[%s1 + $0x20] sm:$0xff]
  %v28 = vld [vmem:[%s1 + $0x28] sm:$0xff]
  %v29 = vld [vmem:[%s1 + $0x30] sm:$0xff]
  %v30 = vld [vmem:[%s1 + $0x38] sm:$0xff]
  %v31 = vld [vmem:[%s1 + $0x40] sm:$0xff]
  %v32 = vld [vmem:[%s1 + $0x48] sm:$0xff]
  %v33 = vld [vmem:[%s1 + $0x50] sm:$0xff]
  %v34 = vld [vmem:[%s1 + $0x58] sm:$0xff]
  %v35 = vld [vmem:[%s1 + $0x60] sm:$0xff]
  %v36 = vld [vmem:[%s1 + $0x68] sm:$0xff]
  %v37 = vld [vmem:[%s1 + $0x70] sm:$0xff]
  %v38 = vld [vmem:[%s1 + $0x78] sm:$0xff]
  %v39 = vld [vmem:[%s1 + $0x80] sm:$0xff]
  %v40 = vld [vmem:[%s1 + $0x88] sm:$0xff]
  %v41 = vld [vmem:[%s1 + $0x90] sm:$0xff]
  %v42 = vld [vmem:[%s1 + $0x98] sm:$0xff]
  %v43 = vld [vmem:[%s1 + $0xa0] sm:$0xff]
  %v44 = vld [vmem:[%s1 + $0xa8] sm:$0xff]
  %v45 = vld [vmem:[%s1 + $0xb0] sm:$0xff]
  %v46 = vld [vmem:[%s1 + $0xb8] sm:$0xff]
  %v47 = vld [vmem:[%s1 + $0xc0] sm:$0xff]
  %v48 = vld [vmem:[%s1 + $0xc8] sm:$0xff]
  %v49 = vld [vmem:[%s1 + $0xd0] sm:$0xff]
  %v50 = vld [vmem:[%s1 + $0xd8] sm:$0xff]
  %v51 = vld [vmem:[%s1 + $0xe0] sm:$0xff]
  %v52 = vld [vmem:[%s1 + $0xe8] sm:$0xff]
  %v53 = vld [vmem:[%s1 + $0xf0] sm:$0xff]
  %v54 = vld [vmem:[%s1 + $0xf8] sm:$0xff]
  %v55 = vld [vmem:[%s1 + $0x100] sm:$0xff]
  %v56 = vld [vmem:[%s1 + $0x108] sm:$0xff]
  %v57 = vld [vmem:[%s1 + $0x110] sm:$0xff]
  %v58 = vld [vmem:[%s1 + $0x118] sm:$0xff]
  %v59 = vld [vmem:[%s1 + $0x120] sm:$0xff]
  %v60 = vld [vmem:[%s1 + $0x128] sm:$0xff]
  %v61 = vld [vmem:[%s1 + $0x130] sm:$0xff]
  %v62 = vld [vmem:[%s1 + $0x138] sm:$0xff]
  %v63 = vld [vmem:[%s1 + $0x140] sm:$0xff]
  %v64 = vld [vmem:[%s1 + $0x148] sm:$0xff]
  %v65 = vld [vmem:[%s1 + $0x150] sm:$0xff]
  %v66 = vld [vmem:[%s1 + $0x158] sm:$0xff]
  %v67 = vld [vmem:[%s1 + $0x160] sm:$0xff]
  %v68 = vld [vmem:[%s1 + $0x168] sm:$0xff]
  %v69 = vld [vmem:[%s1 + $0x170] sm:$0xff]
  %v70 = vld [vmem:[%s1 + $0x178] sm:$0xff]
  %v71 = vld [vmem:[%s1 + $0x180] sm:$0xff]
  %v72 = vld [vmem:[%s1 + $0x188] sm:$0xff]
  %v73 = vld [vmem:[%s1 + $0x190] sm:$0xff]
  %v74 = vld [vmem:[%s1 + $0x198] sm:$0xff]
  %v75 = vld [vmem:[%s1 + $0x1a0] sm:$0xff]
  %v76 = vld [vmem:[%s1 + $0x1a8] sm:$0xff]
  %v77 = vld [vmem:[%s1 + $0x1b0] sm:$0xff]
  %v78 = vld [vmem:[%s1 + $0x1b8] sm:$0xff]
  %v79 = vld [vmem:[%s1 + $0x1c0] sm:$0xff]
  %v80 = vld [vmem:[%s1 + $0x1c8] sm:$0xff]
  %v81 = vld [vmem:[%s1 + $0x1d0] sm:$0xff]
  %v82 = vld [vmem:[%s1 + $0x1d8] sm:$0xff]
  %v83 = vld [vmem:[%s1 + $0x1e0] sm:$0xff]
  %v84 = vld [vmem:[%s1 + $0x1e8] sm:$0xff]
  %v85 = vld [vmem:[%s1 + $0x1f0] sm:$0xff]
  %v86 = vld [vmem:[%s1 + $0x1f8] sm:$0xff]
  %v87 = vld [vmem:[%s2] sm:$0x3]
  %v89 = vlaneseq
  %v90 = vshrl.u32 %v89, 7
  %v91 = vsub.s32 0, %v90
  %v92 = vrot.slane %v87, %v91
  %v93 = vlaneseq
  %v94 = vshrl.u32 %v93, 7
  %v95 = vsub.s32 1, %v94
  %v96 = vrot.slane %v87, %v95
  %v101 = vunpack.c.l.b16 %v21
  %v102 = vunpack.c.h.b16 %v21
  %v103 = vunpack.c.l.b16 %v22
  %v104 = vunpack.c.h.b16 %v22
  %v105 = vpack.c.b16 %v101, %v101
  %v106 = vpack.c.b16 %v102, %v102
  %v107 = vpack.c.b16 %v103, %v103
  %v108 = vpack.c.b16 %v104, %v104
  %v177 = vunpack.c.l.b16 %v23
  %v178 = vunpack.c.h.b16 %v23
  %v179 = vunpack.c.l.b16 %v24
  %v180 = vunpack.c.h.b16 %v24
  %v181 = vunpack.c.l.b16 %v25
  %v182 = vunpack.c.h.b16 %v25
  %v183 = vunpack.c.l.b16 %v26
  %v184 = vunpack.c.h.b16 %v26
  %v185 = vunpack.c.l.b16 %v27
  %v186 = vunpack.c.h.b16 %v27
  %v187 = vunpack.c.l.b16 %v28
  %v188 = vunpack.c.h.b16 %v28
  %v189 = vunpack.c.l.b16 %v29
  %v190 = vunpack.c.h.b16 %v29
  %v191 = vunpack.c.l.b16 %v30
  %v192 = vunpack.c.h.b16 %v30
  %v193 = vunpack.c.l.b16 %v31
  %v194 = vunpack.c.h.b16 %v31
  %v195 = vunpack.c.l.b16 %v32
  %v196 = vunpack.c.h.b16 %v32
  %v197 = vunpack.c.l.b16 %v33
  %v198 = vunpack.c.h.b16 %v33
  %v199 = vunpack.c.l.b16 %v34
  %v200 = vunpack.c.h.b16 %v34
  %v201 = vunpack.c.l.b16 %v35
  %v202 = vunpack.c.h.b16 %v35
  %v203 = vunpack.c.l.b16 %v36
  %v204 = vunpack.c.h.b16 %v36
  %v205 = vunpack.c.l.b16 %v37
  %v206 = vunpack.c.h.b16 %v37
  %v207 = vunpack.c.l.b16 %v38
  %v208 = vunpack.c.h.b16 %v38
  %v209 = vunpack.c.l.b16 %v39
  %v210 = vunpack.c.h.b16 %v39
  %v211 = vunpack.c.l.b16 %v40
  %v212 = vunpack.c.h.b16 %v40
  %v213 = vunpack.c.l.b16 %v41
  %v214 = vunpack.c.h.b16 %v41
  %v215 = vunpack.c.l.b16 %v42
  %v216 = vunpack.c.h.b16 %v42
  %v217 = vunpack.c.l.b16 %v43
  %v218 = vunpack.c.h.b16 %v43
  %v219 = vunpack.c.l.b16 %v44
  %v220 = vunpack.c.h.b16 %v44
  %v221 = vunpack.c.l.b16 %v45
  %v222 = vunpack.c.h.b16 %v45
  %v223 = vunpack.c.l.b16 %v46
  %v224 = vunpack.c.h.b16 %v46
  %v225 = vunpack.c.l.b16 %v47
  %v226 = vunpack.c.h.b16 %v47
  %v227 = vunpack.c.l.b16 %v48
  %v228 = vunpack.c.h.b16 %v48
  %v229 = vunpack.c.l.b16 %v49
  %v230 = vunpack.c.h.b16 %v49
  %v231 = vunpack.c.l.b16 %v50
  %v232 = vunpack.c.h.b16 %v50
  %v233 = vunpack.c.l.b16 %v51
  %v234 = vunpack.c.h.b16 %v51
  %v235 = vunpack.c.l.b16 %v52
  %v236 = vunpack.c.h.b16 %v52
  %v237 = vunpack.c.l.b16 %v53
  %v238 = vunpack.c.h.b16 %v53
  %v239 = vunpack.c.l.b16 %v54
  %v240 = vunpack.c.h.b16 %v54
  %v241 = vunpack.c.l.b16 %v55
  %v242 = vunpack.c.h.b16 %v55
  %v243 = vunpack.c.l.b16 %v56
  %v244 = vunpack.c.h.b16 %v56
  %v245 = vunpack.c.l.b16 %v57
  %v246 = vunpack.c.h.b16 %v57
  %v247 = vunpack.c.l.b16 %v58
  %v248 = vunpack.c.h.b16 %v58
  %v249 = vunpack.c.l.b16 %v59
  %v250 = vunpack.c.h.b16 %v59
  %v251 = vunpack.c.l.b16 %v60
  %v252 = vunpack.c.h.b16 %v60
  %v253 = vunpack.c.l.b16 %v61
  %v254 = vunpack.c.h.b16 %v61
  %v255 = vunpack.c.l.b16 %v62
  %v256 = vunpack.c.h.b16 %v62
  %v257 = vunpack.c.l.b16 %v63
  %v258 = vunpack.c.h.b16 %v63
  %v259 = vunpack.c.l.b16 %v64
  %v260 = vunpack.c.h.b16 %v64
  %v261 = vunpack.c.l.b16 %v65
  %v262 = vunpack.c.h.b16 %v65
  %v263 = vunpack.c.l.b16 %v66
  %v264 = vunpack.c.h.b16 %v66
  %v265 = vunpack.c.l.b16 %v67
  %v266 = vunpack.c.h.b16 %v67
  %v267 = vunpack.c.l.b16 %v68
  %v268 = vunpack.c.h.b16 %v68
  %v269 = vunpack.c.l.b16 %v69
  %v270 = vunpack.c.h.b16 %v69
  %v271 = vunpack.c.l.b16 %v70
  %v272 = vunpack.c.h.b16 %v70
  %v273 = vunpack.c.l.b16 %v71
  %v274 = vunpack.c.h.b16 %v71
  %v275 = vunpack.c.l.b16 %v72
  %v276 = vunpack.c.h.b16 %v72
  %v277 = vunpack.c.l.b16 %v73
  %v278 = vunpack.c.h.b16 %v73
  %v279 = vunpack.c.l.b16 %v74
  %v280 = vunpack.c.h.b16 %v74
  %v281 = vunpack.c.l.b16 %v75
  %v282 = vunpack.c.h.b16 %v75
  %v283 = vunpack.c.l.b16 %v76
  %v284 = vunpack.c.h.b16 %v76
  %v285 = vunpack.c.l.b16 %v77
  %v286 = vunpack.c.h.b16 %v77
  %v287 = vunpack.c.l.b16 %v78
  %v288 = vunpack.c.h.b16 %v78
  %v289 = vunpack.c.l.b16 %v79
  %v290 = vunpack.c.h.b16 %v79
  %v291 = vunpack.c.l.b16 %v80
  %v292 = vunpack.c.h.b16 %v80
  %v293 = vunpack.c.l.b16 %v81
  %v294 = vunpack.c.h.b16 %v81
  %v295 = vunpack.c.l.b16 %v82
  %v296 = vunpack.c.h.b16 %v82
  %v297 = vunpack.c.l.b16 %v83
  %v298 = vunpack.c.h.b16 %v83
  %v299 = vunpack.c.l.b16 %v84
  %v300 = vunpack.c.h.b16 %v84
  %v301 = vunpack.c.l.b16 %v85
  %v302 = vunpack.c.h.b16 %v85
  %v303 = vunpack.c.l.b16 %v86
  %v304 = vunpack.c.h.b16 %v86
  %v305 = vpack.c.b16 %v179, %v177
  %v306 = vpack.c.b16 %v180, %v178
  %v307 = vpack.c.b16 %v183, %v181
  %v308 = vpack.c.b16 %v184, %v182
  %v309 = vpack.c.b16 %v187, %v185
  %v310 = vpack.c.b16 %v188, %v186
  %v311 = vpack.c.b16 %v191, %v189
  %v312 = vpack.c.b16 %v192, %v190
  %v313 = vpack.c.b16 %v195, %v193
  %v314 = vpack.c.b16 %v196, %v194
  %v315 = vpack.c.b16 %v199, %v197
  %v316 = vpack.c.b16 %v200, %v198
  %v317 = vpack.c.b16 %v203, %v201
  %v318 = vpack.c.b16 %v204, %v202
  %v319 = vpack.c.b16 %v207, %v205
  %v320 = vpack.c.b16 %v208, %v206
  %v321 = vpack.c.b16 %v211, %v209
  %v322 = vpack.c.b16 %v212, %v210
  %v323 = vpack.c.b16 %v215, %v213
  %v324 = vpack.c.b16 %v216, %v214
  %v325 = vpack.c.b16 %v219, %v217
  %v326 = vpack.c.b16 %v220, %v218
  %v327 = vpack.c.b16 %v223, %v221
  %v328 = vpack.c.b16 %v224, %v222
  %v329 = vpack.c.b16 %v227, %v225
  %v330 = vpack.c.b16 %v228, %v226
  %v331 = vpack.c.b16 %v231, %v229
  %v332 = vpack.c.b16 %v232, %v230
  %v333 = vpack.c.b16 %v235, %v233
  %v334 = vpack.c.b16 %v236, %v234
  %v335 = vpack.c.b16 %v239, %v237
  %v336 = vpack.c.b16 %v240, %v238
  %v337 = vpack.c.b16 %v243, %v241
  %v338 = vpack.c.b16 %v244, %v242
  %v339 = vpack.c.b16 %v247, %v245
  %v340 = vpack.c.b16 %v248, %v246
  %v341 = vpack.c.b16 %v251, %v249
  %v342 = vpack.c.b16 %v252, %v250
  %v343 = vpack.c.b16 %v255, %v253
  %v344 = vpack.c.b16 %v256, %v254
  %v345 = vpack.c.b16 %v259, %v257
  %v346 = vpack.c.b16 %v260, %v258
  %v347 = vpack.c.b16 %v263, %v261
  %v348 = vpack.c.b16 %v264, %v262
  %v349 = vpack.c.b16 %v267, %v265
  %v350 = vpack.c.b16 %v268, %v266
  %v351 = vpack.c.b16 %v271, %v269
  %v352 = vpack.c.b16 %v272, %v270
  %v353 = vpack.c.b16 %v275, %v273
  %v354 = vpack.c.b16 %v276, %v274
  %v355 = vpack.c.b16 %v279, %v277
  %v356 = vpack.c.b16 %v280, %v278
  %v357 = vpack.c.b16 %v283, %v281
  %v358 = vpack.c.b16 %v284, %v282
  %v359 = vpack.c.b16 %v287, %v285
  %v360 = vpack.c.b16 %v288, %v286
  %v361 = vpack.c.b16 %v291, %v289
  %v362 = vpack.c.b16 %v292, %v290
  %v363 = vpack.c.b16 %v295, %v293
  %v364 = vpack.c.b16 %v296, %v294
  %v365 = vpack.c.b16 %v299, %v297
  %v366 = vpack.c.b16 %v300, %v298
  %v367 = vpack.c.b16 %v303, %v301
  %v368 = vpack.c.b16 %v304, %v302
  %433 = vmatprep.subr.bf16.mxu0 %v306
  %434 = vmatpush1.bf16.msra.mxu0 %v305
  %435 = vmatprep.subr.bf16.mxu0 %v308
  %436 = vmatpush1.bf16.msra.mxu0 %v307
  %437 = vmatprep.subr.bf16.mxu0 %v310
  %438 = vmatpush1.bf16.msra.mxu0 %v309
  %439 = vmatprep.subr.bf16.mxu0 %v312
  %440 = vmatpush1.bf16.msra.mxu0 %v311
  %441 = vmatprep.subr.bf16.mxu0 %v314
  %442 = vmatpush1.bf16.msra.mxu0 %v313
  %443 = vmatprep.subr.bf16.mxu0 %v316
  %444 = vmatpush1.bf16.msra.mxu0 %v315
  %445 = vmatprep.subr.bf16.mxu0 %v318
  %446 = vmatpush1.bf16.msra.mxu0 %v317
  %447 = vmatprep.subr.bf16.mxu0 %v320
  %448 = vmatpush1.bf16.msra.mxu0 %v319
  %449 = vmatprep.subr.bf16.mxu0 %v322
  %450 = vmatpush1.bf16.msra.mxu0 %v321
  %451 = vmatprep.subr.bf16.mxu0 %v324
  %452 = vmatpush1.bf16.msra.mxu0 %v323
  %453 = vmatprep.subr.bf16.mxu0 %v326
  %454 = vmatpush1.bf16.msra.mxu0 %v325
  %455 = vmatprep.subr.bf16.mxu0 %v328
  %456 = vmatpush1.bf16.msra.mxu0 %v327
  %457 = vmatprep.subr.bf16.mxu0 %v330
  %458 = vmatpush1.bf16.msra.mxu0 %v329
  %459 = vmatprep.subr.bf16.mxu0 %v332
  %460 = vmatpush1.bf16.msra.mxu0 %v331
  %461 = vmatprep.subr.bf16.mxu0 %v334
  %462 = vmatpush1.bf16.msra.mxu0 %v333
  %463 = vmatprep.subr.bf16.mxu0 %v336
  %464 = vmatpush1.bf16.msra.mxu0 %v335
  %465 = vmatprep.mubr.bf16.mxu0 %v106
  %466 = vmatmul.mubr.bf16.gmra.mrb[0].mxu0 %v105
  %v467 = vpop.f32.mrb[0].mxu0
  %v468 = vadd.f32 %v92, %v467
  %v469 = vpop.f32.mrb[0].mxu0
  %v470 = vadd.f32 %v96, %v469
  %v471 = vpop.f32.mrb[0].mxu0
  %v472 = vpop.f32.mrb[0].mxu0
  %473 = vdwg.mxu0
  %474 = vmatprep.subr.bf16.mxu0 %v338
  %475 = vmatpush1.bf16.msra.mxu0 %v337
  %476 = vmatprep.subr.bf16.mxu0 %v340
  %477 = vmatpush1.bf16.msra.mxu0 %v339
  %478 = vmatprep.subr.bf16.mxu0 %v342
  %479 = vmatpush1.bf16.msra.mxu0 %v341
  %480 = vmatprep.subr.bf16.mxu0 %v344
  %481 = vmatpush1.bf16.msra.mxu0 %v343
  %482 = vmatprep.subr.bf16.mxu0 %v346
  %483 = vmatpush1.bf16.msra.mxu0 %v345
  %484 = vmatprep.subr.bf16.mxu0 %v348
  %485 = vmatpush1.bf16.msra.mxu0 %v347
  %486 = vmatprep.subr.bf16.mxu0 %v350
  %487 = vmatpush1.bf16.msra.mxu0 %v349
  %488 = vmatprep.subr.bf16.mxu0 %v352
  %489 = vmatpush1.bf16.msra.mxu0 %v351
  %490 = vmatprep.subr.bf16.mxu0 %v354
  %491 = vmatpush1.bf16.msra.mxu0 %v353
  %492 = vmatprep.subr.bf16.mxu0 %v356
  %493 = vmatpush1.bf16.msra.mxu0 %v355
  %494 = vmatprep.subr.bf16.mxu0 %v358
  %495 = vmatpush1.bf16.msra.mxu0 %v357
  %496 = vmatprep.subr.bf16.mxu0 %v360
  %497 = vmatpush1.bf16.msra.mxu0 %v359
  %498 = vmatprep.subr.bf16.mxu0 %v362
  %499 = vmatpush1.bf16.msra.mxu0 %v361
  %500 = vmatprep.subr.bf16.mxu0 %v364
  %501 = vmatpush1.bf16.msra.mxu0 %v363
  %502 = vmatprep.subr.bf16.mxu0 %v366
  %503 = vmatpush1.bf16.msra.mxu0 %v365
  %504 = vmatprep.subr.bf16.mxu0 %v368
  %505 = vmatpush1.bf16.msra.mxu0 %v367
  %506 = vmatprep.mubr.bf16.mxu0 %v108
  %507 = vmatmul.mubr.bf16.gmra.mrb[0].mxu0 %v107
  %v508 = vpop.f32.mrb[0].mxu0
  %v509 = vadd.f32 %v468, %v508
  %v510 = vpop.f32.mrb[0].mxu0
  %v511 = vadd.f32 %v470, %v510
  %v512 = vpop.f32.mrb[0].mxu0
  %v513 = vpop.f32.mrb[0].mxu0
  %514 = vdwg.mxu0
  %vm515 = vcmp.ge.f32.partialorder %v509, 0.0
  %vm516 = vcmp.ge.f32.partialorder %v511, 0.0
  %v517 = vmul.f32 %v509, 0.1
  %v518 = vmul.f32 %v511, 0.1
  %v519 = vsel %vm515, %v509, %v517
  %v520 = vsel %vm516, %v511, %v518
  %v521 = vpack.c.bf16 %v519, %v519
  %v522 = vpack.c.bf16 %v520, %v520
  %v523 = vld [vmem:[%s3] sm:$0xf]
  %v524 = vld [vmem:[%s3 + $0x4] sm:$0xf]
  %v525 = vld [vmem:[%s3 + $0x8] sm:$0xf]
  %v526 = vld [vmem:[%s3 + $0xc] sm:$0xf]
  %v527 = vld [vmem:[%s3 + $0x10] sm:$0xf]
  %v528 = vld [vmem:[%s3 + $0x14] sm:$0xf]
  %v529 = vld [vmem:[%s3 + $0x18] sm:$0xf]
  %v530 = vld [vmem:[%s3 + $0x1c] sm:$0xf]
  %v531 = vld [vmem:[%s3 + $0x20] sm:$0xf]
  %v532 = vld [vmem:[%s3 + $0x24] sm:$0xf]
  %v533 = vld [vmem:[%s3 + $0x28] sm:$0xf]
  %v534 = vld [vmem:[%s3 + $0x2c] sm:$0xf]
  %v535 = vld [vmem:[%s3 + $0x30] sm:$0xf]
  %v536 = vld [vmem:[%s3 + $0x34] sm:$0xf]
  %v537 = vld [vmem:[%s3 + $0x38] sm:$0xf]
  %v538 = vld [vmem:[%s3 + $0x3c] sm:$0xf]
  %v539 = vld [vmem:[%s3 + $0x40] sm:$0xf]
  %v540 = vld [vmem:[%s3 + $0x44] sm:$0xf]
  %v541 = vld [vmem:[%s3 + $0x48] sm:$0xf]
  %v542 = vld [vmem:[%s3 + $0x4c] sm:$0xf]
  %v543 = vld [vmem:[%s3 + $0x50] sm:$0xf]
  %v544 = vld [vmem:[%s3 + $0x54] sm:$0xf]
  %v545 = vld [vmem:[%s3 + $0x58] sm:$0xf]
  %v546 = vld [vmem:[%s3 + $0x5c] sm:$0xf]
  %v547 = vld [vmem:[%s3 + $0x60] sm:$0xf]
  %v548 = vld [vmem:[%s3 + $0x64] sm:$0xf]
  %v549 = vld [vmem:[%s3 + $0x68] sm:$0xf]
  %v550 = vld [vmem:[%s3 + $0x6c] sm:$0xf]
  %v551 = vld [vmem:[%s3 + $0x70] sm:$0xf]
  %v552 = vld [vmem:[%s3 + $0x74] sm:$0xf]
  %v553 = vld [vmem:[%s3 + $0x78] sm:$0xf]
  %v554 = vld [vmem:[%s3 + $0x7c] sm:$0xf]
  %v555 = vld [vmem:[%s4] sm:$0x1]
  %v557 = vlaneseq
  %v558 = vshrl.u32 %v557, 7
  %v559 = vsub.s32 0, %v558
  %v560 = vrot.slane %v555, %v559
  %v594 = vunpack.c.l.b16 %v523
  %v595 = vunpack.c.l.b16 %v524
  %v596 = vunpack.c.l.b16 %v525
  %v597 = vunpack.c.l.b16 %v526
  %v598 = vunpack.c.l.b16 %v527
  %v599 = vunpack.c.l.b16 %v528
  %v600 = vunpack.c.l.b16 %v529
  %v601 = vunpack.c.l.b16 %v530
  %v602 = vunpack.c.l.b16 %v531
  %v603 = vunpack.c.l.b16 %v532
  %v604 = vunpack.c.l.b16 %v533
  %v605 = vunpack.c.l.b16 %v534
  %v606 = vunpack.c.l.b16 %v535
  %v607 = vunpack.c.l.b16 %v536
  %v608 = vunpack.c.l.b16 %v537
  %v609 = vunpack.c.l.b16 %v538
  %v610 = vunpack.c.l.b16 %v539
  %v611 = vunpack.c.l.b16 %v540
  %v612 = vunpack.c.l.b16 %v541
  %v613 = vunpack.c.l.b16 %v542
  %v614 = vunpack.c.l.b16 %v543
  %v615 = vunpack.c.l.b16 %v544
  %v616 = vunpack.c.l.b16 %v545
  %v617 = vunpack.c.l.b16 %v546
  %v618 = vunpack.c.l.b16 %v547
  %v619 = vunpack.c.l.b16 %v548
  %v620 = vunpack.c.l.b16 %v549
  %v621 = vunpack.c.l.b16 %v550
  %v622 = vunpack.c.l.b16 %v551
  %v623 = vunpack.c.l.b16 %v552
  %v624 = vunpack.c.l.b16 %v553
  %v625 = vunpack.c.l.b16 %v554
  %v626 = vpack.c.b16 %v595, %v594
  %v627 = vpack.c.b16 %v597, %v596
  %v628 = vpack.c.b16 %v599, %v598
  %v629 = vpack.c.b16 %v601, %v600
  %v630 = vpack.c.b16 %v603, %v602
  %v631 = vpack.c.b16 %v605, %v604
  %v632 = vpack.c.b16 %v607, %v606
  %v633 = vpack.c.b16 %v609, %v608
  %v634 = vpack.c.b16 %v611, %v610
  %v635 = vpack.c.b16 %v613, %v612
  %v636 = vpack.c.b16 %v615, %v614
  %v637 = vpack.c.b16 %v617, %v616
  %v638 = vpack.c.b16 %v619, %v618
  %v639 = vpack.c.b16 %v621, %v620
  %v640 = vpack.c.b16 %v623, %v622
  %v641 = vpack.c.b16 %v625, %v624
  %658 = vmatprep.subr.bf16.mxu0 0
  %659 = vmatpush1.bf16.msra.mxu0 %v626
  %660 = vmatprep.subr.bf16.mxu0 0
  %661 = vmatpush1.bf16.msra.mxu0 %v627
  %662 = vmatprep.subr.bf16.mxu0 0
  %663 = vmatpush1.bf16.msra.mxu0 %v628
  %664 = vmatprep.subr.bf16.mxu0 0
  %665 = vmatpush1.bf16.msra.mxu0 %v629
  %666 = vmatprep.subr.bf16.mxu0 0
  %667 = vmatpush1.bf16.msra.mxu0 %v630
  %668 = vmatprep.subr.bf16.mxu0 0
  %669 = vmatpush1.bf16.msra.mxu0 %v631
  %670 = vmatprep.subr.bf16.mxu0 0
  %671 = vmatpush1.bf16.msra.mxu0 %v632
  %672 = vmatprep.subr.bf16.mxu0 0
  %673 = vmatpush1.bf16.msra.mxu0 %v633
  %674 = vmatprep.subr.bf16.mxu0 0
  %675 = vmatpush1.bf16.msra.mxu0 %v634
  %676 = vmatprep.subr.bf16.mxu0 0
  %677 = vmatpush1.bf16.msra.mxu0 %v635
  %678 = vmatprep.subr.bf16.mxu0 0
  %679 = vmatpush1.bf16.msra.mxu0 %v636
  %680 = vmatprep.subr.bf16.mxu0 0
  %681 = vmatpush1.bf16.msra.mxu0 %v637
  %682 = vmatprep.subr.bf16.mxu0 0
  %683 = vmatpush1.bf16.msra.mxu0 %v638
  %684 = vmatprep.subr.bf16.mxu0 0
  %685 = vmatpush1.bf16.msra.mxu0 %v639
  %686 = vmatprep.subr.bf16.mxu0 0
  %687 = vmatpush1.bf16.msra.mxu0 %v640
  %688 = vmatprep.subr.bf16.mxu0 0
  %689 = vmatpush1.bf16.msra.mxu0 %v641
  %690 = vmatprep.mubr.bf16.mxu0 %v522
  %691 = vmatmul.mubr.bf16.gmra.mrb[0].mxu0 %v521
  %v692 = vpop.f32.mrb[0].mxu0
  %v693 = vadd.f32 %v560, %v692
  %v694 = vpop.f32.mrb[0].mxu0
  %v695 = vpop.f32.mrb[0].mxu0
  %v696 = vpop.f32.mrb[0].mxu0
  %697 = vdwg.mxu0
  %vm698 = vcmp.ge.f32.partialorder %v693, 0.0
  %v699 = vmul.f32 %v693, 0.1
  %v700 = vsel %vm698, %v693, %v699
  %701 = vst [vmem:[%s5] sm:$0xff] %v700
  // Predicated region
  $region22: #{pi_model_forward.20} parent=0 // pred_check
    _
  $region23: #{pi_model_forward.20} parent=0 // pred_check_branch
    %703 = sbr.rel (0) target = $region25
  $region24: #{pi_model_forward.20} parent=0 // pred_region
    _
  $region25: #{pi_model_forward.20} parent=0 // pred_fallthru
    _
  // Predicated region
  $region26: #{pi_model_forward.20} parent=0 // pred_check
    _
  $region27: #{pi_model_forward.20} parent=0 // pred_check_branch
    %705 = sbr.rel (0) target = $region29
  $region28: #{pi_model_forward.20} parent=0 // pred_region
    _
  $region29: #{pi_model_forward.20} parent=0 // pred_fallthru
    _

// kernel: pi_model_forward.21
$region0: #{pi_model_forward.21}
  #allocation0 [shape = 'u32[]', space=smem, size = 0x4, offset = 0x4, fixed_abs, tag = 'smem constant byte address 0x4 - core index']
  #allocation1 [shape = 'u32[144,128]{1,0:T(1,128)}', space=vmem, size = 0x12000, scoped, tag = 'internal scratch']
  %s0 = inlined_call_operand.vmem [shape: f32[2,4,128], index: 0, kind: input, shape index: {}]
  %s1 = inlined_call_operand.vmem [shape: f32[128,10], index: 1, kind: input, shape index: {}]
  %s2 = inlined_call_operand.vmem [shape: f32[1,10], index: 2, kind: input, shape index: {}]
  %s3 = inlined_call_operand.hbm [shape: f32[2,10], index: 3, kind: output, shape index: {}]
  %s4 = sld [smem:[#allocation0]]
  $region22: #{pi_model_forward.21} parent=0
    _
  %s6 = ssub.s32 1, %s4
  %s7 = scalar_select 0, %s6, %s4
  $region1: #{pi_model_forward.21} parent=0
    #allocation2 [shape = 'u8[1024]{0}', space=vmem, size = 0x400, scoped, tag = 'output window, operand 0, single buffered']
    #allocation3 [shape = 's32[1]{0}', space=sflag, size = 0x4, scoped, tag = 'scoped memory for pi_model_forward.21']
    %8 = vsyncpa [#allocation3], 0
    // Predicated region
    $region2: #{pi_model_forward.21} parent=1 // pred_check
      _
    $region3: #{pi_model_forward.21} parent=1 // pred_check_branch
      %10 = sbr.rel (0) target = $region5
    $region4: #{pi_model_forward.21} parent=1 // pred_region
      _
    $region5: #{pi_model_forward.21} parent=1 // pred_fallthru
      _
    // Predicated region
    $region6: #{pi_model_forward.21} parent=1 // pred_check
      _
    $region7: #{pi_model_forward.21} parent=1 // pred_check_branch
      %12 = sbr.rel (0) target = $region9
    $region8: #{pi_model_forward.21} parent=1 // pred_region
      _
    $region9: #{pi_model_forward.21} parent=1 // pred_fallthru
      _
    // Predicated region
    $region10: #{pi_model_forward.21} parent=1 // pred_check
      _
    $region11: #{pi_model_forward.21} parent=1 // pred_check_branch
      %14 = sbr.rel (0) target = $region13
    $region12: #{pi_model_forward.21} parent=1 // pred_region
      _
    $region13: #{pi_model_forward.21} parent=1 // pred_fallthru
      _
    %v15 = vld [vmem:[%s0] sm:$0xf]
    %v16 = vld [vmem:[%s0 + $0x4] sm:$0xf]
    %vm17 = vcmask 1043456
    %v18 = vsel %vm17, %v15, 0.0
    %v19 = vrot.slane %v18, 4
    %v20 = vadd.f32 %v18, %v19
    %v21 = vrot.slane %v20, 2
    %v22 = vadd.f32 %v20, %v21
    %v23 = vrot.slane %v22, 1
    %v24 = vadd.f32 %v22, %v23
    %v25 = vsel %vm17, %v16, 0.0
    %v26 = vrot.slane %v25, 4
    %v27 = vadd.f32 %v25, %v26
    %v28 = vrot.slane %v27, 2
    %v29 = vadd.f32 %v27, %v28
    %v30 = vrot.slane %v29, 1
    %v31 = vadd.f32 %v29, %v30
    %v32 = vrcp.pop 4.0
    %v33 = vmul.f32 %v24, %v32
    %v34 = vmul.f32 %v31, %v32
    %v35 = vld [vmem:[%s1] sm:$0xff]
    %v36 = vld [vmem:[%s1 + $0x8] sm:$0xff]
    %v37 = vld [vmem:[%s1 + $0x10] sm:$0xff]
    %v38 = vld [vmem:[%s1 + $0x18] sm:$0xff]
    %v39 = vld [vmem:[%s1 + $0x20] sm:$0xff]
    %v40 = vld [vmem:[%s1 + $0x28] sm:$0xff]
    %v41 = vld [vmem:[%s1 + $0x30] sm:$0xff]
    %v42 = vld [vmem:[%s1 + $0x38] sm:$0xff]
    %v43 = vld [vmem:[%s1 + $0x40] sm:$0xff]
    %v44 = vld [vmem:[%s1 + $0x48] sm:$0xff]
    %v45 = vld [vmem:[%s1 + $0x50] sm:$0xff]
    %v46 = vld [vmem:[%s1 + $0x58] sm:$0xff]
    %v47 = vld [vmem:[%s1 + $0x60] sm:$0xff]
    %v48 = vld [vmem:[%s1 + $0x68] sm:$0xff]
    %v49 = vld [vmem:[%s1 + $0x70] sm:$0xff]
    %v50 = vld [vmem:[%s1 + $0x78] sm:$0xff]
    %v51 = vld [vmem:[%s2] sm:$0x1]
    %v53 = vlaneseq
    %v54 = vshrl.u32 %v53, 7
    %v55 = vsub.s32 0, %v54
    %v56 = vrot.slane %v51, %v55
    %vm60 = vcmask 1041409
    %v61 = vsel %vm60, %v34, %v33
    %63 = vmatprep.subr.mxu0 0.0
    %64 = vmatpush1.msra.mxu0 %v35
    %65 = vmatprep.subr.mxu0 0.0
    %66 = vmatpush1.msra.mxu0 %v36
    %67 = vmatprep.subr.mxu0 0.0
    %68 = vmatpush1.msra.mxu0 %v37
    %69 = vmatprep.subr.mxu0 0.0
    %70 = vmatpush1.msra.mxu0 %v38
    %71 = vmatprep.subr.mxu0 0.0
    %72 = vmatpush1.msra.mxu0 %v39
    %73 = vmatprep.subr.mxu0 0.0
    %74 = vmatpush1.msra.mxu0 %v40
    %75 = vmatprep.subr.mxu0 0.0
    %76 = vmatpush1.msra.mxu0 %v41
    %77 = vmatprep.subr.mxu0 0.0
    %78 = vmatpush1.msra.mxu0 %v42
    %79 = vmatprep.subr.mxu0 0.0
    %80 = vmatpush1.msra.mxu0 %v43
    %81 = vmatprep.subr.mxu0 0.0
    %82 = vmatpush1.msra.mxu0 %v44
    %83 = vmatprep.subr.mxu0 0.0
    %84 = vmatpush1.msra.mxu0 %v45
    %85 = vmatprep.subr.mxu0 0.0
    %86 = vmatpush1.msra.mxu0 %v46
    %87 = vmatprep.subr.mxu0 0.0
    %88 = vmatpush1.msra.mxu0 %v47
    %89 = vmatprep.subr.mxu0 0.0
    %90 = vmatpush1.msra.mxu0 %v48
    %91 = vmatprep.subr.mxu0 0.0
    %92 = vmatpush1.msra.mxu0 %v49
    %93 = vmatprep.subr.mxu0 0.0
    %94 = vmatpush1.msra.mxu0 %v50
    %95 = vmatprep.subr.mxu0 0.0
    %96 = vmatpush1.msra.mxu0 0.0
    %97 = vmatprep.subr.mxu0 0.0
    %98 = vmatpush1.msra.mxu0 0.0
    %99 = vmatprep.subr.mxu0 0.0
    %100 = vmatpush1.msra.mxu0 0.0
    %101 = vmatprep.subr.mxu0 0.0
    %102 = vmatpush1.msra.mxu0 0.0
    %103 = vmatprep.subr.mxu0 0.0
    %104 = vmatpush1.msra.mxu0 0.0
    %105 = vmatprep.subr.mxu0 0.0
    %106 = vmatpush1.msra.mxu0 0.0
    %107 = vmatprep.subr.mxu0 0.0
    %108 = vmatpush1.msra.mxu0 0.0
    %109 = vmatprep.subr.mxu0 0.0
    %110 = vmatpush1.msra.mxu0 0.0
    %111 = vmatprep.subr.mxu0 0.0
    %112 = vmatpush1.msra.mxu0 0.0
    %113 = vmatprep.subr.mxu0 0.0
    %114 = vmatpush1.msra.mxu0 0.0
    %115 = vmatprep.subr.mxu0 0.0
    %116 = vmatpush1.msra.mxu0 0.0
    %117 = vmatprep.subr.mxu0 0.0
    %118 = vmatpush1.msra.mxu0 0.0
    %119 = vmatprep.subr.mxu0 0.0
    %120 = vmatpush1.msra.mxu0 0.0
    %121 = vmatprep.subr.mxu0 0.0
    %122 = vmatpush1.msra.mxu0 0.0
    %123 = vmatprep.subr.mxu0 0.0
    %124 = vmatpush1.msra.mxu0 0.0
    %125 = vmatprep.subr.mxu0 0.0
    %126 = vmatpush1.msra.mxu0 0.0
    %127 = vmatprep.mubr.f32.mxu0 0.0
    %128 = vmatmul.mubr.f32.gmra.mrb[0].mxu0 %v61
    %v129 = vpop.f32.mrb[0].mxu0
    %v130 = vadd.f32 %v56, %v129
    %v131 = vpop.f32.mrb[0].mxu0
    %132 = vdwg.mxu0
    %vm133 = vcmask 74752
    %v134 = vsel %vm133, %v130, -inf
    %135 = vmax.xlane.f32.xlu0 %v134
    %v136 = vpop.xlane.xlu0 %135
    %v137 = vsub.f32 %v130, %v136
    %v138 = vmul.f32 %v137, 1.442695
    %v139 = vpow.pop %v138
    %v140 = vsel %vm133, %v139, 0.0
    %141 = vadd.xlane.f32.xlu0 %v140
    %v142 = vpop.xlane.xlu0 %141
    %v143 = vrcp.pop %v142
    %v144 = vmul.f32 %v139, %v143
    %145 = vst.msk [vmem:[#allocation2] sm:$0x3] %vm133, %v144
    // Predicated region
    $region14: #{pi_model_forward.21} parent=1 // pred_check
      _
    $region15: #{pi_model_forward.21} parent=1 // pred_check_branch
      %147 = sbr.rel (0) target = $region17
    $region16: #{pi_model_forward.21} parent=1 // pred_region
      %s149 = ssub.s32 32, 32
      %150 = vsyncadd [#allocation3], %s149
      %s152 = sshll.u32 [#allocation2], 4
      %s153 = int_to_ptr.vmem [resolvable:$true] %s152
      %155 = dma.vmem_to_hbm [thread:$0]  %s153, 32, %s3, [#allocation3]
    $region17: #{pi_model_forward.21} parent=1 // pred_fallthru
      _
    // Predicated region
    $region18: #{pi_model_forward.21} parent=1 // pred_check
      _
    $region19: #{pi_model_forward.21} parent=1 // pred_check_branch
      %157 = sbr.rel (0) target = $region21
    $region20: #{pi_model_forward.21} parent=1 // pred_region
      %158 = dma.done [#allocation3], 32
    $region21: #{pi_model_forward.21} parent=1 // pred_fallthru
      _
    %159 = vsyncpa [#allocation3], 1

// kernel: pi_model_forward.19
$region0: #{pi_model_forward.19}
  #allocation0 [shape = 'u32[]', space=smem, size = 0x4, offset = 0x4, fixed_abs, tag = 'smem constant byte address 0x4 - core index']
  #allocation1 [shape = 'u32[144,128]{1,0:T(1,128)}', space=vmem, size = 0x12000, scoped, tag = 'internal scratch']
  %s0 = inlined_call_operand.vmem [shape: bf16[8,2304], index: 0, kind: input, shape index: {}]
  %s1 = inlined_call_operand.vmem [shape: bf16[2304,512], index: 1, kind: input, shape index: {}]
  %s2 = inlined_call_operand.vmem [shape: f32[1,512], index: 2, kind: input, shape index: {}]
  %s3 = inlined_call_operand.vmem [shape: f32[8,512], index: 3, kind: output, shape index: {}]
  %s4 = sld [smem:[#allocation0]]
  $region22: #{pi_model_forward.19} parent=0
    _
  %s6 = ssub.s32 1, %s4
  %s7 = scalar_select 0, %s6, %s4
  // Predicated region
  $region2: #{pi_model_forward.19} parent=0 // pred_check
    _
  $region3: #{pi_model_forward.19} parent=0 // pred_check_branch
    %9 = sbr.rel (0) target = $region5
  $region4: #{pi_model_forward.19} parent=0 // pred_region
    _
  $region5: #{pi_model_forward.19} parent=0 // pred_fallthru
    _
  // Predicated region
  $region6: #{pi_model_forward.19} parent=0 // pred_check
    _
  $region7: #{pi_model_forward.19} parent=0 // pred_check_branch
    %11 = sbr.rel (0) target = $region9
  $region8: #{pi_model_forward.19} parent=0 // pred_region
    _
  $region9: #{pi_model_forward.19} parent=0 // pred_fallthru
    _
  // Predicated region
  $region10: #{pi_model_forward.19} parent=0 // pred_check
    _
  $region11: #{pi_model_forward.19} parent=0 // pred_check_branch
    %13 = sbr.rel (0) target = $region13
  $region12: #{pi_model_forward.19} parent=0 // pred_region
    _
  $region13: #{pi_model_forward.19} parent=0 // pred_fallthru
    _
  %v14 = vld [vmem:[%s0] sm:$0xff]
  %v15 = vld [vmem:[%s0 + $0x8] sm:$0xff]
  %v16 = vld [vmem:[%s0 + $0x10] sm:$0xff]
  %v17 = vld [vmem:[%s0 + $0x18] sm:$0xff]
  %v18 = vld [vmem:[%s0 + $0x20] sm:$0xff]
  %v19 = vld [vmem:[%s0 + $0x28] sm:$0xff]
  %v20 = vld [vmem:[%s0 + $0x30] sm:$0xff]
  %v21 = vld [vmem:[%s0 + $0x38] sm:$0xff]
  %v22 = vld [vmem:[%s0 + $0x40] sm:$0xff]
  %v23 = vld [vmem:[%s1] sm:$0xff]
  %v24 = vld [vmem:[%s1 + $0x8] sm:$0xff]
  %v25 = vld [vmem:[%s1 + $0x10] sm:$0xff]
  %v26 = vld [vmem:[%s1 + $0x18] sm:$0xff]
  %v27 = vld [vmem:[%s1 + $0x20] sm:$0xff]
  %v28 = vld [vmem:[%s1 + $0x28] sm:$0xff]
  %v29 = vld [vmem:[%s1 + $0x30] sm:$0xff]
  %v30 = vld [vmem:[%s1 + $0x38] sm:$0xff]
  %v31 = vld [vmem:[%s1 + $0x40] sm:$0xff]
  %v32 = vld [vmem:[%s1 + $0x48] sm:$0xff]
  %v33 = vld [vmem:[%s1 + $0x50] sm:$0xff]
  %v34 = vld [vmem:[%s1 + $0x58] sm:$0xff]
  %v35 = vld [vmem:[%s1 + $0x60] sm:$0xff]
  %v36 = vld [vmem:[%s1 + $0x68] sm:$0xff]
  %v37 = vld [vmem:[%s1 + $0x70] sm:$0xff]
  %v38 = vld [vmem:[%s1 + $0x78] sm:$0xff]
  %v39 = vld [vmem:[%s1 + $0x80] sm:$0xff]
  %v40 = vld [vmem:[%s1 + $0x88] sm:$0xff]
  %v41 = vld [vmem:[%s1 + $0x90] sm:$0xff]
  %v42 = vld [vmem:[%s1 + $0x98] sm:$0xff]
  %v43 = vld [vmem:[%s1 + $0xa0] sm:$0xff]
  %v44 = vld [vmem:[%s1 + $0xa8] sm:$0xff]
  %v45 = vld [vmem:[%s1 + $0xb0] sm:$0xff]
  %v46 = vld [vmem:[%s1 + $0xb8] sm:$0xff]
  %v47 = vld [vmem:[%s1 + $0xc0] sm:$0xff]
  %v48 = vld [vmem:[%s1 + $0xc8] sm:$0xff]
  %v49 = vld [vmem:[%s1 + $0xd0] sm:$0xff]
  %v50 = vld [vmem:[%s1 + $0xd8] sm:$0xff]
  %v51 = vld [vmem:[%s1 + $0xe0] sm:$0xff]
  %v52 = vld [vmem:[%s1 + $0xe8] sm:$0xff]
  %v53 = vld [vmem:[%s1 + $0xf0] sm:$0xff]
  %v54 = vld [vmem:[%s1 + $0xf8] sm:$0xff]
  %v55 = vld [vmem:[%s1 + $0x100] sm:$0xff]
  %v56 = vld [vmem:[%s1 + $0x108] sm:$0xff]
  %v57 = vld [vmem:[%s1 + $0x110] sm:$0xff]
  %v58 = vld [vmem:[%s1 + $0x118] sm:$0xff]
  %v59 = vld [vmem:[%s1 + $0x120] sm:$0xff]
  %v60 = vld [vmem:[%s1 + $0x128] sm:$0xff]
  %v61 = vld [vmem:[%s1 + $0x130] sm:$0xff]
  %v62 = vld [vmem:[%s1 + $0x138] sm:$0xff]
  %v63 = vld [vmem:[%s1 + $0x140] sm:$0xff]
  %v64 = vld [vmem:[%s1 + $0x148] sm:$0xff]
  %v65 = vld [vmem:[%s1 + $0x150] sm:$0xff]
  %v66 = vld [vmem:[%s1 + $0x158] sm:$0xff]
  %v67 = vld [vmem:[%s1 + $0x160] sm:$0xff]
  %v68 = vld [vmem:[%s1 + $0x168] sm:$0xff]
  %v69 = vld [vmem:[%s1 + $0x170] sm:$0xff]
  %v70 = vld [vmem:[%s1 + $0x178] sm:$0xff]
  %v71 = vld [vmem:[%s1 + $0x180] sm:$0xff]
  %v72 = vld [vmem:[%s1 + $0x188] sm:$0xff]
  %v73 = vld [vmem:[%s1 + $0x190] sm:$0xff]
  %v74 = vld [vmem:[%s1 + $0x198] sm:$0xff]
  %v75 = vld [vmem:[%s1 + $0x1a0] sm:$0xff]
  %v76 = vld [vmem:[%s1 + $0x1a8] sm:$0xff]
  %v77 = vld [vmem:[%s1 + $0x1b0] sm:$0xff]
  %v78 = vld [vmem:[%s1 + $0x1b8] sm:$0xff]
  %v79 = vld [vmem:[%s1 + $0x1c0] sm:$0xff]
  %v80 = vld [vmem:[%s1 + $0x1c8] sm:$0xff]
  %v81 = vld [vmem:[%s1 + $0x1d0] sm:$0xff]
  %v82 = vld [vmem:[%s1 + $0x1d8] sm:$0xff]
  %v83 = vld [vmem:[%s1 + $0x1e0] sm:$0xff]
  %v84 = vld [vmem:[%s1 + $0x1e8] sm:$0xff]
  %v85 = vld [vmem:[%s1 + $0x1f0] sm:$0xff]
  %v86 = vld [vmem:[%s1 + $0x1f8] sm:$0xff]
  %v87 = vld [vmem:[%s1 + $0x200] sm:$0xff]
  %v88 = vld [vmem:[%s1 + $0x208] sm:$0xff]
  %v89 = vld [vmem:[%s1 + $0x210] sm:$0xff]
  %v90 = vld [vmem:[%s1 + $0x218] sm:$0xff]
  %v91 = vld [vmem:[%s1 + $0x220] sm:$0xff]
  %v92 = vld [vmem:[%s1 + $0x228] sm:$0xff]
  %v93 = vld [vmem:[%s1 + $0x230] sm:$0xff]
  %v94 = vld [vmem:[%s1 + $0x238] sm:$0xff]
  %v95 = vld [vmem:[%s1 + $0x240] sm:$0xff]
  %v96 = vld [vmem:[%s1 + $0x248] sm:$0xff]
  %v97 = vld [vmem:[%s1 + $0x250] sm:$0xff]
  %v98 = vld [vmem:[%s1 + $0x258] sm:$0xff]
  %v99 = vld [vmem:[%s1 + $0x260] sm:$0xff]
  %v100 = vld [vmem:[%s1 + $0x268] sm:$0xff]
  %v101 = vld [vmem:[%s1 + $0x270] sm:$0xff]
  %v102 = vld [vmem:[%s1 + $0x278] sm:$0xff]
  %v103 = vld [vmem:[%s1 + $0x280] sm:$0xff]
  %v104 = vld [vmem:[%s1 + $0x288] sm:$0xff]
  %v105 = vld [vmem:[%s1 + $0x290] sm:$0xff]
  %v106 = vld [vmem:[%s1 + $0x298] sm:$0xff]
  %v107 = vld [vmem:[%s1 + $0x2a0] sm:$0xff]
  %v108 = vld [vmem:[%s1 + $0x2a8] sm:$0xff]
  %v109 = vld [vmem:[%s1 + $0x2b0] sm:$0xff]
  %v110 = vld [vmem:[%s1 + $0x2b8] sm:$0xff]
  %v111 = vld [vmem:[%s1 + $0x2c0] sm:$0xff]
  %v112 = vld [vmem:[%s1 + $0x2c8] sm:$0xff]
  %v113 = vld [vmem:[%s1 + $0x2d0] sm:$0xff]
  %v114 = vld [vmem:[%s1 + $0x2d8] sm:$0xff]
  %v115 = vld [vmem:[%s1 + $0x2e0] sm:$0xff]
  %v116 = vld [vmem:[%s1 + $0x2e8] sm:$0xff]
  %v117 = vld [vmem:[%s1 + $0x2f0] sm:$0xff]
  %v118 = vld [vmem:[%s1 + $0x2f8] sm:$0xff]
  %v119 = vld [vmem:[%s1 + $0x300] sm:$0xff]
  %v120 = vld [vmem:[%s1 + $0x308] sm:$0xff]
  %v121 = vld [vmem:[%s1 + $0x310] sm:$0xff]
  %v122 = vld [vmem:[%s1 + $0x318] sm:$0xff]
  %v123 = vld [vmem:[%s1 + $0x320] sm:$0xff]
  %v124 = vld [vmem:[%s1 + $0x328] sm:$0xff]
  %v125 = vld [vmem:[%s1 + $0x330] sm:$0xff]
  %v126 = vld [vmem:[%s1 + $0x338] sm:$0xff]
  %v127 = vld [vmem:[%s1 + $0x340] sm:$0xff]
  %v128 = vld [vmem:[%s1 + $0x348] sm:$0xff]
  %v129 = vld [vmem:[%s1 + $0x350] sm:$0xff]
  %v130 = vld [vmem:[%s1 + $0x358] sm:$0xff]
  %v131 = vld [vmem:[%s1 + $0x360] sm:$0xff]
  %v132 = vld [vmem:[%s1 + $0x368] sm:$0xff]
  %v133 = vld [vmem:[%s1 + $0x370] sm:$0xff]
  %v134 = vld [vmem:[%s1 + $0x378] sm:$0xff]
  %v135 = vld [vmem:[%s1 + $0x380] sm:$0xff]
  %v136 = vld [vmem:[%s1 + $0x388] sm:$0xff]
  %v137 = vld [vmem:[%s1 + $0x390] sm:$0xff]
  %v138 = vld [vmem:[%s1 + $0x398] sm:$0xff]
  %v139 = vld [vmem:[%s1 + $0x3a0] sm:$0xff]
  %v140 = vld [vmem:[%s1 + $0x3a8] sm:$0xff]
  %v141 = vld [vmem:[%s1 + $0x3b0] sm:$0xff]
  %v142 = vld [vmem:[%s1 + $0x3b8] sm:$0xff]
  %v143 = vld [vmem:[%s1 + $0x3c0] sm:$0xff]
  %v144 = vld [vmem:[%s1 + $0x3c8] sm:$0xff]
  %v145 = vld [vmem:[%s1 + $0x3d0] sm:$0xff]
  %v146 = vld [vmem:[%s1 + $0x3d8] sm:$0xff]
  %v147 = vld [vmem:[%s1 + $0x3e0] sm:$0xff]
  %v148 = vld [vmem:[%s1 + $0x3e8] sm:$0xff]
  %v149 = vld [vmem:[%s1 + $0x3f0] sm:$0xff]
  %v150 = vld [vmem:[%s1 + $0x3f8] sm:$0xff]
  %v151 = vld [vmem:[%s1 + $0x400] sm:$0xff]
  %v152 = vld [vmem:[%s1 + $0x408] sm:$0xff]
  %v153 = vld [vmem:[%s1 + $0x410] sm:$0xff]
  %v154 = vld [vmem:[%s1 + $0x418] sm:$0xff]
  %v155 = vld [vmem:[%s1 + $0x420] sm:$0xff]
  %v156 = vld [vmem:[%s1 + $0x428] sm:$0xff]
  %v157 = vld [vmem:[%s1 + $0x430] sm:$0xff]
  %v158 = vld [vmem:[%s1 + $0x438] sm:$0xff]
  %v159 = vld [vmem:[%s1 + $0x440] sm:$0xff]
  %v160 = vld [vmem:[%s1 + $0x448] sm:$0xff]
  %v161 = vld [vmem:[%s1 + $0x450] sm:$0xff]
  %v162 = vld [vmem:[%s1 + $0x458] sm:$0xff]
  %v163 = vld [vmem:[%s1 + $0x460] sm:$0xff]
  %v164 = vld [vmem:[%s1 + $0x468] sm:$0xff]
  %v165 = vld [vmem:[%s1 + $0x470] sm:$0xff]
  %v166 = vld [vmem:[%s1 + $0x478] sm:$0xff]
  %v167 = vld [vmem:[%s1 + $0x480] sm:$0xff]
  %v168 = vld [vmem:[%s1 + $0x488] sm:$0xff]
  %v169 = vld [vmem:[%s1 + $0x490] sm:$0xff]
  %v170 = vld [vmem:[%s1 + $0x498] sm:$0xff]
  %v171 = vld [vmem:[%s1 + $0x4a0] sm:$0xff]
  %v172 = vld [vmem:[%s1 + $0x4a8] sm:$0xff]
  %v173 = vld [vmem:[%s1 + $0x4b0] sm:$0xff]
  %v174 = vld [vmem:[%s1 + $0x4b8] sm:$0xff]
  %v175 = vld [vmem:[%s1 + $0x4c0] sm:$0xff]
  %v176 = vld [vmem:[%s1 + $0x4c8] sm:$0xff]
  %v177 = vld [vmem:[%s1 + $0x4d0] sm:$0xff]
  %v178 = vld [vmem:[%s1 + $0x4d8] sm:$0xff]
  %v179 = vld [vmem:[%s1 + $0x4e0] sm:$0xff]
  %v180 = vld [vmem:[%s1 + $0x4e8] sm:$0xff]
  %v181 = vld [vmem:[%s1 + $0x4f0] sm:$0xff]
  %v182 = vld [vmem:[%s1 + $0x4f8] sm:$0xff]
  %v183 = vld [vmem:[%s1 + $0x500] sm:$0xff]
  %v184 = vld [vmem:[%s1 + $0x508] sm:$0xff]
  %v185 = vld [vmem:[%s1 + $0x510] sm:$0xff]
  %v186 = vld [vmem:[%s1 + $0x518] sm:$0xff]
  %v187 = vld [vmem:[%s1 + $0x520] sm:$0xff]
  %v188 = vld [vmem:[%s1 + $0x528] sm:$0xff]
  %v189 = vld [vmem:[%s1 + $0x530] sm:$0xff]
  %v190 = vld [vmem:[%s1 + $0x538] sm:$0xff]
  %v191 = vld [vmem:[%s1 + $0x540] sm:$0xff]
  %v192 = vld [vmem:[%s1 + $0x548] sm:$0xff]
  %v193 = vld [vmem:[%s1 + $0x550] sm:$0xff]
  %v194 = vld [vmem:[%s1 + $0x558] sm:$0xff]
  %v195 = vld [vmem:[%s1 + $0x560] sm:$0xff]
  %v196 = vld [vmem:[%s1 + $0x568] sm:$0xff]
  %v197 = vld [vmem:[%s1 + $0x570] sm:$0xff]
  %v198 = vld [vmem:[%s1 + $0x578] sm:$0xff]
  %v199 = vld [vmem:[%s1 + $0x580] sm:$0xff]
  %v200 = vld [vmem:[%s1 + $0x588] sm:$0xff]
  %v201 = vld [vmem:[%s1 + $0x590] sm:$0xff]
  %v202 = vld [vmem:[%s1 + $0x598] sm:$0xff]
  %v203 = vld [vmem:[%s1 + $0x5a0] sm:$0xff]
  %v204 = vld [vmem:[%s1 + $0x5a8] sm:$0xff]
  %v205 = vld [vmem:[%s1 + $0x5b0] sm:$0xff]
  %v206 = vld [vmem:[%s1 + $0x5b8] sm:$0xff]
  %v207 = vld [vmem:[%s1 + $0x5c0] sm:$0xff]
  %v208 = vld [vmem:[%s1 + $0x5c8] sm:$0xff]
  %v209 = vld [vmem:[%s1 + $0x5d0] sm:$0xff]
  %v210 = vld [vmem:[%s1 + $0x5d8] sm:$0xff]
  %v211 = vld [vmem:[%s1 + $0x5e0] sm:$0xff]
  %v212 = vld [vmem:[%s1 + $0x5e8] sm:$0xff]
  %v213 = vld [vmem:[%s1 + $0x5f0] sm:$0xff]
  %v214 = vld [vmem:[%s1 + $0x5f8] sm:$0xff]
  %v215 = vld [vmem:[%s1 + $0x600] sm:$0xff]
  %v216 = vld [vmem:[%s1 + $0x608] sm:$0xff]
  %v217 = vld [vmem:[%s1 + $0x610] sm:$0xff]
  %v218 = vld [vmem:[%s1 + $0x618] sm:$0xff]
  %v219 = vld [vmem:[%s1 + $0x620] sm:$0xff]
  %v220 = vld [vmem:[%s1 + $0x628] sm:$0xff]
  %v221 = vld [vmem:[%s1 + $0x630] sm:$0xff]
  %v222 = vld [vmem:[%s1 + $0x638] sm:$0xff]
  %v223 = vld [vmem:[%s1 + $0x640] sm:$0xff]
  %v224 = vld [vmem:[%s1 + $0x648] sm:$0xff]
  %v225 = vld [vmem:[%s1 + $0x650] sm:$0xff]
  %v226 = vld [vmem:[%s1 + $0x658] sm:$0xff]
  %v227 = vld [vmem:[%s1 + $0x660] sm:$0xff]
  %v228 = vld [vmem:[%s1 + $0x668] sm:$0xff]
  %v229 = vld [vmem:[%s1 + $0x670] sm:$0xff]
  %v230 = vld [vmem:[%s1 + $0x678] sm:$0xff]
  %v231 = vld [vmem:[%s1 + $0x680] sm:$0xff]
  %v232 = vld [vmem:[%s1 + $0x688] sm:$0xff]
  %v233 = vld [vmem:[%s1 + $0x690] sm:$0xff]
  %v234 = vld [vmem:[%s1 + $0x698] sm:$0xff]
  %v235 = vld [vmem:[%s1 + $0x6a0] sm:$0xff]
  %v236 = vld [vmem:[%s1 + $0x6a8] sm:$0xff]
  %v237 = vld [vmem:[%s1 + $0x6b0] sm:$0xff]
  %v238 = vld [vmem:[%s1 + $0x6b8] sm:$0xff]
  %v239 = vld [vmem:[%s1 + $0x6c0] sm:$0xff]
  %v240 = vld [vmem:[%s1 + $0x6c8] sm:$0xff]
  %v241 = vld [vmem:[%s1 + $0x6d0] sm:$0xff]
  %v242 = vld [vmem:[%s1 + $0x6d8] sm:$0xff]
  %v243 = vld [vmem:[%s1 + $0x6e0] sm:$0xff]
  %v244 = vld [vmem:[%s1 + $0x6e8] sm:$0xff]
  %v245 = vld [vmem:[%s1 + $0x6f0] sm:$0xff]
  %v246 = vld [vmem:[%s1 + $0x6f8] sm:$0xff]
  %v247 = vld [vmem:[%s1 + $0x700] sm:$0xff]
  %v248 = vld [vmem:[%s1 + $0x708] sm:$0xff]
  %v249 = vld [vmem:[%s1 + $0x710] sm:$0xff]
  %v250 = vld [vmem:[%s1 + $0x718] sm:$0xff]
  %v251 = vld [vmem:[%s1 + $0x720] sm:$0xff]
  %v252 = vld [vmem:[%s1 + $0x728] sm:$0xff]
  %v253 = vld [vmem:[%s1 + $0x730] sm:$0xff]
  %v254 = vld [vmem:[%s1 + $0x738] sm:$0xff]
  %v255 = vld [vmem:[%s1 + $0x740] sm:$0xff]
  %v256 = vld [vmem:[%s1 + $0x748] sm:$0xff]
  %v257 = vld [vmem:[%s1 + $0x750] sm:$0xff]
  %v258 = vld [vmem:[%s1 + $0x758] sm:$0xff]
  %v259 = vld [vmem:[%s1 + $0x760] sm:$0xff]
  %v260 = vld [vmem:[%s1 + $0x768] sm:$0xff]
  %v261 = vld [vmem:[%s1 + $0x770] sm:$0xff]
  %v262 = vld [vmem:[%s1 + $0x778] sm:$0xff]
  %v263 = vld [vmem:[%s1 + $0x780] sm:$0xff]
  %v264 = vld [vmem:[%s1 + $0x788] sm:$0xff]
  %v265 = vld [vmem:[%s1 + $0x790] sm:$0xff]
  %v266 = vld [vmem:[%s1 + $0x798] sm:$0xff]
  %v267 = vld [vmem:[%s1 + $0x7a0] sm:$0xff]
  %v268 = vld [vmem:[%s1 + $0x7a8] sm:$0xff]
  %v269 = vld [vmem:[%s1 + $0x7b0] sm:$0xff]
  %v270 = vld [vmem:[%s1 + $0x7b8] sm:$0xff]
  %v271 = vld [vmem:[%s1 + $0x7c0] sm:$0xff]
  %v272 = vld [vmem:[%s1 + $0x7c8] sm:$0xff]
  %v273 = vld [vmem:[%s1 + $0x7d0] sm:$0xff]
  %v274 = vld [vmem:[%s1 + $0x7d8] sm:$0xff]
  %v275 = vld [vmem:[%s1 + $0x7e0] sm:$0xff]
  %v276 = vld [vmem:[%s1 + $0x7e8] sm:$0xff]
  %v277 = vld [vmem:[%s1 + $0x7f0] sm:$0xff]
  %v278 = vld [vmem:[%s1 + $0x7f8] sm:$0xff]
  %v279 = vld [vmem:[%s1 + $0x800] sm:$0xff]
  %v280 = vld [vmem:[%s1 + $0x808] sm:$0xff]
  %v281 = vld [vmem:[%s1 + $0x810] sm:$0xff]
  %v282 = vld [vmem:[%s1 + $0x818] sm:$0xff]
  %v283 = vld [vmem:[%s1 + $0x820] sm:$0xff]
  %v284 = vld [vmem:[%s1 + $0x828] sm:$0xff]
  %v285 = vld [vmem:[%s1 + $0x830] sm:$0xff]
  %v286 = vld [vmem:[%s1 + $0x838] sm:$0xff]
  %v287 = vld [vmem:[%s1 + $0x840] sm:$0xff]
  %v288 = vld [vmem:[%s1 + $0x848] sm:$0xff]
  %v289 = vld [vmem:[%s1 + $0x850] sm:$0xff]
  %v290 = vld [vmem:[%s1 + $0x858] sm:$0xff]
  %v291 = vld [vmem:[%s1 + $0x860] sm:$0xff]
  %v292 = vld [vmem:[%s1 + $0x868] sm:$0xff]
  %v293 = vld [vmem:[%s1 + $0x870] sm:$0xff]
  %v294 = vld [vmem:[%s1 + $0x878] sm:$0xff]
  %v295 = vld [vmem:[%s1 + $0x880] sm:$0xff]
  %v296 = vld [vmem:[%s1 + $0x888] sm:$0xff]
  %v297 = vld [vmem:[%s1 + $0x890] sm:$0xff]
  %v298 = vld [vmem:[%s1 + $0x898] sm:$0xff]
  %v299 = vld [vmem:[%s1 + $0x8a0] sm:$0xff]
  %v300 = vld [vmem:[%s1 + $0x8a8] sm:$0xff]
  %v301 = vld [vmem:[%s1 + $0x8b0] sm:$0xff]
  %v302 = vld [vmem:[%s1 + $0x8b8] sm:$0xff]
  %v303 = vld [vmem:[%s1 + $0x8c0] sm:$0xff]
  %v304 = vld [vmem:[%s1 + $0x8c8] sm:$0xff]
  %v305 = vld [vmem:[%s1 + $0x8d0] sm:$0xff]
  %v306 = vld [vmem:[%s1 + $0x8d8] sm:$0xff]
  %v307 = vld [vmem:[%s1 + $0x8e0] sm:$0xff]
  %v308 = vld [vmem:[%s1 + $0x8e8] sm:$0xff]
  %v309 = vld [vmem:[%s1 + $0x8f0] sm:$0xff]
  %v310 = vld [vmem:[%s1 + $0x8f8] sm:$0xff]
  %v311 = vld [vmem:[%s1 + $0x900] sm:$0xff]
  %v312 = vld [vmem:[%s1 + $0x908] sm:$0xff]
  %v313 = vld [vmem:[%s1 + $0x910] sm:$0xff]
  %v314 = vld [vmem:[%s1 + $0x918] sm:$0xff]
  %v315 = vld [vmem:[%s1 + $0x920] sm:$0xff]
  %v316 = vld [vmem:[%s1 + $0x928] sm:$0xff]
  %v317 = vld [vmem:[%s1 + $0x930] sm:$0xff]
  %v318 = vld [vmem:[%s1 + $0x938] sm:$0xff]
  %v319 = vld [vmem:[%s1 + $0x940] sm:$0xff]
  %v320 = vld [vmem:[%s1 + $0x948] sm:$0xff]
  %v321 = vld [vmem:[%s1 + $0x950] sm:$0xff]
  %v322 = vld [vmem:[%s1 + $0x958] sm:$0xff]
  %v323 = vld [vmem:[%s1 + $0x960] sm:$0xff]
  %v324 = vld [vmem:[%s1 + $0x968] sm:$0xff]
  %v325 = vld [vmem:[%s1 + $0x970] sm:$0xff]
  %v326 = vld [vmem:[%s1 + $0x978] sm:$0xff]
  %v327 = vld [vmem:[%s1 + $0x980] sm:$0xff]
  %v328 = vld [vmem:[%s1 + $0x988] sm:$0xff]
  %v329 = vld [vmem:[%s1 + $0x990] sm:$0xff]
  %v330 = vld [vmem:[%s1 + $0x998] sm:$0xff]
  %v331 = vld [vmem:[%s1 + $0x9a0] sm:$0xff]
  %v332 = vld [vmem:[%s1 + $0x9a8] sm:$0xff]
  %v333 = vld [vmem:[%s1 + $0x9b0] sm:$0xff]
  %v334 = vld [vmem:[%s1 + $0x9b8] sm:$0xff]
  %v335 = vld [vmem:[%s1 + $0x9c0] sm:$0xff]
  %v336 = vld [vmem:[%s1 + $0x9c8] sm:$0xff]
  %v337 = vld [vmem:[%s1 + $0x9d0] sm:$0xff]
  %v338 = vld [vmem:[%s1 + $0x9d8] sm:$0xff]
  %v339 = vld [vmem:[%s1 + $0x9e0] sm:$0xff]
  %v340 = vld [vmem:[%s1 + $0x9e8] sm:$0xff]
  %v341 = vld [vmem:[%s1 + $0x9f0] sm:$0xff]
  %v342 = vld [vmem:[%s1 + $0x9f8] sm:$0xff]
  %v343 = vld [vmem:[%s1 + $0xa00] sm:$0xff]
  %v344 = vld [vmem:[%s1 + $0xa08] sm:$0xff]
  %v345 = vld [vmem:[%s1 + $0xa10] sm:$0xff]
  %v346 = vld [vmem:[%s1 + $0xa18] sm:$0xff]
  %v347 = vld [vmem:[%s1 + $0xa20] sm:$0xff]
  %v348 = vld [vmem:[%s1 + $0xa28] sm:$0xff]
  %v349 = vld [vmem:[%s1 + $0xa30] sm:$0xff]
  %v350 = vld [vmem:[%s1 + $0xa38] sm:$0xff]
  %v351 = vld [vmem:[%s1 + $0xa40] sm:$0xff]
  %v352 = vld [vmem:[%s1 + $0xa48] sm:$0xff]
  %v353 = vld [vmem:[%s1 + $0xa50] sm:$0xff]
  %v354 = vld [vmem:[%s1 + $0xa58] sm:$0xff]
  %v355 = vld [vmem:[%s1 + $0xa60] sm:$0xff]
  %v356 = vld [vmem:[%s1 + $0xa68] sm:$0xff]
  %v357 = vld [vmem:[%s1 + $0xa70] sm:$0xff]
  %v358 = vld [vmem:[%s1 + $0xa78] sm:$0xff]
  %v359 = vld [vmem:[%s1 + $0xa80] sm:$0xff]
  %v360 = vld [vmem:[%s1 + $0xa88] sm:$0xff]
  %v361 = vld [vmem:[%s1 + $0xa90] sm:$0xff]
  %v362 = vld [vmem:[%s1 + $0xa98] sm:$0xff]
  %v363 = vld [vmem:[%s1 + $0xaa0] sm:$0xff]
  %v364 = vld [vmem:[%s1 + $0xaa8] sm:$0xff]
  %v365 = vld [vmem:[%s1 + $0xab0] sm:$0xff]
  %v366 = vld [vmem:[%s1 + $0xab8] sm:$0xff]
  %v367 = vld [vmem:[%s1 + $0xac0] sm:$0xff]
  %v368 = vld [vmem:[%s1 + $0xac8] sm:$0xff]
  %v369 = vld [vmem:[%s1 + $0xad0] sm:$0xff]
  %v370 = vld [vmem:[%s1 + $0xad8] sm:$0xff]
  %v371 = vld [vmem:[%s1 + $0xae0] sm:$0xff]
  %v372 = vld [vmem:[%s1 + $0xae8] sm:$0xff]
  %v373 = vld [vmem:[%s1 + $0xaf0] sm:$0xff]
  %v374 = vld [vmem:[%s1 + $0xaf8] sm:$0xff]
  %v375 = vld [vmem:[%s1 + $0xb00] sm:$0xff]
  %v376 = vld [vmem:[%s1 + $0xb08] sm:$0xff]
  %v377 = vld [vmem:[%s1 + $0xb10] sm:$0xff]
  %v378 = vld [vmem:[%s1 + $0xb18] sm:$0xff]
  %v379 = vld [vmem:[%s1 + $0xb20] sm:$0xff]
  %v380 = vld [vmem:[%s1 + $0xb28] sm:$0xff]
  %v381 = vld [vmem:[%s1 + $0xb30] sm:$0xff]
  %v382 = vld [vmem:[%s1 + $0xb38] sm:$0xff]
  %v383 = vld [vmem:[%s1 + $0xb40] sm:$0xff]
  %v384 = vld [vmem:[%s1 + $0xb48] sm:$0xff]
  %v385 = vld [vmem:[%s1 + $0xb50] sm:$0xff]
  %v386 = vld [vmem:[%s1 + $0xb58] sm:$0xff]
  %v387 = vld [vmem:[%s1 + $0xb60] sm:$0xff]
  %v388 = vld [vmem:[%s1 + $0xb68] sm:$0xff]
  %v389 = vld [vmem:[%s1 + $0xb70] sm:$0xff]
  %v390 = vld [vmem:[%s1 + $0xb78] sm:$0xff]
  %v391 = vld [vmem:[%s1 + $0xb80] sm:$0xff]
  %v392 = vld [vmem:[%s1 + $0xb88] sm:$0xff]
  %v393 = vld [vmem:[%s1 + $0xb90] sm:$0xff]
  %v394 = vld [vmem:[%s1 + $0xb98] sm:$0xff]
  %v395 = vld [vmem:[%s1 + $0xba0] sm:$0xff]
  %v396 = vld [vmem:[%s1 + $0xba8] sm:$0xff]
  %v397 = vld [vmem:[%s1 + $0xbb0] sm:$0xff]
  %v398 = vld [vmem:[%s1 + $0xbb8] sm:$0xff]
  %v399 = vld [vmem:[%s1 + $0xbc0] sm:$0xff]
  %v400 = vld [vmem:[%s1 + $0xbc8] sm:$0xff]
  %v401 = vld [vmem:[%s1 + $0xbd0] sm:$0xff]
  %v402 = vld [vmem:[%s1 + $0xbd8] sm:$0xff]
  %v403 = vld [vmem:[%s1 + $0xbe0] sm:$0xff]
  %v404 = vld [vmem:[%s1 + $0xbe8] sm:$0xff]
  %v405 = vld [vmem:[%s1 + $0xbf0] sm:$0xff]
  %v406 = vld [vmem:[%s1 + $0xbf8] sm:$0xff]
  %v407 = vld [vmem:[%s1 + $0xc00] sm:$0xff]
  %v408 = vld [vmem:[%s1 + $0xc08] sm:$0xff]
  %v409 = vld [vmem:[%s1 + $0xc10] sm:$0xff]
  %v410 = vld [vmem:[%s1 + $0xc18] sm:$0xff]
  %v411 = vld [vmem:[%s1 + $0xc20] sm:$0xff]
  %v412 = vld [vmem:[%s1 + $0xc28] sm:$0xff]
  %v413 = vld [vmem:[%s1 + $0xc30] sm:$0xff]
  %v414 = vld [vmem:[%s1 + $0xc38] sm:$0xff]
  %v415 = vld [vmem:[%s1 + $0xc40] sm:$0xff]
  %v416 = vld [vmem:[%s1 + $0xc48] sm:$0xff]
  %v417 = vld [vmem:[%s1 + $0xc50] sm:$0xff]
  %v418 = vld [vmem:[%s1 + $0xc58] sm:$0xff]
  %v419 = vld [vmem:[%s1 + $0xc60] sm:$0xff]
  %v420 = vld [vmem:[%s1 + $0xc68] sm:$0xff]
  %v421 = vld [vmem:[%s1 + $0xc70] sm:$0xff]
  %v422 = vld [vmem:[%s1 + $0xc78] sm:$0xff]
  %v423 = vld [vmem:[%s1 + $0xc80] sm:$0xff]
  %v424 = vld [vmem:[%s1 + $0xc88] sm:$0xff]
  %v425 = vld [vmem:[%s1 + $0xc90] sm:$0xff]
  %v426 = vld [vmem:[%s1 + $0xc98] sm:$0xff]
  %v427 = vld [vmem:[%s1 + $0xca0] sm:$0xff]
  %v428 = vld [vmem:[%s1 + $0xca8] sm:$0xff]
  %v429 = vld [vmem:[%s1 + $0xcb0] sm:$0xff]
  %v430 = vld [vmem:[%s1 + $0xcb8] sm:$0xff]
  %v431 = vld [vmem:[%s1 + $0xcc0] sm:$0xff]
  %v432 = vld [vmem:[%s1 + $0xcc8] sm:$0xff]
  %v433 = vld [vmem:[%s1 + $0xcd0] sm:$0xff]
  %v434 = vld [vmem:[%s1 + $0xcd8] sm:$0xff]
  %v435 = vld [vmem:[%s1 + $0xce0] sm:$0xff]
  %v436 = vld [vmem:[%s1 + $0xce8] sm:$0xff]
  %v437 = vld [vmem:[%s1 + $0xcf0] sm:$0xff]
  %v438 = vld [vmem:[%s1 + $0xcf8] sm:$0xff]
  %v439 = vld [vmem:[%s1 + $0xd00] sm:$0xff]
  %v440 = vld [vmem:[%s1 + $0xd08] sm:$0xff]
  %v441 = vld [vmem:[%s1 + $0xd10] sm:$0xff]
  %v442 = vld [vmem:[%s1 + $0xd18] sm:$0xff]
  %v443 = vld [vmem:[%s1 + $0xd20] sm:$0xff]
  %v444 = vld [vmem:[%s1 + $0xd28] sm:$0xff]
  %v445 = vld [vmem:[%s1 + $0xd30] sm:$0xff]
  %v446 = vld [vmem:[%s1 + $0xd38] sm:$0xff]
  %v447 = vld [vmem:[%s1 + $0xd40] sm:$0xff]
  %v448 = vld [vmem:[%s1 + $0xd48] sm:$0xff]
  %v449 = vld [vmem:[%s1 + $0xd50] sm:$0xff]
  %v450 = vld [vmem:[%s1 + $0xd58] sm:$0xff]
  %v451 = vld [vmem:[%s1 + $0xd60] sm:$0xff]
  %v452 = vld [vmem:[%s1 + $0xd68] sm:$0xff]
  %v453 = vld [vmem:[%s1 + $0xd70] sm:$0xff]
  %v454 = vld [vmem:[%s1 + $0xd78] sm:$0xff]
  %v455 = vld [vmem:[%s1 + $0xd80] sm:$0xff]
  %v456 = vld [vmem:[%s1 + $0xd88] sm:$0xff]
  %v457 = vld [vmem:[%s1 + $0xd90] sm:$0xff]
  %v458 = vld [vmem:[%s1 + $0xd98] sm:$0xff]
  %v459 = vld [vmem:[%s1 + $0xda0] sm:$0xff]
  %v460 = vld [vmem:[%s1 + $0xda8] sm:$0xff]
  %v461 = vld [vmem:[%s1 + $0xdb0] sm:$0xff]
  %v462 = vld [vmem:[%s1 + $0xdb8] sm:$0xff]
  %v463 = vld [vmem:[%s1 + $0xdc0] sm:$0xff]
  %v464 = vld [vmem:[%s1 + $0xdc8] sm:$0xff]
  %v465 = vld [vmem:[%s1 + $0xdd0] sm:$0xff]
  %v466 = vld [vmem:[%s1 + $0xdd8] sm:$0xff]
  %v467 = vld [vmem:[%s1 + $0xde0] sm:$0xff]
  %v468 = vld [vmem:[%s1 + $0xde8] sm:$0xff]
  %v469 = vld [vmem:[%s1 + $0xdf0] sm:$0xff]
  %v470 = vld [vmem:[%s1 + $0xdf8] sm:$0xff]
  %v471 = vld [vmem:[%s1 + $0xe00] sm:$0xff]
  %v472 = vld [vmem:[%s1 + $0xe08] sm:$0xff]
  %v473 = vld [vmem:[%s1 + $0xe10] sm:$0xff]
  %v474 = vld [vmem:[%s1 + $0xe18] sm:$0xff]
  %v475 = vld [vmem:[%s1 + $0xe20] sm:$0xff]
  %v476 = vld [vmem:[%s1 + $0xe28] sm:$0xff]
  %v477 = vld [vmem:[%s1 + $0xe30] sm:$0xff]
  %v478 = vld [vmem:[%s1 + $0xe38] sm:$0xff]
  %v479 = vld [vmem:[%s1 + $0xe40] sm:$0xff]
  %v480 = vld [vmem:[%s1 + $0xe48] sm:$0xff]
  %v481 = vld [vmem:[%s1 + $0xe50] sm:$0xff]
  %v482 = vld [vmem:[%s1 + $0xe58] sm:$0xff]
  %v483 = vld [vmem:[%s1 + $0xe60] sm:$0xff]
  %v484 = vld [vmem:[%s1 + $0xe68] sm:$0xff]
  %v485 = vld [vmem:[%s1 + $0xe70] sm:$0xff]
  %v486 = vld [vmem:[%s1 + $0xe78] sm:$0xff]
  %v487 = vld [vmem:[%s1 + $0xe80] sm:$0xff]
  %v488 = vld [vmem:[%s1 + $0xe88] sm:$0xff]
  %v489 = vld [vmem:[%s1 + $0xe90] sm:$0xff]
  %v490 = vld [vmem:[%s1 + $0xe98] sm:$0xff]
  %v491 = vld [vmem:[%s1 + $0xea0] sm:$0xff]
  %v492 = vld [vmem:[%s1 + $0xea8] sm:$0xff]
  %v493 = vld [vmem:[%s1 + $0xeb0] sm:$0xff]
  %v494 = vld [vmem:[%s1 + $0xeb8] sm:$0xff]
  %v495 = vld [vmem:[%s1 + $0xec0] sm:$0xff]
  %v496 = vld [vmem:[%s1 + $0xec8] sm:$0xff]
  %v497 = vld [vmem:[%s1 + $0xed0] sm:$0xff]
  %v498 = vld [vmem:[%s1 + $0xed8] sm:$0xff]
  %v499 = vld [vmem:[%s1 + $0xee0] sm:$0xff]
  %v500 = vld [vmem:[%s1 + $0xee8] sm:$0xff]
  %v501 = vld [vmem:[%s1 + $0xef0] sm:$0xff]
  %v502 = vld [vmem:[%s1 + $0xef8] sm:$0xff]
  %v503 = vld [vmem:[%s1 + $0xf00] sm:$0xff]
  %v504 = vld [vmem:[%s1 + $0xf08] sm:$0xff]
  %v505 = vld [vmem:[%s1 + $0xf10] sm:$0xff]
  %v506 = vld [vmem:[%s1 + $0xf18] sm:$0xff]
  %v507 = vld [vmem:[%s1 + $0xf20] sm:$0xff]
  %v508 = vld [vmem:[%s1 + $0xf28] sm:$0xff]
  %v509 = vld [vmem:[%s1 + $0xf30] sm:$0xff]
  %v510 = vld [vmem:[%s1 + $0xf38] sm:$0xff]
  %v511 = vld [vmem:[%s1 + $0xf40] sm:$0xff]
  %v512 = vld [vmem:[%s1 + $0xf48] sm:$0xff]
  %v513 = vld [vmem:[%s1 + $0xf50] sm:$0xff]
  %v514 = vld [vmem:[%s1 + $0xf58] sm:$0xff]
  %v515 = vld [vmem:[%s1 + $0xf60] sm:$0xff]
  %v516 = vld [vmem:[%s1 + $0xf68] sm:$0xff]
  %v517 = vld [vmem:[%s1 + $0xf70] sm:$0xff]
  %v518 = vld [vmem:[%s1 + $0xf78] sm:$0xff]
  %v519 = vld [vmem:[%s1 + $0xf80] sm:$0xff]
  %v520 = vld [vmem:[%s1 + $0xf88] sm:$0xff]
  %v521 = vld [vmem:[%s1 + $0xf90] sm:$0xff]
  %v522 = vld [vmem:[%s1 + $0xf98] sm:$0xff]
  %v523 = vld [vmem:[%s1 + $0xfa0] sm:$0xff]
  %v524 = vld [vmem:[%s1 + $0xfa8] sm:$0xff]
  %v525 = vld [vmem:[%s1 + $0xfb0] sm:$0xff]
  %v526 = vld [vmem:[%s1 + $0xfb8] sm:$0xff]
  %v527 = vld [vmem:[%s1 + $0xfc0] sm:$0xff]
  %v528 = vld [vmem:[%s1 + $0xfc8] sm:$0xff]
  %v529 = vld [vmem:[%s1 + $0xfd0] sm:$0xff]
  %v530 = vld [vmem:[%s1 + $0xfd8] sm:$0xff]
  %v531 = vld [vmem:[%s1 + $0xfe0] sm:$0xff]
  %v532 = vld [vmem:[%s1 + $0xfe8] sm:$0xff]
  %v533 = vld [vmem:[%s1 + $0xff0] sm:$0xff]
  %v534 = vld [vmem:[%s1 + $0xff8] sm:$0xff]
  %v535 = vld [vmem:[%s1 + $0x1000] sm:$0xff]
  %v536 = vld [vmem:[%s1 + $0x1008] sm:$0xff]
  %v537 = vld [vmem:[%s1 + $0x1010] sm:$0xff]
  %v538 = vld [vmem:[%s1 + $0x1018] sm:$0xff]
  %v539 = vld [vmem:[%s1 + $0x1020] sm:$0xff]
  %v540 = vld [vmem:[%s1 + $0x1028] sm:$0xff]
  %v541 = vld [vmem:[%s1 + $0x1030] sm:$0xff]
  %v542 = vld [vmem:[%s1 + $0x1038] sm:$0xff]
  %v543 = vld [vmem:[%s1 + $0x1040] sm:$0xff]
  %v544 = vld [vmem:[%s1 + $0x1048] sm:$0xff]
  %v545 = vld [vmem:[%s1 + $0x1050] sm:$0xff]
  %v546 = vld [vmem:[%s1 + $0x1058] sm:$0xff]
  %v547 = vld [vmem:[%s1 + $0x1060] sm:$0xff]
  %v548 = vld [vmem:[%s1 + $0x1068] sm:$0xff]
  %v549 = vld [vmem:[%s1 + $0x1070] sm:$0xff]
  %v550 = vld [vmem:[%s1 + $0x1078] sm:$0xff]
  %v551 = vld [vmem:[%s1 + $0x1080] sm:$0xff]
  %v552 = vld [vmem:[%s1 + $0x1088] sm:$0xff]
  %v553 = vld [vmem:[%s1 + $0x1090] sm:$0xff]
  %v554 = vld [vmem:[%s1 + $0x1098] sm:$0xff]
  %v555 = vld [vmem:[%s1 + $0x10a0] sm:$0xff]
  %v556 = vld [vmem:[%s1 + $0x10a8] sm:$0xff]
  %v557 = vld [vmem:[%s1 + $0x10b0] sm:$0xff]
  %v558 = vld [vmem:[%s1 + $0x10b8] sm:$0xff]
  %v559 = vld [vmem:[%s1 + $0x10c0] sm:$0xff]
  %v560 = vld [vmem:[%s1 + $0x10c8] sm:$0xff]
  %v561 = vld [vmem:[%s1 + $0x10d0] sm:$0xff]
  %v562 = vld [vmem:[%s1 + $0x10d8] sm:$0xff]
  %v563 = vld [vmem:[%s1 + $0x10e0] sm:$0xff]
  %v564 = vld [vmem:[%s1 + $0x10e8] sm:$0xff]
  %v565 = vld [vmem:[%s1 + $0x10f0] sm:$0xff]
  %v566 = vld [vmem:[%s1 + $0x10f8] sm:$0xff]
  %v567 = vld [vmem:[%s1 + $0x1100] sm:$0xff]
  %v568 = vld [vmem:[%s1 + $0x1108] sm:$0xff]
  %v569 = vld [vmem:[%s1 + $0x1110] sm:$0xff]
  %v570 = vld [vmem:[%s1 + $0x1118] sm:$0xff]
  %v571 = vld [vmem:[%s1 + $0x1120] sm:$0xff]
  %v572 = vld [vmem:[%s1 + $0x1128] sm:$0xff]
  %v573 = vld [vmem:[%s1 + $0x1130] sm:$0xff]
  %v574 = vld [vmem:[%s1 + $0x1138] sm:$0xff]
  %v575 = vld [vmem:[%s1 + $0x1140] sm:$0xff]
  %v576 = vld [vmem:[%s1 + $0x1148] sm:$0xff]
  %v577 = vld [vmem:[%s1 + $0x1150] sm:$0xff]
  %v578 = vld [vmem:[%s1 + $0x1158] sm:$0xff]
  %v579 = vld [vmem:[%s1 + $0x1160] sm:$0xff]
  %v580 = vld [vmem:[%s1 + $0x1168] sm:$0xff]
  %v581 = vld [vmem:[%s1 + $0x1170] sm:$0xff]
  %v582 = vld [vmem:[%s1 + $0x1178] sm:$0xff]
  %v583 = vld [vmem:[%s1 + $0x1180] sm:$0xff]
  %v584 = vld [vmem:[%s1 + $0x1188] sm:$0xff]
  %v585 = vld [vmem:[%s1 + $0x1190] sm:$0xff]
  %v586 = vld [vmem:[%s1 + $0x1198] sm:$0xff]
  %v587 = vld [vmem:[%s1 + $0x11a0] sm:$0xff]
  %v588 = vld [vmem:[%s1 + $0x11a8] sm:$0xff]
  %v589 = vld [vmem:[%s1 + $0x11b0] sm:$0xff]
  %v590 = vld [vmem:[%s1 + $0x11b8] sm:$0xff]
  %v591 = vld [vmem:[%s1 + $0x11c0] sm:$0xff]
  %v592 = vld [vmem:[%s1 + $0x11c8] sm:$0xff]
  %v593 = vld [vmem:[%s1 + $0x11d0] sm:$0xff]
  %v594 = vld [vmem:[%s1 + $0x11d8] sm:$0xff]
  %v595 = vld [vmem:[%s1 + $0x11e0] sm:$0xff]
  %v596 = vld [vmem:[%s1 + $0x11e8] sm:$0xff]
  %v597 = vld [vmem:[%s1 + $0x11f0] sm:$0xff]
  %v598 = vld [vmem:[%s1 + $0x11f8] sm:$0xff]
  %v599 = vld [vmem:[%s2] sm:$0xf]
  %v601 = vlaneseq
  %v602 = vshrl.u32 %v601, 7
  %v603 = vsub.s32 0, %v602
  %v604 = vrot.slane %v599, %v603
  %v605 = vlaneseq
  %v606 = vshrl.u32 %v605, 7
  %v607 = vsub.s32 1, %v606
  %v608 = vrot.slane %v599, %v607
  %v609 = vlaneseq
  %v610 = vshrl.u32 %v609, 7
  %v611 = vsub.s32 2, %v610
  %v612 = vrot.slane %v599, %v611
  %v613 = vlaneseq
  %v614 = vshrl.u32 %v613, 7
  %v615 = vsub.s32 3, %v614
  %v616 = vrot.slane %v599, %v615
  %v630 = vunpack.c.l.b16 %v14
  %v631 = vunpack.c.h.b16 %v14
  %v632 = vunpack.c.l.b16 %v15
  %v633 = vunpack.c.h.b16 %v15
  %v634 = vunpack.c.l.b16 %v16
  %v635 = vunpack.c.h.b16 %v16
  %v636 = vunpack.c.l.b16 %v17
  %v637 = vunpack.c.h.b16 %v17
  %v638 = vunpack.c.l.b16 %v18
  %v639 = vunpack.c.h.b16 %v18
  %v640 = vunpack.c.l.b16 %v19
  %v641 = vunpack.c.h.b16 %v19
  %v642 = vunpack.c.l.b16 %v20
  %v643 = vunpack.c.h.b16 %v20
  %v644 = vunpack.c.l.b16 %v21
  %v645 = vunpack.c.h.b16 %v21
  %v646 = vunpack.c.l.b16 %v22
  %v647 = vunpack.c.h.b16 %v22
  %v648 = vpack.c.b16 %v630, %v630
  %v649 = vpack.c.b16 %v631, %v631
  %v650 = vpack.c.b16 %v632, %v632
  %v651 = vpack.c.b16 %v633, %v633
  %v652 = vpack.c.b16 %v634, %v634
  %v653 = vpack.c.b16 %v635, %v635
  %v654 = vpack.c.b16 %v636, %v636
  %v655 = vpack.c.b16 %v637, %v637
  %v656 = vpack.c.b16 %v638, %v638
  %v657 = vpack.c.b16 %v639, %v639
  %v658 = vpack.c.b16 %v640, %v640
  %v659 = vpack.c.b16 %v641, %v641
  %v660 = vpack.c.b16 %v642, %v642
  %v661 = vpack.c.b16 %v643, %v643
  %v662 = vpack.c.b16 %v644, %v644
  %v663 = vpack.c.b16 %v645, %v645
  %v664 = vpack.c.b16 %v646, %v646
  %v665 = vpack.c.b16 %v647, %v647
  %v1260 = vunpack.c.l.b16 %v23
  %v1261 = vunpack.c.h.b16 %v23
  %v1262 = vunpack.c.l.b16 %v24
  %v1263 = vunpack.c.h.b16 %v24
  %v1264 = vunpack.c.l.b16 %v25
  %v1265 = vunpack.c.h.b16 %v25
  %v1266 = vunpack.c.l.b16 %v26
  %v1267 = vunpack.c.h.b16 %v26
  %v1268 = vunpack.c.l.b16 %v27
  %v1269 = vunpack.c.h.b16 %v27
  %v1270 = vunpack.c.l.b16 %v28
  %v1271 = vunpack.c.h.b16 %v28
  %v1272 = vunpack.c.l.b16 %v29
  %v1273 = vunpack.c.h.b16 %v29
  %v1274 = vunpack.c.l.b16 %v30
  %v1275 = vunpack.c.h.b16 %v30
  %v1276 = vunpack.c.l.b16 %v31
  %v1277 = vunpack.c.h.b16 %v31
  %v1278 = vunpack.c.l.b16 %v32
  %v1279 = vunpack.c.h.b16 %v32
  %v1280 = vunpack.c.l.b16 %v33
  %v1281 = vunpack.c.h.b16 %v33
  %v1282 = vunpack.c.l.b16 %v34
  %v1283 = vunpack.c.h.b16 %v34
  %v1284 = vunpack.c.l.b16 %v35
  %v1285 = vunpack.c.h.b16 %v35
  %v1286 = vunpack.c.l.b16 %v36
  %v1287 = vunpack.c.h.b16 %v36
  %v1288 = vunpack.c.l.b16 %v37
  %v1289 = vunpack.c.h.b16 %v37
  %v1290 = vunpack.c.l.b16 %v38
  %v1291 = vunpack.c.h.b16 %v38
  %v1292 = vunpack.c.l.b16 %v39
  %v1293 = vunpack.c.h.b16 %v39
  %v1294 = vunpack.c.l.b16 %v40
  %v1295 = vunpack.c.h.b16 %v40
  %v1296 = vunpack.c.l.b16 %v41
  %v1297 = vunpack.c.h.b16 %v41
  %v1298 = vunpack.c.l.b16 %v42
  %v1299 = vunpack.c.h.b16 %v42
  %v1300 = vunpack.c.l.b16 %v43
  %v1301 = vunpack.c.h.b16 %v43
  %v1302 = vunpack.c.l.b16 %v44
  %v1303 = vunpack.c.h.b16 %v44
  %v1304 = vunpack.c.l.b16 %v45
  %v1305 = vunpack.c.h.b16 %v45
  %v1306 = vunpack.c.l.b16 %v46
  %v1307 = vunpack.c.h.b16 %v46
  %v1308 = vunpack.c.l.b16 %v47
  %v1309 = vunpack.c.h.b16 %v47
  %v1310 = vunpack.c.l.b16 %v48
  %v1311 = vunpack.c.h.b16 %v48
  %v1312 = vunpack.c.l.b16 %v49
  %v1313 = vunpack.c.h.b16 %v49
  %v1314 = vunpack.c.l.b16 %v50
  %v1315 = vunpack.c.h.b16 %v50
  %v1316 = vunpack.c.l.b16 %v51
  %v1317 = vunpack.c.h.b16 %v51
  %v1318 = vunpack.c.l.b16 %v52
  %v1319 = vunpack.c.h.b16 %v52
  %v1320 = vunpack.c.l.b16 %v53
  %v1321 = vunpack.c.h.b16 %v53
  %v1322 = vunpack.c.l.b16 %v54
  %v1323 = vunpack.c.h.b16 %v54
  %v1324 = vunpack.c.l.b16 %v55
  %v1325 = vunpack.c.h.b16 %v55
  %v1326 = vunpack.c.l.b16 %v56
  %v1327 = vunpack.c.h.b16 %v56
  %v1328 = vunpack.c.l.b16 %v57
  %v1329 = vunpack.c.h.b16 %v57
  %v1330 = vunpack.c.l.b16 %v58
  %v1331 = vunpack.c.h.b16 %v58
  %v1332 = vunpack.c.l.b16 %v59
  %v1333 = vunpack.c.h.b16 %v59
  %v1334 = vunpack.c.l.b16 %v60
  %v1335 = vunpack.c.h.b16 %v60
  %v1336 = vunpack.c.l.b16 %v61
  %v1337 = vunpack.c.h.b16 %v61
  %v1338 = vunpack.c.l.b16 %v62
  %v1339 = vunpack.c.h.b16 %v62
  %v1340 = vunpack.c.l.b16 %v63
  %v1341 = vunpack.c.h.b16 %v63
  %v1342 = vunpack.c.l.b16 %v64
  %v1343 = vunpack.c.h.b16 %v64
  %v1344 = vunpack.c.l.b16 %v65
  %v1345 = vunpack.c.h.b16 %v65
  %v1346 = vunpack.c.l.b16 %v66
  %v1347 = vunpack.c.h.b16 %v66
  %v1348 = vunpack.c.l.b16 %v67
  %v1349 = vunpack.c.h.b16 %v67
  %v1350 = vunpack.c.l.b16 %v68
  %v1351 = vunpack.c.h.b16 %v68
  %v1352 = vunpack.c.l.b16 %v69
  %v1353 = vunpack.c.h.b16 %v69
  %v1354 = vunpack.c.l.b16 %v70
  %v1355 = vunpack.c.h.b16 %v70
  %v1356 = vunpack.c.l.b16 %v71
  %v1357 = vunpack.c.h.b16 %v71
  %v1358 = vunpack.c.l.b16 %v72
  %v1359 = vunpack.c.h.b16 %v72
  %v1360 = vunpack.c.l.b16 %v73
  %v1361 = vunpack.c.h.b16 %v73
  %v1362 = vunpack.c.l.b16 %v74
  %v1363 = vunpack.c.h.b16 %v74
  %v1364 = vunpack.c.l.b16 %v75
  %v1365 = vunpack.c.h.b16 %v75
  %v1366 = vunpack.c.l.b16 %v76
  %v1367 = vunpack.c.h.b16 %v76
  %v1368 = vunpack.c.l.b16 %v77
  %v1369 = vunpack.c.h.b16 %v77
  %v1370 = vunpack.c.l.b16 %v78
  %v1371 = vunpack.c.h.b16 %v78
  %v1372 = vunpack.c.l.b16 %v79
  %v1373 = vunpack.c.h.b16 %v79
  %v1374 = vunpack.c.l.b16 %v80
  %v1375 = vunpack.c.h.b16 %v80
  %v1376 = vunpack.c.l.b16 %v81
  %v1377 = vunpack.c.h.b16 %v81
  %v1378 = vunpack.c.l.b16 %v82
  %v1379 = vunpack.c.h.b16 %v82
  %v1380 = vunpack.c.l.b16 %v83
  %v1381 = vunpack.c.h.b16 %v83
  %v1382 = vunpack.c.l.b16 %v84
  %v1383 = vunpack.c.h.b16 %v84
  %v1384 = vunpack.c.l.b16 %v85
  %v1385 = vunpack.c.h.b16 %v85
  %v1386 = vunpack.c.l.b16 %v86
  %v1387 = vunpack.c.h.b16 %v86
  %v1388 = vunpack.c.l.b16 %v87
  %v1389 = vunpack.c.h.b16 %v87
  %v1390 = vunpack.c.l.b16 %v88
  %v1391 = vunpack.c.h.b16 %v88
  %v1392 = vunpack.c.l.b16 %v89
  %v1393 = vunpack.c.h.b16 %v89
  %v1394 = vunpack.c.l.b16 %v90
  %v1395 = vunpack.c.h.b16 %v90
  %v1396 = vunpack.c.l.b16 %v91
  %v1397 = vunpack.c.h.b16 %v91
  %v1398 = vunpack.c.l.b16 %v92
  %v1399 = vunpack.c.h.b16 %v92
  %v1400 = vunpack.c.l.b16 %v93
  %v1401 = vunpack.c.h.b16 %v93
  %v1402 = vunpack.c.l.b16 %v94
  %v1403 = vunpack.c.h.b16 %v94
  %v1404 = vunpack.c.l.b16 %v95
  %v1405 = vunpack.c.h.b16 %v95
  %v1406 = vunpack.c.l.b16 %v96
  %v1407 = vunpack.c.h.b16 %v96
  %v1408 = vunpack.c.l.b16 %v97
  %v1409 = vunpack.c.h.b16 %v97
  %v1410 = vunpack.c.l.b16 %v98
  %v1411 = vunpack.c.h.b16 %v98
  %v1412 = vunpack.c.l.b16 %v99
  %v1413 = vunpack.c.h.b16 %v99
  %v1414 = vunpack.c.l.b16 %v100
  %v1415 = vunpack.c.h.b16 %v100
  %v1416 = vunpack.c.l.b16 %v101
  %v1417 = vunpack.c.h.b16 %v101
  %v1418 = vunpack.c.l.b16 %v102
  %v1419 = vunpack.c.h.b16 %v102
  %v1420 = vunpack.c.l.b16 %v103
  %v1421 = vunpack.c.h.b16 %v103
  %v1422 = vunpack.c.l.b16 %v104
  %v1423 = vunpack.c.h.b16 %v104
  %v1424 = vunpack.c.l.b16 %v105
  %v1425 = vunpack.c.h.b16 %v105
  %v1426 = vunpack.c.l.b16 %v106
  %v1427 = vunpack.c.h.b16 %v106
  %v1428 = vunpack.c.l.b16 %v107
  %v1429 = vunpack.c.h.b16 %v107
  %v1430 = vunpack.c.l.b16 %v108
  %v1431 = vunpack.c.h.b16 %v108
  %v1432 = vunpack.c.l.b16 %v109
  %v1433 = vunpack.c.h.b16 %v109
  %v1434 = vunpack.c.l.b16 %v110
  %v1435 = vunpack.c.h.b16 %v110
  %v1436 = vunpack.c.l.b16 %v111
  %v1437 = vunpack.c.h.b16 %v111
  %v1438 = vunpack.c.l.b16 %v112
  %v1439 = vunpack.c.h.b16 %v112
  %v1440 = vunpack.c.l.b16 %v113
  %v1441 = vunpack.c.h.b16 %v113
  %v1442 = vunpack.c.l.b16 %v114
  %v1443 = vunpack.c.h.b16 %v114
  %v1444 = vunpack.c.l.b16 %v115
  %v1445 = vunpack.c.h.b16 %v115
  %v1446 = vunpack.c.l.b16 %v116
  %v1447 = vunpack.c.h.b16 %v116
  %v1448 = vunpack.c.l.b16 %v117
  %v1449 = vunpack.c.h.b16 %v117
  %v1450 = vunpack.c.l.b16 %v118
  %v1451 = vunpack.c.h.b16 %v118
  %v1452 = vunpack.c.l.b16 %v119
  %v1453 = vunpack.c.h.b16 %v119
  %v1454 = vunpack.c.l.b16 %v120
  %v1455 = vunpack.c.h.b16 %v120
  %v1456 = vunpack.c.l.b16 %v121
  %v1457 = vunpack.c.h.b16 %v121
  %v1458 = vunpack.c.l.b16 %v122
  %v1459 = vunpack.c.h.b16 %v122
  %v1460 = vunpack.c.l.b16 %v123
  %v1461 = vunpack.c.h.b16 %v123
  %v1462 = vunpack.c.l.b16 %v124
  %v1463 = vunpack.c.h.b16 %v124
  %v1464 = vunpack.c.l.b16 %v125
  %v1465 = vunpack.c.h.b16 %v125
  %v1466 = vunpack.c.l.b16 %v126
  %v1467 = vunpack.c.h.b16 %v126
  %v1468 = vunpack.c.l.b16 %v127
  %v1469 = vunpack.c.h.b16 %v127
  %v1470 = vunpack.c.l.b16 %v128
  %v1471 = vunpack.c.h.b16 %v128
  %v1472 = vunpack.c.l.b16 %v129
  %v1473 = vunpack.c.h.b16 %v129
  %v1474 = vunpack.c.l.b16 %v130
  %v1475 = vunpack.c.h.b16 %v130
  %v1476 = vunpack.c.l.b16 %v131
  %v1477 = vunpack.c.h.b16 %v131
  %v1478 = vunpack.c.l.b16 %v132
  %v1479 = vunpack.c.h.b16 %v132
  %v1480 = vunpack.c.l.b16 %v133
  %v1481 = vunpack.c.h.b16 %v133
  %v1482 = vunpack.c.l.b16 %v134
  %v1483 = vunpack.c.h.b16 %v134
  %v1484 = vunpack.c.l.b16 %v135
  %v1485 = vunpack.c.h.b16 %v135
  %v1486 = vunpack.c.l.b16 %v136
  %v1487 = vunpack.c.h.b16 %v136
  %v1488 = vunpack.c.l.b16 %v137
  %v1489 = vunpack.c.h.b16 %v137
  %v1490 = vunpack.c.l.b16 %v138
  %v1491 = vunpack.c.h.b16 %v138
  %v1492 = vunpack.c.l.b16 %v139
  %v1493 = vunpack.c.h.b16 %v139
  %v1494 = vunpack.c.l.b16 %v140
  %v1495 = vunpack.c.h.b16 %v140
  %v1496 = vunpack.c.l.b16 %v141
  %v1497 = vunpack.c.h.b16 %v141
  %v1498 = vunpack.c.l.b16 %v142
  %v1499 = vunpack.c.h.b16 %v142
  %v1500 = vunpack.c.l.b16 %v143
  %v1501 = vunpack.c.h.b16 %v143
  %v1502 = vunpack.c.l.b16 %v144
  %v1503 = vunpack.c.h.b16 %v144
  %v1504 = vunpack.c.l.b16 %v145
  %v1505 = vunpack.c.h.b16 %v145
  %v1506 = vunpack.c.l.b16 %v146
  %v1507 = vunpack.c.h.b16 %v146
  %v1508 = vunpack.c.l.b16 %v147
  %v1509 = vunpack.c.h.b16 %v147
  %v1510 = vunpack.c.l.b16 %v148
  %v1511 = vunpack.c.h.b16 %v148
  %v1512 = vunpack.c.l.b16 %v149
  %v1513 = vunpack.c.h.b16 %v149
  %v1514 = vunpack.c.l.b16 %v150
  %v1515 = vunpack.c.h.b16 %v150
  %v1516 = vunpack.c.l.b16 %v151
  %v1517 = vunpack.c.h.b16 %v151
  %v1518 = vunpack.c.l.b16 %v152
  %v1519 = vunpack.c.h.b16 %v152
  %v1520 = vunpack.c.l.b16 %v153
  %v1521 = vunpack.c.h.b16 %v153
  %v1522 = vunpack.c.l.b16 %v154
  %v1523 = vunpack.c.h.b16 %v154
  %v1524 = vunpack.c.l.b16 %v155
  %v1525 = vunpack.c.h.b16 %v155
  %v1526 = vunpack.c.l.b16 %v156
  %v1527 = vunpack.c.h.b16 %v156
  %v1528 = vunpack.c.l.b16 %v157
  %v1529 = vunpack.c.h.b16 %v157
  %v1530 = vunpack.c.l.b16 %v158
  %v1531 = vunpack.c.h.b16 %v158
  %v1532 = vunpack.c.l.b16 %v159
  %v1533 = vunpack.c.h.b16 %v159
  %v1534 = vunpack.c.l.b16 %v160
  %v1535 = vunpack.c.h.b16 %v160
  %v1536 = vunpack.c.l.b16 %v161
  %v1537 = vunpack.c.h.b16 %v161
  %v1538 = vunpack.c.l.b16 %v162
  %v1539 = vunpack.c.h.b16 %v162
  %v1540 = vunpack.c.l.b16 %v163
  %v1541 = vunpack.c.h.b16 %v163
  %v1542 = vunpack.c.l.b16 %v164
  %v1543 = vunpack.c.h.b16 %v164
  %v1544 = vunpack.c.l.b16 %v165
  %v1545 = vunpack.c.h.b16 %v165
  %v1546 = vunpack.c.l.b16 %v166
  %v1547 = vunpack.c.h.b16 %v166
  %v1548 = vunpack.c.l.b16 %v167
  %v1549 = vunpack.c.h.b16 %v167
  %v1550 = vunpack.c.l.b16 %v168
  %v1551 = vunpack.c.h.b16 %v168
  %v1552 = vunpack.c.l.b16 %v169
  %v1553 = vunpack.c.h.b16 %v169
  %v1554 = vunpack.c.l.b16 %v170
  %v1555 = vunpack.c.h.b16 %v170
  %v1556 = vunpack.c.l.b16 %v171
  %v1557 = vunpack.c.h.b16 %v171
  %v1558 = vunpack.c.l.b16 %v172
  %v1559 = vunpack.c.h.b16 %v172
  %v1560 = vunpack.c.l.b16 %v173
  %v1561 = vunpack.c.h.b16 %v173
  %v1562 = vunpack.c.l.b16 %v174
  %v1563 = vunpack.c.h.b16 %v174
  %v1564 = vunpack.c.l.b16 %v175
  %v1565 = vunpack.c.h.b16 %v175
  %v1566 = vunpack.c.l.b16 %v176
  %v1567 = vunpack.c.h.b16 %v176
  %v1568 = vunpack.c.l.b16 %v177
  %v1569 = vunpack.c.h.b16 %v177
  %v1570 = vunpack.c.l.b16 %v178
  %v1571 = vunpack.c.h.b16 %v178
  %v1572 = vunpack.c.l.b16 %v179
  %v1573 = vunpack.c.h.b16 %v179
  %v1574 = vunpack.c.l.b16 %v180
  %v1575 = vunpack.c.h.b16 %v180
  %v1576 = vunpack.c.l.b16 %v181
  %v1577 = vunpack.c.h.b16 %v181
  %v1578 = vunpack.c.l.b16 %v182
  %v1579 = vunpack.c.h.b16 %v182
  %v1580 = vunpack.c.l.b16 %v183
  %v1581 = vunpack.c.h.b16 %v183
  %v1582 = vunpack.c.l.b16 %v184
  %v1583 = vunpack.c.h.b16 %v184
  %v1584 = vunpack.c.l.b16 %v185
  %v1585 = vunpack.c.h.b16 %v185
  %v1586 = vunpack.c.l.b16 %v186
  %v1587 = vunpack.c.h.b16 %v186
  %v1588 = vunpack.c.l.b16 %v187
  %v1589 = vunpack.c.h.b16 %v187
  %v1590 = vunpack.c.l.b16 %v188
  %v1591 = vunpack.c.h.b16 %v188
  %v1592 = vunpack.c.l.b16 %v189
  %v1593 = vunpack.c.h.b16 %v189
  %v1594 = vunpack.c.l.b16 %v190
  %v1595 = vunpack.c.h.b16 %v190
  %v1596 = vunpack.c.l.b16 %v191
  %v1597 = vunpack.c.h.b16 %v191
  %v1598 = vunpack.c.l.b16 %v192
  %v1599 = vunpack.c.h.b16 %v192
  %v1600 = vunpack.c.l.b16 %v193
  %v1601 = vunpack.c.h.b16 %v193
  %v1602 = vunpack.c.l.b16 %v194
  %v1603 = vunpack.c.h.b16 %v194
  %v1604 = vunpack.c.l.b16 %v195
  %v1605 = vunpack.c.h.b16 %v195
  %v1606 = vunpack.c.l.b16 %v196
  %v1607 = vunpack.c.h.b16 %v196
  %v1608 = vunpack.c.l.b16 %v197
  %v1609 = vunpack.c.h.b16 %v197
  %v1610 = vunpack.c.l.b16 %v198
  %v1611 = vunpack.c.h.b16 %v198
  %v1612 = vunpack.c.l.b16 %v199
  %v1613 = vunpack.c.h.b16 %v199
  %v1614 = vunpack.c.l.b16 %v200
  %v1615 = vunpack.c.h.b16 %v200
  %v1616 = vunpack.c.l.b16 %v201
  %v1617 = vunpack.c.h.b16 %v201
  %v1618 = vunpack.c.l.b16 %v202
  %v1619 = vunpack.c.h.b16 %v202
  %v1620 = vunpack.c.l.b16 %v203
  %v1621 = vunpack.c.h.b16 %v203
  %v1622 = vunpack.c.l.b16 %v204
  %v1623 = vunpack.c.h.b16 %v204
  %v1624 = vunpack.c.l.b16 %v205
  %v1625 = vunpack.c.h.b16 %v205
  %v1626 = vunpack.c.l.b16 %v206
  %v1627 = vunpack.c.h.b16 %v206
  %v1628 = vunpack.c.l.b16 %v207
  %v1629 = vunpack.c.h.b16 %v207
  %v1630 = vunpack.c.l.b16 %v208
  %v1631 = vunpack.c.h.b16 %v208
  %v1632 = vunpack.c.l.b16 %v209
  %v1633 = vunpack.c.h.b16 %v209
  %v1634 = vunpack.c.l.b16 %v210
  %v1635 = vunpack.c.h.b16 %v210
  %v1636 = vunpack.c.l.b16 %v211
  %v1637 = vunpack.c.h.b16 %v211
  %v1638 = vunpack.c.l.b16 %v212
  %v1639 = vunpack.c.h.b16 %v212
  %v1640 = vunpack.c.l.b16 %v213
  %v1641 = vunpack.c.h.b16 %v213
  %v1642 = vunpack.c.l.b16 %v214
  %v1643 = vunpack.c.h.b16 %v214
  %v1644 = vunpack.c.l.b16 %v215
  %v1645 = vunpack.c.h.b16 %v215
  %v1646 = vunpack.c.l.b16 %v216
  %v1647 = vunpack.c.h.b16 %v216
  %v1648 = vunpack.c.l.b16 %v217
  %v1649 = vunpack.c.h.b16 %v217
  %v1650 = vunpack.c.l.b16 %v218
  %v1651 = vunpack.c.h.b16 %v218
  %v1652 = vunpack.c.l.b16 %v219
  %v1653 = vunpack.c.h.b16 %v219
  %v1654 = vunpack.c.l.b16 %v220
  %v1655 = vunpack.c.h.b16 %v220
  %v1656 = vunpack.c.l.b16 %v221
  %v1657 = vunpack.c.h.b16 %v221
  %v1658 = vunpack.c.l.b16 %v222
  %v1659 = vunpack.c.h.b16 %v222
  %v1660 = vunpack.c.l.b16 %v223
  %v1661 = vunpack.c.h.b16 %v223
  %v1662 = vunpack.c.l.b16 %v224
  %v1663 = vunpack.c.h.b16 %v224
  %v1664 = vunpack.c.l.b16 %v225
  %v1665 = vunpack.c.h.b16 %v225
  %v1666 = vunpack.c.l.b16 %v226
  %v1667 = vunpack.c.h.b16 %v226
  %v1668 = vunpack.c.l.b16 %v227
  %v1669 = vunpack.c.h.b16 %v227
  %v1670 = vunpack.c.l.b16 %v228
  %v1671 = vunpack.c.h.b16 %v228
  %v1672 = vunpack.c.l.b16 %v229
  %v1673 = vunpack.c.h.b16 %v229
  %v1674 = vunpack.c.l.b16 %v230
  %v1675 = vunpack.c.h.b16 %v230
  %v1676 = vunpack.c.l.b16 %v231
  %v1677 = vunpack.c.h.b16 %v231
  %v1678 = vunpack.c.l.b16 %v232
  %v1679 = vunpack.c.h.b16 %v232
  %v1680 = vunpack.c.l.b16 %v233
  %v1681 = vunpack.c.h.b16 %v233
  %v1682 = vunpack.c.l.b16 %v234
  %v1683 = vunpack.c.h.b16 %v234
  %v1684 = vunpack.c.l.b16 %v235
  %v1685 = vunpack.c.h.b16 %v235
  %v1686 = vunpack.c.l.b16 %v236
  %v1687 = vunpack.c.h.b16 %v236
  %v1688 = vunpack.c.l.b16 %v237
  %v1689 = vunpack.c.h.b16 %v237
  %v1690 = vunpack.c.l.b16 %v238
  %v1691 = vunpack.c.h.b16 %v238
  %v1692 = vunpack.c.l.b16 %v239
  %v1693 = vunpack.c.h.b16 %v239
  %v1694 = vunpack.c.l.b16 %v240
  %v1695 = vunpack.c.h.b16 %v240
  %v1696 = vunpack.c.l.b16 %v241
  %v1697 = vunpack.c.h.b16 %v241
  %v1698 = vunpack.c.l.b16 %v242
  %v1699 = vunpack.c.h.b16 %v242
  %v1700 = vunpack.c.l.b16 %v243
  %v1701 = vunpack.c.h.b16 %v243
  %v1702 = vunpack.c.l.b16 %v244
  %v1703 = vunpack.c.h.b16 %v244
  %v1704 = vunpack.c.l.b16 %v245
  %v1705 = vunpack.c.h.b16 %v245
  %v1706 = vunpack.c.l.b16 %v246
  %v1707 = vunpack.c.h.b16 %v246
  %v1708 = vunpack.c.l.b16 %v247
  %v1709 = vunpack.c.h.b16 %v247
  %v1710 = vunpack.c.l.b16 %v248
  %v1711 = vunpack.c.h.b16 %v248
  %v1712 = vunpack.c.l.b16 %v249
  %v1713 = vunpack.c.h.b16 %v249
  %v1714 = vunpack.c.l.b16 %v250
  %v1715 = vunpack.c.h.b16 %v250
  %v1716 = vunpack.c.l.b16 %v251
  %v1717 = vunpack.c.h.b16 %v251
  %v1718 = vunpack.c.l.b16 %v252
  %v1719 = vunpack.c.h.b16 %v252
  %v1720 = vunpack.c.l.b16 %v253
  %v1721 = vunpack.c.h.b16 %v253
  %v1722 = vunpack.c.l.b16 %v254
  %v1723 = vunpack.c.h.b16 %v254
  %v1724 = vunpack.c.l.b16 %v255
  %v1725 = vunpack.c.h.b16 %v255
  %v1726 = vunpack.c.l.b16 %v256
  %v1727 = vunpack.c.h.b16 %v256
  %v1728 = vunpack.c.l.b16 %v257
  %v1729 = vunpack.c.h.b16 %v257
  %v1730 = vunpack.c.l.b16 %v258
  %v1731 = vunpack.c.h.b16 %v258
  %v1732 = vunpack.c.l.b16 %v259
  %v1733 = vunpack.c.h.b16 %v259
  %v1734 = vunpack.c.l.b16 %v260
  %v1735 = vunpack.c.h.b16 %v260
  %v1736 = vunpack.c.l.b16 %v261
  %v1737 = vunpack.c.h.b16 %v261
  %v1738 = vunpack.c.l.b16 %v262
  %v1739 = vunpack.c.h.b16 %v262
  %v1740 = vunpack.c.l.b16 %v263
  %v1741 = vunpack.c.h.b16 %v263
  %v1742 = vunpack.c.l.b16 %v264
  %v1743 = vunpack.c.h.b16 %v264
  %v1744 = vunpack.c.l.b16 %v265
  %v1745 = vunpack.c.h.b16 %v265
  %v1746 = vunpack.c.l.b16 %v266
  %v1747 = vunpack.c.h.b16 %v266
  %v1748 = vunpack.c.l.b16 %v267
  %v1749 = vunpack.c.h.b16 %v267
  %v1750 = vunpack.c.l.b16 %v268
  %v1751 = vunpack.c.h.b16 %v268
  %v1752 = vunpack.c.l.b16 %v269
  %v1753 = vunpack.c.h.b16 %v269
  %v1754 = vunpack.c.l.b16 %v270
  %v1755 = vunpack.c.h.b16 %v270
  %v1756 = vunpack.c.l.b16 %v271
  %v1757 = vunpack.c.h.b16 %v271
  %v1758 = vunpack.c.l.b16 %v272
  %v1759 = vunpack.c.h.b16 %v272
  %v1760 = vunpack.c.l.b16 %v273
  %v1761 = vunpack.c.h.b16 %v273
  %v1762 = vunpack.c.l.b16 %v274
  %v1763 = vunpack.c.h.b16 %v274
  %v1764 = vunpack.c.l.b16 %v275
  %v1765 = vunpack.c.h.b16 %v275
  %v1766 = vunpack.c.l.b16 %v276
  %v1767 = vunpack.c.h.b16 %v276
  %v1768 = vunpack.c.l.b16 %v277
  %v1769 = vunpack.c.h.b16 %v277
  %v1770 = vunpack.c.l.b16 %v278
  %v1771 = vunpack.c.h.b16 %v278
  %v1772 = vunpack.c.l.b16 %v279
  %v1773 = vunpack.c.h.b16 %v279
  %v1774 = vunpack.c.l.b16 %v280
  %v1775 = vunpack.c.h.b16 %v280
  %v1776 = vunpack.c.l.b16 %v281
  %v1777 = vunpack.c.h.b16 %v281
  %v1778 = vunpack.c.l.b16 %v282
  %v1779 = vunpack.c.h.b16 %v282
  %v1780 = vunpack.c.l.b16 %v283
  %v1781 = vunpack.c.h.b16 %v283
  %v1782 = vunpack.c.l.b16 %v284
  %v1783 = vunpack.c.h.b16 %v284
  %v1784 = vunpack.c.l.b16 %v285
  %v1785 = vunpack.c.h.b16 %v285
  %v1786 = vunpack.c.l.b16 %v286
  %v1787 = vunpack.c.h.b16 %v286
  %v1788 = vunpack.c.l.b16 %v287
  %v1789 = vunpack.c.h.b16 %v287
  %v1790 = vunpack.c.l.b16 %v288
  %v1791 = vunpack.c.h.b16 %v288
  %v1792 = vunpack.c.l.b16 %v289
  %v1793 = vunpack.c.h.b16 %v289
  %v1794 = vunpack.c.l.b16 %v290
  %v1795 = vunpack.c.h.b16 %v290
  %v1796 = vunpack.c.l.b16 %v291
  %v1797 = vunpack.c.h.b16 %v291
  %v1798 = vunpack.c.l.b16 %v292
  %v1799 = vunpack.c.h.b16 %v292
  %v1800 = vunpack.c.l.b16 %v293
  %v1801 = vunpack.c.h.b16 %v293
  %v1802 = vunpack.c.l.b16 %v294
  %v1803 = vunpack.c.h.b16 %v294
  %v1804 = vunpack.c.l.b16 %v295
  %v1805 = vunpack.c.h.b16 %v295
  %v1806 = vunpack.c.l.b16 %v296
  %v1807 = vunpack.c.h.b16 %v296
  %v1808 = vunpack.c.l.b16 %v297
  %v1809 = vunpack.c.h.b16 %v297
  %v1810 = vunpack.c.l.b16 %v298
  %v1811 = vunpack.c.h.b16 %v298
  %v1812 = vunpack.c.l.b16 %v299
  %v1813 = vunpack.c.h.b16 %v299
  %v1814 = vunpack.c.l.b16 %v300
  %v1815 = vunpack.c.h.b16 %v300
  %v1816 = vunpack.c.l.b16 %v301
  %v1817 = vunpack.c.h.b16 %v301
  %v1818 = vunpack.c.l.b16 %v302
  %v1819 = vunpack.c.h.b16 %v302
  %v1820 = vunpack.c.l.b16 %v303
  %v1821 = vunpack.c.h.b16 %v303
  %v1822 = vunpack.c.l.b16 %v304
  %v1823 = vunpack.c.h.b16 %v304
  %v1824 = vunpack.c.l.b16 %v305
  %v1825 = vunpack.c.h.b16 %v305
  %v1826 = vunpack.c.l.b16 %v306
  %v1827 = vunpack.c.h.b16 %v306
  %v1828 = vunpack.c.l.b16 %v307
  %v1829 = vunpack.c.h.b16 %v307
  %v1830 = vunpack.c.l.b16 %v308
  %v1831 = vunpack.c.h.b16 %v308
  %v1832 = vunpack.c.l.b16 %v309
  %v1833 = vunpack.c.h.b16 %v309
  %v1834 = vunpack.c.l.b16 %v310
  %v1835 = vunpack.c.h.b16 %v310
  %v1836 = vunpack.c.l.b16 %v311
  %v1837 = vunpack.c.h.b16 %v311
  %v1838 = vunpack.c.l.b16 %v312
  %v1839 = vunpack.c.h.b16 %v312
  %v1840 = vunpack.c.l.b16 %v313
  %v1841 = vunpack.c.h.b16 %v313
  %v1842 = vunpack.c.l.b16 %v314
  %v1843 = vunpack.c.h.b16 %v314
  %v1844 = vunpack.c.l.b16 %v315
  %v1845 = vunpack.c.h.b16 %v315
  %v1846 = vunpack.c.l.b16 %v316
  %v1847 = vunpack.c.h.b16 %v316
  %v1848 = vunpack.c.l.b16 %v317
  %v1849 = vunpack.c.h.b16 %v317
  %v1850 = vunpack.c.l.b16 %v318
  %v1851 = vunpack.c.h.b16 %v318
  %v1852 = vunpack.c.l.b16 %v319
  %v1853 = vunpack.c.h.b16 %v319
  %v1854 = vunpack.c.l.b16 %v320
  %v1855 = vunpack.c.h.b16 %v320
  %v1856 = vunpack.c.l.b16 %v321
  %v1857 = vunpack.c.h.b16 %v321
  %v1858 = vunpack.c.l.b16 %v322
  %v1859 = vunpack.c.h.b16 %v322
  %v1860 = vunpack.c.l.b16 %v323
  %v1861 = vunpack.c.h.b16 %v323
  %v1862 = vunpack.c.l.b16 %v324
  %v1863 = vunpack.c.h.b16 %v324
  %v1864 = vunpack.c.l.b16 %v325
  %v1865 = vunpack.c.h.b16 %v325
  %v1866 = vunpack.c.l.b16 %v326
  %v1867 = vunpack.c.h.b16 %v326
  %v1868 = vunpack.c.l.b16 %v327
  %v1869 = vunpack.c.h.b16 %v327
  %v1870 = vunpack.c.l.b16 %v328
  %v1871 = vunpack.c.h.b16 %v328
  %v1872 = vunpack.c.l.b16 %v329
  %v1873 = vunpack.c.h.b16 %v329
  %v1874 = vunpack.c.l.b16 %v330
  %v1875 = vunpack.c.h.b16 %v330
  %v1876 = vunpack.c.l.b16 %v331
  %v1877 = vunpack.c.h.b16 %v331
  %v1878 = vunpack.c.l.b16 %v332
  %v1879 = vunpack.c.h.b16 %v332
  %v1880 = vunpack.c.l.b16 %v333
  %v1881 = vunpack.c.h.b16 %v333
  %v1882 = vunpack.c.l.b16 %v334
  %v1883 = vunpack.c.h.b16 %v334
  %v1884 = vunpack.c.l.b16 %v335
  %v1885 = vunpack.c.h.b16 %v335
  %v1886 = vunpack.c.l.b16 %v336
  %v1887 = vunpack.c.h.b16 %v336
  %v1888 = vunpack.c.l.b16 %v337
  %v1889 = vunpack.c.h.b16 %v337
  %v1890 = vunpack.c.l.b16 %v338
  %v1891 = vunpack.c.h.b16 %v338
  %v1892 = vunpack.c.l.b16 %v339
  %v1893 = vunpack.c.h.b16 %v339
  %v1894 = vunpack.c.l.b16 %v340
  %v1895 = vunpack.c.h.b16 %v340
  %v1896 = vunpack.c.l.b16 %v341
  %v1897 = vunpack.c.h.b16 %v341
  %v1898 = vunpack.c.l.b16 %v342
  %v1899 = vunpack.c.h.b16 %v342
  %v1900 = vunpack.c.l.b16 %v343
  %v1901 = vunpack.c.h.b16 %v343
  %v1902 = vunpack.c.l.b16 %v344
  %v1903 = vunpack.c.h.b16 %v344
  %v1904 = vunpack.c.l.b16 %v345
  %v1905 = vunpack.c.h.b16 %v345
  %v1906 = vunpack.c.l.b16 %v346
  %v1907 = vunpack.c.h.b16 %v346
  %v1908 = vunpack.c.l.b16 %v347
  %v1909 = vunpack.c.h.b16 %v347
  %v1910 = vunpack.c.l.b16 %v348
  %v1911 = vunpack.c.h.b16 %v348
  %v1912 = vunpack.c.l.b16 %v349
  %v1913 = vunpack.c.h.b16 %v349
  %v1914 = vunpack.c.l.b16 %v350
  %v1915 = vunpack.c.h.b16 %v350
  %v1916 = vunpack.c.l.b16 %v351
  %v1917 = vunpack.c.h.b16 %v351
  %v1918 = vunpack.c.l.b16 %v352
  %v1919 = vunpack.c.h.b16 %v352
  %v1920 = vunpack.c.l.b16 %v353
  %v1921 = vunpack.c.h.b16 %v353
  %v1922 = vunpack.c.l.b16 %v354
  %v1923 = vunpack.c.h.b16 %v354
  %v1924 = vunpack.c.l.b16 %v355
  %v1925 = vunpack.c.h.b16 %v355
  %v1926 = vunpack.c.l.b16 %v356
  %v1927 = vunpack.c.h.b16 %v356
  %v1928 = vunpack.c.l.b16 %v357
  %v1929 = vunpack.c.h.b16 %v357
  %v1930 = vunpack.c.l.b16 %v358
  %v1931 = vunpack.c.h.b16 %v358
  %v1932 = vunpack.c.l.b16 %v359
  %v1933 = vunpack.c.h.b16 %v359
  %v1934 = vunpack.c.l.b16 %v360
  %v1935 = vunpack.c.h.b16 %v360
  %v1936 = vunpack.c.l.b16 %v361
  %v1937 = vunpack.c.h.b16 %v361
  %v1938 = vunpack.c.l.b16 %v362
  %v1939 = vunpack.c.h.b16 %v362
  %v1940 = vunpack.c.l.b16 %v363
  %v1941 = vunpack.c.h.b16 %v363
  %v1942 = vunpack.c.l.b16 %v364
  %v1943 = vunpack.c.h.b16 %v364
  %v1944 = vunpack.c.l.b16 %v365
  %v1945 = vunpack.c.h.b16 %v365
  %v1946 = vunpack.c.l.b16 %v366
  %v1947 = vunpack.c.h.b16 %v366
  %v1948 = vunpack.c.l.b16 %v367
  %v1949 = vunpack.c.h.b16 %v367
  %v1950 = vunpack.c.l.b16 %v368
  %v1951 = vunpack.c.h.b16 %v368
  %v1952 = vunpack.c.l.b16 %v369
  %v1953 = vunpack.c.h.b16 %v369
  %v1954 = vunpack.c.l.b16 %v370
  %v1955 = vunpack.c.h.b16 %v370
  %v1956 = vunpack.c.l.b16 %v371
  %v1957 = vunpack.c.h.b16 %v371
  %v1958 = vunpack.c.l.b16 %v372
  %v1959 = vunpack.c.h.b16 %v372
  %v1960 = vunpack.c.l.b16 %v373
  %v1961 = vunpack.c.h.b16 %v373
  %v1962 = vunpack.c.l.b16 %v374
  %v1963 = vunpack.c.h.b16 %v374
  %v1964 = vunpack.c.l.b16 %v375
  %v1965 = vunpack.c.h.b16 %v375
  %v1966 = vunpack.c.l.b16 %v376
  %v1967 = vunpack.c.h.b16 %v376
  %v1968 = vunpack.c.l.b16 %v377
  %v1969 = vunpack.c.h.b16 %v377
  %v1970 = vunpack.c.l.b16 %v378
  %v1971 = vunpack.c.h.b16 %v378
  %v1972 = vunpack.c.l.b16 %v379
  %v1973 = vunpack.c.h.b16 %v379
  %v1974 = vunpack.c.l.b16 %v380
  %v1975 = vunpack.c.h.b16 %v380
  %v1976 = vunpack.c.l.b16 %v381
  %v1977 = vunpack.c.h.b16 %v381
  %v1978 = vunpack.c.l.b16 %v382
  %v1979 = vunpack.c.h.b16 %v382
  %v1980 = vunpack.c.l.b16 %v383
  %v1981 = vunpack.c.h.b16 %v383
  %v1982 = vunpack.c.l.b16 %v384
  %v1983 = vunpack.c.h.b16 %v384
  %v1984 = vunpack.c.l.b16 %v385
  %v1985 = vunpack.c.h.b16 %v385
  %v1986 = vunpack.c.l.b16 %v386
  %v1987 = vunpack.c.h.b16 %v386
  %v1988 = vunpack.c.l.b16 %v387
  %v1989 = vunpack.c.h.b16 %v387
  %v1990 = vunpack.c.l.b16 %v388
  %v1991 = vunpack.c.h.b16 %v388
  %v1992 = vunpack.c.l.b16 %v389
  %v1993 = vunpack.c.h.b16 %v389
  %v1994 = vunpack.c.l.b16 %v390
  %v1995 = vunpack.c.h.b16 %v390
  %v1996 = vunpack.c.l.b16 %v391
  %v1997 = vunpack.c.h.b16 %v391
  %v1998 = vunpack.c.l.b16 %v392
  %v1999 = vunpack.c.h.b16 %v392
  %v2000 = vunpack.c.l.b16 %v393
  %v2001 = vunpack.c.h.b16 %v393
  %v2002 = vunpack.c.l.b16 %v394
  %v2003 = vunpack.c.h.b16 %v394
  %v2004 = vunpack.c.l.b16 %v395
  %v2005 = vunpack.c.h.b16 %v395
  %v2006 = vunpack.c.l.b16 %v396
  %v2007 = vunpack.c.h.b16 %v396
  %v2008 = vunpack.c.l.b16 %v397
  %v2009 = vunpack.c.h.b16 %v397
  %v2010 = vunpack.c.l.b16 %v398
  %v2011 = vunpack.c.h.b16 %v398
  %v2012 = vunpack.c.l.b16 %v399
  %v2013 = vunpack.c.h.b16 %v399
  %v2014 = vunpack.c.l.b16 %v400
  %v2015 = vunpack.c.h.b16 %v400
  %v2016 = vunpack.c.l.b16 %v401
  %v2017 = vunpack.c.h.b16 %v401
  %v2018 = vunpack.c.l.b16 %v402
  %v2019 = vunpack.c.h.b16 %v402
  %v2020 = vunpack.c.l.b16 %v403
  %v2021 = vunpack.c.h.b16 %v403
  %v2022 = vunpack.c.l.b16 %v404
  %v2023 = vunpack.c.h.b16 %v404
  %v2024 = vunpack.c.l.b16 %v405
  %v2025 = vunpack.c.h.b16 %v405
  %v2026 = vunpack.c.l.b16 %v406
  %v2027 = vunpack.c.h.b16 %v406
  %v2028 = vunpack.c.l.b16 %v407
  %v2029 = vunpack.c.h.b16 %v407
  %v2030 = vunpack.c.l.b16 %v408
  %v2031 = vunpack.c.h.b16 %v408
  %v2032 = vunpack.c.l.b16 %v409
  %v2033 = vunpack.c.h.b16 %v409
  %v2034 = vunpack.c.l.b16 %v410
  %v2035 = vunpack.c.h.b16 %v410
  %v2036 = vunpack.c.l.b16 %v411
  %v2037 = vunpack.c.h.b16 %v411
  %v2038 = vunpack.c.l.b16 %v412
  %v2039 = vunpack.c.h.b16 %v412
  %v2040 = vunpack.c.l.b16 %v413
  %v2041 = vunpack.c.h.b16 %v413
  %v2042 = vunpack.c.l.b16 %v414
  %v2043 = vunpack.c.h.b16 %v414
  %v2044 = vunpack.c.l.b16 %v415
  %v2045 = vunpack.c.h.b16 %v415
  %v2046 = vunpack.c.l.b16 %v416
  %v2047 = vunpack.c.h.b16 %v416
  %v2048 = vunpack.c.l.b16 %v417
  %v2049 = vunpack.c.h.b16 %v417
  %v2050 = vunpack.c.l.b16 %v418
  %v2051 = vunpack.c.h.b16 %v418
  %v2052 = vunpack.c.l.b16 %v419
  %v2053 = vunpack.c.h.b16 %v419
  %v2054 = vunpack.c.l.b16 %v420
  %v2055 = vunpack.c.h.b16 %v420
  %v2056 = vunpack.c.l.b16 %v421
  %v2057 = vunpack.c.h.b16 %v421
  %v2058 = vunpack.c.l.b16 %v422
  %v2059 = vunpack.c.h.b16 %v422
  %v2060 = vunpack.c.l.b16 %v423
  %v2061 = vunpack.c.h.b16 %v423
  %v2062 = vunpack.c.l.b16 %v424
  %v2063 = vunpack.c.h.b16 %v424
  %v2064 = vunpack.c.l.b16 %v425
  %v2065 = vunpack.c.h.b16 %v425
  %v2066 = vunpack.c.l.b16 %v426
  %v2067 = vunpack.c.h.b16 %v426
  %v2068 = vunpack.c.l.b16 %v427
  %v2069 = vunpack.c.h.b16 %v427
  %v2070 = vunpack.c.l.b16 %v428
  %v2071 = vunpack.c.h.b16 %v428
  %v2072 = vunpack.c.l.b16 %v429
  %v2073 = vunpack.c.h.b16 %v429
  %v2074 = vunpack.c.l.b16 %v430
  %v2075 = vunpack.c.h.b16 %v430
  %v2076 = vunpack.c.l.b16 %v431
  %v2077 = vunpack.c.h.b16 %v431
  %v2078 = vunpack.c.l.b16 %v432
  %v2079 = vunpack.c.h.b16 %v432
  %v2080 = vunpack.c.l.b16 %v433
  %v2081 = vunpack.c.h.b16 %v433
  %v2082 = vunpack.c.l.b16 %v434
  %v2083 = vunpack.c.h.b16 %v434
  %v2084 = vunpack.c.l.b16 %v435
  %v2085 = vunpack.c.h.b16 %v435
  %v2086 = vunpack.c.l.b16 %v436
  %v2087 = vunpack.c.h.b16 %v436
  %v2088 = vunpack.c.l.b16 %v437
  %v2089 = vunpack.c.h.b16 %v437
  %v2090 = vunpack.c.l.b16 %v438
  %v2091 = vunpack.c.h.b16 %v438
  %v2092 = vunpack.c.l.b16 %v439
  %v2093 = vunpack.c.h.b16 %v439
  %v2094 = vunpack.c.l.b16 %v440
  %v2095 = vunpack.c.h.b16 %v440
  %v2096 = vunpack.c.l.b16 %v441
  %v2097 = vunpack.c.h.b16 %v441
  %v2098 = vunpack.c.l.b16 %v442
  %v2099 = vunpack.c.h.b16 %v442
  %v2100 = vunpack.c.l.b16 %v443
  %v2101 = vunpack.c.h.b16 %v443
  %v2102 = vunpack.c.l.b16 %v444
  %v2103 = vunpack.c.h.b16 %v444
  %v2104 = vunpack.c.l.b16 %v445
  %v2105 = vunpack.c.h.b16 %v445
  %v2106 = vunpack.c.l.b16 %v446
  %v2107 = vunpack.c.h.b16 %v446
  %v2108 = vunpack.c.l.b16 %v447
  %v2109 = vunpack.c.h.b16 %v447
  %v2110 = vunpack.c.l.b16 %v448
  %v2111 = vunpack.c.h.b16 %v448
  %v2112 = vunpack.c.l.b16 %v449
  %v2113 = vunpack.c.h.b16 %v449
  %v2114 = vunpack.c.l.b16 %v450
  %v2115 = vunpack.c.h.b16 %v450
  %v2116 = vunpack.c.l.b16 %v451
  %v2117 = vunpack.c.h.b16 %v451
  %v2118 = vunpack.c.l.b16 %v452
  %v2119 = vunpack.c.h.b16 %v452
  %v2120 = vunpack.c.l.b16 %v453
  %v2121 = vunpack.c.h.b16 %v453
  %v2122 = vunpack.c.l.b16 %v454
  %v2123 = vunpack.c.h.b16 %v454
  %v2124 = vunpack.c.l.b16 %v455
  %v2125 = vunpack.c.h.b16 %v455
  %v2126 = vunpack.c.l.b16 %v456
  %v2127 = vunpack.c.h.b16 %v456
  %v2128 = vunpack.c.l.b16 %v457
  %v2129 = vunpack.c.h.b16 %v457
  %v2130 = vunpack.c.l.b16 %v458
  %v2131 = vunpack.c.h.b16 %v458
  %v2132 = vunpack.c.l.b16 %v459
  %v2133 = vunpack.c.h.b16 %v459
  %v2134 = vunpack.c.l.b16 %v460
  %v2135 = vunpack.c.h.b16 %v460
  %v2136 = vunpack.c.l.b16 %v461
  %v2137 = vunpack.c.h.b16 %v461
  %v2138 = vunpack.c.l.b16 %v462
  %v2139 = vunpack.c.h.b16 %v462
  %v2140 = vunpack.c.l.b16 %v463
  %v2141 = vunpack.c.h.b16 %v463
  %v2142 = vunpack.c.l.b16 %v464
  %v2143 = vunpack.c.h.b16 %v464
  %v2144 = vunpack.c.l.b16 %v465
  %v2145 = vunpack.c.h.b16 %v465
  %v2146 = vunpack.c.l.b16 %v466
  %v2147 = vunpack.c.h.b16 %v466
  %v2148 = vunpack.c.l.b16 %v467
  %v2149 = vunpack.c.h.b16 %v467
  %v2150 = vunpack.c.l.b16 %v468
  %v2151 = vunpack.c.h.b16 %v468
  %v2152 = vunpack.c.l.b16 %v469
  %v2153 = vunpack.c.h.b16 %v469
  %v2154 = vunpack.c.l.b16 %v470
  %v2155 = vunpack.c.h.b16 %v470
  %v2156 = vunpack.c.l.b16 %v471
  %v2157 = vunpack.c.h.b16 %v471
  %v2158 = vunpack.c.l.b16 %v472
  %v2159 = vunpack.c.h.b16 %v472
  %v2160 = vunpack.c.l.b16 %v473
  %v2161 = vunpack.c.h.b16 %v473
  %v2162 = vunpack.c.l.b16 %v474
  %v2163 = vunpack.c.h.b16 %v474
  %v2164 = vunpack.c.l.b16 %v475
  %v2165 = vunpack.c.h.b16 %v475
  %v2166 = vunpack.c.l.b16 %v476
  %v2167 = vunpack.c.h.b16 %v476
  %v2168 = vunpack.c.l.b16 %v477
  %v2169 = vunpack.c.h.b16 %v477
  %v2170 = vunpack.c.l.b16 %v478
  %v2171 = vunpack.c.h.b16 %v478
  %v2172 = vunpack.c.l.b16 %v479
  %v2173 = vunpack.c.h.b16 %v479
  %v2174 = vunpack.c.l.b16 %v480
  %v2175 = vunpack.c.h.b16 %v480
  %v2176 = vunpack.c.l.b16 %v481
  %v2177 = vunpack.c.h.b16 %v481
  %v2178 = vunpack.c.l.b16 %v482
  %v2179 = vunpack.c.h.b16 %v482
  %v2180 = vunpack.c.l.b16 %v483
  %v2181 = vunpack.c.h.b16 %v483
  %v2182 = vunpack.c.l.b16 %v484
  %v2183 = vunpack.c.h.b16 %v484
  %v2184 = vunpack.c.l.b16 %v485
  %v2185 = vunpack.c.h.b16 %v485
  %v2186 = vunpack.c.l.b16 %v486
  %v2187 = vunpack.c.h.b16 %v486
  %v2188 = vunpack.c.l.b16 %v487
  %v2189 = vunpack.c.h.b16 %v487
  %v2190 = vunpack.c.l.b16 %v488
  %v2191 = vunpack.c.h.b16 %v488
  %v2192 = vunpack.c.l.b16 %v489
  %v2193 = vunpack.c.h.b16 %v489
  %v2194 = vunpack.c.l.b16 %v490
  %v2195 = vunpack.c.h.b16 %v490
  %v2196 = vunpack.c.l.b16 %v491
  %v2197 = vunpack.c.h.b16 %v491
  %v2198 = vunpack.c.l.b16 %v492
  %v2199 = vunpack.c.h.b16 %v492
  %v2200 = vunpack.c.l.b16 %v493
  %v2201 = vunpack.c.h.b16 %v493
  %v2202 = vunpack.c.l.b16 %v494
  %v2203 = vunpack.c.h.b16 %v494
  %v2204 = vunpack.c.l.b16 %v495
  %v2205 = vunpack.c.h.b16 %v495
  %v2206 = vunpack.c.l.b16 %v496
  %v2207 = vunpack.c.h.b16 %v496
  %v2208 = vunpack.c.l.b16 %v497
  %v2209 = vunpack.c.h.b16 %v497
  %v2210 = vunpack.c.l.b16 %v498
  %v2211 = vunpack.c.h.b16 %v498
  %v2212 = vunpack.c.l.b16 %v499
  %v2213 = vunpack.c.h.b16 %v499
  %v2214 = vunpack.c.l.b16 %v500
  %v2215 = vunpack.c.h.b16 %v500
  %v2216 = vunpack.c.l.b16 %v501
  %v2217 = vunpack.c.h.b16 %v501
  %v2218 = vunpack.c.l.b16 %v502
  %v2219 = vunpack.c.h.b16 %v502
  %v2220 = vunpack.c.l.b16 %v503
  %v2221 = vunpack.c.h.b16 %v503
  %v2222 = vunpack.c.l.b16 %v504
  %v2223 = vunpack.c.h.b16 %v504
  %v2224 = vunpack.c.l.b16 %v505
  %v2225 = vunpack.c.h.b16 %v505
  %v2226 = vunpack.c.l.b16 %v506
  %v2227 = vunpack.c.h.b16 %v506
  %v2228 = vunpack.c.l.b16 %v507
  %v2229 = vunpack.c.h.b16 %v507
  %v2230 = vunpack.c.l.b16 %v508
  %v2231 = vunpack.c.h.b16 %v508
  %v2232 = vunpack.c.l.b16 %v509
  %v2233 = vunpack.c.h.b16 %v509
  %v2234 = vunpack.c.l.b16 %v510
  %v2235 = vunpack.c.h.b16 %v510
  %v2236 = vunpack.c.l.b16 %v511
  %v2237 = vunpack.c.h.b16 %v511
  %v2238 = vunpack.c.l.b16 %v512
  %v2239 = vunpack.c.h.b16 %v512
  %v2240 = vunpack.c.l.b16 %v513
  %v2241 = vunpack.c.h.b16 %v513
  %v2242 = vunpack.c.l.b16 %v514
  %v2243 = vunpack.c.h.b16 %v514
  %v2244 = vunpack.c.l.b16 %v515
  %v2245 = vunpack.c.h.b16 %v515
  %v2246 = vunpack.c.l.b16 %v516
  %v2247 = vunpack.c.h.b16 %v516
  %v2248 = vunpack.c.l.b16 %v517
  %v2249 = vunpack.c.h.b16 %v517
  %v2250 = vunpack.c.l.b16 %v518
  %v2251 = vunpack.c.h.b16 %v518
  %v2252 = vunpack.c.l.b16 %v519
  %v2253 = vunpack.c.h.b16 %v519
  %v2254 = vunpack.c.l.b16 %v520
  %v2255 = vunpack.c.h.b16 %v520
  %v2256 = vunpack.c.l.b16 %v521
  %v2257 = vunpack.c.h.b16 %v521
  %v2258 = vunpack.c.l.b16 %v522
  %v2259 = vunpack.c.h.b16 %v522
  %v2260 = vunpack.c.l.b16 %v523
  %v2261 = vunpack.c.h.b16 %v523
  %v2262 = vunpack.c.l.b16 %v524
  %v2263 = vunpack.c.h.b16 %v524
  %v2264 = vunpack.c.l.b16 %v525
  %v2265 = vunpack.c.h.b16 %v525
  %v2266 = vunpack.c.l.b16 %v526
  %v2267 = vunpack.c.h.b16 %v526
  %v2268 = vunpack.c.l.b16 %v527
  %v2269 = vunpack.c.h.b16 %v527
  %v2270 = vunpack.c.l.b16 %v528
  %v2271 = vunpack.c.h.b16 %v528
  %v2272 = vunpack.c.l.b16 %v529
  %v2273 = vunpack.c.h.b16 %v529
  %v2274 = vunpack.c.l.b16 %v530
  %v2275 = vunpack.c.h.b16 %v530
  %v2276 = vunpack.c.l.b16 %v531
  %v2277 = vunpack.c.h.b16 %v531
  %v2278 = vunpack.c.l.b16 %v532
  %v2279 = vunpack.c.h.b16 %v532
  %v2280 = vunpack.c.l.b16 %v533
  %v2281 = vunpack.c.h.b16 %v533
  %v2282 = vunpack.c.l.b16 %v534
  %v2283 = vunpack.c.h.b16 %v534
  %v2284 = vunpack.c.l.b16 %v535
  %v2285 = vunpack.c.h.b16 %v535
  %v2286 = vunpack.c.l.b16 %v536
  %v2287 = vunpack.c.h.b16 %v536
  %v2288 = vunpack.c.l.b16 %v537
  %v2289 = vunpack.c.h.b16 %v537
  %v2290 = vunpack.c.l.b16 %v538
  %v2291 = vunpack.c.h.b16 %v538
  %v2292 = vunpack.c.l.b16 %v539
  %v2293 = vunpack.c.h.b16 %v539
  %v2294 = vunpack.c.l.b16 %v540
  %v2295 = vunpack.c.h.b16 %v540
  %v2296 = vunpack.c.l.b16 %v541
  %v2297 = vunpack.c.h.b16 %v541
  %v2298 = vunpack.c.l.b16 %v542
  %v2299 = vunpack.c.h.b16 %v542
  %v2300 = vunpack.c.l.b16 %v543
  %v2301 = vunpack.c.h.b16 %v543
  %v2302 = vunpack.c.l.b16 %v544
  %v2303 = vunpack.c.h.b16 %v544
  %v2304 = vunpack.c.l.b16 %v545
  %v2305 = vunpack.c.h.b16 %v545
  %v2306 = vunpack.c.l.b16 %v546
  %v2307 = vunpack.c.h.b16 %v546
  %v2308 = vunpack.c.l.b16 %v547
  %v2309 = vunpack.c.h.b16 %v547
  %v2310 = vunpack.c.l.b16 %v548
  %v2311 = vunpack.c.h.b16 %v548
  %v2312 = vunpack.c.l.b16 %v549
  %v2313 = vunpack.c.h.b16 %v549
  %v2314 = vunpack.c.l.b16 %v550
  %v2315 = vunpack.c.h.b16 %v550
  %v2316 = vunpack.c.l.b16 %v551
  %v2317 = vunpack.c.h.b16 %v551
  %v2318 = vunpack.c.l.b16 %v552
  %v2319 = vunpack.c.h.b16 %v552
  %v2320 = vunpack.c.l.b16 %v553
  %v2321 = vunpack.c.h.b16 %v553
  %v2322 = vunpack.c.l.b16 %v554
  %v2323 = vunpack.c.h.b16 %v554
  %v2324 = vunpack.c.l.b16 %v555
  %v2325 = vunpack.c.h.b16 %v555
  %v2326 = vunpack.c.l.b16 %v556
  %v2327 = vunpack.c.h.b16 %v556
  %v2328 = vunpack.c.l.b16 %v557
  %v2329 = vunpack.c.h.b16 %v557
  %v2330 = vunpack.c.l.b16 %v558
  %v2331 = vunpack.c.h.b16 %v558
  %v2332 = vunpack.c.l.b16 %v559
  %v2333 = vunpack.c.h.b16 %v559
  %v2334 = vunpack.c.l.b16 %v560
  %v2335 = vunpack.c.h.b16 %v560
  %v2336 = vunpack.c.l.b16 %v561
  %v2337 = vunpack.c.h.b16 %v561
  %v2338 = vunpack.c.l.b16 %v562
  %v2339 = vunpack.c.h.b16 %v562
  %v2340 = vunpack.c.l.b16 %v563
  %v2341 = vunpack.c.h.b16 %v563
  %v2342 = vunpack.c.l.b16 %v564
  %v2343 = vunpack.c.h.b16 %v564
  %v2344 = vunpack.c.l.b16 %v565
  %v2345 = vunpack.c.h.b16 %v565
  %v2346 = vunpack.c.l.b16 %v566
  %v2347 = vunpack.c.h.b16 %v566
  %v2348 = vunpack.c.l.b16 %v567
  %v2349 = vunpack.c.h.b16 %v567
  %v2350 = vunpack.c.l.b16 %v568
  %v2351 = vunpack.c.h.b16 %v568
  %v2352 = vunpack.c.l.b16 %v569
  %v2353 = vunpack.c.h.b16 %v569
  %v2354 = vunpack.c.l.b16 %v570
  %v2355 = vunpack.c.h.b16 %v570
  %v2356 = vunpack.c.l.b16 %v571
  %v2357 = vunpack.c.h.b16 %v571
  %v2358 = vunpack.c.l.b16 %v572
  %v2359 = vunpack.c.h.b16 %v572
  %v2360 = vunpack.c.l.b16 %v573
  %v2361 = vunpack.c.h.b16 %v573
  %v2362 = vunpack.c.l.b16 %v574
  %v2363 = vunpack.c.h.b16 %v574
  %v2364 = vunpack.c.l.b16 %v575
  %v2365 = vunpack.c.h.b16 %v575
  %v2366 = vunpack.c.l.b16 %v576
  %v2367 = vunpack.c.h.b16 %v576
  %v2368 = vunpack.c.l.b16 %v577
  %v2369 = vunpack.c.h.b16 %v577
  %v2370 = vunpack.c.l.b16 %v578
  %v2371 = vunpack.c.h.b16 %v578
  %v2372 = vunpack.c.l.b16 %v579
  %v2373 = vunpack.c.h.b16 %v579
  %v2374 = vunpack.c.l.b16 %v580
  %v2375 = vunpack.c.h.b16 %v580
  %v2376 = vunpack.c.l.b16 %v581
  %v2377 = vunpack.c.h.b16 %v581
  %v2378 = vunpack.c.l.b16 %v582
  %v2379 = vunpack.c.h.b16 %v582
  %v2380 = vunpack.c.l.b16 %v583
  %v2381 = vunpack.c.h.b16 %v583
  %v2382 = vunpack.c.l.b16 %v584
  %v2383 = vunpack.c.h.b16 %v584
  %v2384 = vunpack.c.l.b16 %v585
  %v2385 = vunpack.c.h.b16 %v585
  %v2386 = vunpack.c.l.b16 %v586
  %v2387 = vunpack.c.h.b16 %v586
  %v2388 = vunpack.c.l.b16 %v587
  %v2389 = vunpack.c.h.b16 %v587
  %v2390 = vunpack.c.l.b16 %v588
  %v2391 = vunpack.c.h.b16 %v588
  %v2392 = vunpack.c.l.b16 %v589
  %v2393 = vunpack.c.h.b16 %v589
  %v2394 = vunpack.c.l.b16 %v590
  %v2395 = vunpack.c.h.b16 %v590
  %v2396 = vunpack.c.l.b16 %v591
  %v2397 = vunpack.c.h.b16 %v591
  %v2398 = vunpack.c.l.b16 %v592
  %v2399 = vunpack.c.h.b16 %v592
  %v2400 = vunpack.c.l.b16 %v593
  %v2401 = vunpack.c.h.b16 %v593
  %v2402 = vunpack.c.l.b16 %v594
  %v2403 = vunpack.c.h.b16 %v594
  %v2404 = vunpack.c.l.b16 %v595
  %v2405 = vunpack.c.h.b16 %v595
  %v2406 = vunpack.c.l.b16 %v596
  %v2407 = vunpack.c.h.b16 %v596
  %v2408 = vunpack.c.l.b16 %v597
  %v2409 = vunpack.c.h.b16 %v597
  %v2410 = vunpack.c.l.b16 %v598
  %v2411 = vunpack.c.h.b16 %v598
  %v2412 = vpack.c.b16 %v1264, %v1260
  %v2413 = vpack.c.b16 %v1265, %v1261
  %v2414 = vpack.c.b16 %v1266, %v1262
  %v2415 = vpack.c.b16 %v1267, %v1263
  %v2416 = vpack.c.b16 %v1272, %v1268
  %v2417 = vpack.c.b16 %v1273, %v1269
  %v2418 = vpack.c.b16 %v1274, %v1270
  %v2419 = vpack.c.b16 %v1275, %v1271
  %v2420 = vpack.c.b16 %v1280, %v1276
  %v2421 = vpack.c.b16 %v1281, %v1277
  %v2422 = vpack.c.b16 %v1282, %v1278
  %v2423 = vpack.c.b16 %v1283, %v1279
  %v2424 = vpack.c.b16 %v1288, %v1284
  %v2425 = vpack.c.b16 %v1289, %v1285
  %v2426 = vpack.c.b16 %v1290, %v1286
  %v2427 = vpack.c.b16 %v1291, %v1287
  %v2428 = vpack.c.b16 %v1296, %v1292
  %v2429 = vpack.c.b16 %v1297, %v1293
  %v2430 = vpack.c.b16 %v1298, %v1294
  %v2431 = vpack.c.b16 %v1299, %v1295
  %v2432 = vpack.c.b16 %v1304, %v1300
  %v2433 = vpack.c.b16 %v1305, %v1301
  %v2434 = vpack.c.b16 %v1306, %v1302
  %v2435 = vpack.c.b16 %v1307, %v1303
  %v2436 = vpack.c.b16 %v1312, %v1308
  %v2437 = vpack.c.b16 %v1313, %v1309
  %v2438 = vpack.c.b16 %v1314, %v1310
  %v2439 = vpack.c.b16 %v1315, %v1311
  %v2440 = vpack.c.b16 %v1320, %v1316
  %v2441 = vpack.c.b16 %v1321, %v1317
  %v2442 = vpack.c.b16 %v1322, %v1318
  %v2443 = vpack.c.b16 %v1323, %v1319
  %v2444 = vpack.c.b16 %v1328, %v1324
  %v2445 = vpack.c.b16 %v1329, %v1325
  %v2446 = vpack.c.b16 %v1330, %v1326
  %v2447 = vpack.c.b16 %v1331, %v1327
  %v2448 = vpack.c.b16 %v1336, %v1332
  %v2449 = vpack.c.b16 %v1337, %v1333
  %v2450 = vpack.c.b16 %v1338, %v1334
  %v2451 = vpack.c.b16 %v1339, %v1335
  %v2452 = vpack.c.b16 %v1344, %v1340
  %v2453 = vpack.c.b16 %v1345, %v1341
  %v2454 = vpack.c.b16 %v1346, %v1342
  %v2455 = vpack.c.b16 %v1347, %v1343
  %v2456 = vpack.c.b16 %v1352, %v1348
  %v2457 = vpack.c.b16 %v1353, %v1349
  %v2458 = vpack.c.b16 %v1354, %v1350
  %v2459 = vpack.c.b16 %v1355, %v1351
  %v2460 = vpack.c.b16 %v1360, %v1356
  %v2461 = vpack.c.b16 %v1361, %v1357
  %v2462 = vpack.c.b16 %v1362, %v1358
  %v2463 = vpack.c.b16 %v1363, %v1359
  %v2464 = vpack.c.b16 %v1368, %v1364
  %v2465 = vpack.c.b16 %v1369, %v1365
  %v2466 = vpack.c.b16 %v1370, %v1366
  %v2467 = vpack.c.b16 %v1371, %v1367
  %v2468 = vpack.c.b16 %v1376, %v1372
  %v2469 = vpack.c.b16 %v1377, %v1373
  %v2470 = vpack.c.b16 %v1378, %v1374
  %v2471 = vpack.c.b16 %v1379, %v1375
  %v2472 = vpack.c.b16 %v1384, %v1380
  %v2473 = vpack.c.b16 %v1385, %v1381
  %v2474 = vpack.c.b16 %v1386, %v1382
  %v2475 = vpack.c.b16 %v1387, %v1383
  %v2476 = vpack.c.b16 %v1392, %v1388
  %v2477 = vpack.c.b16 %v1393, %v1389
  %v2478 = vpack.c.b16 %v1394, %v1390
  %v2479 = vpack.c.b16 %v1395, %v1391
  %v2480 = vpack.c.b16 %v1400, %v1396
  %v2481 = vpack.c.b16 %v1401, %v1397
  %v2482 = vpack.c.b16 %v1402, %v1398
  %v2483 = vpack.c.b16 %v1403, %v1399
  %v2484 = vpack.c.b16 %v1408, %v1404
  %v2485 = vpack.c.b16 %v1409, %v1405
  %v2486 = vpack.c.b16 %v1410, %v1406
  %v2487 = vpack.c.b16 %v1411, %v1407
  %v2488 = vpack.c.b16 %v1416, %v1412
  %v2489 = vpack.c.b16 %v1417, %v1413
  %v2490 = vpack.c.b16 %v1418, %v1414
  %v2491 = vpack.c.b16 %v1419, %v1415
  %v2492 = vpack.c.b16 %v1424, %v1420
  %v2493 = vpack.c.b16 %v1425, %v1421
  %v2494 = vpack.c.b16 %v1426, %v1422
  %v2495 = vpack.c.b16 %v1427, %v1423
  %v2496 = vpack.c.b16 %v1432, %v1428
  %v2497 = vpack.c.b16 %v1433, %v1429
  %v2498 = vpack.c.b16 %v1434, %v1430
  %v2499 = vpack.c.b16 %v1435, %v1431
  %v2500 = vpack.c.b16 %v1440, %v1436
  %v2501 = vpack.c.b16 %v1441, %v1437
  %v2502 = vpack.c.b16 %v1442, %v1438
  %v2503 = vpack.c.b16 %v1443, %v1439
  %v2504 = vpack.c.b16 %v1448, %v1444
  %v2505 = vpack.c.b16 %v1449, %v1445
  %v2506 = vpack.c.b16 %v1450, %v1446
  %v2507 = vpack.c.b16 %v1451, %v1447
  %v2508 = vpack.c.b16 %v1456, %v1452
  %v2509 = vpack.c.b16 %v1457, %v1453
  %v2510 = vpack.c.b16 %v1458, %v1454
  %v2511 = vpack.c.b16 %v1459, %v1455
  %v2512 = vpack.c.b16 %v1464, %v1460
  %v2513 = vpack.c.b16 %v1465, %v1461
  %v2514 = vpack.c.b16 %v1466, %v1462
  %v2515 = vpack.c.b16 %v1467, %v1463
  %v2516 = vpack.c.b16 %v1472, %v1468
  %v2517 = vpack.c.b16 %v1473, %v1469
  %v2518 = vpack.c.b16 %v1474, %v1470
  %v2519 = vpack.c.b16 %v1475, %v1471
  %v2520 = vpack.c.b16 %v1480, %v1476
  %v2521 = vpack.c.b16 %v1481, %v1477
  %v2522 = vpack.c.b16 %v1482, %v1478
  %v2523 = vpack.c.b16 %v1483, %v1479
  %v2524 = vpack.c.b16 %v1488, %v1484
  %v2525 = vpack.c.b16 %v1489, %v1485
  %v2526 = vpack.c.b16 %v1490, %v1486
  %v2527 = vpack.c.b16 %v1491, %v1487
  %v2528 = vpack.c.b16 %v1496, %v1492
  %v2529 = vpack.c.b16 %v1497, %v1493
  %v2530 = vpack.c.b16 %v1498, %v1494
  %v2531 = vpack.c.b16 %v1499, %v1495
  %v2532 = vpack.c.b16 %v1504, %v1500
  %v2533 = vpack.c.b16 %v1505, %v1501
  %v2534 = vpack.c.b16 %v1506, %v1502
  %v2535 = vpack.c.b16 %v1507, %v1503
  %v2536 = vpack.c.b16 %v1512, %v1508
  %v2537 = vpack.c.b16 %v1513, %v1509
  %v2538 = vpack.c.b16 %v1514, %v1510
  %v2539 = vpack.c.b16 %v1515, %v1511
  %v2540 = vpack.c.b16 %v1520, %v1516
  %v2541 = vpack.c.b16 %v1521, %v1517
  %v2542 = vpack.c.b16 %v1522, %v1518
  %v2543 = vpack.c.b16 %v1523, %v1519
  %v2544 = vpack.c.b16 %v1528, %v1524
  %v2545 = vpack.c.b16 %v1529, %v1525
  %v2546 = vpack.c.b16 %v1530, %v1526
  %v2547 = vpack.c.b16 %v1531, %v1527
  %v2548 = vpack.c.b16 %v1536, %v1532
  %v2549 = vpack.c.b16 %v1537, %v1533
  %v2550 = vpack.c.b16 %v1538, %v1534
  %v2551 = vpack.c.b16 %v1539, %v1535
  %v2552 = vpack.c.b16 %v1544, %v1540
  %v2553 = vpack.c.b16 %v1545, %v1541
  %v2554 = vpack.c.b16 %v1546, %v1542
  %v2555 = vpack.c.b16 %v1547, %v1543
  %v2556 = vpack.c.b16 %v1552, %v1548
  %v2557 = vpack.c.b16 %v1553, %v1549
  %v2558 = vpack.c.b16 %v1554, %v1550
  %v2559 = vpack.c.b16 %v1555, %v1551
  %v2560 = vpack.c.b16 %v1560, %v1556
  %v2561 = vpack.c.b16 %v1561, %v1557
  %v2562 = vpack.c.b16 %v1562, %v1558
  %v2563 = vpack.c.b16 %v1563, %v1559
  %v2564 = vpack.c.b16 %v1568, %v1564
  %v2565 = vpack.c.b16 %v1569, %v1565
  %v2566 = vpack.c.b16 %v1570, %v1566
  %v2567 = vpack.c.b16 %v1571, %v1567
  %v2568 = vpack.c.b16 %v1576, %v1572
  %v2569 = vpack.c.b16 %v1577, %v1573
  %v2570 = vpack.c.b16 %v1578, %v1574
  %v2571 = vpack.c.b16 %v1579, %v1575
  %v2572 = vpack.c.b16 %v1584, %v1580
  %v2573 = vpack.c.b16 %v1585, %v1581
  %v2574 = vpack.c.b16 %v1586, %v1582
  %v2575 = vpack.c.b16 %v1587, %v1583
  %v2576 = vpack.c.b16 %v1592, %v1588
  %v2577 = vpack.c.b16 %v1593, %v1589
  %v2578 = vpack.c.b16 %v1594, %v1590
  %v2579 = vpack.c.b16 %v1595, %v1591
  %v2580 = vpack.c.b16 %v1600, %v1596
  %v2581 = vpack.c.b16 %v1601, %v1597
  %v2582 = vpack.c.b16 %v1602, %v1598
  %v2583 = vpack.c.b16 %v1603, %v1599
  %v2584 = vpack.c.b16 %v1608, %v1604
  %v2585 = vpack.c.b16 %v1609, %v1605
  %v2586 = vpack.c.b16 %v1610, %v1606
  %v2587 = vpack.c.b16 %v1611, %v1607
  %v2588 = vpack.c.b16 %v1616, %v1612
  %v2589 = vpack.c.b16 %v1617, %v1613
  %v2590 = vpack.c.b16 %v1618, %v1614
  %v2591 = vpack.c.b16 %v1619, %v1615
  %v2592 = vpack.c.b16 %v1624, %v1620
  %v2593 = vpack.c.b16 %v1625, %v1621
  %v2594 = vpack.c.b16 %v1626, %v1622
  %v2595 = vpack.c.b16 %v1627, %v1623
  %v2596 = vpack.c.b16 %v1632, %v1628
  %v2597 = vpack.c.b16 %v1633, %v1629
  %v2598 = vpack.c.b16 %v1634, %v1630
  %v2599 = vpack.c.b16 %v1635, %v1631
  %v2600 = vpack.c.b16 %v1640, %v1636
  %v2601 = vpack.c.b16 %v1641, %v1637
  %v2602 = vpack.c.b16 %v1642, %v1638
  %v2603 = vpack.c.b16 %v1643, %v1639
  %v2604 = vpack.c.b16 %v1648, %v1644
  %v2605 = vpack.c.b16 %v1649, %v1645
  %v2606 = vpack.c.b16 %v1650, %v1646
  %v2607 = vpack.c.b16 %v1651, %v1647
  %v2608 = vpack.c.b16 %v1656, %v1652
  %v2609 = vpack.c.b16 %v1657, %v1653
  %v2610 = vpack.c.b16 %v1658, %v1654
  %v2611 = vpack.c.b16 %v1659, %v1655
  %v2612 = vpack.c.b16 %v1664, %v1660
  %v2613 = vpack.c.b16 %v1665, %v1661
  %v2614 = vpack.c.b16 %v1666, %v1662
  %v2615 = vpack.c.b16 %v1667, %v1663
  %v2616 = vpack.c.b16 %v1672, %v1668
  %v2617 = vpack.c.b16 %v1673, %v1669
  %v2618 = vpack.c.b16 %v1674, %v1670
  %v2619 = vpack.c.b16 %v1675, %v1671
  %v2620 = vpack.c.b16 %v1680, %v1676
  %v2621 = vpack.c.b16 %v1681, %v1677
  %v2622 = vpack.c.b16 %v1682, %v1678
  %v2623 = vpack.c.b16 %v1683, %v1679
  %v2624 = vpack.c.b16 %v1688, %v1684
  %v2625 = vpack.c.b16 %v1689, %v1685
  %v2626 = vpack.c.b16 %v1690, %v1686
  %v2627 = vpack.c.b16 %v1691, %v1687
  %v2628 = vpack.c.b16 %v1696, %v1692
  %v2629 = vpack.c.b16 %v1697, %v1693
  %v2630 = vpack.c.b16 %v1698, %v1694
  %v2631 = vpack.c.b16 %v1699, %v1695
  %v2632 = vpack.c.b16 %v1704, %v1700
  %v2633 = vpack.c.b16 %v1705, %v1701
  %v2634 = vpack.c.b16 %v1706, %v1702
  %v2635 = vpack.c.b16 %v1707, %v1703
  %v2636 = vpack.c.b16 %v1712, %v1708
  %v2637 = vpack.c.b16 %v1713, %v1709
  %v2638 = vpack.c.b16 %v1714, %v1710
  %v2639 = vpack.c.b16 %v1715, %v1711
  %v2640 = vpack.c.b16 %v1720, %v1716
  %v2641 = vpack.c.b16 %v1721, %v1717
  %v2642 = vpack.c.b16 %v1722, %v1718
  %v2643 = vpack.c.b16 %v1723, %v1719
  %v2644 = vpack.c.b16 %v1728, %v1724
  %v2645 = vpack.c.b16 %v1729, %v1725
  %v2646 = vpack.c.b16 %v1730, %v1726
  %v2647 = vpack.c.b16 %v1731, %v1727
  %v2648 = vpack.c.b16 %v1736, %v1732
  %v2649 = vpack.c.b16 %v1737, %v1733
  %v2650 = vpack.c.b16 %v1738, %v1734
  %v2651 = vpack.c.b16 %v1739, %v1735
  %v2652 = vpack.c.b16 %v1744, %v1740
  %v2653 = vpack.c.b16 %v1745, %v1741
  %v2654 = vpack.c.b16 %v1746, %v1742
  %v2655 = vpack.c.b16 %v1747, %v1743
  %v2656 = vpack.c.b16 %v1752, %v1748
  %v2657 = vpack.c.b16 %v1753, %v1749
  %v2658 = vpack.c.b16 %v1754, %v1750
  %v2659 = vpack.c.b16 %v1755, %v1751
  %v2660 = vpack.c.b16 %v1760, %v1756
  %v2661 = vpack.c.b16 %v1761, %v1757
  %v2662 = vpack.c.b16 %v1762, %v1758
  %v2663 = vpack.c.b16 %v1763, %v1759
  %v2664 = vpack.c.b16 %v1768, %v1764
  %v2665 = vpack.c.b16 %v1769, %v1765
  %v2666 = vpack.c.b16 %v1770, %v1766
  %v2667 = vpack.c.b16 %v1771, %v1767
  %v2668 = vpack.c.b16 %v1776, %v1772
  %v2669 = vpack.c.b16 %v1777, %v1773
  %v2670 = vpack.c.b16 %v1778, %v1774
  %v2671 = vpack.c.b16 %v1779, %v1775
  %v2672 = vpack.c.b16 %v1784, %v1780
  %v2673 = vpack.c.b16 %v1785, %v1781
  %v2674 = vpack.c.b16 %v1786, %v1782
  %v2675 = vpack.c.b16 %v1787, %v1783
  %v2676 = vpack.c.b16 %v1792, %v1788
  %v2677 = vpack.c.b16 %v1793, %v1789
  %v2678 = vpack.c.b16 %v1794, %v1790
  %v2679 = vpack.c.b16 %v1795, %v1791
  %v2680 = vpack.c.b16 %v1800, %v1796
  %v2681 = vpack.c.b16 %v1801, %v1797
  %v2682 = vpack.c.b16 %v1802, %v1798
  %v2683 = vpack.c.b16 %v1803, %v1799
  %v2684 = vpack.c.b16 %v1808, %v1804
  %v2685 = vpack.c.b16 %v1809, %v1805
  %v2686 = vpack.c.b16 %v1810, %v1806
  %v2687 = vpack.c.b16 %v1811, %v1807
  %v2688 = vpack.c.b16 %v1816, %v1812
  %v2689 = vpack.c.b16 %v1817, %v1813
  %v2690 = vpack.c.b16 %v1818, %v1814
  %v2691 = vpack.c.b16 %v1819, %v1815
  %v2692 = vpack.c.b16 %v1824, %v1820
  %v2693 = vpack.c.b16 %v1825, %v1821
  %v2694 = vpack.c.b16 %v1826, %v1822
  %v2695 = vpack.c.b16 %v1827, %v1823
  %v2696 = vpack.c.b16 %v1832, %v1828
  %v2697 = vpack.c.b16 %v1833, %v1829
  %v2698 = vpack.c.b16 %v1834, %v1830
  %v2699 = vpack.c.b16 %v1835, %v1831
  %v2700 = vpack.c.b16 %v1840, %v1836
  %v2701 = vpack.c.b16 %v1841, %v1837
  %v2702 = vpack.c.b16 %v1842, %v1838
  %v2703 = vpack.c.b16 %v1843, %v1839
  %v2704 = vpack.c.b16 %v1848, %v1844
  %v2705 = vpack.c.b16 %v1849, %v1845
  %v2706 = vpack.c.b16 %v1850, %v1846
  %v2707 = vpack.c.b16 %v1851, %v1847
  %v2708 = vpack.c.b16 %v1856, %v1852
  %v2709 = vpack.c.b16 %v1857, %v1853
  %v2710 = vpack.c.b16 %v1858, %v1854
  %v2711 = vpack.c.b16 %v1859, %v1855
  %v2712 = vpack.c.b16 %v1864, %v1860
  %v2713 = vpack.c.b16 %v1865, %v1861
  %v2714 = vpack.c.b16 %v1866, %v1862
  %v2715 = vpack.c.b16 %v1867, %v1863
  %v2716 = vpack.c.b16 %v1872, %v1868
  %v2717 = vpack.c.b16 %v1873, %v1869
  %v2718 = vpack.c.b16 %v1874, %v1870
  %v2719 = vpack.c.b16 %v1875, %v1871
  %v2720 = vpack.c.b16 %v1880, %v1876
  %v2721 = vpack.c.b16 %v1881, %v1877
  %v2722 = vpack.c.b16 %v1882, %v1878
  %v2723 = vpack.c.b16 %v1883, %v1879
  %v2724 = vpack.c.b16 %v1888, %v1884
  %v2725 = vpack.c.b16 %v1889, %v1885
  %v2726 = vpack.c.b16 %v1890, %v1886
  %v2727 = vpack.c.b16 %v1891, %v1887
  %v2728 = vpack.c.b16 %v1896, %v1892
  %v2729 = vpack.c.b16 %v1897, %v1893
  %v2730 = vpack.c.b16 %v1898, %v1894
  %v2731 = vpack.c.b16 %v1899, %v1895
  %v2732 = vpack.c.b16 %v1904, %v1900
  %v2733 = vpack.c.b16 %v1905, %v1901
  %v2734 = vpack.c.b16 %v1906, %v1902
  %v2735 = vpack.c.b16 %v1907, %v1903
  %v2736 = vpack.c.b16 %v1912, %v1908
  %v2737 = vpack.c.b16 %v1913, %v1909
  %v2738 = vpack.c.b16 %v1914, %v1910
  %v2739 = vpack.c.b16 %v1915, %v1911
  %v2740 = vpack.c.b16 %v1920, %v1916
  %v2741 = vpack.c.b16 %v1921, %v1917
  %v2742 = vpack.c.b16 %v1922, %v1918
  %v2743 = vpack.c.b16 %v1923, %v1919
  %v2744 = vpack.c.b16 %v1928, %v1924
  %v2745 = vpack.c.b16 %v1929, %v1925
  %v2746 = vpack.c.b16 %v1930, %v1926
  %v2747 = vpack.c.b16 %v1931, %v1927
  %v2748 = vpack.c.b16 %v1936, %v1932
  %v2749 = vpack.c.b16 %v1937, %v1933
  %v2750 = vpack.c.b16 %v1938, %v1934
  %v2751 = vpack.c.b16 %v1939, %v1935
  %v2752 = vpack.c.b16 %v1944, %v1940
  %v2753 = vpack.c.b16 %v1945, %v1941
  %v2754 = vpack.c.b16 %v1946, %v1942
  %v2755 = vpack.c.b16 %v1947, %v1943
  %v2756 = vpack.c.b16 %v1952, %v1948
  %v2757 = vpack.c.b16 %v1953, %v1949
  %v2758 = vpack.c.b16 %v1954, %v1950
  %v2759 = vpack.c.b16 %v1955, %v1951
  %v2760 = vpack.c.b16 %v1960, %v1956
  %v2761 = vpack.c.b16 %v1961, %v1957
  %v2762 = vpack.c.b16 %v1962, %v1958
  %v2763 = vpack.c.b16 %v1963, %v1959
  %v2764 = vpack.c.b16 %v1968, %v1964
  %v2765 = vpack.c.b16 %v1969, %v1965
  %v2766 = vpack.c.b16 %v1970, %v1966
  %v2767 = vpack.c.b16 %v1971, %v1967
  %v2768 = vpack.c.b16 %v1976, %v1972
  %v2769 = vpack.c.b16 %v1977, %v1973
  %v2770 = vpack.c.b16 %v1978, %v1974
  %v2771 = vpack.c.b16 %v1979, %v1975
  %v2772 = vpack.c.b16 %v1984, %v1980
  %v2773 = vpack.c.b16 %v1985, %v1981
  %v2774 = vpack.c.b16 %v1986, %v1982
  %v2775 = vpack.c.b16 %v1987, %v1983
  %v2776 = vpack.c.b16 %v1992, %v1988
  %v2777 = vpack.c.b16 %v1993, %v1989
  %v2778 = vpack.c.b16 %v1994, %v1990
  %v2779 = vpack.c.b16 %v1995, %v1991
  %v2780 = vpack.c.b16 %v2000, %v1996
  %v2781 = vpack.c.b16 %v2001, %v1997
  %v2782 = vpack.c.b16 %v2002, %v1998
  %v2783 = vpack.c.b16 %v2003, %v1999
  %v2784 = vpack.c.b16 %v2008, %v2004
  %v2785 = vpack.c.b16 %v2009, %v2005
  %v2786 = vpack.c.b16 %v2010, %v2006
  %v2787 = vpack.c.b16 %v2011, %v2007
  %v2788 = vpack.c.b16 %v2016, %v2012
  %v2789 = vpack.c.b16 %v2017, %v2013
  %v2790 = vpack.c.b16 %v2018, %v2014
  %v2791 = vpack.c.b16 %v2019, %v2015
  %v2792 = vpack.c.b16 %v2024, %v2020
  %v2793 = vpack.c.b16 %v2025, %v2021
  %v2794 = vpack.c.b16 %v2026, %v2022
  %v2795 = vpack.c.b16 %v2027, %v2023
  %v2796 = vpack.c.b16 %v2032, %v2028
  %v2797 = vpack.c.b16 %v2033, %v2029
  %v2798 = vpack.c.b16 %v2034, %v2030
  %v2799 = vpack.c.b16 %v2035, %v2031
  %v2800 = vpack.c.b16 %v2040, %v2036
  %v2801 = vpack.c.b16 %v2041, %v2037
  %v2802 = vpack.c.b16 %v2042, %v2038
  %v2803 = vpack.c.b16 %v2043, %v2039
  %v2804 = vpack.c.b16 %v2048, %v2044
  %v2805 = vpack.c.b16 %v2049, %v2045
  %v2806 = vpack.c.b16 %v2050, %v2046
  %v2807 = vpack.c.b16 %v2051, %v2047
  %v2808 = vpack.c.b16 %v2056, %v2052
  %v2809 = vpack.c.b16 %v2057, %v2053
  %v2810 = vpack.c.b16 %v2058, %v2054
  %v2811 = vpack.c.b16 %v2059, %v2055
  %v2812 = vpack.c.b16 %v2064, %v2060
  %v2813 = vpack.c.b16 %v2065, %v2061
  %v2814 = vpack.c.b16 %v2066, %v2062
  %v2815 = vpack.c.b16 %v2067, %v2063
  %v2816 = vpack.c.b16 %v2072, %v2068
  %v2817 = vpack.c.b16 %v2073, %v2069
  %v2818 = vpack.c.b16 %v2074, %v2070
  %v2819 = vpack.c.b16 %v2075, %v2071
  %v2820 = vpack.c.b16 %v2080, %v2076
  %v2821 = vpack.c.b16 %v2081, %v2077
  %v2822 = vpack.c.b16 %v2082, %v2078
  %v2823 = vpack.c.b16 %v2083, %v2079
  %v2824 = vpack.c.b16 %v2088, %v2084
  %v2825 = vpack.c.b16 %v2089, %v2085
  %v2826 = vpack.c.b16 %v2090, %v2086
  %v2827 = vpack.c.b16 %v2091, %v2087
  %v2828 = vpack.c.b16 %v2096, %v2092
  %v2829 = vpack.c.b16 %v2097, %v2093
  %v2830 = vpack.c.b16 %v2098, %v2094
  %v2831 = vpack.c.b16 %v2099, %v2095
  %v2832 = vpack.c.b16 %v2104, %v2100
  %v2833 = vpack.c.b16 %v2105, %v2101
  %v2834 = vpack.c.b16 %v2106, %v2102
  %v2835 = vpack.c.b16 %v2107, %v2103
  %v2836 = vpack.c.b16 %v2112, %v2108
  %v2837 = vpack.c.b16 %v2113, %v2109
  %v2838 = vpack.c.b16 %v2114, %v2110
  %v2839 = vpack.c.b16 %v2115, %v2111
  %v2840 = vpack.c.b16 %v2120, %v2116
  %v2841 = vpack.c.b16 %v2121, %v2117
  %v2842 = vpack.c.b16 %v2122, %v2118
  %v2843 = vpack.c.b16 %v2123, %v2119
  %v2844 = vpack.c.b16 %v2128, %v2124
  %v2845 = vpack.c.b16 %v2129, %v2125
  %v2846 = vpack.c.b16 %v2130, %v2126
  %v2847 = vpack.c.b16 %v2131, %v2127
  %v2848 = vpack.c.b16 %v2136, %v2132
  %v2849 = vpack.c.b16 %v2137, %v2133
  %v2850 = vpack.c.b16 %v2138, %v2134
  %v2851 = vpack.c.b16 %v2139, %v2135
  %v2852 = vpack.c.b16 %v2144, %v2140
  %v2853 = vpack.c.b16 %v2145, %v2141
  %v2854 = vpack.c.b16 %v2146, %v2142
  %v2855 = vpack.c.b16 %v2147, %v2143
  %v2856 = vpack.c.b16 %v2152, %v2148
  %v2857 = vpack.c.b16 %v2153, %v2149
  %v2858 = vpack.c.b16 %v2154, %v2150
  %v2859 = vpack.c.b16 %v2155, %v2151
  %v2860 = vpack.c.b16 %v2160, %v2156
  %v2861 = vpack.c.b16 %v2161, %v2157
  %v2862 = vpack.c.b16 %v2162, %v2158
  %v2863 = vpack.c.b16 %v2163, %v2159
  %v2864 = vpack.c.b16 %v2168, %v2164
  %v2865 = vpack.c.b16 %v2169, %v2165
  %v2866 = vpack.c.b16 %v2170, %v2166
  %v2867 = vpack.c.b16 %v2171, %v2167
  %v2868 = vpack.c.b16 %v2176, %v2172
  %v2869 = vpack.c.b16 %v2177, %v2173
  %v2870 = vpack.c.b16 %v2178, %v2174
  %v2871 = vpack.c.b16 %v2179, %v2175
  %v2872 = vpack.c.b16 %v2184, %v2180
  %v2873 = vpack.c.b16 %v2185, %v2181
  %v2874 = vpack.c.b16 %v2186, %v2182
  %v2875 = vpack.c.b16 %v2187, %v2183
  %v2876 = vpack.c.b16 %v2192, %v2188
  %v2877 = vpack.c.b16 %v2193, %v2189
  %v2878 = vpack.c.b16 %v2194, %v2190
  %v2879 = vpack.c.b16 %v2195, %v2191
  %v2880 = vpack.c.b16 %v2200, %v2196
  %v2881 = vpack.c.b16 %v2201, %v2197
  %v2882 = vpack.c.b16 %v2202, %v2198
  %v2883 = vpack.c.b16 %v2203, %v2199
  %v2884 = vpack.c.b16 %v2208, %v2204
  %v2885 = vpack.c.b16 %v2209, %v2205
  %v2886 = vpack.c.b16 %v2210, %v2206
  %v2887 = vpack.c.b16 %v2211, %v2207
  %v2888 = vpack.c.b16 %v2216, %v2212
  %v2889 = vpack.c.b16 %v2217, %v2213
  %v2890 = vpack.c.b16 %v2218, %v2214
  %v2891 = vpack.c.b16 %v2219, %v2215
  %v2892 = vpack.c.b16 %v2224, %v2220
  %v2893 = vpack.c.b16 %v2225, %v2221
  %v2894 = vpack.c.b16 %v2226, %v2222
  %v2895 = vpack.c.b16 %v2227, %v2223
  %v2896 = vpack.c.b16 %v2232, %v2228
  %v2897 = vpack.c.b16 %v2233, %v2229
  %v2898 = vpack.c.b16 %v2234, %v2230
  %v2899 = vpack.c.b16 %v2235, %v2231
  %v2900 = vpack.c.b16 %v2240, %v2236
  %v2901 = vpack.c.b16 %v2241, %v2237
  %v2902 = vpack.c.b16 %v2242, %v2238
  %v2903 = vpack.c.b16 %v2243, %v2239
  %v2904 = vpack.c.b16 %v2248, %v2244
  %v2905 = vpack.c.b16 %v2249, %v2245
  %v2906 = vpack.c.b16 %v2250, %v2246
  %v2907 = vpack.c.b16 %v2251, %v2247
  %v2908 = vpack.c.b16 %v2256, %v2252
  %v2909 = vpack.c.b16 %v2257, %v2253
  %v2910 = vpack.c.b16 %v2258, %v2254
  %v2911 = vpack.c.b16 %v2259, %v2255
  %v2912 = vpack.c.b16 %v2264, %v2260
  %v2913 = vpack.c.b16 %v2265, %v2261
  %v2914 = vpack.c.b16 %v2266, %v2262
  %v2915 = vpack.c.b16 %v2267, %v2263
  %v2916 = vpack.c.b16 %v2272, %v2268
  %v2917 = vpack.c.b16 %v2273, %v2269
  %v2918 = vpack.c.b16 %v2274, %v2270
  %v2919 = vpack.c.b16 %v2275, %v2271
  %v2920 = vpack.c.b16 %v2280, %v2276
  %v2921 = vpack.c.b16 %v2281, %v2277
  %v2922 = vpack.c.b16 %v2282, %v2278
  %v2923 = vpack.c.b16 %v2283, %v2279
  %v2924 = vpack.c.b16 %v2288, %v2284
  %v2925 = vpack.c.b16 %v2289, %v2285
  %v2926 = vpack.c.b16 %v2290, %v2286
  %v2927 = vpack.c.b16 %v2291, %v2287
  %v2928 = vpack.c.b16 %v2296, %v2292
  %v2929 = vpack.c.b16 %v2297, %v2293
  %v2930 = vpack.c.b16 %v2298, %v2294
  %v2931 = vpack.c.b16 %v2299, %v2295
  %v2932 = vpack.c.b16 %v2304, %v2300
  %v2933 = vpack.c.b16 %v2305, %v2301
  %v2934 = vpack.c.b16 %v2306, %v2302
  %v2935 = vpack.c.b16 %v2307, %v2303
  %v2936 = vpack.c.b16 %v2312, %v2308
  %v2937 = vpack.c.b16 %v2313, %v2309
  %v2938 = vpack.c.b16 %v2314, %v2310
  %v2939 = vpack.c.b16 %v2315, %v2311
  %v2940 = vpack.c.b16 %v2320, %v2316
  %v2941 = vpack.c.b16 %v2321, %v2317
  %v2942 = vpack.c.b16 %v2322, %v2318
  %v2943 = vpack.c.b16 %v2323, %v2319
  %v2944 = vpack.c.b16 %v2328, %v2324
  %v2945 = vpack.c.b16 %v2329, %v2325
  %v2946 = vpack.c.b16 %v2330, %v2326
  %v2947 = vpack.c.b16 %v2331, %v2327
  %v2948 = vpack.c.b16 %v2336, %v2332
  %v2949 = vpack.c.b16 %v2337, %v2333
  %v2950 = vpack.c.b16 %v2338, %v2334
  %v2951 = vpack.c.b16 %v2339, %v2335
  %v2952 = vpack.c.b16 %v2344, %v2340
  %v2953 = vpack.c.b16 %v2345, %v2341
  %v2954 = vpack.c.b16 %v2346, %v2342
  %v2955 = vpack.c.b16 %v2347, %v2343
  %v2956 = vpack.c.b16 %v2352, %v2348
  %v2957 = vpack.c.b16 %v2353, %v2349
  %v2958 = vpack.c.b16 %v2354, %v2350
  %v2959 = vpack.c.b16 %v2355, %v2351
  %v2960 = vpack.c.b16 %v2360, %v2356
  %v2961 = vpack.c.b16 %v2361, %v2357
  %v2962 = vpack.c.b16 %v2362, %v2358
  %v2963 = vpack.c.b16 %v2363, %v2359
  %v2964 = vpack.c.b16 %v2368, %v2364
  %v2965 = vpack.c.b16 %v2369, %v2365
  %v2966 = vpack.c.b16 %v2370, %v2366
  %v2967 = vpack.c.b16 %v2371, %v2367
  %v2968 = vpack.c.b16 %v2376, %v2372
  %v2969 = vpack.c.b16 %v2377, %v2373
  %v2970 = vpack.c.b16 %v2378, %v2374
  %v2971 = vpack.c.b16 %v2379, %v2375
  %v2972 = vpack.c.b16 %v2384, %v2380
  %v2973 = vpack.c.b16 %v2385, %v2381
  %v2974 = vpack.c.b16 %v2386, %v2382
  %v2975 = vpack.c.b16 %v2387, %v2383
  %v2976 = vpack.c.b16 %v2392, %v2388
  %v2977 = vpack.c.b16 %v2393, %v2389
  %v2978 = vpack.c.b16 %v2394, %v2390
  %v2979 = vpack.c.b16 %v2395, %v2391
  %v2980 = vpack.c.b16 %v2400, %v2396
  %v2981 = vpack.c.b16 %v2401, %v2397
  %v2982 = vpack.c.b16 %v2402, %v2398
  %v2983 = vpack.c.b16 %v2403, %v2399
  %v2984 = vpack.c.b16 %v2408, %v2404
  %v2985 = vpack.c.b16 %v2409, %v2405
  %v2986 = vpack.c.b16 %v2410, %v2406
  %v2987 = vpack.c.b16 %v2411, %v2407
  %3564 = vmatprep.subr.bf16.mxu0 %v2413
  %3565 = vmatpush1.bf16.msra.mxu0 %v2412
  %3566 = vmatprep.subr.bf16.mxu0 %v2417
  %3567 = vmatpush1.bf16.msra.mxu0 %v2416
  %3568 = vmatprep.subr.bf16.mxu0 %v2421
  %3569 = vmatpush1.bf16.msra.mxu0 %v2420
  %3570 = vmatprep.subr.bf16.mxu0 %v2425
  %3571 = vmatpush1.bf16.msra.mxu0 %v2424
  %3572 = vmatprep.subr.bf16.mxu0 %v2429
  %3573 = vmatpush1.bf16.msra.mxu0 %v2428
  %3574 = vmatprep.subr.bf16.mxu0 %v2433
  %3575 = vmatpush1.bf16.msra.mxu0 %v2432
  %3576 = vmatprep.subr.bf16.mxu0 %v2437
  %3577 = vmatpush1.bf16.msra.mxu0 %v2436
  %3578 = vmatprep.subr.bf16.mxu0 %v2441
  %3579 = vmatpush1.bf16.msra.mxu0 %v2440
  %3580 = vmatprep.subr.bf16.mxu0 %v2445
  %3581 = vmatpush1.bf16.msra.mxu0 %v2444
  %3582 = vmatprep.subr.bf16.mxu0 %v2449
  %3583 = vmatpush1.bf16.msra.mxu0 %v2448
  %3584 = vmatprep.subr.bf16.mxu0 %v2453
  %3585 = vmatpush1.bf16.msra.mxu0 %v2452
  %3586 = vmatprep.subr.bf16.mxu0 %v2457
  %3587 = vmatpush1.bf16.msra.mxu0 %v2456
  %3588 = vmatprep.subr.bf16.mxu0 %v2461
  %3589 = vmatpush1.bf16.msra.mxu0 %v2460
  %3590 = vmatprep.subr.bf16.mxu0 %v2465
  %3591 = vmatpush1.bf16.msra.mxu0 %v2464
  %3592 = vmatprep.subr.bf16.mxu0 %v2469
  %3593 = vmatpush1.bf16.msra.mxu0 %v2468
  %3594 = vmatprep.subr.bf16.mxu0 %v2473
  %3595 = vmatpush1.bf16.msra.mxu0 %v2472
  %3596 = vmatprep.mubr.bf16.mxu0 %v649
  %3597 = vmatmul.mubr.bf16.gmra.mrb[0].mxu0 %v648
  %v3598 = vpop.f32.mrb[0].mxu0
  %v3599 = vadd.f32 %v604, %v3598
  %v3600 = vpop.f32.mrb[0].mxu0
  %v3601 = vadd.f32 %v608, %v3600
  %v3602 = vpop.f32.mrb[0].mxu0
  %v3603 = vpop.f32.mrb[0].mxu0
  %3604 = vdwg.mxu0
  %3605 = vmatprep.subr.bf16.mxu0 %v2477
  %3606 = vmatpush1.bf16.msra.mxu0 %v2476
  %3607 = vmatprep.subr.bf16.mxu0 %v2481
  %3608 = vmatpush1.bf16.msra.mxu0 %v2480
  %3609 = vmatprep.subr.bf16.mxu0 %v2485
  %3610 = vmatpush1.bf16.msra.mxu0 %v2484
  %3611 = vmatprep.subr.bf16.mxu0 %v2489
  %3612 = vmatpush1.bf16.msra.mxu0 %v2488
  %3613 = vmatprep.subr.bf16.mxu0 %v2493
  %3614 = vmatpush1.bf16.msra.mxu0 %v2492
  %3615 = vmatprep.subr.bf16.mxu0 %v2497
  %3616 = vmatpush1.bf16.msra.mxu0 %v2496
  %3617 = vmatprep.subr.bf16.mxu0 %v2501
  %3618 = vmatpush1.bf16.msra.mxu0 %v2500
  %3619 = vmatprep.subr.bf16.mxu0 %v2505
  %3620 = vmatpush1.bf16.msra.mxu0 %v2504
  %3621 = vmatprep.subr.bf16.mxu0 %v2509
  %3622 = vmatpush1.bf16.msra.mxu0 %v2508
  %3623 = vmatprep.subr.bf16.mxu0 %v2513
  %3624 = vmatpush1.bf16.msra.mxu0 %v2512
  %3625 = vmatprep.subr.bf16.mxu0 %v2517
  %3626 = vmatpush1.bf16.msra.mxu0 %v2516
  %3627 = vmatprep.subr.bf16.mxu0 %v2521
  %3628 = vmatpush1.bf16.msra.mxu0 %v2520
  %3629 = vmatprep.subr.bf16.mxu0 %v2525
  %3630 = vmatpush1.bf16.msra.mxu0 %v2524
  %3631 = vmatprep.subr.bf16.mxu0 %v2529
  %3632 = vmatpush1.bf16.msra.mxu0 %v2528
  %3633 = vmatprep.subr.bf16.mxu0 %v2533
  %3634 = vmatpush1.bf16.msra.mxu0 %v2532
  %3635 = vmatprep.subr.bf16.mxu0 %v2537
  %3636 = vmatpush1.bf16.msra.mxu0 %v2536
  %3637 = vmatprep.mubr.bf16.mxu0 %v651
  %3638 = vmatmul.mubr.bf16.gmra.mrb[0].mxu0 %v650
  %v3639 = vpop.f32.mrb[0].mxu0
  %v3640 = vadd.f32 %v3599, %v3639
  %v3641 = vpop.f32.mrb[0].mxu0
  %v3642 = vadd.f32 %v3601, %v3641
  %v3643 = vpop.f32.mrb[0].mxu0
  %v3644 = vpop.f32.mrb[0].mxu0
  %3645 = vdwg.mxu0
  %3646 = vmatprep.subr.bf16.mxu0 %v2541
  %3647 = vmatpush1.bf16.msra.mxu0 %v2540
  %3648 = vmatprep.subr.bf16.mxu0 %v2545
  %3649 = vmatpush1.bf16.msra.mxu0 %v2544
  %3650 = vmatprep.subr.bf16.mxu0 %v2549
  %3651 = vmatpush1.bf16.msra.mxu0 %v2548
  %3652 = vmatprep.subr.bf16.mxu0 %v2553
  %3653 = vmatpush1.bf16.msra.mxu0 %v2552
  %3654 = vmatprep.subr.bf16.mxu0 %v2557
  %3655 = vmatpush1.bf16.msra.mxu0 %v2556
  %3656 = vmatprep.subr.bf16.mxu0 %v2561
  %3657 = vmatpush1.bf16.msra.mxu0 %v2560
  %3658 = vmatprep.subr.bf16.mxu0 %v2565
  %3659 = vmatpush1.bf16.msra.mxu0 %v2564
  %3660 = vmatprep.subr.bf16.mxu0 %v2569
  %3661 = vmatpush1.bf16.msra.mxu0 %v2568
  %3662 = vmatprep.subr.bf16.mxu0 %v2573
  %3663 = vmatpush1.bf16.msra.mxu0 %v2572
  %3664 = vmatprep.subr.bf16.mxu0 %v2577
  %3665 = vmatpush1.bf16.msra.mxu0 %v2576
  %3666 = vmatprep.subr.bf16.mxu0 %v2581
  %3667 = vmatpush1.bf16.msra.mxu0 %v2580
  %3668 = vmatprep.subr.bf16.mxu0 %v2585
  %3669 = vmatpush1.bf16.msra.mxu0 %v2584
  %3670 = vmatprep.subr.bf16.mxu0 %v2589
  %3671 = vmatpush1.bf16.msra.mxu0 %v2588
  %3672 = vmatprep.subr.bf16.mxu0 %v2593
  %3673 = vmatpush1.bf16.msra.mxu0 %v2592
  %3674 = vmatprep.subr.bf16.mxu0 %v2597
  %3675 = vmatpush1.bf16.msra.mxu0 %v2596
  %3676 = vmatprep.subr.bf16.mxu0 %v2601
  %3677 = vmatpush1.bf16.msra.mxu0 %v2600
  %3678 = vmatprep.mubr.bf16.mxu0 %v653
  %3679 = vmatmul.mubr.bf16.gmra.mrb[0].mxu0 %v652
  %v3680 = vpop.f32.mrb[0].mxu0
  %v3681 = vadd.f32 %v3640, %v3680
  %v3682 = vpop.f32.mrb[0].mxu0
  %v3683 = vadd.f32 %v3642, %v3682
  %v3684 = vpop.f32.mrb[0].mxu0
  %v3685 = vpop.f32.mrb[0].mxu0
  %3686 = vdwg.mxu0
  %3687 = vmatprep.subr.bf16.mxu0 %v2605
  %3688 = vmatpush1.bf16.msra.mxu0 %v2604
  %3689 = vmatprep.subr.bf16.mxu0 %v2609
  %3690 = vmatpush1.bf16.msra.mxu0 %v2608
  %3691 = vmatprep.subr.bf16.mxu0 %v2613
  %3692 = vmatpush1.bf16.msra.mxu0 %v2612
  %3693 = vmatprep.subr.bf16.mxu0 %v2617
  %3694 = vmatpush1.bf16.msra.mxu0 %v2616
  %3695 = vmatprep.subr.bf16.mxu0 %v2621
  %3696 = vmatpush1.bf16.msra.mxu0 %v2620
  %3697 = vmatprep.subr.bf16.mxu0 %v2625
  %3698 = vmatpush1.bf16.msra.mxu0 %v2624
  %3699 = vmatprep.subr.bf16.mxu0 %v2629
  %3700 = vmatpush1.bf16.msra.mxu0 %v2628
  %3701 = vmatprep.subr.bf16.mxu0 %v2633
  %3702 = vmatpush1.bf16.msra.mxu0 %v2632
  %3703 = vmatprep.subr.bf16.mxu0 %v2637
  %3704 = vmatpush1.bf16.msra.mxu0 %v2636
  %3705 = vmatprep.subr.bf16.mxu0 %v2641
  %3706 = vmatpush1.bf16.msra.mxu0 %v2640
  %3707 = vmatprep.subr.bf16.mxu0 %v2645
  %3708 = vmatpush1.bf16.msra.mxu0 %v2644
  %3709 = vmatprep.subr.bf16.mxu0 %v2649
  %3710 = vmatpush1.bf16.msra.mxu0 %v2648
  %3711 = vmatprep.subr.bf16.mxu0 %v2653
  %3712 = vmatpush1.bf16.msra.mxu0 %v2652
  %3713 = vmatprep.subr.bf16.mxu0 %v2657
  %3714 = vmatpush1.bf16.msra.mxu0 %v2656
  %3715 = vmatprep.subr.bf16.mxu0 %v2661
  %3716 = vmatpush1.bf16.msra.mxu0 %v2660
  %3717 = vmatprep.subr.bf16.mxu0 %v2665
  %3718 = vmatpush1.bf16.msra.mxu0 %v2664
  %3719 = vmatprep.mubr.bf16.mxu0 %v655
  %3720 = vmatmul.mubr.bf16.gmra.mrb[0].mxu0 %v654
  %v3721 = vpop.f32.mrb[0].mxu0
  %v3722 = vadd.f32 %v3681, %v3721
  %v3723 = vpop.f32.mrb[0].mxu0
  %v3724 = vadd.f32 %v3683, %v3723
  %v3725 = vpop.f32.mrb[0].mxu0
  %v3726 = vpop.f32.mrb[0].mxu0
  %3727 = vdwg.mxu0
  %3728 = vmatprep.subr.bf16.mxu0 %v2669
  %3729 = vmatpush1.bf16.msra.mxu0 %v2668
  %3730 = vmatprep.subr.bf16.mxu0 %v2673
  %3731 = vmatpush1.bf16.msra.mxu0 %v2672
  %3732 = vmatprep.subr.bf16.mxu0 %v2677
  %3733 = vmatpush1.bf16.msra.mxu0 %v2676
  %3734 = vmatprep.subr.bf16.mxu0 %v2681
  %3735 = vmatpush1.bf16.msra.mxu0 %v2680
  %3736 = vmatprep.subr.bf16.mxu0 %v2685
  %3737 = vmatpush1.bf16.msra.mxu0 %v2684
  %3738 = vmatprep.subr.bf16.mxu0 %v2689
  %3739 = vmatpush1.bf16.msra.mxu0 %v2688
  %3740 = vmatprep.subr.bf16.mxu0 %v2693
  %3741 = vmatpush1.bf16.msra.mxu0 %v2692
  %3742 = vmatprep.subr.bf16.mxu0 %v2697
  %3743 = vmatpush1.bf16.msra.mxu0 %v2696
  %3744 = vmatprep.subr.bf16.mxu0 %v2701
  %3745 = vmatpush1.bf16.msra.mxu0 %v2700
  %3746 = vmatprep.subr.bf16.mxu0 %v2705
  %3747 = vmatpush1.bf16.msra.mxu0 %v2704
  %3748 = vmatprep.subr.bf16.mxu0 %v2709
  %3749 = vmatpush1.bf16.msra.mxu0 %v2708
  %3750 = vmatprep.subr.bf16.mxu0 %v2713
  %3751 = vmatpush1.bf16.msra.mxu0 %v2712
  %3752 = vmatprep.subr.bf16.mxu0 %v2717
  %3753 = vmatpush1.bf16.msra.mxu0 %v2716
  %3754 = vmatprep.subr.bf16.mxu0 %v2721
  %3755 = vmatpush1.bf16.msra.mxu0 %v2720
  %3756 = vmatprep.subr.bf16.mxu0 %v2725
  %3757 = vmatpush1.bf16.msra.mxu0 %v2724
  %3758 = vmatprep.subr.bf16.mxu0 %v2729
  %3759 = vmatpush1.bf16.msra.mxu0 %v2728
  %3760 = vmatprep.mubr.bf16.mxu0 %v657
  %3761 = vmatmul.mubr.bf16.gmra.mrb[0].mxu0 %v656
  %v3762 = vpop.f32.mrb[0].mxu0
  %v3763 = vadd.f32 %v3722, %v3762
  %v3764 = vpop.f32.mrb[0].mxu0
  %v3765 = vadd.f32 %v3724, %v3764
  %v3766 = vpop.f32.mrb[0].mxu0
  %v3767 = vpop.f32.mrb[0].mxu0
  %3768 = vdwg.mxu0
  %3769 = vmatprep.subr.bf16.mxu0 %v2733
  %3770 = vmatpush1.bf16.msra.mxu0 %v2732
  %3771 = vmatprep.subr.bf16.mxu0 %v2737
  %3772 = vmatpush1.bf16.msra.mxu0 %v2736
  %3773 = vmatprep.subr.bf16.mxu0 %v2741
  %3774 = vmatpush1.bf16.msra.mxu0 %v2740
  %3775 = vmatprep.subr.bf16.mxu0 %v2745
  %3776 = vmatpush1.bf16.msra.mxu0 %v2744
  %3777 = vmatprep.subr.bf16.mxu0 %v2749
  %3778 = vmatpush1.bf16.msra.mxu0 %v2748
  %3779 = vmatprep.subr.bf16.mxu0 %v2753
  %3780 = vmatpush1.bf16.msra.mxu0 %v2752
  %3781 = vmatprep.subr.bf16.mxu0 %v2757
  %3782 = vmatpush1.bf16.msra.mxu0 %v2756
  %3783 = vmatprep.subr.bf16.mxu0 %v2761
  %3784 = vmatpush1.bf16.msra.mxu0 %v2760
  %3785 = vmatprep.subr.bf16.mxu0 %v2765
  %3786 = vmatpush1.bf16.msra.mxu0 %v2764
  %3787 = vmatprep.subr.bf16.mxu0 %v2769
  %3788 = vmatpush1.bf16.msra.mxu0 %v2768
  %3789 = vmatprep.subr.bf16.mxu0 %v2773
  %3790 = vmatpush1.bf16.msra.mxu0 %v2772
  %3791 = vmatprep.subr.bf16.mxu0 %v2777
  %3792 = vmatpush1.bf16.msra.mxu0 %v2776
  %3793 = vmatprep.subr.bf16.mxu0 %v2781
  %3794 = vmatpush1.bf16.msra.mxu0 %v2780
  %3795 = vmatprep.subr.bf16.mxu0 %v2785
  %3796 = vmatpush1.bf16.msra.mxu0 %v2784
  %3797 = vmatprep.subr.bf16.mxu0 %v2789
  %3798 = vmatpush1.bf16.msra.mxu0 %v2788
  %3799 = vmatprep.subr.bf16.mxu0 %v2793
  %3800 = vmatpush1.bf16.msra.mxu0 %v2792
  %3801 = vmatprep.mubr.bf16.mxu0 %v659
  %3802 = vmatmul.mubr.bf16.gmra.mrb[0].mxu0 %v658
  %v3803 = vpop.f32.mrb[0].mxu0
  %v3804 = vadd.f32 %v3763, %v3803
  %v3805 = vpop.f32.mrb[0].mxu0
  %v3806 = vadd.f32 %v3765, %v3805
  %v3807 = vpop.f32.mrb[0].mxu0
  %v3808 = vpop.f32.mrb[0].mxu0
  %3809 = vdwg.mxu0
  %3810 = vmatprep.subr.bf16.mxu0 %v2797
  %3811 = vmatpush1.bf16.msra.mxu0 %v2796
  %3812 = vmatprep.subr.bf16.mxu0 %v2801
  %3813 = vmatpush1.bf16.msra.mxu0 %v2800
  %3814 = vmatprep.subr.bf16.mxu0 %v2805
  %3815 = vmatpush1.bf16.msra.mxu0 %v2804
  %3816 = vmatprep.subr.bf16.mxu0 %v2809
  %3817 = vmatpush1.bf16.msra.mxu0 %v2808
  %3818 = vmatprep.subr.bf16.mxu0 %v2813
  %3819 = vmatpush1.bf16.msra.mxu0 %v2812
  %3820 = vmatprep.subr.bf16.mxu0 %v2817
  %3821 = vmatpush1.bf16.msra.mxu0 %v2816
  %3822 = vmatprep.subr.bf16.mxu0 %v2821
  %3823 = vmatpush1.bf16.msra.mxu0 %v2820
  %3824 = vmatprep.subr.bf16.mxu0 %v2825
  %3825 = vmatpush1.bf16.msra.mxu0 %v2824
  %3826 = vmatprep.subr.bf16.mxu0 %v2829
  %3827 = vmatpush1.bf16.msra.mxu0 %v2828
  %3828 = vmatprep.subr.bf16.mxu0 %v2833
  %3829 = vmatpush1.bf16.msra.mxu0 %v2832
  %3830 = vmatprep.subr.bf16.mxu0 %v2837
  %3831 = vmatpush1.bf16.msra.mxu0 %v2836
  %3832 = vmatprep.subr.bf16.mxu0 %v2841
  %3833 = vmatpush1.bf16.msra.mxu0 %v2840
  %3834 = vmatprep.subr.bf16.mxu0 %v2845
  %3835 = vmatpush1.bf16.msra.mxu0 %v2844
  %3836 = vmatprep.subr.bf16.mxu0 %v2849
  %3837 = vmatpush1.bf16.msra.mxu0 %v2848
  %3838 = vmatprep.subr.bf16.mxu0 %v2853
  %3839 = vmatpush1.bf16.msra.mxu0 %v2852
  %3840 = vmatprep.subr.bf16.mxu0 %v2857
  %3841 = vmatpush1.bf16.msra.mxu0 %v2856
  %3842 = vmatprep.mubr.bf16.mxu0 %v661
  %3843 = vmatmul.mubr.bf16.gmra.mrb[0].mxu0 %v660
  %v3844 = vpop.f32.mrb[0].mxu0
  %v3845 = vadd.f32 %v3804, %v3844
  %v3846 = vpop.f32.mrb[0].mxu0
  %v3847 = vadd.f32 %v3806, %v3846
  %v3848 = vpop.f32.mrb[0].mxu0
  %v3849 = vpop.f32.mrb[0].mxu0
  %3850 = vdwg.mxu0
  %3851 = vmatprep.subr.bf16.mxu0 %v2861
  %3852 = vmatpush1.bf16.msra.mxu0 %v2860
  %3853 = vmatprep.subr.bf16.mxu0 %v2865
  %3854 = vmatpush1.bf16.msra.mxu0 %v2864
  %3855 = vmatprep.subr.bf16.mxu0 %v2869
  %3856 = vmatpush1.bf16.msra.mxu0 %v2868
  %3857 = vmatprep.subr.bf16.mxu0 %v2873
  %3858 = vmatpush1.bf16.msra.mxu0 %v2872
  %3859 = vmatprep.subr.bf16.mxu0 %v2877
  %3860 = vmatpush1.bf16.msra.mxu0 %v2876
  %3861 = vmatprep.subr.bf16.mxu0 %v2881
  %3862 = vmatpush1.bf16.msra.mxu0 %v2880
  %3863 = vmatprep.subr.bf16.mxu0 %v2885
  %3864 = vmatpush1.bf16.msra.mxu0 %v2884
  %3865 = vmatprep.subr.bf16.mxu0 %v2889
  %3866 = vmatpush1.bf16.msra.mxu0 %v2888
  %3867 = vmatprep.subr.bf16.mxu0 %v2893
  %3868 = vmatpush1.bf16.msra.mxu0 %v2892
  %3869 = vmatprep.subr.bf16.mxu0 %v2897
  %3870 = vmatpush1.bf16.msra.mxu0 %v2896
  %3871 = vmatprep.subr.bf16.mxu0 %v2901
  %3872 = vmatpush1.bf16.msra.mxu0 %v2900
  %3873 = vmatprep.subr.bf16.mxu0 %v2905
  %3874 = vmatpush1.bf16.msra.mxu0 %v2904
  %3875 = vmatprep.subr.bf16.mxu0 %v2909
  %3876 = vmatpush1.bf16.msra.mxu0 %v2908
  %3877 = vmatprep.subr.bf16.mxu0 %v2913
  %3878 = vmatpush1.bf16.msra.mxu0 %v2912
  %3879 = vmatprep.subr.bf16.mxu0 %v2917
  %3880 = vmatpush1.bf16.msra.mxu0 %v2916
  %3881 = vmatprep.subr.bf16.mxu0 %v2921
  %3882 = vmatpush1.bf16.msra.mxu0 %v2920
  %3883 = vmatprep.mubr.bf16.mxu0 %v663
  %3884 = vmatmul.mubr.bf16.gmra.mrb[0].mxu0 %v662
  %v3885 = vpop.f32.mrb[0].mxu0
  %v3886 = vadd.f32 %v3845, %v3885
  %v3887 = vpop.f32.mrb[0].mxu0
  %v3888 = vadd.f32 %v3847, %v3887
  %v3889 = vpop.f32.mrb[0].mxu0
  %v3890 = vpop.f32.mrb[0].mxu0
  %3891 = vdwg.mxu0
  %3892 = vmatprep.subr.bf16.mxu0 %v2925
  %3893 = vmatpush1.bf16.msra.mxu0 %v2924
  %3894 = vmatprep.subr.bf16.mxu0 %v2929
  %3895 = vmatpush1.bf16.msra.mxu0 %v2928
  %3896 = vmatprep.subr.bf16.mxu0 %v2933
  %3897 = vmatpush1.bf16.msra.mxu0 %v2932
  %3898 = vmatprep.subr.bf16.mxu0 %v2937
  %3899 = vmatpush1.bf16.msra.mxu0 %v2936
  %3900 = vmatprep.subr.bf16.mxu0 %v2941
  %3901 = vmatpush1.bf16.msra.mxu0 %v2940
  %3902 = vmatprep.subr.bf16.mxu0 %v2945
  %3903 = vmatpush1.bf16.msra.mxu0 %v2944
  %3904 = vmatprep.subr.bf16.mxu0 %v2949
  %3905 = vmatpush1.bf16.msra.mxu0 %v2948
  %3906 = vmatprep.subr.bf16.mxu0 %v2953
  %3907 = vmatpush1.bf16.msra.mxu0 %v2952
  %3908 = vmatprep.subr.bf16.mxu0 %v2957
  %3909 = vmatpush1.bf16.msra.mxu0 %v2956
  %3910 = vmatprep.subr.bf16.mxu0 %v2961
  %3911 = vmatpush1.bf16.msra.mxu0 %v2960
  %3912 = vmatprep.subr.bf16.mxu0 %v2965
  %3913 = vmatpush1.bf16.msra.mxu0 %v2964
  %3914 = vmatprep.subr.bf16.mxu0 %v2969
  %3915 = vmatpush1.bf16.msra.mxu0 %v2968
  %3916 = vmatprep.subr.bf16.mxu0 %v2973
  %3917 = vmatpush1.bf16.msra.mxu0 %v2972
  %3918 = vmatprep.subr.bf16.mxu0 %v2977
  %3919 = vmatpush1.bf16.msra.mxu0 %v2976
  %3920 = vmatprep.subr.bf16.mxu0 %v2981
  %3921 = vmatpush1.bf16.msra.mxu0 %v2980
  %3922 = vmatprep.subr.bf16.mxu0 %v2985
  %3923 = vmatpush1.bf16.msra.mxu0 %v2984
  %3924 = vmatprep.mubr.bf16.mxu0 %v665
  %3925 = vmatmul.mubr.bf16.gmra.mrb[0].mxu0 %v664
  %v3926 = vpop.f32.mrb[0].mxu0
  %v3927 = vadd.f32 %v3886, %v3926
  %v3928 = vpop.f32.mrb[0].mxu0
  %v3929 = vadd.f32 %v3888, %v3928
  %v3930 = vpop.f32.mrb[0].mxu0
  %v3931 = vpop.f32.mrb[0].mxu0
  %3932 = vdwg.mxu0
  %3933 = vmatprep.subr.bf16.mxu0 %v2415
  %3934 = vmatpush1.bf16.msra.mxu0 %v2414
  %3935 = vmatprep.subr.bf16.mxu0 %v2419
  %3936 = vmatpush1.bf16.msra.mxu0 %v2418
  %3937 = vmatprep.subr.bf16.mxu0 %v2423
  %3938 = vmatpush1.bf16.msra.mxu0 %v2422
  %3939 = vmatprep.subr.bf16.mxu0 %v2427
  %3940 = vmatpush1.bf16.msra.mxu0 %v2426
  %3941 = vmatprep.subr.bf16.mxu0 %v2431
  %3942 = vmatpush1.bf16.msra.mxu0 %v2430
  %3943 = vmatprep.subr.bf16.mxu0 %v2435
  %3944 = vmatpush1.bf16.msra.mxu0 %v2434
  %3945 = vmatprep.subr.bf16.mxu0 %v2439
  %3946 = vmatpush1.bf16.msra.mxu0 %v2438
  %3947 = vmatprep.subr.bf16.mxu0 %v2443
  %3948 = vmatpush1.bf16.msra.mxu0 %v2442
  %3949 = vmatprep.subr.bf16.mxu0 %v2447
  %3950 = vmatpush1.bf16.msra.mxu0 %v2446
  %3951 = vmatprep.subr.bf16.mxu0 %v2451
  %3952 = vmatpush1.bf16.msra.mxu0 %v2450
  %3953 = vmatprep.subr.bf16.mxu0 %v2455
  %3954 = vmatpush1.bf16.msra.mxu0 %v2454
  %3955 = vmatprep.subr.bf16.mxu0 %v2459
  %3956 = vmatpush1.bf16.msra.mxu0 %v2458
  %3957 = vmatprep.subr.bf16.mxu0 %v2463
  %3958 = vmatpush1.bf16.msra.mxu0 %v2462
  %3959 = vmatprep.subr.bf16.mxu0 %v2467
  %3960 = vmatpush1.bf16.msra.mxu0 %v2466
  %3961 = vmatprep.subr.bf16.mxu0 %v2471
  %3962 = vmatpush1.bf16.msra.mxu0 %v2470
  %3963 = vmatprep.subr.bf16.mxu0 %v2475
  %3964 = vmatpush1.bf16.msra.mxu0 %v2474
  %3965 = vmatprep.mubr.bf16.mxu0 %v649
  %3966 = vmatmul.mubr.bf16.gmra.mrb[0].mxu0 %v648
  %v3967 = vpop.f32.mrb[0].mxu0
  %v3968 = vadd.f32 %v612, %v3967
  %v3969 = vpop.f32.mrb[0].mxu0
  %v3970 = vadd.f32 %v616, %v3969
  %v3971 = vpop.f32.mrb[0].mxu0
  %v3972 = vpop.f32.mrb[0].mxu0
  %3973 = vdwg.mxu0
  %3974 = vmatprep.subr.bf16.mxu0 %v2479
  %3975 = vmatpush1.bf16.msra.mxu0 %v2478
  %3976 = vmatprep.subr.bf16.mxu0 %v2483
  %3977 = vmatpush1.bf16.msra.mxu0 %v2482
  %3978 = vmatprep.subr.bf16.mxu0 %v2487
  %3979 = vmatpush1.bf16.msra.mxu0 %v2486
  %3980 = vmatprep.subr.bf16.mxu0 %v2491
  %3981 = vmatpush1.bf16.msra.mxu0 %v2490
  %3982 = vmatprep.subr.bf16.mxu0 %v2495
  %3983 = vmatpush1.bf16.msra.mxu0 %v2494
  %3984 = vmatprep.subr.bf16.mxu0 %v2499
  %3985 = vmatpush1.bf16.msra.mxu0 %v2498
  %3986 = vmatprep.subr.bf16.mxu0 %v2503
  %3987 = vmatpush1.bf16.msra.mxu0 %v2502
  %3988 = vmatprep.subr.bf16.mxu0 %v2507
  %3989 = vmatpush1.bf16.msra.mxu0 %v2506
  %3990 = vmatprep.subr.bf16.mxu0 %v2511
  %3991 = vmatpush1.bf16.msra.mxu0 %v2510
  %3992 = vmatprep.subr.bf16.mxu0 %v2515
  %3993 = vmatpush1.bf16.msra.mxu0 %v2514
  %3994 = vmatprep.subr.bf16.mxu0 %v2519
  %3995 = vmatpush1.bf16.msra.mxu0 %v2518
  %3996 = vmatprep.subr.bf16.mxu0 %v2523
  %3997 = vmatpush1.bf16.msra.mxu0 %v2522
  %3998 = vmatprep.subr.bf16.mxu0 %v2527
  %3999 = vmatpush1.bf16.msra.mxu0 %v2526
  %4000 = vmatprep.subr.bf16.mxu0 %v2531
  %4001 = vmatpush1.bf16.msra.mxu0 %v2530
  %4002 = vmatprep.subr.bf16.mxu0 %v2535
  %4003 = vmatpush1.bf16.msra.mxu0 %v2534
  %4004 = vmatprep.subr.bf16.mxu0 %v2539
  %4005 = vmatpush1.bf16.msra.mxu0 %v2538
  %4006 = vmatprep.mubr.bf16.mxu0 %v651
  %4007 = vmatmul.mubr.bf16.gmra.mrb[0].mxu0 %v650
  %v4008 = vpop.f32.mrb[0].mxu0
  %v4009 = vadd.f32 %v3968, %v4008
  %v4010 = vpop.f32.mrb[0].mxu0
  %v4011 = vadd.f32 %v3970, %v4010
  %v4012 = vpop.f32.mrb[0].mxu0
  %v4013 = vpop.f32.mrb[0].mxu0
  %4014 = vdwg.mxu0
  %4015 = vmatprep.subr.bf16.mxu0 %v2543
  %4016 = vmatpush1.bf16.msra.mxu0 %v2542
  %4017 = vmatprep.subr.bf16.mxu0 %v2547
  %4018 = vmatpush1.bf16.msra.mxu0 %v2546
  %4019 = vmatprep.subr.bf16.mxu0 %v2551
  %4020 = vmatpush1.bf16.msra.mxu0 %v2550
  %4021 = vmatprep.subr.bf16.mxu0 %v2555
  %4022 = vmatpush1.bf16.msra.mxu0 %v2554
  %4023 = vmatprep.subr.bf16.mxu0 %v2559
  %4024 = vmatpush1.bf16.msra.mxu0 %v2558
  %4025 = vmatprep.subr.bf16.mxu0 %v2563
  %4026 = vmatpush1.bf16.msra.mxu0 %v2562
  %4027 = vmatprep.subr.bf16.mxu0 %v2567
  %4028 = vmatpush1.bf16.msra.mxu0 %v2566
  %4029 = vmatprep.subr.bf16.mxu0 %v2571
  %4030 = vmatpush1.bf16.msra.mxu0 %v2570
  %4031 = vmatprep.subr.bf16.mxu0 %v2575
  %4032 = vmatpush1.bf16.msra.mxu0 %v2574
  %4033 = vmatprep.subr.bf16.mxu0 %v2579
  %4034 = vmatpush1.bf16.msra.mxu0 %v2578
  %4035 = vmatprep.subr.bf16.mxu0 %v2583
  %4036 = vmatpush1.bf16.msra.mxu0 %v2582
  %4037 = vmatprep.subr.bf16.mxu0 %v2587
  %4038 = vmatpush1.bf16.msra.mxu0 %v2586
  %4039 = vmatprep.subr.bf16.mxu0 %v2591
  %4040 = vmatpush1.bf16.msra.mxu0 %v2590
  %4041 = vmatprep.subr.bf16.mxu0 %v2595
  %4042 = vmatpush1.bf16.msra.mxu0 %v2594
  %4043 = vmatprep.subr.bf16.mxu0 %v2599
  %4044 = vmatpush1.bf16.msra.mxu0 %v2598
  %4045 = vmatprep.subr.bf16.mxu0 %v2603
  %4046 = vmatpush1.bf16.msra.mxu0 %v2602
  %4047 = vmatprep.mubr.bf16.mxu0 %v653
  %4048 = vmatmul.mubr.bf16.gmra.mrb[0].mxu0 %v652
  %v4049 = vpop.f32.mrb[0].mxu0
  %v4050 = vadd.f32 %v4009, %v4049
  %v4051 = vpop.f32.mrb[0].mxu0
  %v4052 = vadd.f32 %v4011, %v4051
  %v4053 = vpop.f32.mrb[0].mxu0
  %v4054 = vpop.f32.mrb[0].mxu0
  %4055 = vdwg.mxu0
  %4056 = vmatprep.subr.bf16.mxu0 %v2607
  %4057 = vmatpush1.bf16.msra.mxu0 %v2606
  %4058 = vmatprep.subr.bf16.mxu0 %v2611
  %4059 = vmatpush1.bf16.msra.mxu0 %v2610
  %4060 = vmatprep.subr.bf16.mxu0 %v2615
  %4061 = vmatpush1.bf16.msra.mxu0 %v2614
  %4062 = vmatprep.subr.bf16.mxu0 %v2619
  %4063 = vmatpush1.bf16.msra.mxu0 %v2618
  %4064 = vmatprep.subr.bf16.mxu0 %v2623
  %4065 = vmatpush1.bf16.msra.mxu0 %v2622
  %4066 = vmatprep.subr.bf16.mxu0 %v2627
  %4067 = vmatpush1.bf16.msra.mxu0 %v2626
  %4068 = vmatprep.subr.bf16.mxu0 %v2631
  %4069 = vmatpush1.bf16.msra.mxu0 %v2630
  %4070 = vmatprep.subr.bf16.mxu0 %v2635
  %4071 = vmatpush1.bf16.msra.mxu0 %v2634
  %4072 = vmatprep.subr.bf16.mxu0 %v2639
  %4073 = vmatpush1.bf16.msra.mxu0 %v2638
  %4074 = vmatprep.subr.bf16.mxu0 %v2643
  %4075 = vmatpush1.bf16.msra.mxu0 %v2642
  %4076 = vmatprep.subr.bf16.mxu0 %v2647
  %4077 = vmatpush1.bf16.msra.mxu0 %v2646
  %4078 = vmatprep.subr.bf16.mxu0 %v2651
  %4079 = vmatpush1.bf16.msra.mxu0 %v2650
  %4080 = vmatprep.subr.bf16.mxu0 %v2655
  %4081 = vmatpush1.bf16.msra.mxu0 %v2654
  %4082 = vmatprep.subr.bf16.mxu0 %v2659
  %4083 = vmatpush1.bf16.msra.mxu0 %v2658
  %4084 = vmatprep.subr.bf16.mxu0 %v2663
  %4085 = vmatpush1.bf16.msra.mxu0 %v2662
  %4086 = vmatprep.subr.bf16.mxu0 %v2667
  %4087 = vmatpush1.bf16.msra.mxu0 %v2666
  %4088 = vmatprep.mubr.bf16.mxu0 %v655
  %4089 = vmatmul.mubr.bf16.gmra.mrb[0].mxu0 %v654
  %v4090 = vpop.f32.mrb[0].mxu0
  %v4091 = vadd.f32 %v4050, %v4090
  %v4092 = vpop.f32.mrb[0].mxu0
  %v4093 = vadd.f32 %v4052, %v4092
  %v4094 = vpop.f32.mrb[0].mxu0
  %v4095 = vpop.f32.mrb[0].mxu0
  %4096 = vdwg.mxu0
  %4097 = vmatprep.subr.bf16.mxu0 %v2671
  %4098 = vmatpush1.bf16.msra.mxu0 %v2670
  %4099 = vmatprep.subr.bf16.mxu0 %v2675
  %4100 = vmatpush1.bf16.msra.mxu0 %v2674
  %4101 = vmatprep.subr.bf16.mxu0 %v2679
  %4102 = vmatpush1.bf16.msra.mxu0 %v2678
  %4103 = vmatprep.subr.bf16.mxu0 %v2683
  %4104 = vmatpush1.bf16.msra.mxu0 %v2682
  %4105 = vmatprep.subr.bf16.mxu0 %v2687
  %4106 = vmatpush1.bf16.msra.mxu0 %v2686
  %4107 = vmatprep.subr.bf16.mxu0 %v2691
  %4108 = vmatpush1.bf16.msra.mxu0 %v2690
  %4109 = vmatprep.subr.bf16.mxu0 %v2695
  %4110 = vmatpush1.bf16.msra.mxu0 %v2694
  %4111 = vmatprep.subr.bf16.mxu0 %v2699
  %4112 = vmatpush1.bf16.msra.mxu0 %v2698
  %4113 = vmatprep.subr.bf16.mxu0 %v2703
  %4114 = vmatpush1.bf16.msra.mxu0 %v2702
  %4115 = vmatprep.subr.bf16.mxu0 %v2707
  %4116 = vmatpush1.bf16.msra.mxu0 %v2706
  %4117 = vmatprep.subr.bf16.mxu0 %v2711
  %4118 = vmatpush1.bf16.msra.mxu0 %v2710
  %4119 = vmatprep.subr.bf16.mxu0 %v2715
  %4120 = vmatpush1.bf16.msra.mxu0 %v2714
  %4121 = vmatprep.subr.bf16.mxu0 %v2719
  %4122 = vmatpush1.bf16.msra.mxu0 %v2718
  %4123 = vmatprep.subr.bf16.mxu0 %v2723
  %4124 = vmatpush1.bf16.msra.mxu0 %v2722
  %4125 = vmatprep.subr.bf16.mxu0 %v2727
  %4126 = vmatpush1.bf16.msra.mxu0 %v2726
  %4127 = vmatprep.subr.bf16.mxu0 %v2731
  %4128 = vmatpush1.bf16.msra.mxu0 %v2730
  %4129 = vmatprep.mubr.bf16.mxu0 %v657
  %4130 = vmatmul.mubr.bf16.gmra.mrb[0].mxu0 %v656
  %v4131 = vpop.f32.mrb[0].mxu0
  %v4132 = vadd.f32 %v4091, %v4131
  %v4133 = vpop.f32.mrb[0].mxu0
  %v4134 = vadd.f32 %v4093, %v4133
  %v4135 = vpop.f32.mrb[0].mxu0
  %v4136 = vpop.f32.mrb[0].mxu0
  %4137 = vdwg.mxu0
  %4138 = vmatprep.subr.bf16.mxu0 %v2735
  %4139 = vmatpush1.bf16.msra.mxu0 %v2734
  %4140 = vmatprep.subr.bf16.mxu0 %v2739
  %4141 = vmatpush1.bf16.msra.mxu0 %v2738
  %4142 = vmatprep.subr.bf16.mxu0 %v2743
  %4143 = vmatpush1.bf16.msra.mxu0 %v2742
  %4144 = vmatprep.subr.bf16.mxu0 %v2747
  %4145 = vmatpush1.bf16.msra.mxu0 %v2746
  %4146 = vmatprep.subr.bf16.mxu0 %v2751
  %4147 = vmatpush1.bf16.msra.mxu0 %v2750
  %4148 = vmatprep.subr.bf16.mxu0 %v2755
  %4149 = vmatpush1.bf16.msra.mxu0 %v2754
  %4150 = vmatprep.subr.bf16.mxu0 %v2759
  %4151 = vmatpush1.bf16.msra.mxu0 %v2758
  %4152 = vmatprep.subr.bf16.mxu0 %v2763
  %4153 = vmatpush1.bf16.msra.mxu0 %v2762
  %4154 = vmatprep.subr.bf16.mxu0 %v2767
  %4155 = vmatpush1.bf16.msra.mxu0 %v2766
  %4156 = vmatprep.subr.bf16.mxu0 %v2771
  %4157 = vmatpush1.bf16.msra.mxu0 %v2770
  %4158 = vmatprep.subr.bf16.mxu0 %v2775
  %4159 = vmatpush1.bf16.msra.mxu0 %v2774
  %4160 = vmatprep.subr.bf16.mxu0 %v2779
  %4161 = vmatpush1.bf16.msra.mxu0 %v2778
  %4162 = vmatprep.subr.bf16.mxu0 %v2783
  %4163 = vmatpush1.bf16.msra.mxu0 %v2782
  %4164 = vmatprep.subr.bf16.mxu0 %v2787
  %4165 = vmatpush1.bf16.msra.mxu0 %v2786
  %4166 = vmatprep.subr.bf16.mxu0 %v2791
  %4167 = vmatpush1.bf16.msra.mxu0 %v2790
  %4168 = vmatprep.subr.bf16.mxu0 %v2795
  %4169 = vmatpush1.bf16.msra.mxu0 %v2794
  %4170 = vmatprep.mubr.bf16.mxu0 %v659
  %4171 = vmatmul.mubr.bf16.gmra.mrb[0].mxu0 %v658
  %v4172 = vpop.f32.mrb[0].mxu0
  %v4173 = vadd.f32 %v4132, %v4172
  %v4174 = vpop.f32.mrb[0].mxu0
  %v4175 = vadd.f32 %v4134, %v4174
  %v4176 = vpop.f32.mrb[0].mxu0
  %v4177 = vpop.f32.mrb[0].mxu0
  %4178 = vdwg.mxu0
  %4179 = vmatprep.subr.bf16.mxu0 %v2799
  %4180 = vmatpush1.bf16.msra.mxu0 %v2798
  %4181 = vmatprep.subr.bf16.mxu0 %v2803
  %4182 = vmatpush1.bf16.msra.mxu0 %v2802
  %4183 = vmatprep.subr.bf16.mxu0 %v2807
  %4184 = vmatpush1.bf16.msra.mxu0 %v2806
  %4185 = vmatprep.subr.bf16.mxu0 %v2811
  %4186 = vmatpush1.bf16.msra.mxu0 %v2810
  %4187 = vmatprep.subr.bf16.mxu0 %v2815
  %4188 = vmatpush1.bf16.msra.mxu0 %v2814
  %4189 = vmatprep.subr.bf16.mxu0 %v2819
  %4190 = vmatpush1.bf16.msra.mxu0 %v2818
  %4191 = vmatprep.subr.bf16.mxu0 %v2823
  %4192 = vmatpush1.bf16.msra.mxu0 %v2822
  %4193 = vmatprep.subr.bf16.mxu0 %v2827
  %4194 = vmatpush1.bf16.msra.mxu0 %v2826
  %4195 = vmatprep.subr.bf16.mxu0 %v2831
  %4196 = vmatpush1.bf16.msra.mxu0 %v2830
  %4197 = vmatprep.subr.bf16.mxu0 %v2835
  %4198 = vmatpush1.bf16.msra.mxu0 %v2834
  %4199 = vmatprep.subr.bf16.mxu0 %v2839
  %4200 = vmatpush1.bf16.msra.mxu0 %v2838
  %4201 = vmatprep.subr.bf16.mxu0 %v2843
  %4202 = vmatpush1.bf16.msra.mxu0 %v2842
  %4203 = vmatprep.subr.bf16.mxu0 %v2847
  %4204 = vmatpush1.bf16.msra.mxu0 %v2846
  %4205 = vmatprep.subr.bf16.mxu0 %v2851
  %4206 = vmatpush1.bf16.msra.mxu0 %v2850
  %4207 = vmatprep.subr.bf16.mxu0 %v2855
  %4208 = vmatpush1.bf16.msra.mxu0 %v2854
  %4209 = vmatprep.subr.bf16.mxu0 %v2859
  %4210 = vmatpush1.bf16.msra.mxu0 %v2858
  %4211 = vmatprep.mubr.bf16.mxu0 %v661
  %4212 = vmatmul.mubr.bf16.gmra.mrb[0].mxu0 %v660
  %v4213 = vpop.f32.mrb[0].mxu0
  %v4214 = vadd.f32 %v4173, %v4213
  %v4215 = vpop.f32.mrb[0].mxu0
  %v4216 = vadd.f32 %v4175, %v4215
  %v4217 = vpop.f32.mrb[0].mxu0
  %v4218 = vpop.f32.mrb[0].mxu0
  %4219 = vdwg.mxu0
  %4220 = vmatprep.subr.bf16.mxu0 %v2863
  %4221 = vmatpush1.bf16.msra.mxu0 %v2862
  %4222 = vmatprep.subr.bf16.mxu0 %v2867
  %4223 = vmatpush1.bf16.msra.mxu0 %v2866
  %4224 = vmatprep.subr.bf16.mxu0 %v2871
  %4225 = vmatpush1.bf16.msra.mxu0 %v2870
  %4226 = vmatprep.subr.bf16.mxu0 %v2875
  %4227 = vmatpush1.bf16.msra.mxu0 %v2874
  %4228 = vmatprep.subr.bf16.mxu0 %v2879
  %4229 = vmatpush1.bf16.msra.mxu0 %v2878
  %4230 = vmatprep.subr.bf16.mxu0 %v2883
  %4231 = vmatpush1.bf16.msra.mxu0 %v2882
  %4232 = vmatprep.subr.bf16.mxu0 %v2887
  %4233 = vmatpush1.bf16.msra.mxu0 %v2886
  %4234 = vmatprep.subr.bf16.mxu0 %v2891
  %4235 = vmatpush1.bf16.msra.mxu0 %v2890
  %4236 = vmatprep.subr.bf16.mxu0 %v2895
  %4237 = vmatpush1.bf16.msra.mxu0 %v2894
  %4238 = vmatprep.subr.bf16.mxu0 %v2899
  %4239 = vmatpush1.bf16.msra.mxu0 %v2898
  %4240 = vmatprep.subr.bf16.mxu0 %v2903
  %4241 = vmatpush1.bf16.msra.mxu0 %v2902
  %4242 = vmatprep.subr.bf16.mxu0 %v2907
  %4243 = vmatpush1.bf16.msra.mxu0 %v2906
  %4244 = vmatprep.subr.bf16.mxu0 %v2911
  %4245 = vmatpush1.bf16.msra.mxu0 %v2910
  %4246 = vmatprep.subr.bf16.mxu0 %v2915
  %4247 = vmatpush1.bf16.msra.mxu0 %v2914
  %4248 = vmatprep.subr.bf16.mxu0 %v2919
  %4249 = vmatpush1.bf16.msra.mxu0 %v2918
  %4250 = vmatprep.subr.bf16.mxu0 %v2923
  %4251 = vmatpush1.bf16.msra.mxu0 %v2922
  %4252 = vmatprep.mubr.bf16.mxu0 %v663
  %4253 = vmatmul.mubr.bf16.gmra.mrb[0].mxu0 %v662
  %v4254 = vpop.f32.mrb[0].mxu0
  %v4255 = vadd.f32 %v4214, %v4254
  %v4256 = vpop.f32.mrb[0].mxu0
  %v4257 = vadd.f32 %v4216, %v4256
  %v4258 = vpop.f32.mrb[0].mxu0
  %v4259 = vpop.f32.mrb[0].mxu0
  %4260 = vdwg.mxu0
  %4261 = vmatprep.subr.bf16.mxu0 %v2927
  %4262 = vmatpush1.bf16.msra.mxu0 %v2926
  %4263 = vmatprep.subr.bf16.mxu0 %v2931
  %4264 = vmatpush1.bf16.msra.mxu0 %v2930
  %4265 = vmatprep.subr.bf16.mxu0 %v2935
  %4266 = vmatpush1.bf16.msra.mxu0 %v2934
  %4267 = vmatprep.subr.bf16.mxu0 %v2939
  %4268 = vmatpush1.bf16.msra.mxu0 %v2938
  %4269 = vmatprep.subr.bf16.mxu0 %v2943
  %4270 = vmatpush1.bf16.msra.mxu0 %v2942
  %4271 = vmatprep.subr.bf16.mxu0 %v2947
  %4272 = vmatpush1.bf16.msra.mxu0 %v2946
  %4273 = vmatprep.subr.bf16.mxu0 %v2951
  %4274 = vmatpush1.bf16.msra.mxu0 %v2950
  %4275 = vmatprep.subr.bf16.mxu0 %v2955
  %4276 = vmatpush1.bf16.msra.mxu0 %v2954
  %4277 = vmatprep.subr.bf16.mxu0 %v2959
  %4278 = vmatpush1.bf16.msra.mxu0 %v2958
  %4279 = vmatprep.subr.bf16.mxu0 %v2963
  %4280 = vmatpush1.bf16.msra.mxu0 %v2962
  %4281 = vmatprep.subr.bf16.mxu0 %v2967
  %4282 = vmatpush1.bf16.msra.mxu0 %v2966
  %4283 = vmatprep.subr.bf16.mxu0 %v2971
  %4284 = vmatpush1.bf16.msra.mxu0 %v2970
  %4285 = vmatprep.subr.bf16.mxu0 %v2975
  %4286 = vmatpush1.bf16.msra.mxu0 %v2974
  %4287 = vmatprep.subr.bf16.mxu0 %v2979
  %4288 = vmatpush1.bf16.msra.mxu0 %v2978
  %4289 = vmatprep.subr.bf16.mxu0 %v2983
  %4290 = vmatpush1.bf16.msra.mxu0 %v2982
  %4291 = vmatprep.subr.bf16.mxu0 %v2987
  %4292 = vmatpush1.bf16.msra.mxu0 %v2986
  %4293 = vmatprep.mubr.bf16.mxu0 %v665
  %4294 = vmatmul.mubr.bf16.gmra.mrb[0].mxu0 %v664
  %v4295 = vpop.f32.mrb[0].mxu0
  %v4296 = vadd.f32 %v4255, %v4295
  %v4297 = vpop.f32.mrb[0].mxu0
  %v4298 = vadd.f32 %v4257, %v4297
  %v4299 = vpop.f32.mrb[0].mxu0
  %v4300 = vpop.f32.mrb[0].mxu0
  %4301 = vdwg.mxu0
  %vm4302 = vcmp.ge.f32.partialorder %v3927, 0.0
  %vm4303 = vcmp.ge.f32.partialorder %v3929, 0.0
  %vm4304 = vcmp.ge.f32.partialorder %v4296, 0.0
  %vm4305 = vcmp.ge.f32.partialorder %v4298, 0.0
  %v4306 = vmul.f32 %v3927, 0.1
  %v4307 = vmul.f32 %v3929, 0.1
  %v4308 = vmul.f32 %v4296, 0.1
  %v4309 = vmul.f32 %v4298, 0.1
  %v4310 = vsel %vm4302, %v3927, %v4306
  %v4311 = vsel %vm4303, %v3929, %v4307
  %v4312 = vsel %vm4304, %v4296, %v4308
  %v4313 = vsel %vm4305, %v4298, %v4309
  %4314 = vst [vmem:[%s3] sm:$0xff] %v4310
  %4315 = vst [vmem:[%s3 + $0x8] sm:$0xff] %v4311
  %4316 = vst [vmem:[%s3 + $0x10] sm:$0xff] %v4312
  %4317 = vst [vmem:[%s3 + $0x18] sm:$0xff] %v4313
  // Predicated region
  $region14: #{pi_model_forward.19} parent=0 // pred_check
    _
  $region15: #{pi_model_forward.19} parent=0 // pred_check_branch
    %4319 = sbr.rel (0) target = $region17
  $region16: #{pi_model_forward.19} parent=0 // pred_region
    _
  $region17: #{pi_model_forward.19} parent=0 // pred_fallthru
    _
  // Predicated region
  $region18: #{pi_model_forward.19} parent=0 // pred_check
    _
  $region19: #{pi_model_forward.19} parent=0 // pred_check_branch
    %4321 = sbr.rel (0) target = $region21
  $region20: #{pi_model_forward.19} parent=0 // pred_region
    _
  $region21: #{pi_model_forward.19} parent=0 // pred_fallthru
    _

</llo_original>
